<compile_context>
chip_gen: v7x
topology: tpu7x:2x2x1
jax: 0.10.0
libtpu: 0.0.40
codegen_flags: <defaults>
</compile_context>

<pallas_src>
import jax
import jax.numpy as jnp
from jax.experimental import pallas as pl
from jax.experimental.pallas import tpu as pltpu


def _round_up(x, m):
    return (x + m - 1) // m * m


# --------------------------------------------------------------------------
# Kernel 1: fused conv (im2col matmul) + bias + ReLU + 2x2 max-pool
#   x_ref : (4, TM, K)  bf16   im2col patches for the 4 shifts of the pool window
#   w_ref : (K, Cout)   bf16   conv weights reshaped to (KH*KW*Cin, Cout)
#   b_ref : (1, Cout)   f32
#   o_ref : (TM, Cout)  bf16   pooled output rows (n, ph, pw) for this tile
# --------------------------------------------------------------------------
def conv_relu_pool_kernel(x_ref, w_ref, b_ref, o_ref):
    tm = o_ref.shape[0]
    # Sublane-concat the 4 tile-aligned slabs -> one (4*TM, K) lhs: a single MXU
    # matmul instead of 4 (one weight push, one fill/drain, one bias broadcast).
    lhs = jnp.concatenate([x_ref[0], x_ref[1], x_ref[2], x_ref[3]], axis=0)
    r = jnp.dot(lhs, w_ref[...], preferred_element_type=jnp.float32)
    r = jnp.maximum(r + b_ref[...], 0.0)                       # bias + ReLU (f32)
    # 2x2 max-pool == elementwise max over the 4 shift groups.
    m = jnp.maximum(jnp.maximum(r[0:tm], r[tm:2 * tm]),
                    jnp.maximum(r[2 * tm:3 * tm], r[3 * tm:4 * tm]))
    o_ref[...] = m.astype(o_ref.dtype)


def _im2col_pooled(x, KH, KW):
    """x: (N,H,W,Cin) -> patches (4, N*PH*PW, KH*KW*Cin) in pooled-output row order.

    Pure indexing glue (no arithmetic), runs in the activation dtype (bf16).
    Patch column order is (kh, kw, cin), matching w.reshape(K, Cout).
    Pool windows past the conv-output edge are dropped (floor), matching F.max_pool2d.
    """
    N, H, W, Cin = x.shape
    OH, OW = H - KH + 1, W - KW + 1
    PH, PW = OH // 2, OW // 2
    groups = []
    for dh in range(2):
        for dw in range(2):
            per_k = []
            for kh in range(KH):
                for kw in range(KW):
                    sl = x[:, kh + dh::2, kw + dw::2, :][:, :PH, :PW, :]
                    per_k.append(sl)
            patch = jnp.stack(per_k, axis=3)  # (N, PH, PW, KH*KW, Cin)
            groups.append(patch.reshape(N * PH * PW, KH * KW * Cin))
    return jnp.stack(groups, axis=0), (N, PH, PW)


def conv_relu_pool(x, w, b):
    """x: (N,H,W,Cin) NHWC bf16; w: (KH,KW,Cin,Cout) f32; b: (Cout,) f32
    -> (N,PH,PW,Cout) bf16."""
    KH, KW, Cin, Cout = w.shape
    patches, (N, PH, PW) = _im2col_pooled(x, KH, KW)        # bf16
    M, K = patches.shape[1], patches.shape[2]

    # Row tile: multiple of 16 (bf16 sublane packing), grows with batch, capped at 256
    # so double-buffered blocks stay well inside v7x's 64 MiB VMEM even for K=1600.
    TM = min(256, _round_up(M, 16))
    Mp = _round_up(M, TM)
    if Mp != M:
        patches = jnp.pad(patches, ((0, 0), (0, Mp - M), (0, 0)))

    w2d = w.reshape(K, Cout).astype(jnp.bfloat16)
    b2d = b.reshape(1, Cout).astype(jnp.float32)

    out = pl.pallas_call(
        conv_relu_pool_kernel,
        out_shape=jax.ShapeDtypeStruct((Mp, Cout), jnp.bfloat16),
        grid=(Mp // TM,),
        in_specs=[
            pl.BlockSpec((4, TM, K), lambda i: (0, i, 0)),
            pl.BlockSpec((K, Cout), lambda i: (0, 0)),   # resident across grid steps
            pl.BlockSpec((1, Cout), lambda i: (0, 0)),   # resident across grid steps
        ],
        out_specs=pl.BlockSpec((TM, Cout), lambda i: (i, 0)),
        compiler_params=pltpu.CompilerParams(
            dimension_semantics=("parallel",)),
    )(patches, w2d, b2d)

    return out[:M].reshape(N, PH, PW, Cout)


# --------------------------------------------------------------------------
# Kernel 2: fused fc1 + ReLU + fc2 + softmax(dim=1), tiled over batch rows.
# --------------------------------------------------------------------------
def mlp_softmax_kernel(x_ref, w1_ref, b1_ref, w2_ref, b2_ref, o_ref):
    h = jnp.dot(x_ref[...], w1_ref[...], preferred_element_type=jnp.float32)
    h = jnp.maximum(h + b1_ref[...], 0.0)                       # bias + ReLU (f32)
    logits = jnp.dot(h.astype(jnp.bfloat16), w2_ref[...],
                     preferred_element_type=jnp.float32) + b2_ref[...]
    z = logits - jnp.max(logits, axis=-1, keepdims=True)        # softmax in f32
    e = jnp.exp(z)
    o_ref[...] = (e / jnp.sum(e, axis=-1, keepdims=True)).astype(o_ref.dtype)


def mlp_softmax(x, w1, b1, w2, b2):
    N, D = x.shape
    H = w1.shape[1]
    C = w2.shape[1]
    TN = min(256, _round_up(N, 16))
    Np = _round_up(N, TN)
    xp = jnp.pad(x, ((0, Np - N), (0, 0))) if Np != N else x
    out = pl.pallas_call(
        mlp_softmax_kernel,
        out_shape=jax.ShapeDtypeStruct((Np, C), jnp.float32),
        grid=(Np // TN,),
        in_specs=[
            pl.BlockSpec((TN, D), lambda i: (i, 0)),
            pl.BlockSpec((D, H), lambda i: (0, 0)),      # fc1 weight stays resident
            pl.BlockSpec((1, H), lambda i: (0, 0)),
            pl.BlockSpec((H, C), lambda i: (0, 0)),      # fc2 weight stays resident
            pl.BlockSpec((1, C), lambda i: (0, 0)),
        ],
        out_specs=pl.BlockSpec((TN, C), lambda i: (i, 0)),
        compiler_params=pltpu.CompilerParams(
            dimension_semantics=("parallel",)),
    )(xp.astype(jnp.bfloat16),
      w1.astype(jnp.bfloat16), b1.reshape(1, H).astype(jnp.float32),
      w2.astype(jnp.bfloat16), b2.reshape(1, C).astype(jnp.float32))
    return out[:N]


# --------------------------------------------------------------------------
# Full forward pass (matches sentdex Net.forward)
# --------------------------------------------------------------------------
def net_forward(x_nchw, params):
    # x_nchw: (N, 1, 50, 50) float32 (PyTorch layout)
    x = jnp.transpose(x_nchw, (0, 2, 3, 1)).astype(jnp.bfloat16)  # -> NHWC bf16
    x = conv_relu_pool(x, params["w_conv1"], params["b_conv1"])   # (N, 23, 23, 32)
    x = conv_relu_pool(x, params["w_conv2"], params["b_conv2"])   # (N, 9, 9, 64)
    x = conv_relu_pool(x, params["w_conv3"], params["b_conv3"])   # (N, 2, 2, 128)
    # PyTorch x.view(-1, 512) flattens NCHW in (C, H, W) order:
    x = jnp.transpose(x, (0, 3, 1, 2)).reshape(x.shape[0], -1)    # (N, 512)
    return mlp_softmax(x, params["w_fc1"], params["b_fc1"],
                       params["w_fc2"], params["b_fc2"])          # (N, 2) f32


# --------------------------------------------------------------------------
# Deterministic synthetic parameters (shapes from the PyTorch __init__)
# --------------------------------------------------------------------------
def init_params(key):
    ks = jax.random.split(key, 10)

    def uinit(k, shape, fan_in):
        bound = 1.0 / (fan_in ** 0.5)
        return jax.random.uniform(k, shape, jnp.float32, -bound, bound)

    params = {
        # conv weights stored as (KH, KW, Cin, Cout) to match the im2col column order
        "w_conv1": uinit(ks[0], (5, 5, 1, 32), 5 * 5 * 1),
        "b_conv1": uinit(ks[1], (32,), 5 * 5 * 1),
        "w_conv2": uinit(ks[2], (5, 5, 32, 64), 5 * 5 * 32),
        "b_conv2": uinit(ks[3], (64,), 5 * 5 * 32),
        "w_conv3": uinit(ks[4], (5, 5, 64, 128), 5 * 5 * 64),
        "b_conv3": uinit(ks[5], (128,), 5 * 5 * 64),
        # fc weights stored already transposed: (in_features, out_features)
        "w_fc1": uinit(ks[6], (512, 512), 512),
        "b_fc1": uinit(ks[7], (512,), 512),
        "w_fc2": uinit(ks[8], (512, 2), 512),
        "b_fc2": uinit(ks[9], (2,), 512),
    }
    return params


if __name__ == "__main__":
    key = jax.random.PRNGKey(0)
    pkey, xkey = jax.random.split(key)
    params = init_params(pkey)

    # The module's fc1 size (512 = 128*2*2) is derived from a 50x50 input,
    # so spatial must be 50; keep batch small.
    x = jax.random.normal(xkey, (2, 1, 50, 50), dtype=jnp.float32)

    out = jax.jit(net_forward)(x, params)
    out = jax.block_until_ready(out)

    assert out.shape == (2, 2), out.shape
    assert bool(jnp.all(jnp.isfinite(out)))
    # softmax rows sum to 1
    assert bool(jnp.allclose(jnp.sum(out, axis=1), 1.0, atol=1e-5))
    print("KERNEL_OK")
</pallas_src>

<mosaic_0001>
module attributes {stable_mosaic.version = 11 : i64} {
  func.func @conv_relu_pool_kernel(%arg0: i32, %arg1: memref<4x256x25xbf16, #tpu.memory_space<vmem>>, %arg2: memref<25x32xbf16, #tpu.memory_space<vmem>>, %arg3: memref<1x32xf32, #tpu.memory_space<vmem>>, %arg4: memref<256x32xbf16, #tpu.memory_space<vmem>>) attributes {dimension_semantics = [#tpu.dimension_semantics<parallel>], iteration_bounds = array<i64: 5>, scalar_prefetch = 0 : i64, scratch_operands = 0 : i64, tpu.core_type = #tpu.core_type<tc>, window_params = [{transform_indices = @transform_0, window_bounds = array<i64: 4, 256, 25>}, {pipeline_mode = #tpu.pipeline_mode<synchronous>, transform_indices = @transform_1, window_bounds = array<i64: 25, 32>}, {pipeline_mode = #tpu.pipeline_mode<synchronous>, transform_indices = @transform_2, window_bounds = array<i64: 1, 32>}, {transform_indices = @transform_3, window_bounds = array<i64: 256, 32>}]} {
    %c0 = arith.constant 0 : index
    %c0_0 = arith.constant 0 : index
    %c0_1 = arith.constant 0 : index
    %0 = vector.load %arg1[%c0, %c0_0, %c0_1] : memref<4x256x25xbf16, #tpu.memory_space<vmem>>, vector<1x256x25xbf16>
    %1 = vector.shape_cast %0 : vector<1x256x25xbf16> to vector<256x25xbf16>
    %c1 = arith.constant 1 : index
    %c0_2 = arith.constant 0 : index
    %c0_3 = arith.constant 0 : index
    %2 = vector.load %arg1[%c1, %c0_2, %c0_3] : memref<4x256x25xbf16, #tpu.memory_space<vmem>>, vector<1x256x25xbf16>
    %3 = vector.shape_cast %2 : vector<1x256x25xbf16> to vector<256x25xbf16>
    %c2 = arith.constant 2 : index
    %c0_4 = arith.constant 0 : index
    %c0_5 = arith.constant 0 : index
    %4 = vector.load %arg1[%c2, %c0_4, %c0_5] : memref<4x256x25xbf16, #tpu.memory_space<vmem>>, vector<1x256x25xbf16>
    %5 = vector.shape_cast %4 : vector<1x256x25xbf16> to vector<256x25xbf16>
    %c3 = arith.constant 3 : index
    %c0_6 = arith.constant 0 : index
    %c0_7 = arith.constant 0 : index
    %6 = vector.load %arg1[%c3, %c0_6, %c0_7] : memref<4x256x25xbf16, #tpu.memory_space<vmem>>, vector<1x256x25xbf16>
    %7 = vector.shape_cast %6 : vector<1x256x25xbf16> to vector<256x25xbf16>
    %8 = tpu.concatenate %1, %3, %5, %7 in 0 : vector<256x25xbf16>, vector<256x25xbf16>, vector<256x25xbf16>, vector<256x25xbf16> -> vector<1024x25xbf16>
    %c0_8 = arith.constant 0 : index
    %c0_9 = arith.constant 0 : index
    %9 = vector.load %arg2[%c0_8, %c0_9] : memref<25x32xbf16, #tpu.memory_space<vmem>>, vector<25x32xbf16>
    %cst = arith.constant dense<0.000000e+00> : vector<1024x32xf32>
    %10 = tpu.matmul %8, %9, %cst {dimension_numbers = #tpu.dot_dimension_numbers<[1], [0], [0], [1], [0, 0, 1, 1], [], []>} : vector<1024x25xbf16>, vector<25x32xbf16>, vector<1024x32xf32> -> vector<1024x32xf32>
    %c0_10 = arith.constant 0 : index
    %c0_11 = arith.constant 0 : index
    %11 = vector.load %arg3[%c0_10, %c0_11] : memref<1x32xf32, #tpu.memory_space<vmem>>, vector<1x32xf32>
    %12 = vector.broadcast %11 : vector<1x32xf32> to vector<1024x32xf32>
    %13 = arith.addf %10, %12 : vector<1024x32xf32>
    %cst_12 = arith.constant 0.000000e+00 : f32
    %14 = vector.broadcast %cst_12 : f32 to vector<1024x32xf32>
    %15 = arith.maximumf %13, %14 : vector<1024x32xf32>
    %16 = vector.extract_strided_slice %15 {offsets = [0, 0], sizes = [256, 32], strides = [1, 1]} : vector<1024x32xf32> to vector<256x32xf32>
    %17 = vector.extract_strided_slice %15 {offsets = [256, 0], sizes = [256, 32], strides = [1, 1]} : vector<1024x32xf32> to vector<256x32xf32>
    %18 = arith.maximumf %16, %17 : vector<256x32xf32>
    %19 = vector.extract_strided_slice %15 {offsets = [512, 0], sizes = [256, 32], strides = [1, 1]} : vector<1024x32xf32> to vector<256x32xf32>
    %20 = vector.extract_strided_slice %15 {offsets = [768, 0], sizes = [256, 32], strides = [1, 1]} : vector<1024x32xf32> to vector<256x32xf32>
    %21 = arith.maximumf %19, %20 : vector<256x32xf32>
    %22 = arith.maximumf %18, %21 : vector<256x32xf32>
    %23 = arith.truncf %22 : vector<256x32xf32> to vector<256x32xbf16>
    %c0_13 = arith.constant 0 : index
    %c0_14 = arith.constant 0 : index
    %24 = vector.load %arg4[%c0_13, %c0_14] : memref<256x32xbf16, #tpu.memory_space<vmem>>, vector<256x32xbf16>
    tpu.vector_store %arg4[%c0_13, %c0_14], %23 {strides = array<i32>} : memref<256x32xbf16, #tpu.memory_space<vmem>>, vector<256x32xbf16>,
    return
  }
  func.func @transform_0(%arg0: i32) -> (i32, i32, i32) {
    %c0_i32 = arith.constant 0 : i32
    %c0_i32_0 = arith.constant 0 : i32
    %c0_i32_1 = arith.constant 0 : i32
    return %c0_i32, %arg0, %c0_i32_0 : i32, i32, i32
  }
  func.func @transform_1(%arg0: i32) -> (i32, i32) {
    %c0_i32 = arith.constant 0 : i32
    %c0_i32_0 = arith.constant 0 : i32
    %c0_i32_1 = arith.constant 0 : i32
    return %c0_i32, %c0_i32_0 : i32, i32
  }
  func.func @transform_2(%arg0: i32) -> (i32, i32) {
    %c0_i32 = arith.constant 0 : i32
    %c0_i32_0 = arith.constant 0 : i32
    %c0_i32_1 = arith.constant 0 : i32
    return %c0_i32, %c0_i32_0 : i32, i32
  }
  func.func @transform_3(%arg0: i32) -> (i32, i32) {
    %c0_i32 = arith.constant 0 : i32
    %c0_i32_0 = arith.constant 0 : i32
    return %arg0, %c0_i32 : i32, i32
  }
}

module attributes {stable_mosaic.version = 11 : i64} {
  func.func @conv_relu_pool_kernel(%arg0: i32, %arg1: memref<4x176x800xbf16, #tpu.memory_space<vmem>>, %arg2: memref<800x64xbf16, #tpu.memory_space<vmem>>, %arg3: memref<1x64xf32, #tpu.memory_space<vmem>>, %arg4: memref<176x64xbf16, #tpu.memory_space<vmem>>) attributes {dimension_semantics = [#tpu.dimension_semantics<parallel>], iteration_bounds = array<i64: 1>, scalar_prefetch = 0 : i64, scratch_operands = 0 : i64, tpu.core_type = #tpu.core_type<tc>, window_params = [{transform_indices = @transform_0, window_bounds = array<i64: 4, 176, 800>}, {pipeline_mode = #tpu.pipeline_mode<synchronous>, transform_indices = @transform_1, window_bounds = array<i64: 800, 64>}, {pipeline_mode = #tpu.pipeline_mode<synchronous>, transform_indices = @transform_2, window_bounds = array<i64: 1, 64>}, {transform_indices = @transform_3, window_bounds = array<i64: 176, 64>}]} {
    %c0 = arith.constant 0 : index
    %c0_0 = arith.constant 0 : index
    %c0_1 = arith.constant 0 : index
    %0 = vector.load %arg1[%c0, %c0_0, %c0_1] : memref<4x176x800xbf16, #tpu.memory_space<vmem>>, vector<1x176x800xbf16>
    %1 = vector.shape_cast %0 : vector<1x176x800xbf16> to vector<176x800xbf16>
    %c1 = arith.constant 1 : index
    %c0_2 = arith.constant 0 : index
    %c0_3 = arith.constant 0 : index
    %2 = vector.load %arg1[%c1, %c0_2, %c0_3] : memref<4x176x800xbf16, #tpu.memory_space<vmem>>, vector<1x176x800xbf16>
    %3 = vector.shape_cast %2 : vector<1x176x800xbf16> to vector<176x800xbf16>
    %c2 = arith.constant 2 : index
    %c0_4 = arith.constant 0 : index
    %c0_5 = arith.constant 0 : index
    %4 = vector.load %arg1[%c2, %c0_4, %c0_5] : memref<4x176x800xbf16, #tpu.memory_space<vmem>>, vector<1x176x800xbf16>
    %5 = vector.shape_cast %4 : vector<1x176x800xbf16> to vector<176x800xbf16>
    %c3 = arith.constant 3 : index
    %c0_6 = arith.constant 0 : index
    %c0_7 = arith.constant 0 : index
    %6 = vector.load %arg1[%c3, %c0_6, %c0_7] : memref<4x176x800xbf16, #tpu.memory_space<vmem>>, vector<1x176x800xbf16>
    %7 = vector.shape_cast %6 : vector<1x176x800xbf16> to vector<176x800xbf16>
    %8 = tpu.concatenate %1, %3, %5, %7 in 0 : vector<176x800xbf16>, vector<176x800xbf16>, vector<176x800xbf16>, vector<176x800xbf16> -> vector<704x800xbf16>
    %c0_8 = arith.constant 0 : index
    %c0_9 = arith.constant 0 : index
    %9 = vector.load %arg2[%c0_8, %c0_9] : memref<800x64xbf16, #tpu.memory_space<vmem>>, vector<800x64xbf16>
    %cst = arith.constant dense<0.000000e+00> : vector<704x64xf32>
    %10 = tpu.matmul %8, %9, %cst {dimension_numbers = #tpu.dot_dimension_numbers<[1], [0], [0], [1], [0, 0, 1, 1], [], []>} : vector<704x800xbf16>, vector<800x64xbf16>, vector<704x64xf32> -> vector<704x64xf32>
    %c0_10 = arith.constant 0 : index
    %c0_11 = arith.constant 0 : index
    %11 = vector.load %arg3[%c0_10, %c0_11] : memref<1x64xf32, #tpu.memory_space<vmem>>, vector<1x64xf32>
    %12 = vector.broadcast %11 : vector<1x64xf32> to vector<704x64xf32>
    %13 = arith.addf %10, %12 : vector<704x64xf32>
    %cst_12 = arith.constant 0.000000e+00 : f32
    %14 = vector.broadcast %cst_12 : f32 to vector<704x64xf32>
    %15 = arith.maximumf %13, %14 : vector<704x64xf32>
    %16 = vector.extract_strided_slice %15 {offsets = [0, 0], sizes = [176, 64], strides = [1, 1]} : vector<704x64xf32> to vector<176x64xf32>
    %17 = vector.extract_strided_slice %15 {offsets = [176, 0], sizes = [176, 64], strides = [1, 1]} : vector<704x64xf32> to vector<176x64xf32>
    %18 = arith.maximumf %16, %17 : vector<176x64xf32>
    %19 = vector.extract_strided_slice %15 {offsets = [352, 0], sizes = [176, 64], strides = [1, 1]} : vector<704x64xf32> to vector<176x64xf32>
    %20 = vector.extract_strided_slice %15 {offsets = [528, 0], sizes = [176, 64], strides = [1, 1]} : vector<704x64xf32> to vector<176x64xf32>
    %21 = arith.maximumf %19, %20 : vector<176x64xf32>
    %22 = arith.maximumf %18, %21 : vector<176x64xf32>
    %23 = arith.truncf %22 : vector<176x64xf32> to vector<176x64xbf16>
    %c0_13 = arith.constant 0 : index
    %c0_14 = arith.constant 0 : index
    %24 = vector.load %arg4[%c0_13, %c0_14] : memref<176x64xbf16, #tpu.memory_space<vmem>>, vector<176x64xbf16>
    tpu.vector_store %arg4[%c0_13, %c0_14], %23 {strides = array<i32>} : memref<176x64xbf16, #tpu.memory_space<vmem>>, vector<176x64xbf16>,
    return
  }
  func.func @transform_0(%arg0: i32) -> (i32, i32, i32) {
    %c0_i32 = arith.constant 0 : i32
    %c0_i32_0 = arith.constant 0 : i32
    %c0_i32_1 = arith.constant 0 : i32
    return %c0_i32, %arg0, %c0_i32_0 : i32, i32, i32
  }
  func.func @transform_1(%arg0: i32) -> (i32, i32) {
    %c0_i32 = arith.constant 0 : i32
    %c0_i32_0 = arith.constant 0 : i32
    %c0_i32_1 = arith.constant 0 : i32
    return %c0_i32, %c0_i32_0 : i32, i32
  }
  func.func @transform_2(%arg0: i32) -> (i32, i32) {
    %c0_i32 = arith.constant 0 : i32
    %c0_i32_0 = arith.constant 0 : i32
    %c0_i32_1 = arith.constant 0 : i32
    return %c0_i32, %c0_i32_0 : i32, i32
  }
  func.func @transform_3(%arg0: i32) -> (i32, i32) {
    %c0_i32 = arith.constant 0 : i32
    %c0_i32_0 = arith.constant 0 : i32
    return %arg0, %c0_i32 : i32, i32
  }
}

module attributes {stable_mosaic.version = 11 : i64} {
  func.func @conv_relu_pool_kernel(%arg0: i32, %arg1: memref<4x16x1600xbf16, #tpu.memory_space<vmem>>, %arg2: memref<1600x128xbf16, #tpu.memory_space<vmem>>, %arg3: memref<1x128xf32, #tpu.memory_space<vmem>>, %arg4: memref<16x128xbf16, #tpu.memory_space<vmem>>) attributes {dimension_semantics = [#tpu.dimension_semantics<parallel>], iteration_bounds = array<i64: 1>, scalar_prefetch = 0 : i64, scratch_operands = 0 : i64, tpu.core_type = #tpu.core_type<tc>, window_params = [{transform_indices = @transform_0, window_bounds = array<i64: 4, 16, 1600>}, {pipeline_mode = #tpu.pipeline_mode<synchronous>, transform_indices = @transform_1, window_bounds = array<i64: 1600, 128>}, {pipeline_mode = #tpu.pipeline_mode<synchronous>, transform_indices = @transform_2, window_bounds = array<i64: 1, 128>}, {transform_indices = @transform_3, window_bounds = array<i64: 16, 128>}]} {
    %c0 = arith.constant 0 : index
    %c0_0 = arith.constant 0 : index
    %c0_1 = arith.constant 0 : index
    %0 = vector.load %arg1[%c0, %c0_0, %c0_1] : memref<4x16x1600xbf16, #tpu.memory_space<vmem>>, vector<1x16x1600xbf16>
    %1 = vector.shape_cast %0 : vector<1x16x1600xbf16> to vector<16x1600xbf16>
    %c1 = arith.constant 1 : index
    %c0_2 = arith.constant 0 : index
    %c0_3 = arith.constant 0 : index
    %2 = vector.load %arg1[%c1, %c0_2, %c0_3] : memref<4x16x1600xbf16, #tpu.memory_space<vmem>>, vector<1x16x1600xbf16>
    %3 = vector.shape_cast %2 : vector<1x16x1600xbf16> to vector<16x1600xbf16>
    %c2 = arith.constant 2 : index
    %c0_4 = arith.constant 0 : index
    %c0_5 = arith.constant 0 : index
    %4 = vector.load %arg1[%c2, %c0_4, %c0_5] : memref<4x16x1600xbf16, #tpu.memory_space<vmem>>, vector<1x16x1600xbf16>
    %5 = vector.shape_cast %4 : vector<1x16x1600xbf16> to vector<16x1600xbf16>
    %c3 = arith.constant 3 : index
    %c0_6 = arith.constant 0 : index
    %c0_7 = arith.constant 0 : index
    %6 = vector.load %arg1[%c3, %c0_6, %c0_7] : memref<4x16x1600xbf16, #tpu.memory_space<vmem>>, vector<1x16x1600xbf16>
    %7 = vector.shape_cast %6 : vector<1x16x1600xbf16> to vector<16x1600xbf16>
    %8 = tpu.concatenate %1, %3, %5, %7 in 0 : vector<16x1600xbf16>, vector<16x1600xbf16>, vector<16x1600xbf16>, vector<16x1600xbf16> -> vector<64x1600xbf16>
    %c0_8 = arith.constant 0 : index
    %c0_9 = arith.constant 0 : index
    %9 = vector.load %arg2[%c0_8, %c0_9] : memref<1600x128xbf16, #tpu.memory_space<vmem>>, vector<1600x128xbf16>
    %cst = arith.constant dense<0.000000e+00> : vector<64x128xf32>
    %10 = tpu.matmul %8, %9, %cst {dimension_numbers = #tpu.dot_dimension_numbers<[1], [0], [0], [1], [0, 0, 1, 1], [], []>} : vector<64x1600xbf16>, vector<1600x128xbf16>, vector<64x128xf32> -> vector<64x128xf32>
    %c0_10 = arith.constant 0 : index
    %c0_11 = arith.constant 0 : index
    %11 = vector.load %arg3[%c0_10, %c0_11] : memref<1x128xf32, #tpu.memory_space<vmem>>, vector<1x128xf32>
    %12 = vector.broadcast %11 : vector<1x128xf32> to vector<64x128xf32>
    %13 = arith.addf %10, %12 : vector<64x128xf32>
    %cst_12 = arith.constant 0.000000e+00 : f32
    %14 = vector.broadcast %cst_12 : f32 to vector<64x128xf32>
    %15 = arith.maximumf %13, %14 : vector<64x128xf32>
    %16 = vector.extract_strided_slice %15 {offsets = [0, 0], sizes = [16, 128], strides = [1, 1]} : vector<64x128xf32> to vector<16x128xf32>
    %17 = vector.extract_strided_slice %15 {offsets = [16, 0], sizes = [16, 128], strides = [1, 1]} : vector<64x128xf32> to vector<16x128xf32>
    %18 = arith.maximumf %16, %17 : vector<16x128xf32>
    %19 = vector.extract_strided_slice %15 {offsets = [32, 0], sizes = [16, 128], strides = [1, 1]} : vector<64x128xf32> to vector<16x128xf32>
    %20 = vector.extract_strided_slice %15 {offsets = [48, 0], sizes = [16, 128], strides = [1, 1]} : vector<64x128xf32> to vector<16x128xf32>
    %21 = arith.maximumf %19, %20 : vector<16x128xf32>
    %22 = arith.maximumf %18, %21 : vector<16x128xf32>
    %23 = arith.truncf %22 : vector<16x128xf32> to vector<16x128xbf16>
    %c0_13 = arith.constant 0 : index
    %c0_14 = arith.constant 0 : index
    %24 = vector.load %arg4[%c0_13, %c0_14] : memref<16x128xbf16, #tpu.memory_space<vmem>>, vector<16x128xbf16>
    tpu.vector_store %arg4[%c0_13, %c0_14], %23 {strides = array<i32>} : memref<16x128xbf16, #tpu.memory_space<vmem>>, vector<16x128xbf16>,
    return
  }
  func.func @transform_0(%arg0: i32) -> (i32, i32, i32) {
    %c0_i32 = arith.constant 0 : i32
    %c0_i32_0 = arith.constant 0 : i32
    %c0_i32_1 = arith.constant 0 : i32
    return %c0_i32, %arg0, %c0_i32_0 : i32, i32, i32
  }
  func.func @transform_1(%arg0: i32) -> (i32, i32) {
    %c0_i32 = arith.constant 0 : i32
    %c0_i32_0 = arith.constant 0 : i32
    %c0_i32_1 = arith.constant 0 : i32
    return %c0_i32, %c0_i32_0 : i32, i32
  }
  func.func @transform_2(%arg0: i32) -> (i32, i32) {
    %c0_i32 = arith.constant 0 : i32
    %c0_i32_0 = arith.constant 0 : i32
    %c0_i32_1 = arith.constant 0 : i32
    return %c0_i32, %c0_i32_0 : i32, i32
  }
  func.func @transform_3(%arg0: i32) -> (i32, i32) {
    %c0_i32 = arith.constant 0 : i32
    %c0_i32_0 = arith.constant 0 : i32
    return %arg0, %c0_i32 : i32, i32
  }
}

module attributes {stable_mosaic.version = 11 : i64} {
  func.func @mlp_softmax_kernel(%arg0: i32, %arg1: memref<16x512xbf16, #tpu.memory_space<vmem>>, %arg2: memref<512x512xbf16, #tpu.memory_space<vmem>>, %arg3: memref<1x512xf32, #tpu.memory_space<vmem>>, %arg4: memref<512x2xbf16, #tpu.memory_space<vmem>>, %arg5: memref<1x2xf32, #tpu.memory_space<vmem>>, %arg6: memref<16x2xf32, #tpu.memory_space<vmem>>) attributes {dimension_semantics = [#tpu.dimension_semantics<parallel>], iteration_bounds = array<i64: 1>, scalar_prefetch = 0 : i64, scratch_operands = 0 : i64, tpu.core_type = #tpu.core_type<tc>, window_params = [{transform_indices = @transform_0, window_bounds = array<i64: 16, 512>}, {pipeline_mode = #tpu.pipeline_mode<synchronous>, transform_indices = @transform_1, window_bounds = array<i64: 512, 512>}, {pipeline_mode = #tpu.pipeline_mode<synchronous>, transform_indices = @transform_2, window_bounds = array<i64: 1, 512>}, {pipeline_mode = #tpu.pipeline_mode<synchronous>, transform_indices = @transform_3, window_bounds = array<i64: 512, 2>}, {pipeline_mode = #tpu.pipeline_mode<synchronous>, transform_indices = @transform_4, window_bounds = array<i64: 1, 2>}, {transform_indices = @transform_5, window_bounds = array<i64: 16, 2>}]} {
    %c0 = arith.constant 0 : index
    %c0_0 = arith.constant 0 : index
    %0 = vector.load %arg1[%c0, %c0_0] : memref<16x512xbf16, #tpu.memory_space<vmem>>, vector<16x512xbf16>
    %c0_1 = arith.constant 0 : index
    %c0_2 = arith.constant 0 : index
    %1 = vector.load %arg2[%c0_1, %c0_2] : memref<512x512xbf16, #tpu.memory_space<vmem>>, vector<512x512xbf16>
    %cst = arith.constant dense<0.000000e+00> : vector<16x512xf32>
    %2 = tpu.matmul %0, %1, %cst {dimension_numbers = #tpu.dot_dimension_numbers<[1], [0], [0], [1], [0, 0, 1, 1], [], []>} : vector<16x512xbf16>, vector<512x512xbf16>, vector<16x512xf32> -> vector<16x512xf32>
    %c0_3 = arith.constant 0 : index
    %c0_4 = arith.constant 0 : index
    %3 = vector.load %arg3[%c0_3, %c0_4] : memref<1x512xf32, #tpu.memory_space<vmem>>, vector<1x512xf32>
    %4 = vector.broadcast %3 : vector<1x512xf32> to vector<16x512xf32>
    %5 = arith.addf %2, %4 : vector<16x512xf32>
    %cst_5 = arith.constant 0.000000e+00 : f32
    %6 = vector.broadcast %cst_5 : f32 to vector<16x512xf32>
    %7 = arith.maximumf %5, %6 : vector<16x512xf32>
    %8 = arith.truncf %7 : vector<16x512xf32> to vector<16x512xbf16>
    %c0_6 = arith.constant 0 : index
    %c0_7 = arith.constant 0 : index
    %9 = vector.load %arg4[%c0_6, %c0_7] : memref<512x2xbf16, #tpu.memory_space<vmem>>, vector<512x2xbf16>
    %cst_8 = arith.constant dense<0.000000e+00> : vector<16x2xf32>
    %10 = tpu.matmul %8, %9, %cst_8 {dimension_numbers = #tpu.dot_dimension_numbers<[1], [0], [0], [1], [0, 0, 1, 1], [], []>} : vector<16x512xbf16>, vector<512x2xbf16>, vector<16x2xf32> -> vector<16x2xf32>
    %c0_9 = arith.constant 0 : index
    %c0_10 = arith.constant 0 : index
    %11 = vector.load %arg5[%c0_9, %c0_10] : memref<1x2xf32, #tpu.memory_space<vmem>>, vector<1x2xf32>
    %12 = vector.broadcast %11 : vector<1x2xf32> to vector<16x2xf32>
    %13 = arith.addf %10, %12 : vector<16x2xf32>
    %cst_11 = arith.constant dense<0xFF800000> : vector<16xf32>
    %14 = vector.multi_reduction <maximumf>, %13, %cst_11 [1] : vector<16x2xf32> to vector<16xf32>
    %15 = vector.shape_cast %14 : vector<16xf32> to vector<16x1xf32>
    %16 = vector.broadcast %15 : vector<16x1xf32> to vector<16x2xf32>
    %17 = arith.subf %13, %16 : vector<16x2xf32>
    %18 = math.exp %17 : vector<16x2xf32>
    %cst_12 = arith.constant dense<0.000000e+00> : vector<16xf32>
    %19 = vector.multi_reduction <add>, %18, %cst_12 [1] : vector<16x2xf32> to vector<16xf32>
    %20 = vector.shape_cast %19 : vector<16xf32> to vector<16x1xf32>
    %21 = vector.broadcast %20 : vector<16x1xf32> to vector<16x2xf32>
    %22 = arith.divf %18, %21 : vector<16x2xf32>
    %c0_13 = arith.constant 0 : index
    %c0_14 = arith.constant 0 : index
    %23 = vector.load %arg6[%c0_13, %c0_14] : memref<16x2xf32, #tpu.memory_space<vmem>>, vector<16x2xf32>
    tpu.vector_store %arg6[%c0_13, %c0_14], %22 {strides = array<i32>} : memref<16x2xf32, #tpu.memory_space<vmem>>, vector<16x2xf32>,
    return
  }
  func.func @transform_0(%arg0: i32) -> (i32, i32) {
    %c0_i32 = arith.constant 0 : i32
    %c0_i32_0 = arith.constant 0 : i32
    return %arg0, %c0_i32 : i32, i32
  }
  func.func @transform_1(%arg0: i32) -> (i32, i32) {
    %c0_i32 = arith.constant 0 : i32
    %c0_i32_0 = arith.constant 0 : i32
    %c0_i32_1 = arith.constant 0 : i32
    return %c0_i32, %c0_i32_0 : i32, i32
  }
  func.func @transform_2(%arg0: i32) -> (i32, i32) {
    %c0_i32 = arith.constant 0 : i32
    %c0_i32_0 = arith.constant 0 : i32
    %c0_i32_1 = arith.constant 0 : i32
    return %c0_i32, %c0_i32_0 : i32, i32
  }
  func.func @transform_3(%arg0: i32) -> (i32, i32) {
    %c0_i32 = arith.constant 0 : i32
    %c0_i32_0 = arith.constant 0 : i32
    %c0_i32_1 = arith.constant 0 : i32
    return %c0_i32, %c0_i32_0 : i32, i32
  }
  func.func @transform_4(%arg0: i32) -> (i32, i32) {
    %c0_i32 = arith.constant 0 : i32
    %c0_i32_0 = arith.constant 0 : i32
    %c0_i32_1 = arith.constant 0 : i32
    return %c0_i32, %c0_i32_0 : i32, i32
  }
  func.func @transform_5(%arg0: i32) -> (i32, i32) {
    %c0_i32 = arith.constant 0 : i32
    %c0_i32_0 = arith.constant 0 : i32
    return %arg0, %c0_i32 : i32, i32
  }
}

</mosaic_0001>

<llo_original>
// kernel: net_forward.4
$region0: #{net_forward.4}
  #allocation0 [shape = 'u32[]', space=smem, size = 0x4, offset = 0x4, fixed_abs, tag = 'smem constant byte address 0x4 - core index']
  #allocation1 [shape = 'u32[144,128]{1,0:T(1,128)}', space=vmem, size = 0x12000, scoped, tag = 'internal scratch']
  %s0 = inlined_call_operand.vmem [shape: bf16[4,1280,25], index: 0, kind: input, shape index: {}]
  %s1 = inlined_call_operand.vmem [shape: bf16[25,32], index: 1, kind: input, shape index: {}]
  %s2 = inlined_call_operand.vmem [shape: f32[1,32], index: 2, kind: input, shape index: {}]
  %s3 = inlined_call_operand.vmem [shape: bf16[1280,32], index: 3, kind: output, shape index: {}]
  %s4 = sld [smem:[#allocation0]]
  $region86: #{net_forward.4} parent=0
    _
  %s6 = ssub.s32 1, %s4
  %s7 = scalar_select 0, %s6, %s4
  $region1: #{net_forward.4} parent=0
    #allocation2 [shape = 'u8[524288]{0}', space=vmem, size = 0x80000, scoped, tag = 'input window, operand 0']
    loop: start=0, step=1, limit=7
    $region2: #{net_forward.4} parent=1 // loop_pre_header
      _
    $region3: #{net_forward.4} parent=1 // loop_header
      %s9 = sphi 0, %s13
      %p10 = scmp.ge.s32.totalorder %s9, 7
      %s19 = sphi 0, %s21
      %s22 = sphi 0, %s19
      %s23 = sphi 0, %s22
      %s39 = sphi 0, %s23
      %s43 = sphi 0, %s43
      %s45 = sphi 0, %s43
      %s46 = sphi 0, %s45
      %s60 = sphi 0, %s46
      %s64 = sphi 0, %s64
      %s66 = sphi 0, %s64
      %s67 = sphi 0, %s66
      %s81 = sphi 0, %s67
      %s87 = sphi 0, %s89
      %s90 = sphi 0, %s87
      %s91 = sphi 0, %s90
      %s107 = sphi 0, %s91
    $region4: #{net_forward.4} parent=1 // loop_header_branch
      %12 = sbr.rel (%p10) target = $region8
    $region5: #{net_forward.4} parent=1 // loop_body
      %s14 = ssub.s32 %s9, 1
      %s15 = ssub.s32 %s9, 2
      %s16 = sadd.s32 %s9, 1
      %s17 = ssub.s32 %s9, %s16
      %p18 = scmp.eq.s32.totalorder %s17, 0
      %s20 = sadd.s32 %s19, 1
      %s21 = scalar_select %p18, %s19, %s20
      %p24 = pneg %p18
      %p25 = scmp.eq.s32.totalorder %s9, 4
      %p26 = por %p24, %p25
      %p27 = scmp.ne.s32.totalorder %s19, %s22
      %p28 = scmp.eq.s32.totalorder %s9, 0
      %p29 = por %p27, %p28
      %p30 = scmp.ne.s32.totalorder %s19, %s22
      %p31 = scmp.eq.s32.totalorder %s14, 4
      %p32 = por %p30, %p31
      %p33 = scmp.ne.s32.totalorder %s22, %s23
      %p34 = scmp.eq.s32.totalorder %s14, 0
      %p35 = por %p33, %p34
      %p36 = scmp.ne.s32.totalorder %s22, %s23
      %p37 = scmp.eq.s32.totalorder %s15, 4
      %p38 = por %p36, %p37
      %p40 = scmp.ne.s32.totalorder %s23, %s39
      %p41 = scmp.eq.s32.totalorder %s15, 0
      %p42 = por %p40, %p41
      %s44 = sadd.s32 %s43, 1
      %p47 = scmp.eq.s32.totalorder %s9, 4
      %p48 = scmp.ne.s32.totalorder %s43, %s45
      %p49 = scmp.eq.s32.totalorder %s9, 0
      %p50 = por %p48, %p49
      %p51 = scmp.ne.s32.totalorder %s43, %s45
      %p52 = scmp.eq.s32.totalorder %s14, 4
      %p53 = por %p51, %p52
      %p54 = scmp.ne.s32.totalorder %s45, %s46
      %p55 = scmp.eq.s32.totalorder %s14, 0
      %p56 = por %p54, %p55
      %p57 = scmp.ne.s32.totalorder %s45, %s46
      %p58 = scmp.eq.s32.totalorder %s15, 4
      %p59 = por %p57, %p58
      %p61 = scmp.ne.s32.totalorder %s46, %s60
      %p62 = scmp.eq.s32.totalorder %s15, 0
      %p63 = por %p61, %p62
      %s65 = sadd.s32 %s64, 1
      %p68 = scmp.eq.s32.totalorder %s9, 4
      %p69 = scmp.ne.s32.totalorder %s64, %s66
      %p70 = scmp.eq.s32.totalorder %s9, 0
      %p71 = por %p69, %p70
      %p72 = scmp.ne.s32.totalorder %s64, %s66
      %p73 = scmp.eq.s32.totalorder %s14, 4
      %p74 = por %p72, %p73
      %p75 = scmp.ne.s32.totalorder %s66, %s67
      %p76 = scmp.eq.s32.totalorder %s14, 0
      %p77 = por %p75, %p76
      %p78 = scmp.ne.s32.totalorder %s66, %s67
      %p79 = scmp.eq.s32.totalorder %s15, 4
      %p80 = por %p78, %p79
      %p82 = scmp.ne.s32.totalorder %s67, %s81
      %p83 = scmp.eq.s32.totalorder %s15, 0
      %p84 = por %p82, %p83
      %s85 = ssub.s32 %s9, %s16
      %p86 = scmp.eq.s32.totalorder %s85, 0
      %s88 = sadd.s32 %s87, 1
      %s89 = scalar_select %p86, %s87, %s88
      %p92 = pneg %p86
      %p93 = scmp.eq.s32.totalorder %s9, 4
      %p94 = por %p92, %p93
      %p95 = scmp.ne.s32.totalorder %s87, %s90
      %p96 = scmp.eq.s32.totalorder %s9, 0
      %p97 = por %p95, %p96
      %p98 = scmp.ne.s32.totalorder %s87, %s90
      %p99 = scmp.eq.s32.totalorder %s14, 4
      %p100 = por %p98, %p99
      %p101 = scmp.ne.s32.totalorder %s90, %s91
      %p102 = scmp.eq.s32.totalorder %s14, 0
      %p103 = por %p101, %p102
      %p104 = scmp.ne.s32.totalorder %s90, %s91
      %p105 = scmp.eq.s32.totalorder %s15, 4
      %p106 = por %p104, %p105
      %p108 = scmp.ne.s32.totalorder %s91, %s107
      %p109 = scmp.eq.s32.totalorder %s15, 0
      %p110 = por %p108, %p109
      %p111 = scmp.le.s32.totalorder 1, %s9
      %p112 = scmp.lt.s32.totalorder %s9, 6
      %p113 = pnand %p111, %p112
      %p114 = pneg %p113
      // Predicated region
      $region9: #{net_forward.4} parent=5 // pred_check
        _
      $region10: #{net_forward.4} parent=5 // pred_check_branch
        %116 = sbr.rel (%p113) target = $region12
      $region11: #{net_forward.4} parent=5 // pred_region
        %s117 = ssub.s32 %s9, 1
        // Predicated region
        $region13: #{net_forward.4} parent=11 // pred_check
          %p118 = pneg %p56
        $region14: #{net_forward.4} parent=11 // pred_check_branch
          %120 = sbr.rel (%p118) target = $region16
        $region15: #{net_forward.4} parent=11 // pred_region
          _
        $region16: #{net_forward.4} parent=11 // pred_fallthru
          _
        // Predicated region
        $region17: #{net_forward.4} parent=11 // pred_check
          %p121 = pneg %p77
        $region18: #{net_forward.4} parent=11 // pred_check_branch
          %123 = sbr.rel (%p121) target = $region20
        $region19: #{net_forward.4} parent=11 // pred_region
          _
        $region20: #{net_forward.4} parent=11 // pred_fallthru
          _
      $region12: #{net_forward.4} parent=5 // pred_fallthru
        _
      %p124 = scmp.lt.s32.totalorder %s9, 5
      // Predicated region
      $region21: #{net_forward.4} parent=5 // pred_check
        %p125 = pneg %p124
      $region22: #{net_forward.4} parent=5 // pred_check_branch
        %127 = sbr.rel (%p125) target = $region24
      $region23: #{net_forward.4} parent=5 // pred_region
        // Predicated region
        $region25: #{net_forward.4} parent=23 // pred_check
          %p128 = pneg %p29
        $region26: #{net_forward.4} parent=23 // pred_check_branch
          %130 = sbr.rel (%p128) target = $region28
        $region27: #{net_forward.4} parent=23 // pred_region
          %s131 = sand.u32 %s19, 1
          %s132 = sand.u32 %s19, 1
          %s133 = smul.addr %s132, 512
          %s134 = scalar_lea.vmem [#allocation2], %s133
          %s135 = smul.u32 32, %s9
          %s136 = smul.addr %s135, 4
          %s137 = scalar_lea.vmem %s0, %s136
          // Predicated region
          $region29: #{net_forward.4} parent=27 // pred_check
            _
          $region30: #{net_forward.4} parent=27 // pred_check_branch
            %139 = sbr.rel (0) target = $region32
          $region31: #{net_forward.4} parent=27 // pred_region
            // Predicated region
            $region33: #{net_forward.4} parent=31 // pred_check
              _
            $region34: #{net_forward.4} parent=31 // pred_check_branch
              %141 = sbr.rel target = $region36
            $region35: #{net_forward.4} parent=31 // pred_region
              // Predicated region
              $region48: #{net_forward.4} parent=35 // pred_check
                _
              $region49: #{net_forward.4} parent=35 // pred_check_branch
                %410 = sbr.rel (0) target = $region51
              $region50: #{net_forward.4} parent=35 // pred_region
                loop: start=0, step=1, limit=1
                $region52: #{net_forward.4} parent=50 // loop_pre_header
                  _
                $region53: #{net_forward.4} parent=50 // loop_header
                  %s412 = sphi 0, %s416
                  %p413 = scmp.ge.s32.totalorder %s412, 1
                  %s417 = sphi %s137, %s137
                  %s418 = sphi %s134, %s134
                $region54: #{net_forward.4} parent=50 // loop_header_branch
                  %415 = sbr.rel (%p413) target = $region58
                $region55: #{net_forward.4} parent=50 // loop_body
                  _
                $region56: #{net_forward.4} parent=50 // loop_footer
                  %s416 = sadd.s32 1, %s412
                $region57: #{net_forward.4} parent=50 // loop_footer_branch
                  %411 = sbr.rel target = $region53
                $region58: #{net_forward.4} parent=50 // loop_exit
                  _
                loop: start=0, step=1, limit=1
                $region59: #{net_forward.4} parent=50 // loop_pre_header
                  _
                $region60: #{net_forward.4} parent=50 // loop_header
                  %s421 = sphi 0, %s425
                  %p422 = scmp.ge.s32.totalorder %s421, 1
                  %s426 = sphi %s137, %s137
                  %s427 = sphi %s134, %s134
                $region61: #{net_forward.4} parent=50 // loop_header_branch
                  %424 = sbr.rel (%p422) target = $region65
                $region62: #{net_forward.4} parent=50 // loop_body
                  %v428 = vld [vmem:[%s426] sm:$0xf]
                  %429 = vst [vmem:[%s427] sm:$0xf] %v428
                  %v430 = vld [vmem:[%s426 + $0x4] sm:$0xf]
                  %431 = vst [vmem:[%s427 + $0x4] sm:$0xf] %v430
                  %v432 = vld [vmem:[%s426 + $0x8] sm:$0xf]
                  %433 = vst [vmem:[%s427 + $0x8] sm:$0xf] %v432
                  %v434 = vld [vmem:[%s426 + $0xc] sm:$0xf]
                  %435 = vst [vmem:[%s427 + $0xc] sm:$0xf] %v434
                  %v436 = vld [vmem:[%s426 + $0x10] sm:$0xf]
                  %437 = vst [vmem:[%s427 + $0x10] sm:$0xf] %v436
                  %v438 = vld [vmem:[%s426 + $0x14] sm:$0xf]
                  %439 = vst [vmem:[%s427 + $0x14] sm:$0xf] %v438
                  %v440 = vld [vmem:[%s426 + $0x18] sm:$0xf]
                  %441 = vst [vmem:[%s427 + $0x18] sm:$0xf] %v440
                  %v442 = vld [vmem:[%s426 + $0x1c] sm:$0xf]
                  %443 = vst [vmem:[%s427 + $0x1c] sm:$0xf] %v442
                  %v444 = vld [vmem:[%s426 + $0x20] sm:$0xf]
                  %445 = vst [vmem:[%s427 + $0x20] sm:$0xf] %v444
                  %v446 = vld [vmem:[%s426 + $0x24] sm:$0xf]
                  %447 = vst [vmem:[%s427 + $0x24] sm:$0xf] %v446
                  %v448 = vld [vmem:[%s426 + $0x28] sm:$0xf]
                  %449 = vst [vmem:[%s427 + $0x28] sm:$0xf] %v448
                  %v450 = vld [vmem:[%s426 + $0x2c] sm:$0xf]
                  %451 = vst [vmem:[%s427 + $0x2c] sm:$0xf] %v450
                  %v452 = vld [vmem:[%s426 + $0x30] sm:$0xf]
                  %453 = vst [vmem:[%s427 + $0x30] sm:$0xf] %v452
                  %v454 = vld [vmem:[%s426 + $0x34] sm:$0xf]
                  %455 = vst [vmem:[%s427 + $0x34] sm:$0xf] %v454
                  %v456 = vld [vmem:[%s426 + $0x38] sm:$0xf]
                  %457 = vst [vmem:[%s427 + $0x38] sm:$0xf] %v456
                  %v458 = vld [vmem:[%s426 + $0x3c] sm:$0xf]
                  %459 = vst [vmem:[%s427 + $0x3c] sm:$0xf] %v458
                  %v460 = vld [vmem:[%s426 + $0x40] sm:$0xf]
                  %461 = vst [vmem:[%s427 + $0x40] sm:$0xf] %v460
                  %v462 = vld [vmem:[%s426 + $0x44] sm:$0xf]
                  %463 = vst [vmem:[%s427 + $0x44] sm:$0xf] %v462
                  %v464 = vld [vmem:[%s426 + $0x48] sm:$0xf]
                  %465 = vst [vmem:[%s427 + $0x48] sm:$0xf] %v464
                  %v466 = vld [vmem:[%s426 + $0x4c] sm:$0xf]
                  %467 = vst [vmem:[%s427 + $0x4c] sm:$0xf] %v466
                  %v468 = vld [vmem:[%s426 + $0x50] sm:$0xf]
                  %469 = vst [vmem:[%s427 + $0x50] sm:$0xf] %v468
                  %v470 = vld [vmem:[%s426 + $0x54] sm:$0xf]
                  %471 = vst [vmem:[%s427 + $0x54] sm:$0xf] %v470
                  %v472 = vld [vmem:[%s426 + $0x58] sm:$0xf]
                  %473 = vst [vmem:[%s427 + $0x58] sm:$0xf] %v472
                  %v474 = vld [vmem:[%s426 + $0x5c] sm:$0xf]
                  %475 = vst [vmem:[%s427 + $0x5c] sm:$0xf] %v474
                  %v476 = vld [vmem:[%s426 + $0x60] sm:$0xf]
                  %477 = vst [vmem:[%s427 + $0x60] sm:$0xf] %v476
                  %v478 = vld [vmem:[%s426 + $0x64] sm:$0xf]
                  %479 = vst [vmem:[%s427 + $0x64] sm:$0xf] %v478
                  %v480 = vld [vmem:[%s426 + $0x68] sm:$0xf]
                  %481 = vst [vmem:[%s427 + $0x68] sm:$0xf] %v480
                  %v482 = vld [vmem:[%s426 + $0x6c] sm:$0xf]
                  %483 = vst [vmem:[%s427 + $0x6c] sm:$0xf] %v482
                  %v484 = vld [vmem:[%s426 + $0x70] sm:$0xf]
                  %485 = vst [vmem:[%s427 + $0x70] sm:$0xf] %v484
                  %v486 = vld [vmem:[%s426 + $0x74] sm:$0xf]
                  %487 = vst [vmem:[%s427 + $0x74] sm:$0xf] %v486
                  %v488 = vld [vmem:[%s426 + $0x78] sm:$0xf]
                  %489 = vst [vmem:[%s427 + $0x78] sm:$0xf] %v488
                  %v490 = vld [vmem:[%s426 + $0x7c] sm:$0xf]
                  %491 = vst [vmem:[%s427 + $0x7c] sm:$0xf] %v490
                  %v492 = vld [vmem:[%s426 + $0x280] sm:$0xf]
                  %493 = vst [vmem:[%s427 + $0x80] sm:$0xf] %v492
                  %v494 = vld [vmem:[%s426 + $0x284] sm:$0xf]
                  %495 = vst [vmem:[%s427 + $0x84] sm:$0xf] %v494
                  %v496 = vld [vmem:[%s426 + $0x288] sm:$0xf]
                  %497 = vst [vmem:[%s427 + $0x88] sm:$0xf] %v496
                  %v498 = vld [vmem:[%s426 + $0x28c] sm:$0xf]
                  %499 = vst [vmem:[%s427 + $0x8c] sm:$0xf] %v498
                  %v500 = vld [vmem:[%s426 + $0x290] sm:$0xf]
                  %501 = vst [vmem:[%s427 + $0x90] sm:$0xf] %v500
                  %v502 = vld [vmem:[%s426 + $0x294] sm:$0xf]
                  %503 = vst [vmem:[%s427 + $0x94] sm:$0xf] %v502
                  %v504 = vld [vmem:[%s426 + $0x298] sm:$0xf]
                  %505 = vst [vmem:[%s427 + $0x98] sm:$0xf] %v504
                  %v506 = vld [vmem:[%s426 + $0x29c] sm:$0xf]
                  %507 = vst [vmem:[%s427 + $0x9c] sm:$0xf] %v506
                  %v508 = vld [vmem:[%s426 + $0x2a0] sm:$0xf]
                  %509 = vst [vmem:[%s427 + $0xa0] sm:$0xf] %v508
                  %v510 = vld [vmem:[%s426 + $0x2a4] sm:$0xf]
                  %511 = vst [vmem:[%s427 + $0xa4] sm:$0xf] %v510
                  %v512 = vld [vmem:[%s426 + $0x2a8] sm:$0xf]
                  %513 = vst [vmem:[%s427 + $0xa8] sm:$0xf] %v512
                  %v514 = vld [vmem:[%s426 + $0x2ac] sm:$0xf]
                  %515 = vst [vmem:[%s427 + $0xac] sm:$0xf] %v514
                  %v516 = vld [vmem:[%s426 + $0x2b0] sm:$0xf]
                  %517 = vst [vmem:[%s427 + $0xb0] sm:$0xf] %v516
                  %v518 = vld [vmem:[%s426 + $0x2b4] sm:$0xf]
                  %519 = vst [vmem:[%s427 + $0xb4] sm:$0xf] %v518
                  %v520 = vld [vmem:[%s426 + $0x2b8] sm:$0xf]
                  %521 = vst [vmem:[%s427 + $0xb8] sm:$0xf] %v520
                  %v522 = vld [vmem:[%s426 + $0x2bc] sm:$0xf]
                  %523 = vst [vmem:[%s427 + $0xbc] sm:$0xf] %v522
                  %v524 = vld [vmem:[%s426 + $0x2c0] sm:$0xf]
                  %525 = vst [vmem:[%s427 + $0xc0] sm:$0xf] %v524
                  %v526 = vld [vmem:[%s426 + $0x2c4] sm:$0xf]
                  %527 = vst [vmem:[%s427 + $0xc4] sm:$0xf] %v526
                  %v528 = vld [vmem:[%s426 + $0x2c8] sm:$0xf]
                  %529 = vst [vmem:[%s427 + $0xc8] sm:$0xf] %v528
                  %v530 = vld [vmem:[%s426 + $0x2cc] sm:$0xf]
                  %531 = vst [vmem:[%s427 + $0xcc] sm:$0xf] %v530
                  %v532 = vld [vmem:[%s426 + $0x2d0] sm:$0xf]
                  %533 = vst [vmem:[%s427 + $0xd0] sm:$0xf] %v532
                  %v534 = vld [vmem:[%s426 + $0x2d4] sm:$0xf]
                  %535 = vst [vmem:[%s427 + $0xd4] sm:$0xf] %v534
                  %v536 = vld [vmem:[%s426 + $0x2d8] sm:$0xf]
                  %537 = vst [vmem:[%s427 + $0xd8] sm:$0xf] %v536
                  %v538 = vld [vmem:[%s426 + $0x2dc] sm:$0xf]
                  %539 = vst [vmem:[%s427 + $0xdc] sm:$0xf] %v538
                  %v540 = vld [vmem:[%s426 + $0x2e0] sm:$0xf]
                  %541 = vst [vmem:[%s427 + $0xe0] sm:$0xf] %v540
                  %v542 = vld [vmem:[%s426 + $0x2e4] sm:$0xf]
                  %543 = vst [vmem:[%s427 + $0xe4] sm:$0xf] %v542
                  %v544 = vld [vmem:[%s426 + $0x2e8] sm:$0xf]
                  %545 = vst [vmem:[%s427 + $0xe8] sm:$0xf] %v544
                  %v546 = vld [vmem:[%s426 + $0x2ec] sm:$0xf]
                  %547 = vst [vmem:[%s427 + $0xec] sm:$0xf] %v546
                  %v548 = vld [vmem:[%s426 + $0x2f0] sm:$0xf]
                  %549 = vst [vmem:[%s427 + $0xf0] sm:$0xf] %v548
                  %v550 = vld [vmem:[%s426 + $0x2f4] sm:$0xf]
                  %551 = vst [vmem:[%s427 + $0xf4] sm:$0xf] %v550
                  %v552 = vld [vmem:[%s426 + $0x2f8] sm:$0xf]
                  %553 = vst [vmem:[%s427 + $0xf8] sm:$0xf] %v552
                  %v554 = vld [vmem:[%s426 + $0x2fc] sm:$0xf]
                  %555 = vst [vmem:[%s427 + $0xfc] sm:$0xf] %v554
                  %v556 = vld [vmem:[%s426 + $0x500] sm:$0xf]
                  %557 = vst [vmem:[%s427 + $0x100] sm:$0xf] %v556
                  %v558 = vld [vmem:[%s426 + $0x504] sm:$0xf]
                  %559 = vst [vmem:[%s427 + $0x104] sm:$0xf] %v558
                  %v560 = vld [vmem:[%s426 + $0x508] sm:$0xf]
                  %561 = vst [vmem:[%s427 + $0x108] sm:$0xf] %v560
                  %v562 = vld [vmem:[%s426 + $0x50c] sm:$0xf]
                  %563 = vst [vmem:[%s427 + $0x10c] sm:$0xf] %v562
                  %v564 = vld [vmem:[%s426 + $0x510] sm:$0xf]
                  %565 = vst [vmem:[%s427 + $0x110] sm:$0xf] %v564
                  %v566 = vld [vmem:[%s426 + $0x514] sm:$0xf]
                  %567 = vst [vmem:[%s427 + $0x114] sm:$0xf] %v566
                  %v568 = vld [vmem:[%s426 + $0x518] sm:$0xf]
                  %569 = vst [vmem:[%s427 + $0x118] sm:$0xf] %v568
                  %v570 = vld [vmem:[%s426 + $0x51c] sm:$0xf]
                  %571 = vst [vmem:[%s427 + $0x11c] sm:$0xf] %v570
                  %v572 = vld [vmem:[%s426 + $0x520] sm:$0xf]
                  %573 = vst [vmem:[%s427 + $0x120] sm:$0xf] %v572
                  %v574 = vld [vmem:[%s426 + $0x524] sm:$0xf]
                  %575 = vst [vmem:[%s427 + $0x124] sm:$0xf] %v574
                  %v576 = vld [vmem:[%s426 + $0x528] sm:$0xf]
                  %577 = vst [vmem:[%s427 + $0x128] sm:$0xf] %v576
                  %v578 = vld [vmem:[%s426 + $0x52c] sm:$0xf]
                  %579 = vst [vmem:[%s427 + $0x12c] sm:$0xf] %v578
                  %v580 = vld [vmem:[%s426 + $0x530] sm:$0xf]
                  %581 = vst [vmem:[%s427 + $0x130] sm:$0xf] %v580
                  %v582 = vld [vmem:[%s426 + $0x534] sm:$0xf]
                  %583 = vst [vmem:[%s427 + $0x134] sm:$0xf] %v582
                  %v584 = vld [vmem:[%s426 + $0x538] sm:$0xf]
                  %585 = vst [vmem:[%s427 + $0x138] sm:$0xf] %v584
                  %v586 = vld [vmem:[%s426 + $0x53c] sm:$0xf]
                  %587 = vst [vmem:[%s427 + $0x13c] sm:$0xf] %v586
                  %v588 = vld [vmem:[%s426 + $0x540] sm:$0xf]
                  %589 = vst [vmem:[%s427 + $0x140] sm:$0xf] %v588
                  %v590 = vld [vmem:[%s426 + $0x544] sm:$0xf]
                  %591 = vst [vmem:[%s427 + $0x144] sm:$0xf] %v590
                  %v592 = vld [vmem:[%s426 + $0x548] sm:$0xf]
                  %593 = vst [vmem:[%s427 + $0x148] sm:$0xf] %v592
                  %v594 = vld [vmem:[%s426 + $0x54c] sm:$0xf]
                  %595 = vst [vmem:[%s427 + $0x14c] sm:$0xf] %v594
                  %v596 = vld [vmem:[%s426 + $0x550] sm:$0xf]
                  %597 = vst [vmem:[%s427 + $0x150] sm:$0xf] %v596
                  %v598 = vld [vmem:[%s426 + $0x554] sm:$0xf]
                  %599 = vst [vmem:[%s427 + $0x154] sm:$0xf] %v598
                  %v600 = vld [vmem:[%s426 + $0x558] sm:$0xf]
                  %601 = vst [vmem:[%s427 + $0x158] sm:$0xf] %v600
                  %v602 = vld [vmem:[%s426 + $0x55c] sm:$0xf]
                  %603 = vst [vmem:[%s427 + $0x15c] sm:$0xf] %v602
                  %v604 = vld [vmem:[%s426 + $0x560] sm:$0xf]
                  %605 = vst [vmem:[%s427 + $0x160] sm:$0xf] %v604
                  %v606 = vld [vmem:[%s426 + $0x564] sm:$0xf]
                  %607 = vst [vmem:[%s427 + $0x164] sm:$0xf] %v606
                  %v608 = vld [vmem:[%s426 + $0x568] sm:$0xf]
                  %609 = vst [vmem:[%s427 + $0x168] sm:$0xf] %v608
                  %v610 = vld [vmem:[%s426 + $0x56c] sm:$0xf]
                  %611 = vst [vmem:[%s427 + $0x16c] sm:$0xf] %v610
                  %v612 = vld [vmem:[%s426 + $0x570] sm:$0xf]
                  %613 = vst [vmem:[%s427 + $0x170] sm:$0xf] %v612
                  %v614 = vld [vmem:[%s426 + $0x574] sm:$0xf]
                  %615 = vst [vmem:[%s427 + $0x174] sm:$0xf] %v614
                  %v616 = vld [vmem:[%s426 + $0x578] sm:$0xf]
                  %617 = vst [vmem:[%s427 + $0x178] sm:$0xf] %v616
                  %v618 = vld [vmem:[%s426 + $0x57c] sm:$0xf]
                  %619 = vst [vmem:[%s427 + $0x17c] sm:$0xf] %v618
                  %v620 = vld [vmem:[%s426 + $0x780] sm:$0xf]
                  %621 = vst [vmem:[%s427 + $0x180] sm:$0xf] %v620
                  %v622 = vld [vmem:[%s426 + $0x784] sm:$0xf]
                  %623 = vst [vmem:[%s427 + $0x184] sm:$0xf] %v622
                  %v624 = vld [vmem:[%s426 + $0x788] sm:$0xf]
                  %625 = vst [vmem:[%s427 + $0x188] sm:$0xf] %v624
                  %v626 = vld [vmem:[%s426 + $0x78c] sm:$0xf]
                  %627 = vst [vmem:[%s427 + $0x18c] sm:$0xf] %v626
                  %v628 = vld [vmem:[%s426 + $0x790] sm:$0xf]
                  %629 = vst [vmem:[%s427 + $0x190] sm:$0xf] %v628
                  %v630 = vld [vmem:[%s426 + $0x794] sm:$0xf]
                  %631 = vst [vmem:[%s427 + $0x194] sm:$0xf] %v630
                  %v632 = vld [vmem:[%s426 + $0x798] sm:$0xf]
                  %633 = vst [vmem:[%s427 + $0x198] sm:$0xf] %v632
                  %v634 = vld [vmem:[%s426 + $0x79c] sm:$0xf]
                  %635 = vst [vmem:[%s427 + $0x19c] sm:$0xf] %v634
                  %v636 = vld [vmem:[%s426 + $0x7a0] sm:$0xf]
                  %637 = vst [vmem:[%s427 + $0x1a0] sm:$0xf] %v636
                  %v638 = vld [vmem:[%s426 + $0x7a4] sm:$0xf]
                  %639 = vst [vmem:[%s427 + $0x1a4] sm:$0xf] %v638
                  %v640 = vld [vmem:[%s426 + $0x7a8] sm:$0xf]
                  %641 = vst [vmem:[%s427 + $0x1a8] sm:$0xf] %v640
                  %v642 = vld [vmem:[%s426 + $0x7ac] sm:$0xf]
                  %643 = vst [vmem:[%s427 + $0x1ac] sm:$0xf] %v642
                  %v644 = vld [vmem:[%s426 + $0x7b0] sm:$0xf]
                  %645 = vst [vmem:[%s427 + $0x1b0] sm:$0xf] %v644
                  %v646 = vld [vmem:[%s426 + $0x7b4] sm:$0xf]
                  %647 = vst [vmem:[%s427 + $0x1b4] sm:$0xf] %v646
                  %v648 = vld [vmem:[%s426 + $0x7b8] sm:$0xf]
                  %649 = vst [vmem:[%s427 + $0x1b8] sm:$0xf] %v648
                  %v650 = vld [vmem:[%s426 + $0x7bc] sm:$0xf]
                  %651 = vst [vmem:[%s427 + $0x1bc] sm:$0xf] %v650
                  %v652 = vld [vmem:[%s426 + $0x7c0] sm:$0xf]
                  %653 = vst [vmem:[%s427 + $0x1c0] sm:$0xf] %v652
                  %v654 = vld [vmem:[%s426 + $0x7c4] sm:$0xf]
                  %655 = vst [vmem:[%s427 + $0x1c4] sm:$0xf] %v654
                  %v656 = vld [vmem:[%s426 + $0x7c8] sm:$0xf]
                  %657 = vst [vmem:[%s427 + $0x1c8] sm:$0xf] %v656
                  %v658 = vld [vmem:[%s426 + $0x7cc] sm:$0xf]
                  %659 = vst [vmem:[%s427 + $0x1cc] sm:$0xf] %v658
                  %v660 = vld [vmem:[%s426 + $0x7d0] sm:$0xf]
                  %661 = vst [vmem:[%s427 + $0x1d0] sm:$0xf] %v660
                  %v662 = vld [vmem:[%s426 + $0x7d4] sm:$0xf]
                  %663 = vst [vmem:[%s427 + $0x1d4] sm:$0xf] %v662
                  %v664 = vld [vmem:[%s426 + $0x7d8] sm:$0xf]
                  %665 = vst [vmem:[%s427 + $0x1d8] sm:$0xf] %v664
                  %v666 = vld [vmem:[%s426 + $0x7dc] sm:$0xf]
                  %667 = vst [vmem:[%s427 + $0x1dc] sm:$0xf] %v666
                  %v668 = vld [vmem:[%s426 + $0x7e0] sm:$0xf]
                  %669 = vst [vmem:[%s427 + $0x1e0] sm:$0xf] %v668
                  %v670 = vld [vmem:[%s426 + $0x7e4] sm:$0xf]
                  %671 = vst [vmem:[%s427 + $0x1e4] sm:$0xf] %v670
                  %v672 = vld [vmem:[%s426 + $0x7e8] sm:$0xf]
                  %673 = vst [vmem:[%s427 + $0x1e8] sm:$0xf] %v672
                  %v674 = vld [vmem:[%s426 + $0x7ec] sm:$0xf]
                  %675 = vst [vmem:[%s427 + $0x1ec] sm:$0xf] %v674
                  %v676 = vld [vmem:[%s426 + $0x7f0] sm:$0xf]
                  %677 = vst [vmem:[%s427 + $0x1f0] sm:$0xf] %v676
                  %v678 = vld [vmem:[%s426 + $0x7f4] sm:$0xf]
                  %679 = vst [vmem:[%s427 + $0x1f4] sm:$0xf] %v678
                  %v680 = vld [vmem:[%s426 + $0x7f8] sm:$0xf]
                  %681 = vst [vmem:[%s427 + $0x1f8] sm:$0xf] %v680
                  %v682 = vld [vmem:[%s426 + $0x7fc] sm:$0xf]
                  %683 = vst [vmem:[%s427 + $0x1fc] sm:$0xf] %v682
                $region63: #{net_forward.4} parent=50 // loop_footer
                  %s425 = sadd.s32 1, %s421
                $region64: #{net_forward.4} parent=50 // loop_footer_branch
                  %420 = sbr.rel target = $region60
                $region65: #{net_forward.4} parent=50 // loop_exit
                  _
              $region51: #{net_forward.4} parent=35 // pred_fallthru
                _
            $region36: #{net_forward.4} parent=31 // pred_fallthru
              _
            // Predicated region
            $region37: #{net_forward.4} parent=31 // pred_check
              _
            $region38: #{net_forward.4} parent=31 // pred_check_branch
              %143 = sbr.rel (0) target = $region40
            $region39: #{net_forward.4} parent=31 // pred_region
              loop: start=0, step=1, limit=1
              $region41: #{net_forward.4} parent=39 // loop_pre_header
                _
              $region42: #{net_forward.4} parent=39 // loop_header
                %s146 = sphi 0, %s150
                %p147 = scmp.ge.s32.totalorder %s146, 1
                %s151 = sphi %s137, %s137
                %s152 = sphi %s134, %s134
              $region43: #{net_forward.4} parent=39 // loop_header_branch
                %149 = sbr.rel (%p147) target = $region47
              $region44: #{net_forward.4} parent=39 // loop_body
                %v153 = vld [vmem:[%s151] sm:$0xf]
                %154 = vst [vmem:[%s152] sm:$0xf] %v153
                %v155 = vld [vmem:[%s151 + $0x4] sm:$0xf]
                %156 = vst [vmem:[%s152 + $0x4] sm:$0xf] %v155
                %v157 = vld [vmem:[%s151 + $0x8] sm:$0xf]
                %158 = vst [vmem:[%s152 + $0x8] sm:$0xf] %v157
                %v159 = vld [vmem:[%s151 + $0xc] sm:$0xf]
                %160 = vst [vmem:[%s152 + $0xc] sm:$0xf] %v159
                %v161 = vld [vmem:[%s151 + $0x10] sm:$0xf]
                %162 = vst [vmem:[%s152 + $0x10] sm:$0xf] %v161
                %v163 = vld [vmem:[%s151 + $0x14] sm:$0xf]
                %164 = vst [vmem:[%s152 + $0x14] sm:$0xf] %v163
                %v165 = vld [vmem:[%s151 + $0x18] sm:$0xf]
                %166 = vst [vmem:[%s152 + $0x18] sm:$0xf] %v165
                %v167 = vld [vmem:[%s151 + $0x1c] sm:$0xf]
                %168 = vst [vmem:[%s152 + $0x1c] sm:$0xf] %v167
                %v169 = vld [vmem:[%s151 + $0x20] sm:$0xf]
                %170 = vst [vmem:[%s152 + $0x20] sm:$0xf] %v169
                %v171 = vld [vmem:[%s151 + $0x24] sm:$0xf]
                %172 = vst [vmem:[%s152 + $0x24] sm:$0xf] %v171
                %v173 = vld [vmem:[%s151 + $0x28] sm:$0xf]
                %174 = vst [vmem:[%s152 + $0x28] sm:$0xf] %v173
                %v175 = vld [vmem:[%s151 + $0x2c] sm:$0xf]
                %176 = vst [vmem:[%s152 + $0x2c] sm:$0xf] %v175
                %v177 = vld [vmem:[%s151 + $0x30] sm:$0xf]
                %178 = vst [vmem:[%s152 + $0x30] sm:$0xf] %v177
                %v179 = vld [vmem:[%s151 + $0x34] sm:$0xf]
                %180 = vst [vmem:[%s152 + $0x34] sm:$0xf] %v179
                %v181 = vld [vmem:[%s151 + $0x38] sm:$0xf]
                %182 = vst [vmem:[%s152 + $0x38] sm:$0xf] %v181
                %v183 = vld [vmem:[%s151 + $0x3c] sm:$0xf]
                %184 = vst [vmem:[%s152 + $0x3c] sm:$0xf] %v183
                %v185 = vld [vmem:[%s151 + $0x40] sm:$0xf]
                %186 = vst [vmem:[%s152 + $0x40] sm:$0xf] %v185
                %v187 = vld [vmem:[%s151 + $0x44] sm:$0xf]
                %188 = vst [vmem:[%s152 + $0x44] sm:$0xf] %v187
                %v189 = vld [vmem:[%s151 + $0x48] sm:$0xf]
                %190 = vst [vmem:[%s152 + $0x48] sm:$0xf] %v189
                %v191 = vld [vmem:[%s151 + $0x4c] sm:$0xf]
                %192 = vst [vmem:[%s152 + $0x4c] sm:$0xf] %v191
                %v193 = vld [vmem:[%s151 + $0x50] sm:$0xf]
                %194 = vst [vmem:[%s152 + $0x50] sm:$0xf] %v193
                %v195 = vld [vmem:[%s151 + $0x54] sm:$0xf]
                %196 = vst [vmem:[%s152 + $0x54] sm:$0xf] %v195
                %v197 = vld [vmem:[%s151 + $0x58] sm:$0xf]
                %198 = vst [vmem:[%s152 + $0x58] sm:$0xf] %v197
                %v199 = vld [vmem:[%s151 + $0x5c] sm:$0xf]
                %200 = vst [vmem:[%s152 + $0x5c] sm:$0xf] %v199
                %v201 = vld [vmem:[%s151 + $0x60] sm:$0xf]
                %202 = vst [vmem:[%s152 + $0x60] sm:$0xf] %v201
                %v203 = vld [vmem:[%s151 + $0x64] sm:$0xf]
                %204 = vst [vmem:[%s152 + $0x64] sm:$0xf] %v203
                %v205 = vld [vmem:[%s151 + $0x68] sm:$0xf]
                %206 = vst [vmem:[%s152 + $0x68] sm:$0xf] %v205
                %v207 = vld [vmem:[%s151 + $0x6c] sm:$0xf]
                %208 = vst [vmem:[%s152 + $0x6c] sm:$0xf] %v207
                %v209 = vld [vmem:[%s151 + $0x70] sm:$0xf]
                %210 = vst [vmem:[%s152 + $0x70] sm:$0xf] %v209
                %v211 = vld [vmem:[%s151 + $0x74] sm:$0xf]
                %212 = vst [vmem:[%s152 + $0x74] sm:$0xf] %v211
                %v213 = vld [vmem:[%s151 + $0x78] sm:$0xf]
                %214 = vst [vmem:[%s152 + $0x78] sm:$0xf] %v213
                %v215 = vld [vmem:[%s151 + $0x7c] sm:$0xf]
                %216 = vst [vmem:[%s152 + $0x7c] sm:$0xf] %v215
                %v217 = vld [vmem:[%s151 + $0x280] sm:$0xf]
                %218 = vst [vmem:[%s152 + $0x80] sm:$0xf] %v217
                %v219 = vld [vmem:[%s151 + $0x284] sm:$0xf]
                %220 = vst [vmem:[%s152 + $0x84] sm:$0xf] %v219
                %v221 = vld [vmem:[%s151 + $0x288] sm:$0xf]
                %222 = vst [vmem:[%s152 + $0x88] sm:$0xf] %v221
                %v223 = vld [vmem:[%s151 + $0x28c] sm:$0xf]
                %224 = vst [vmem:[%s152 + $0x8c] sm:$0xf] %v223
                %v225 = vld [vmem:[%s151 + $0x290] sm:$0xf]
                %226 = vst [vmem:[%s152 + $0x90] sm:$0xf] %v225
                %v227 = vld [vmem:[%s151 + $0x294] sm:$0xf]
                %228 = vst [vmem:[%s152 + $0x94] sm:$0xf] %v227
                %v229 = vld [vmem:[%s151 + $0x298] sm:$0xf]
                %230 = vst [vmem:[%s152 + $0x98] sm:$0xf] %v229
                %v231 = vld [vmem:[%s151 + $0x29c] sm:$0xf]
                %232 = vst [vmem:[%s152 + $0x9c] sm:$0xf] %v231
                %v233 = vld [vmem:[%s151 + $0x2a0] sm:$0xf]
                %234 = vst [vmem:[%s152 + $0xa0] sm:$0xf] %v233
                %v235 = vld [vmem:[%s151 + $0x2a4] sm:$0xf]
                %236 = vst [vmem:[%s152 + $0xa4] sm:$0xf] %v235
                %v237 = vld [vmem:[%s151 + $0x2a8] sm:$0xf]
                %238 = vst [vmem:[%s152 + $0xa8] sm:$0xf] %v237
                %v239 = vld [vmem:[%s151 + $0x2ac] sm:$0xf]
                %240 = vst [vmem:[%s152 + $0xac] sm:$0xf] %v239
                %v241 = vld [vmem:[%s151 + $0x2b0] sm:$0xf]
                %242 = vst [vmem:[%s152 + $0xb0] sm:$0xf] %v241
                %v243 = vld [vmem:[%s151 + $0x2b4] sm:$0xf]
                %244 = vst [vmem:[%s152 + $0xb4] sm:$0xf] %v243
                %v245 = vld [vmem:[%s151 + $0x2b8] sm:$0xf]
                %246 = vst [vmem:[%s152 + $0xb8] sm:$0xf] %v245
                %v247 = vld [vmem:[%s151 + $0x2bc] sm:$0xf]
                %248 = vst [vmem:[%s152 + $0xbc] sm:$0xf] %v247
                %v249 = vld [vmem:[%s151 + $0x2c0] sm:$0xf]
                %250 = vst [vmem:[%s152 + $0xc0] sm:$0xf] %v249
                %v251 = vld [vmem:[%s151 + $0x2c4] sm:$0xf]
                %252 = vst [vmem:[%s152 + $0xc4] sm:$0xf] %v251
                %v253 = vld [vmem:[%s151 + $0x2c8] sm:$0xf]
                %254 = vst [vmem:[%s152 + $0xc8] sm:$0xf] %v253
                %v255 = vld [vmem:[%s151 + $0x2cc] sm:$0xf]
                %256 = vst [vmem:[%s152 + $0xcc] sm:$0xf] %v255
                %v257 = vld [vmem:[%s151 + $0x2d0] sm:$0xf]
                %258 = vst [vmem:[%s152 + $0xd0] sm:$0xf] %v257
                %v259 = vld [vmem:[%s151 + $0x2d4] sm:$0xf]
                %260 = vst [vmem:[%s152 + $0xd4] sm:$0xf] %v259
                %v261 = vld [vmem:[%s151 + $0x2d8] sm:$0xf]
                %262 = vst [vmem:[%s152 + $0xd8] sm:$0xf] %v261
                %v263 = vld [vmem:[%s151 + $0x2dc] sm:$0xf]
                %264 = vst [vmem:[%s152 + $0xdc] sm:$0xf] %v263
                %v265 = vld [vmem:[%s151 + $0x2e0] sm:$0xf]
                %266 = vst [vmem:[%s152 + $0xe0] sm:$0xf] %v265
                %v267 = vld [vmem:[%s151 + $0x2e4] sm:$0xf]
                %268 = vst [vmem:[%s152 + $0xe4] sm:$0xf] %v267
                %v269 = vld [vmem:[%s151 + $0x2e8] sm:$0xf]
                %270 = vst [vmem:[%s152 + $0xe8] sm:$0xf] %v269
                %v271 = vld [vmem:[%s151 + $0x2ec] sm:$0xf]
                %272 = vst [vmem:[%s152 + $0xec] sm:$0xf] %v271
                %v273 = vld [vmem:[%s151 + $0x2f0] sm:$0xf]
                %274 = vst [vmem:[%s152 + $0xf0] sm:$0xf] %v273
                %v275 = vld [vmem:[%s151 + $0x2f4] sm:$0xf]
                %276 = vst [vmem:[%s152 + $0xf4] sm:$0xf] %v275
                %v277 = vld [vmem:[%s151 + $0x2f8] sm:$0xf]
                %278 = vst [vmem:[%s152 + $0xf8] sm:$0xf] %v277
                %v279 = vld [vmem:[%s151 + $0x2fc] sm:$0xf]
                %280 = vst [vmem:[%s152 + $0xfc] sm:$0xf] %v279
                %v281 = vld [vmem:[%s151 + $0x500] sm:$0xf]
                %282 = vst [vmem:[%s152 + $0x100] sm:$0xf] %v281
                %v283 = vld [vmem:[%s151 + $0x504] sm:$0xf]
                %284 = vst [vmem:[%s152 + $0x104] sm:$0xf] %v283
                %v285 = vld [vmem:[%s151 + $0x508] sm:$0xf]
                %286 = vst [vmem:[%s152 + $0x108] sm:$0xf] %v285
                %v287 = vld [vmem:[%s151 + $0x50c] sm:$0xf]
                %288 = vst [vmem:[%s152 + $0x10c] sm:$0xf] %v287
                %v289 = vld [vmem:[%s151 + $0x510] sm:$0xf]
                %290 = vst [vmem:[%s152 + $0x110] sm:$0xf] %v289
                %v291 = vld [vmem:[%s151 + $0x514] sm:$0xf]
                %292 = vst [vmem:[%s152 + $0x114] sm:$0xf] %v291
                %v293 = vld [vmem:[%s151 + $0x518] sm:$0xf]
                %294 = vst [vmem:[%s152 + $0x118] sm:$0xf] %v293
                %v295 = vld [vmem:[%s151 + $0x51c] sm:$0xf]
                %296 = vst [vmem:[%s152 + $0x11c] sm:$0xf] %v295
                %v297 = vld [vmem:[%s151 + $0x520] sm:$0xf]
                %298 = vst [vmem:[%s152 + $0x120] sm:$0xf] %v297
                %v299 = vld [vmem:[%s151 + $0x524] sm:$0xf]
                %300 = vst [vmem:[%s152 + $0x124] sm:$0xf] %v299
                %v301 = vld [vmem:[%s151 + $0x528] sm:$0xf]
                %302 = vst [vmem:[%s152 + $0x128] sm:$0xf] %v301
                %v303 = vld [vmem:[%s151 + $0x52c] sm:$0xf]
                %304 = vst [vmem:[%s152 + $0x12c] sm:$0xf] %v303
                %v305 = vld [vmem:[%s151 + $0x530] sm:$0xf]
                %306 = vst [vmem:[%s152 + $0x130] sm:$0xf] %v305
                %v307 = vld [vmem:[%s151 + $0x534] sm:$0xf]
                %308 = vst [vmem:[%s152 + $0x134] sm:$0xf] %v307
                %v309 = vld [vmem:[%s151 + $0x538] sm:$0xf]
                %310 = vst [vmem:[%s152 + $0x138] sm:$0xf] %v309
                %v311 = vld [vmem:[%s151 + $0x53c] sm:$0xf]
                %312 = vst [vmem:[%s152 + $0x13c] sm:$0xf] %v311
                %v313 = vld [vmem:[%s151 + $0x540] sm:$0xf]
                %314 = vst [vmem:[%s152 + $0x140] sm:$0xf] %v313
                %v315 = vld [vmem:[%s151 + $0x544] sm:$0xf]
                %316 = vst [vmem:[%s152 + $0x144] sm:$0xf] %v315
                %v317 = vld [vmem:[%s151 + $0x548] sm:$0xf]
                %318 = vst [vmem:[%s152 + $0x148] sm:$0xf] %v317
                %v319 = vld [vmem:[%s151 + $0x54c] sm:$0xf]
                %320 = vst [vmem:[%s152 + $0x14c] sm:$0xf] %v319
                %v321 = vld [vmem:[%s151 + $0x550] sm:$0xf]
                %322 = vst [vmem:[%s152 + $0x150] sm:$0xf] %v321
                %v323 = vld [vmem:[%s151 + $0x554] sm:$0xf]
                %324 = vst [vmem:[%s152 + $0x154] sm:$0xf] %v323
                %v325 = vld [vmem:[%s151 + $0x558] sm:$0xf]
                %326 = vst [vmem:[%s152 + $0x158] sm:$0xf] %v325
                %v327 = vld [vmem:[%s151 + $0x55c] sm:$0xf]
                %328 = vst [vmem:[%s152 + $0x15c] sm:$0xf] %v327
                %v329 = vld [vmem:[%s151 + $0x560] sm:$0xf]
                %330 = vst [vmem:[%s152 + $0x160] sm:$0xf] %v329
                %v331 = vld [vmem:[%s151 + $0x564] sm:$0xf]
                %332 = vst [vmem:[%s152 + $0x164] sm:$0xf] %v331
                %v333 = vld [vmem:[%s151 + $0x568] sm:$0xf]
                %334 = vst [vmem:[%s152 + $0x168] sm:$0xf] %v333
                %v335 = vld [vmem:[%s151 + $0x56c] sm:$0xf]
                %336 = vst [vmem:[%s152 + $0x16c] sm:$0xf] %v335
                %v337 = vld [vmem:[%s151 + $0x570] sm:$0xf]
                %338 = vst [vmem:[%s152 + $0x170] sm:$0xf] %v337
                %v339 = vld [vmem:[%s151 + $0x574] sm:$0xf]
                %340 = vst [vmem:[%s152 + $0x174] sm:$0xf] %v339
                %v341 = vld [vmem:[%s151 + $0x578] sm:$0xf]
                %342 = vst [vmem:[%s152 + $0x178] sm:$0xf] %v341
                %v343 = vld [vmem:[%s151 + $0x57c] sm:$0xf]
                %344 = vst [vmem:[%s152 + $0x17c] sm:$0xf] %v343
                %v345 = vld [vmem:[%s151 + $0x780] sm:$0xf]
                %346 = vst [vmem:[%s152 + $0x180] sm:$0xf] %v345
                %v347 = vld [vmem:[%s151 + $0x784] sm:$0xf]
                %348 = vst [vmem:[%s152 + $0x184] sm:$0xf] %v347
                %v349 = vld [vmem:[%s151 + $0x788] sm:$0xf]
                %350 = vst [vmem:[%s152 + $0x188] sm:$0xf] %v349
                %v351 = vld [vmem:[%s151 + $0x78c] sm:$0xf]
                %352 = vst [vmem:[%s152 + $0x18c] sm:$0xf] %v351
                %v353 = vld [vmem:[%s151 + $0x790] sm:$0xf]
                %354 = vst [vmem:[%s152 + $0x190] sm:$0xf] %v353
                %v355 = vld [vmem:[%s151 + $0x794] sm:$0xf]
                %356 = vst [vmem:[%s152 + $0x194] sm:$0xf] %v355
                %v357 = vld [vmem:[%s151 + $0x798] sm:$0xf]
                %358 = vst [vmem:[%s152 + $0x198] sm:$0xf] %v357
                %v359 = vld [vmem:[%s151 + $0x79c] sm:$0xf]
                %360 = vst [vmem:[%s152 + $0x19c] sm:$0xf] %v359
                %v361 = vld [vmem:[%s151 + $0x7a0] sm:$0xf]
                %362 = vst [vmem:[%s152 + $0x1a0] sm:$0xf] %v361
                %v363 = vld [vmem:[%s151 + $0x7a4] sm:$0xf]
                %364 = vst [vmem:[%s152 + $0x1a4] sm:$0xf] %v363
                %v365 = vld [vmem:[%s151 + $0x7a8] sm:$0xf]
                %366 = vst [vmem:[%s152 + $0x1a8] sm:$0xf] %v365
                %v367 = vld [vmem:[%s151 + $0x7ac] sm:$0xf]
                %368 = vst [vmem:[%s152 + $0x1ac] sm:$0xf] %v367
                %v369 = vld [vmem:[%s151 + $0x7b0] sm:$0xf]
                %370 = vst [vmem:[%s152 + $0x1b0] sm:$0xf] %v369
                %v371 = vld [vmem:[%s151 + $0x7b4] sm:$0xf]
                %372 = vst [vmem:[%s152 + $0x1b4] sm:$0xf] %v371
                %v373 = vld [vmem:[%s151 + $0x7b8] sm:$0xf]
                %374 = vst [vmem:[%s152 + $0x1b8] sm:$0xf] %v373
                %v375 = vld [vmem:[%s151 + $0x7bc] sm:$0xf]
                %376 = vst [vmem:[%s152 + $0x1bc] sm:$0xf] %v375
                %v377 = vld [vmem:[%s151 + $0x7c0] sm:$0xf]
                %378 = vst [vmem:[%s152 + $0x1c0] sm:$0xf] %v377
                %v379 = vld [vmem:[%s151 + $0x7c4] sm:$0xf]
                %380 = vst [vmem:[%s152 + $0x1c4] sm:$0xf] %v379
                %v381 = vld [vmem:[%s151 + $0x7c8] sm:$0xf]
                %382 = vst [vmem:[%s152 + $0x1c8] sm:$0xf] %v381
                %v383 = vld [vmem:[%s151 + $0x7cc] sm:$0xf]
                %384 = vst [vmem:[%s152 + $0x1cc] sm:$0xf] %v383
                %v385 = vld [vmem:[%s151 + $0x7d0] sm:$0xf]
                %386 = vst [vmem:[%s152 + $0x1d0] sm:$0xf] %v385
                %v387 = vld [vmem:[%s151 + $0x7d4] sm:$0xf]
                %388 = vst [vmem:[%s152 + $0x1d4] sm:$0xf] %v387
                %v389 = vld [vmem:[%s151 + $0x7d8] sm:$0xf]
                %390 = vst [vmem:[%s152 + $0x1d8] sm:$0xf] %v389
                %v391 = vld [vmem:[%s151 + $0x7dc] sm:$0xf]
                %392 = vst [vmem:[%s152 + $0x1dc] sm:$0xf] %v391
                %v393 = vld [vmem:[%s151 + $0x7e0] sm:$0xf]
                %394 = vst [vmem:[%s152 + $0x1e0] sm:$0xf] %v393
                %v395 = vld [vmem:[%s151 + $0x7e4] sm:$0xf]
                %396 = vst [vmem:[%s152 + $0x1e4] sm:$0xf] %v395
                %v397 = vld [vmem:[%s151 + $0x7e8] sm:$0xf]
                %398 = vst [vmem:[%s152 + $0x1e8] sm:$0xf] %v397
                %v399 = vld [vmem:[%s151 + $0x7ec] sm:$0xf]
                %400 = vst [vmem:[%s152 + $0x1ec] sm:$0xf] %v399
                %v401 = vld [vmem:[%s151 + $0x7f0] sm:$0xf]
                %402 = vst [vmem:[%s152 + $0x1f0] sm:$0xf] %v401
                %v403 = vld [vmem:[%s151 + $0x7f4] sm:$0xf]
                %404 = vst [vmem:[%s152 + $0x1f4] sm:$0xf] %v403
                %v405 = vld [vmem:[%s151 + $0x7f8] sm:$0xf]
                %406 = vst [vmem:[%s152 + $0x1f8] sm:$0xf] %v405
                %v407 = vld [vmem:[%s151 + $0x7fc] sm:$0xf]
                %408 = vst [vmem:[%s152 + $0x1fc] sm:$0xf] %v407
              $region45: #{net_forward.4} parent=39 // loop_footer
                %s150 = sadd.s32 1, %s146
              $region46: #{net_forward.4} parent=39 // loop_footer_branch
                %145 = sbr.rel target = $region42
              $region47: #{net_forward.4} parent=39 // loop_exit
                _
            $region40: #{net_forward.4} parent=31 // pred_fallthru
              _
          $region32: #{net_forward.4} parent=27 // pred_fallthru
            _
          %684 = vnop
        $region28: #{net_forward.4} parent=23 // pred_fallthru
          _
      $region24: #{net_forward.4} parent=5 // pred_fallthru
        _
      %p685 = scmp.le.s32.totalorder 1, %s9
      %p686 = scmp.lt.s32.totalorder %s9, 6
      %p687 = pnand %p685, %p686
      %p688 = pneg %p687
      // Predicated region
      $region66: #{net_forward.4} parent=5 // pred_check
        _
      $region67: #{net_forward.4} parent=5 // pred_check_branch
        %690 = sbr.rel (%p687) target = $region69
      $region68: #{net_forward.4} parent=5 // pred_region
        %s691 = ssub.s32 %s9, 1
        %s692 = sand.u32 %s22, 1
        %s693 = sand.u32 %s22, 1
        %s694 = smul.addr %s693, 512
        %s695 = scalar_lea.vmem [#allocation2], %s694
        // Predicated region
        $region70: #{net_forward.4} parent=68 // pred_check
          %p696 = pneg %p35
        $region71: #{net_forward.4} parent=68 // pred_check_branch
          %698 = sbr.rel (%p696) target = $region73
        $region72: #{net_forward.4} parent=68 // pred_region
          _
        $region73: #{net_forward.4} parent=68 // pred_fallthru
          _
        %s699 = sand.u32 %s22, 1
        %s700 = sand.u32 %s22, 1
        %s701 = smul.addr %s700, 512
        %s702 = scalar_lea.vmem [#allocation2], %s701
        %p703 = pneg %p35
        %p704 = pneg %p32
        %p705 = pneg %p56
        %p706 = pneg %p53
        %p707 = pneg %p77
        %p708 = pneg %p74
        %p709 = pneg %p103
        %p710 = pneg %p100
        %s711 = smul.u32 32, %s14
        %p712 = scmp.lt.s32.totalorder %s711, 159
        %s713 = scalar_select %p712, %s711, 159
        %s714 = smul.addr %s713, 4
        %s715 = scalar_lea.vmem %s3, %s714
        %s716 = smul.u32 32, %s14
        %s717 = smul.u32 32, %s14
        %p718 = scmp.lt.s32.totalorder %s717, 159
        %s719 = scalar_select %p718, %s717, 159
        %s720 = smul.addr %s719, 4
        %s721 = scalar_lea.vmem %s3, %s720
        %s722 = smul.u32 32, %s14
        %v724 = vld [vmem:[%s695] sm:$0xf]
        %v725 = vld [vmem:[%s695 + $0x4] sm:$0xf]
        %v726 = vld [vmem:[%s695 + $0x8] sm:$0xf]
        %v727 = vld [vmem:[%s695 + $0xc] sm:$0xf]
        %v728 = vld [vmem:[%s695 + $0x10] sm:$0xf]
        %v729 = vld [vmem:[%s695 + $0x14] sm:$0xf]
        %v730 = vld [vmem:[%s695 + $0x18] sm:$0xf]
        %v731 = vld [vmem:[%s695 + $0x1c] sm:$0xf]
        %v732 = vld [vmem:[%s695 + $0x20] sm:$0xf]
        %v733 = vld [vmem:[%s695 + $0x24] sm:$0xf]
        %v734 = vld [vmem:[%s695 + $0x28] sm:$0xf]
        %v735 = vld [vmem:[%s695 + $0x2c] sm:$0xf]
        %v736 = vld [vmem:[%s695 + $0x30] sm:$0xf]
        %v737 = vld [vmem:[%s695 + $0x34] sm:$0xf]
        %v738 = vld [vmem:[%s695 + $0x38] sm:$0xf]
        %v739 = vld [vmem:[%s695 + $0x3c] sm:$0xf]
        %v740 = vld [vmem:[%s695 + $0x40] sm:$0xf]
        %v741 = vld [vmem:[%s695 + $0x44] sm:$0xf]
        %v742 = vld [vmem:[%s695 + $0x48] sm:$0xf]
        %v743 = vld [vmem:[%s695 + $0x4c] sm:$0xf]
        %v744 = vld [vmem:[%s695 + $0x50] sm:$0xf]
        %v745 = vld [vmem:[%s695 + $0x54] sm:$0xf]
        %v746 = vld [vmem:[%s695 + $0x58] sm:$0xf]
        %v747 = vld [vmem:[%s695 + $0x5c] sm:$0xf]
        %v748 = vld [vmem:[%s695 + $0x60] sm:$0xf]
        %v749 = vld [vmem:[%s695 + $0x64] sm:$0xf]
        %v750 = vld [vmem:[%s695 + $0x68] sm:$0xf]
        %v751 = vld [vmem:[%s695 + $0x6c] sm:$0xf]
        %v752 = vld [vmem:[%s695 + $0x70] sm:$0xf]
        %v753 = vld [vmem:[%s695 + $0x74] sm:$0xf]
        %v754 = vld [vmem:[%s695 + $0x78] sm:$0xf]
        %v755 = vld [vmem:[%s695 + $0x7c] sm:$0xf]
        %s756 = scalar_lea.vmem %s695, 128 [#allocation2]
        %v757 = vld [vmem:[%s756] sm:$0xf]
        %v758 = vld [vmem:[%s756 + $0x4] sm:$0xf]
        %v759 = vld [vmem:[%s756 + $0x8] sm:$0xf]
        %v760 = vld [vmem:[%s756 + $0xc] sm:$0xf]
        %v761 = vld [vmem:[%s756 + $0x10] sm:$0xf]
        %v762 = vld [vmem:[%s756 + $0x14] sm:$0xf]
        %v763 = vld [vmem:[%s756 + $0x18] sm:$0xf]
        %v764 = vld [vmem:[%s756 + $0x1c] sm:$0xf]
        %v765 = vld [vmem:[%s756 + $0x20] sm:$0xf]
        %v766 = vld [vmem:[%s756 + $0x24] sm:$0xf]
        %v767 = vld [vmem:[%s756 + $0x28] sm:$0xf]
        %v768 = vld [vmem:[%s756 + $0x2c] sm:$0xf]
        %v769 = vld [vmem:[%s756 + $0x30] sm:$0xf]
        %v770 = vld [vmem:[%s756 + $0x34] sm:$0xf]
        %v771 = vld [vmem:[%s756 + $0x38] sm:$0xf]
        %v772 = vld [vmem:[%s756 + $0x3c] sm:$0xf]
        %v773 = vld [vmem:[%s756 + $0x40] sm:$0xf]
        %v774 = vld [vmem:[%s756 + $0x44] sm:$0xf]
        %v775 = vld [vmem:[%s756 + $0x48] sm:$0xf]
        %v776 = vld [vmem:[%s756 + $0x4c] sm:$0xf]
        %v777 = vld [vmem:[%s756 + $0x50] sm:$0xf]
        %v778 = vld [vmem:[%s756 + $0x54] sm:$0xf]
        %v779 = vld [vmem:[%s756 + $0x58] sm:$0xf]
        %v780 = vld [vmem:[%s756 + $0x5c] sm:$0xf]
        %v781 = vld [vmem:[%s756 + $0x60] sm:$0xf]
        %v782 = vld [vmem:[%s756 + $0x64] sm:$0xf]
        %v783 = vld [vmem:[%s756 + $0x68] sm:$0xf]
        %v784 = vld [vmem:[%s756 + $0x6c] sm:$0xf]
        %v785 = vld [vmem:[%s756 + $0x70] sm:$0xf]
        %v786 = vld [vmem:[%s756 + $0x74] sm:$0xf]
        %v787 = vld [vmem:[%s756 + $0x78] sm:$0xf]
        %v788 = vld [vmem:[%s756 + $0x7c] sm:$0xf]
        %s789 = scalar_lea.vmem %s695, 256 [#allocation2]
        %v790 = vld [vmem:[%s789] sm:$0xf]
        %v791 = vld [vmem:[%s789 + $0x4] sm:$0xf]
        %v792 = vld [vmem:[%s789 + $0x8] sm:$0xf]
        %v793 = vld [vmem:[%s789 + $0xc] sm:$0xf]
        %v794 = vld [vmem:[%s789 + $0x10] sm:$0xf]
        %v795 = vld [vmem:[%s789 + $0x14] sm:$0xf]
        %v796 = vld [vmem:[%s789 + $0x18] sm:$0xf]
        %v797 = vld [vmem:[%s789 + $0x1c] sm:$0xf]
        %v798 = vld [vmem:[%s789 + $0x20] sm:$0xf]
        %v799 = vld [vmem:[%s789 + $0x24] sm:$0xf]
        %v800 = vld [vmem:[%s789 + $0x28] sm:$0xf]
        %v801 = vld [vmem:[%s789 + $0x2c] sm:$0xf]
        %v802 = vld [vmem:[%s789 + $0x30] sm:$0xf]
        %v803 = vld [vmem:[%s789 + $0x34] sm:$0xf]
        %v804 = vld [vmem:[%s789 + $0x38] sm:$0xf]
        %v805 = vld [vmem:[%s789 + $0x3c] sm:$0xf]
        %v806 = vld [vmem:[%s789 + $0x40] sm:$0xf]
        %v807 = vld [vmem:[%s789 + $0x44] sm:$0xf]
        %v808 = vld [vmem:[%s789 + $0x48] sm:$0xf]
        %v809 = vld [vmem:[%s789 + $0x4c] sm:$0xf]
        %v810 = vld [vmem:[%s789 + $0x50] sm:$0xf]
        %v811 = vld [vmem:[%s789 + $0x54] sm:$0xf]
        %v812 = vld [vmem:[%s789 + $0x58] sm:$0xf]
        %v813 = vld [vmem:[%s789 + $0x5c] sm:$0xf]
        %v814 = vld [vmem:[%s789 + $0x60] sm:$0xf]
        %v815 = vld [vmem:[%s789 + $0x64] sm:$0xf]
        %v816 = vld [vmem:[%s789 + $0x68] sm:$0xf]
        %v817 = vld [vmem:[%s789 + $0x6c] sm:$0xf]
        %v818 = vld [vmem:[%s789 + $0x70] sm:$0xf]
        %v819 = vld [vmem:[%s789 + $0x74] sm:$0xf]
        %v820 = vld [vmem:[%s789 + $0x78] sm:$0xf]
        %v821 = vld [vmem:[%s789 + $0x7c] sm:$0xf]
        %s822 = scalar_lea.vmem %s695, 384 [#allocation2]
        %v823 = vld [vmem:[%s822] sm:$0xf]
        %v824 = vld [vmem:[%s822 + $0x4] sm:$0xf]
        %v825 = vld [vmem:[%s822 + $0x8] sm:$0xf]
        %v826 = vld [vmem:[%s822 + $0xc] sm:$0xf]
        %v827 = vld [vmem:[%s822 + $0x10] sm:$0xf]
        %v828 = vld [vmem:[%s822 + $0x14] sm:$0xf]
        %v829 = vld [vmem:[%s822 + $0x18] sm:$0xf]
        %v830 = vld [vmem:[%s822 + $0x1c] sm:$0xf]
        %v831 = vld [vmem:[%s822 + $0x20] sm:$0xf]
        %v832 = vld [vmem:[%s822 + $0x24] sm:$0xf]
        %v833 = vld [vmem:[%s822 + $0x28] sm:$0xf]
        %v834 = vld [vmem:[%s822 + $0x2c] sm:$0xf]
        %v835 = vld [vmem:[%s822 + $0x30] sm:$0xf]
        %v836 = vld [vmem:[%s822 + $0x34] sm:$0xf]
        %v837 = vld [vmem:[%s822 + $0x38] sm:$0xf]
        %v838 = vld [vmem:[%s822 + $0x3c] sm:$0xf]
        %v839 = vld [vmem:[%s822 + $0x40] sm:$0xf]
        %v840 = vld [vmem:[%s822 + $0x44] sm:$0xf]
        %v841 = vld [vmem:[%s822 + $0x48] sm:$0xf]
        %v842 = vld [vmem:[%s822 + $0x4c] sm:$0xf]
        %v843 = vld [vmem:[%s822 + $0x50] sm:$0xf]
        %v844 = vld [vmem:[%s822 + $0x54] sm:$0xf]
        %v845 = vld [vmem:[%s822 + $0x58] sm:$0xf]
        %v846 = vld [vmem:[%s822 + $0x5c] sm:$0xf]
        %v847 = vld [vmem:[%s822 + $0x60] sm:$0xf]
        %v848 = vld [vmem:[%s822 + $0x64] sm:$0xf]
        %v849 = vld [vmem:[%s822 + $0x68] sm:$0xf]
        %v850 = vld [vmem:[%s822 + $0x6c] sm:$0xf]
        %v851 = vld [vmem:[%s822 + $0x70] sm:$0xf]
        %v852 = vld [vmem:[%s822 + $0x74] sm:$0xf]
        %v853 = vld [vmem:[%s822 + $0x78] sm:$0xf]
        %v854 = vld [vmem:[%s822 + $0x7c] sm:$0xf]
        %v887 = vunpack.c.l.b16 %v724
        %v888 = vunpack.c.l.b16 %v725
        %v889 = vunpack.c.l.b16 %v726
        %v890 = vunpack.c.l.b16 %v727
        %v891 = vunpack.c.l.b16 %v728
        %v892 = vunpack.c.l.b16 %v729
        %v893 = vunpack.c.l.b16 %v730
        %v894 = vunpack.c.l.b16 %v731
        %v895 = vunpack.c.l.b16 %v732
        %v896 = vunpack.c.l.b16 %v733
        %v897 = vunpack.c.l.b16 %v734
        %v898 = vunpack.c.l.b16 %v735
        %v899 = vunpack.c.l.b16 %v736
        %v900 = vunpack.c.l.b16 %v737
        %v901 = vunpack.c.l.b16 %v738
        %v902 = vunpack.c.l.b16 %v739
        %v903 = vunpack.c.l.b16 %v740
        %v904 = vunpack.c.l.b16 %v741
        %v905 = vunpack.c.l.b16 %v742
        %v906 = vunpack.c.l.b16 %v743
        %v907 = vunpack.c.l.b16 %v744
        %v908 = vunpack.c.l.b16 %v745
        %v909 = vunpack.c.l.b16 %v746
        %v910 = vunpack.c.l.b16 %v747
        %v911 = vunpack.c.l.b16 %v748
        %v912 = vunpack.c.l.b16 %v749
        %v913 = vunpack.c.l.b16 %v750
        %v914 = vunpack.c.l.b16 %v751
        %v915 = vunpack.c.l.b16 %v752
        %v916 = vunpack.c.l.b16 %v753
        %v917 = vunpack.c.l.b16 %v754
        %v918 = vunpack.c.l.b16 %v755
        %v919 = vpack.c.b16 %v888, %v887
        %v920 = vpack.c.b16 %v890, %v889
        %v921 = vpack.c.b16 %v892, %v891
        %v922 = vpack.c.b16 %v894, %v893
        %v923 = vpack.c.b16 %v896, %v895
        %v924 = vpack.c.b16 %v898, %v897
        %v925 = vpack.c.b16 %v900, %v899
        %v926 = vpack.c.b16 %v902, %v901
        %v927 = vpack.c.b16 %v904, %v903
        %v928 = vpack.c.b16 %v906, %v905
        %v929 = vpack.c.b16 %v908, %v907
        %v930 = vpack.c.b16 %v910, %v909
        %v931 = vpack.c.b16 %v912, %v911
        %v932 = vpack.c.b16 %v914, %v913
        %v933 = vpack.c.b16 %v916, %v915
        %v934 = vpack.c.b16 %v918, %v917
        %v967 = vunpack.c.l.b16 %v757
        %v968 = vunpack.c.l.b16 %v758
        %v969 = vunpack.c.l.b16 %v759
        %v970 = vunpack.c.l.b16 %v760
        %v971 = vunpack.c.l.b16 %v761
        %v972 = vunpack.c.l.b16 %v762
        %v973 = vunpack.c.l.b16 %v763
        %v974 = vunpack.c.l.b16 %v764
        %v975 = vunpack.c.l.b16 %v765
        %v976 = vunpack.c.l.b16 %v766
        %v977 = vunpack.c.l.b16 %v767
        %v978 = vunpack.c.l.b16 %v768
        %v979 = vunpack.c.l.b16 %v769
        %v980 = vunpack.c.l.b16 %v770
        %v981 = vunpack.c.l.b16 %v771
        %v982 = vunpack.c.l.b16 %v772
        %v983 = vunpack.c.l.b16 %v773
        %v984 = vunpack.c.l.b16 %v774
        %v985 = vunpack.c.l.b16 %v775
        %v986 = vunpack.c.l.b16 %v776
        %v987 = vunpack.c.l.b16 %v777
        %v988 = vunpack.c.l.b16 %v778
        %v989 = vunpack.c.l.b16 %v779
        %v990 = vunpack.c.l.b16 %v780
        %v991 = vunpack.c.l.b16 %v781
        %v992 = vunpack.c.l.b16 %v782
        %v993 = vunpack.c.l.b16 %v783
        %v994 = vunpack.c.l.b16 %v784
        %v995 = vunpack.c.l.b16 %v785
        %v996 = vunpack.c.l.b16 %v786
        %v997 = vunpack.c.l.b16 %v787
        %v998 = vunpack.c.l.b16 %v788
        %v999 = vpack.c.b16 %v968, %v967
        %v1000 = vpack.c.b16 %v970, %v969
        %v1001 = vpack.c.b16 %v972, %v971
        %v1002 = vpack.c.b16 %v974, %v973
        %v1003 = vpack.c.b16 %v976, %v975
        %v1004 = vpack.c.b16 %v978, %v977
        %v1005 = vpack.c.b16 %v980, %v979
        %v1006 = vpack.c.b16 %v982, %v981
        %v1007 = vpack.c.b16 %v984, %v983
        %v1008 = vpack.c.b16 %v986, %v985
        %v1009 = vpack.c.b16 %v988, %v987
        %v1010 = vpack.c.b16 %v990, %v989
        %v1011 = vpack.c.b16 %v992, %v991
        %v1012 = vpack.c.b16 %v994, %v993
        %v1013 = vpack.c.b16 %v996, %v995
        %v1014 = vpack.c.b16 %v998, %v997
        %v1047 = vunpack.c.l.b16 %v790
        %v1048 = vunpack.c.l.b16 %v791
        %v1049 = vunpack.c.l.b16 %v792
        %v1050 = vunpack.c.l.b16 %v793
        %v1051 = vunpack.c.l.b16 %v794
        %v1052 = vunpack.c.l.b16 %v795
        %v1053 = vunpack.c.l.b16 %v796
        %v1054 = vunpack.c.l.b16 %v797
        %v1055 = vunpack.c.l.b16 %v798
        %v1056 = vunpack.c.l.b16 %v799
        %v1057 = vunpack.c.l.b16 %v800
        %v1058 = vunpack.c.l.b16 %v801
        %v1059 = vunpack.c.l.b16 %v802
        %v1060 = vunpack.c.l.b16 %v803
        %v1061 = vunpack.c.l.b16 %v804
        %v1062 = vunpack.c.l.b16 %v805
        %v1063 = vunpack.c.l.b16 %v806
        %v1064 = vunpack.c.l.b16 %v807
        %v1065 = vunpack.c.l.b16 %v808
        %v1066 = vunpack.c.l.b16 %v809
        %v1067 = vunpack.c.l.b16 %v810
        %v1068 = vunpack.c.l.b16 %v811
        %v1069 = vunpack.c.l.b16 %v812
        %v1070 = vunpack.c.l.b16 %v813
        %v1071 = vunpack.c.l.b16 %v814
        %v1072 = vunpack.c.l.b16 %v815
        %v1073 = vunpack.c.l.b16 %v816
        %v1074 = vunpack.c.l.b16 %v817
        %v1075 = vunpack.c.l.b16 %v818
        %v1076 = vunpack.c.l.b16 %v819
        %v1077 = vunpack.c.l.b16 %v820
        %v1078 = vunpack.c.l.b16 %v821
        %v1079 = vpack.c.b16 %v1048, %v1047
        %v1080 = vpack.c.b16 %v1050, %v1049
        %v1081 = vpack.c.b16 %v1052, %v1051
        %v1082 = vpack.c.b16 %v1054, %v1053
        %v1083 = vpack.c.b16 %v1056, %v1055
        %v1084 = vpack.c.b16 %v1058, %v1057
        %v1085 = vpack.c.b16 %v1060, %v1059
        %v1086 = vpack.c.b16 %v1062, %v1061
        %v1087 = vpack.c.b16 %v1064, %v1063
        %v1088 = vpack.c.b16 %v1066, %v1065
        %v1089 = vpack.c.b16 %v1068, %v1067
        %v1090 = vpack.c.b16 %v1070, %v1069
        %v1091 = vpack.c.b16 %v1072, %v1071
        %v1092 = vpack.c.b16 %v1074, %v1073
        %v1093 = vpack.c.b16 %v1076, %v1075
        %v1094 = vpack.c.b16 %v1078, %v1077
        %v1127 = vunpack.c.l.b16 %v823
        %v1128 = vunpack.c.l.b16 %v824
        %v1129 = vunpack.c.l.b16 %v825
        %v1130 = vunpack.c.l.b16 %v826
        %v1131 = vunpack.c.l.b16 %v827
        %v1132 = vunpack.c.l.b16 %v828
        %v1133 = vunpack.c.l.b16 %v829
        %v1134 = vunpack.c.l.b16 %v830
        %v1135 = vunpack.c.l.b16 %v831
        %v1136 = vunpack.c.l.b16 %v832
        %v1137 = vunpack.c.l.b16 %v833
        %v1138 = vunpack.c.l.b16 %v834
        %v1139 = vunpack.c.l.b16 %v835
        %v1140 = vunpack.c.l.b16 %v836
        %v1141 = vunpack.c.l.b16 %v837
        %v1142 = vunpack.c.l.b16 %v838
        %v1143 = vunpack.c.l.b16 %v839
        %v1144 = vunpack.c.l.b16 %v840
        %v1145 = vunpack.c.l.b16 %v841
        %v1146 = vunpack.c.l.b16 %v842
        %v1147 = vunpack.c.l.b16 %v843
        %v1148 = vunpack.c.l.b16 %v844
        %v1149 = vunpack.c.l.b16 %v845
        %v1150 = vunpack.c.l.b16 %v846
        %v1151 = vunpack.c.l.b16 %v847
        %v1152 = vunpack.c.l.b16 %v848
        %v1153 = vunpack.c.l.b16 %v849
        %v1154 = vunpack.c.l.b16 %v850
        %v1155 = vunpack.c.l.b16 %v851
        %v1156 = vunpack.c.l.b16 %v852
        %v1157 = vunpack.c.l.b16 %v853
        %v1158 = vunpack.c.l.b16 %v854
        %v1159 = vpack.c.b16 %v1128, %v1127
        %v1160 = vpack.c.b16 %v1130, %v1129
        %v1161 = vpack.c.b16 %v1132, %v1131
        %v1162 = vpack.c.b16 %v1134, %v1133
        %v1163 = vpack.c.b16 %v1136, %v1135
        %v1164 = vpack.c.b16 %v1138, %v1137
        %v1165 = vpack.c.b16 %v1140, %v1139
        %v1166 = vpack.c.b16 %v1142, %v1141
        %v1167 = vpack.c.b16 %v1144, %v1143
        %v1168 = vpack.c.b16 %v1146, %v1145
        %v1169 = vpack.c.b16 %v1148, %v1147
        %v1170 = vpack.c.b16 %v1150, %v1149
        %v1171 = vpack.c.b16 %v1152, %v1151
        %v1172 = vpack.c.b16 %v1154, %v1153
        %v1173 = vpack.c.b16 %v1156, %v1155
        %v1174 = vpack.c.b16 %v1158, %v1157
        %v1175 = vld [vmem:[%s1] sm:$0xf]
        %v1176 = vld [vmem:[%s1 + $0x4] sm:$0xf]
        %v1177 = vld [vmem:[%s1 + $0x8] sm:$0xf]
        %v1178 = vld [vmem:[%s1 + $0xc] sm:$0x1]
        %v1179 = vld [vmem:[%s2] sm:$0x1]
        %v1181 = vlaneseq
        %v1182 = vshrl.u32 %v1181, 7
        %v1183 = vsub.s32 0, %v1182
        %v1184 = vrot.slane %v1179, %v1183
        %v1190 = vunpack.c.l.b16 %v1175
        %v1191 = vunpack.c.l.b16 %v1176
        %v1192 = vunpack.c.l.b16 %v1177
        %v1193 = vunpack.c.l.b16 %v1178
        %v1194 = vpack.c.b16 %v1191, %v1190
        %v1195 = vpack.c.b16 %v1193, %v1192
        %vm1197 = vcmask 203776
        %v1199 = vsel %vm1197, %v919, 0
        %v1202 = vsel %vm1197, %v920, 0
        %v1205 = vsel %vm1197, %v921, 0
        %v1208 = vsel %vm1197, %v922, 0
        %v1211 = vsel %vm1197, %v923, 0
        %v1214 = vsel %vm1197, %v924, 0
        %v1217 = vsel %vm1197, %v925, 0
        %v1220 = vsel %vm1197, %v926, 0
        %v1223 = vsel %vm1197, %v927, 0
        %v1226 = vsel %vm1197, %v928, 0
        %v1229 = vsel %vm1197, %v929, 0
        %v1232 = vsel %vm1197, %v930, 0
        %v1235 = vsel %vm1197, %v931, 0
        %v1238 = vsel %vm1197, %v932, 0
        %v1241 = vsel %vm1197, %v933, 0
        %v1244 = vsel %vm1197, %v934, 0
        %v1247 = vsel %vm1197, %v999, 0
        %v1250 = vsel %vm1197, %v1000, 0
        %v1253 = vsel %vm1197, %v1001, 0
        %v1256 = vsel %vm1197, %v1002, 0
        %v1259 = vsel %vm1197, %v1003, 0
        %v1262 = vsel %vm1197, %v1004, 0
        %v1265 = vsel %vm1197, %v1005, 0
        %v1268 = vsel %vm1197, %v1006, 0
        %v1271 = vsel %vm1197, %v1007, 0
        %v1274 = vsel %vm1197, %v1008, 0
        %v1277 = vsel %vm1197, %v1009, 0
        %v1280 = vsel %vm1197, %v1010, 0
        %v1283 = vsel %vm1197, %v1011, 0
        %v1286 = vsel %vm1197, %v1012, 0
        %v1289 = vsel %vm1197, %v1013, 0
        %v1292 = vsel %vm1197, %v1014, 0
        %v1295 = vsel %vm1197, %v1079, 0
        %v1298 = vsel %vm1197, %v1080, 0
        %v1301 = vsel %vm1197, %v1081, 0
        %v1304 = vsel %vm1197, %v1082, 0
        %v1307 = vsel %vm1197, %v1083, 0
        %v1310 = vsel %vm1197, %v1084, 0
        %v1313 = vsel %vm1197, %v1085, 0
        %v1316 = vsel %vm1197, %v1086, 0
        %v1319 = vsel %vm1197, %v1087, 0
        %v1322 = vsel %vm1197, %v1088, 0
        %v1325 = vsel %vm1197, %v1089, 0
        %v1328 = vsel %vm1197, %v1090, 0
        %v1331 = vsel %vm1197, %v1091, 0
        %v1334 = vsel %vm1197, %v1092, 0
        %v1337 = vsel %vm1197, %v1093, 0
        %v1340 = vsel %vm1197, %v1094, 0
        %v1343 = vsel %vm1197, %v1159, 0
        %v1346 = vsel %vm1197, %v1160, 0
        %v1349 = vsel %vm1197, %v1161, 0
        %v1352 = vsel %vm1197, %v1162, 0
        %v1355 = vsel %vm1197, %v1163, 0
        %v1358 = vsel %vm1197, %v1164, 0
        %v1361 = vsel %vm1197, %v1165, 0
        %v1364 = vsel %vm1197, %v1166, 0
        %v1367 = vsel %vm1197, %v1167, 0
        %v1370 = vsel %vm1197, %v1168, 0
        %v1373 = vsel %vm1197, %v1169, 0
        %v1376 = vsel %vm1197, %v1170, 0
        %v1379 = vsel %vm1197, %v1171, 0
        %v1382 = vsel %vm1197, %v1172, 0
        %v1385 = vsel %vm1197, %v1173, 0
        %v1388 = vsel %vm1197, %v1174, 0
        %vm1390 = vcmask 1043456
        %vm1391 = vcmask 1044480
        %v1392 = vsel %vm1390, 4294967295, 65535
        %v1393 = vsel %vm1391, %v1392, 0
        %v1395 = vand.u32 %v1195, %v1393
        %1397 = vmatprep.subr.bf16.mxu0 0
        %1398 = vmatpush1.bf16.msra.mxu0 %v1194
        %1399 = vmatprep.subr.bf16.mxu0 0
        %1400 = vmatpush1.bf16.msra.mxu0 %v1395
        %1401 = vmatprep.subr.bf16.mxu0 0
        %1402 = vmatpush1.bf16.msra.mxu0 0
        %1403 = vmatprep.subr.bf16.mxu0 0
        %1404 = vmatpush1.bf16.msra.mxu0 0
        %1405 = vmatprep.subr.bf16.mxu0 0
        %1406 = vmatpush1.bf16.msra.mxu0 0
        %1407 = vmatprep.subr.bf16.mxu0 0
        %1408 = vmatpush1.bf16.msra.mxu0 0
        %1409 = vmatprep.subr.bf16.mxu0 0
        %1410 = vmatpush1.bf16.msra.mxu0 0
        %1411 = vmatprep.subr.bf16.mxu0 0
        %1412 = vmatpush1.bf16.msra.mxu0 0
        %1413 = vmatprep.subr.bf16.mxu0 0
        %1414 = vmatpush1.bf16.msra.mxu0 0
        %1415 = vmatprep.subr.bf16.mxu0 0
        %1416 = vmatpush1.bf16.msra.mxu0 0
        %1417 = vmatprep.subr.bf16.mxu0 0
        %1418 = vmatpush1.bf16.msra.mxu0 0
        %1419 = vmatprep.subr.bf16.mxu0 0
        %1420 = vmatpush1.bf16.msra.mxu0 0
        %1421 = vmatprep.subr.bf16.mxu0 0
        %1422 = vmatpush1.bf16.msra.mxu0 0
        %1423 = vmatprep.subr.bf16.mxu0 0
        %1424 = vmatpush1.bf16.msra.mxu0 0
        %1425 = vmatprep.subr.bf16.mxu0 0
        %1426 = vmatpush1.bf16.msra.mxu0 0
        %1427 = vmatprep.subr.bf16.mxu0 0
        %1428 = vmatpush1.bf16.msra.mxu0 0
        %1429 = vmatprep.mubr.bf16.mxu0 0
        %1430 = vmatmul.mubr.bf16.gmra.mrb[0].mxu0 %v1199
        %v1431 = vpop.f32.mrb[0].mxu0
        %v1432 = vadd.f32 %v1184, %v1431
        %v1433 = vpop.f32.mrb[0].mxu0
        %v1434 = vpop.f32.mrb[0].mxu0
        %v1435 = vadd.f32 %v1184, %v1434
        %v1436 = vpop.f32.mrb[0].mxu0
        %1437 = vmatprep.mubr.bf16.mxu0 0
        %1438 = vmatmul.mubr.bf16.gmra.mrb[0].mxu0 %v1202
        %v1439 = vpop.f32.mrb[0].mxu0
        %v1440 = vadd.f32 %v1184, %v1439
        %v1441 = vpop.f32.mrb[0].mxu0
        %v1442 = vpop.f32.mrb[0].mxu0
        %v1443 = vadd.f32 %v1184, %v1442
        %v1444 = vpop.f32.mrb[0].mxu0
        %1445 = vmatprep.mubr.bf16.mxu0 0
        %1446 = vmatmul.mubr.bf16.gmra.mrb[0].mxu0 %v1205
        %v1447 = vpop.f32.mrb[0].mxu0
        %v1448 = vadd.f32 %v1184, %v1447
        %v1449 = vpop.f32.mrb[0].mxu0
        %v1450 = vpop.f32.mrb[0].mxu0
        %v1451 = vadd.f32 %v1184, %v1450
        %v1452 = vpop.f32.mrb[0].mxu0
        %1453 = vmatprep.mubr.bf16.mxu0 0
        %1454 = vmatmul.mubr.bf16.gmra.mrb[0].mxu0 %v1208
        %v1455 = vpop.f32.mrb[0].mxu0
        %v1456 = vadd.f32 %v1184, %v1455
        %v1457 = vpop.f32.mrb[0].mxu0
        %v1458 = vpop.f32.mrb[0].mxu0
        %v1459 = vadd.f32 %v1184, %v1458
        %v1460 = vpop.f32.mrb[0].mxu0
        %1461 = vmatprep.mubr.bf16.mxu0 0
        %1462 = vmatmul.mubr.bf16.gmra.mrb[0].mxu0 %v1211
        %v1463 = vpop.f32.mrb[0].mxu0
        %v1464 = vadd.f32 %v1184, %v1463
        %v1465 = vpop.f32.mrb[0].mxu0
        %v1466 = vpop.f32.mrb[0].mxu0
        %v1467 = vadd.f32 %v1184, %v1466
        %v1468 = vpop.f32.mrb[0].mxu0
        %1469 = vmatprep.mubr.bf16.mxu0 0
        %1470 = vmatmul.mubr.bf16.gmra.mrb[0].mxu0 %v1214
        %v1471 = vpop.f32.mrb[0].mxu0
        %v1472 = vadd.f32 %v1184, %v1471
        %v1473 = vpop.f32.mrb[0].mxu0
        %v1474 = vpop.f32.mrb[0].mxu0
        %v1475 = vadd.f32 %v1184, %v1474
        %v1476 = vpop.f32.mrb[0].mxu0
        %1477 = vmatprep.mubr.bf16.mxu0 0
        %1478 = vmatmul.mubr.bf16.gmra.mrb[0].mxu0 %v1217
        %v1479 = vpop.f32.mrb[0].mxu0
        %v1480 = vadd.f32 %v1184, %v1479
        %v1481 = vpop.f32.mrb[0].mxu0
        %v1482 = vpop.f32.mrb[0].mxu0
        %v1483 = vadd.f32 %v1184, %v1482
        %v1484 = vpop.f32.mrb[0].mxu0
        %1485 = vmatprep.mubr.bf16.mxu0 0
        %1486 = vmatmul.mubr.bf16.gmra.mrb[0].mxu0 %v1220
        %v1487 = vpop.f32.mrb[0].mxu0
        %v1488 = vadd.f32 %v1184, %v1487
        %v1489 = vpop.f32.mrb[0].mxu0
        %v1490 = vpop.f32.mrb[0].mxu0
        %v1491 = vadd.f32 %v1184, %v1490
        %v1492 = vpop.f32.mrb[0].mxu0
        %1493 = vmatprep.mubr.bf16.mxu0 0
        %1494 = vmatmul.mubr.bf16.gmra.mrb[0].mxu0 %v1223
        %v1495 = vpop.f32.mrb[0].mxu0
        %v1496 = vadd.f32 %v1184, %v1495
        %v1497 = vpop.f32.mrb[0].mxu0
        %v1498 = vpop.f32.mrb[0].mxu0
        %v1499 = vadd.f32 %v1184, %v1498
        %v1500 = vpop.f32.mrb[0].mxu0
        %1501 = vmatprep.mubr.bf16.mxu0 0
        %1502 = vmatmul.mubr.bf16.gmra.mrb[0].mxu0 %v1226
        %v1503 = vpop.f32.mrb[0].mxu0
        %v1504 = vadd.f32 %v1184, %v1503
        %v1505 = vpop.f32.mrb[0].mxu0
        %v1506 = vpop.f32.mrb[0].mxu0
        %v1507 = vadd.f32 %v1184, %v1506
        %v1508 = vpop.f32.mrb[0].mxu0
        %1509 = vmatprep.mubr.bf16.mxu0 0
        %1510 = vmatmul.mubr.bf16.gmra.mrb[0].mxu0 %v1229
        %v1511 = vpop.f32.mrb[0].mxu0
        %v1512 = vadd.f32 %v1184, %v1511
        %v1513 = vpop.f32.mrb[0].mxu0
        %v1514 = vpop.f32.mrb[0].mxu0
        %v1515 = vadd.f32 %v1184, %v1514
        %v1516 = vpop.f32.mrb[0].mxu0
        %1517 = vmatprep.mubr.bf16.mxu0 0
        %1518 = vmatmul.mubr.bf16.gmra.mrb[0].mxu0 %v1232
        %v1519 = vpop.f32.mrb[0].mxu0
        %v1520 = vadd.f32 %v1184, %v1519
        %v1521 = vpop.f32.mrb[0].mxu0
        %v1522 = vpop.f32.mrb[0].mxu0
        %v1523 = vadd.f32 %v1184, %v1522
        %v1524 = vpop.f32.mrb[0].mxu0
        %1525 = vmatprep.mubr.bf16.mxu0 0
        %1526 = vmatmul.mubr.bf16.gmra.mrb[0].mxu0 %v1235
        %v1527 = vpop.f32.mrb[0].mxu0
        %v1528 = vadd.f32 %v1184, %v1527
        %v1529 = vpop.f32.mrb[0].mxu0
        %v1530 = vpop.f32.mrb[0].mxu0
        %v1531 = vadd.f32 %v1184, %v1530
        %v1532 = vpop.f32.mrb[0].mxu0
        %1533 = vmatprep.mubr.bf16.mxu0 0
        %1534 = vmatmul.mubr.bf16.gmra.mrb[0].mxu0 %v1238
        %v1535 = vpop.f32.mrb[0].mxu0
        %v1536 = vadd.f32 %v1184, %v1535
        %v1537 = vpop.f32.mrb[0].mxu0
        %v1538 = vpop.f32.mrb[0].mxu0
        %v1539 = vadd.f32 %v1184, %v1538
        %v1540 = vpop.f32.mrb[0].mxu0
        %1541 = vmatprep.mubr.bf16.mxu0 0
        %1542 = vmatmul.mubr.bf16.gmra.mrb[0].mxu0 %v1241
        %v1543 = vpop.f32.mrb[0].mxu0
        %v1544 = vadd.f32 %v1184, %v1543
        %v1545 = vpop.f32.mrb[0].mxu0
        %v1546 = vpop.f32.mrb[0].mxu0
        %v1547 = vadd.f32 %v1184, %v1546
        %v1548 = vpop.f32.mrb[0].mxu0
        %1549 = vmatprep.mubr.bf16.mxu0 0
        %1550 = vmatmul.mubr.bf16.gmra.mrb[0].mxu0 %v1244
        %v1551 = vpop.f32.mrb[0].mxu0
        %v1552 = vadd.f32 %v1184, %v1551
        %v1553 = vpop.f32.mrb[0].mxu0
        %v1554 = vpop.f32.mrb[0].mxu0
        %v1555 = vadd.f32 %v1184, %v1554
        %v1556 = vpop.f32.mrb[0].mxu0
        %1557 = vmatprep.mubr.bf16.mxu0 0
        %1558 = vmatmul.mubr.bf16.gmra.mrb[0].mxu0 %v1247
        %v1559 = vpop.f32.mrb[0].mxu0
        %v1560 = vadd.f32 %v1184, %v1559
        %v1561 = vpop.f32.mrb[0].mxu0
        %v1562 = vpop.f32.mrb[0].mxu0
        %v1563 = vadd.f32 %v1184, %v1562
        %v1564 = vpop.f32.mrb[0].mxu0
        %1565 = vmatprep.mubr.bf16.mxu0 0
        %1566 = vmatmul.mubr.bf16.gmra.mrb[0].mxu0 %v1250
        %v1567 = vpop.f32.mrb[0].mxu0
        %v1568 = vadd.f32 %v1184, %v1567
        %v1569 = vpop.f32.mrb[0].mxu0
        %v1570 = vpop.f32.mrb[0].mxu0
        %v1571 = vadd.f32 %v1184, %v1570
        %v1572 = vpop.f32.mrb[0].mxu0
        %1573 = vmatprep.mubr.bf16.mxu0 0
        %1574 = vmatmul.mubr.bf16.gmra.mrb[0].mxu0 %v1253
        %v1575 = vpop.f32.mrb[0].mxu0
        %v1576 = vadd.f32 %v1184, %v1575
        %v1577 = vpop.f32.mrb[0].mxu0
        %v1578 = vpop.f32.mrb[0].mxu0
        %v1579 = vadd.f32 %v1184, %v1578
        %v1580 = vpop.f32.mrb[0].mxu0
        %1581 = vmatprep.mubr.bf16.mxu0 0
        %1582 = vmatmul.mubr.bf16.gmra.mrb[0].mxu0 %v1256
        %v1583 = vpop.f32.mrb[0].mxu0
        %v1584 = vadd.f32 %v1184, %v1583
        %v1585 = vpop.f32.mrb[0].mxu0
        %v1586 = vpop.f32.mrb[0].mxu0
        %v1587 = vadd.f32 %v1184, %v1586
        %v1588 = vpop.f32.mrb[0].mxu0
        %1589 = vmatprep.mubr.bf16.mxu0 0
        %1590 = vmatmul.mubr.bf16.gmra.mrb[0].mxu0 %v1259
        %v1591 = vpop.f32.mrb[0].mxu0
        %v1592 = vadd.f32 %v1184, %v1591
        %v1593 = vpop.f32.mrb[0].mxu0
        %v1594 = vpop.f32.mrb[0].mxu0
        %v1595 = vadd.f32 %v1184, %v1594
        %v1596 = vpop.f32.mrb[0].mxu0
        %1597 = vmatprep.mubr.bf16.mxu0 0
        %1598 = vmatmul.mubr.bf16.gmra.mrb[0].mxu0 %v1262
        %v1599 = vpop.f32.mrb[0].mxu0
        %v1600 = vadd.f32 %v1184, %v1599
        %v1601 = vpop.f32.mrb[0].mxu0
        %v1602 = vpop.f32.mrb[0].mxu0
        %v1603 = vadd.f32 %v1184, %v1602
        %v1604 = vpop.f32.mrb[0].mxu0
        %1605 = vmatprep.mubr.bf16.mxu0 0
        %1606 = vmatmul.mubr.bf16.gmra.mrb[0].mxu0 %v1265
        %v1607 = vpop.f32.mrb[0].mxu0
        %v1608 = vadd.f32 %v1184, %v1607
        %v1609 = vpop.f32.mrb[0].mxu0
        %v1610 = vpop.f32.mrb[0].mxu0
        %v1611 = vadd.f32 %v1184, %v1610
        %v1612 = vpop.f32.mrb[0].mxu0
        %1613 = vmatprep.mubr.bf16.mxu0 0
        %1614 = vmatmul.mubr.bf16.gmra.mrb[0].mxu0 %v1268
        %v1615 = vpop.f32.mrb[0].mxu0
        %v1616 = vadd.f32 %v1184, %v1615
        %v1617 = vpop.f32.mrb[0].mxu0
        %v1618 = vpop.f32.mrb[0].mxu0
        %v1619 = vadd.f32 %v1184, %v1618
        %v1620 = vpop.f32.mrb[0].mxu0
        %1621 = vmatprep.mubr.bf16.mxu0 0
        %1622 = vmatmul.mubr.bf16.gmra.mrb[0].mxu0 %v1271
        %v1623 = vpop.f32.mrb[0].mxu0
        %v1624 = vadd.f32 %v1184, %v1623
        %v1625 = vpop.f32.mrb[0].mxu0
        %v1626 = vpop.f32.mrb[0].mxu0
        %v1627 = vadd.f32 %v1184, %v1626
        %v1628 = vpop.f32.mrb[0].mxu0
        %1629 = vmatprep.mubr.bf16.mxu0 0
        %1630 = vmatmul.mubr.bf16.gmra.mrb[0].mxu0 %v1274
        %v1631 = vpop.f32.mrb[0].mxu0
        %v1632 = vadd.f32 %v1184, %v1631
        %v1633 = vpop.f32.mrb[0].mxu0
        %v1634 = vpop.f32.mrb[0].mxu0
        %v1635 = vadd.f32 %v1184, %v1634
        %v1636 = vpop.f32.mrb[0].mxu0
        %1637 = vmatprep.mubr.bf16.mxu0 0
        %1638 = vmatmul.mubr.bf16.gmra.mrb[0].mxu0 %v1277
        %v1639 = vpop.f32.mrb[0].mxu0
        %v1640 = vadd.f32 %v1184, %v1639
        %v1641 = vpop.f32.mrb[0].mxu0
        %v1642 = vpop.f32.mrb[0].mxu0
        %v1643 = vadd.f32 %v1184, %v1642
        %v1644 = vpop.f32.mrb[0].mxu0
        %1645 = vmatprep.mubr.bf16.mxu0 0
        %1646 = vmatmul.mubr.bf16.gmra.mrb[0].mxu0 %v1280
        %v1647 = vpop.f32.mrb[0].mxu0
        %v1648 = vadd.f32 %v1184, %v1647
        %v1649 = vpop.f32.mrb[0].mxu0
        %v1650 = vpop.f32.mrb[0].mxu0
        %v1651 = vadd.f32 %v1184, %v1650
        %v1652 = vpop.f32.mrb[0].mxu0
        %1653 = vmatprep.mubr.bf16.mxu0 0
        %1654 = vmatmul.mubr.bf16.gmra.mrb[0].mxu0 %v1283
        %v1655 = vpop.f32.mrb[0].mxu0
        %v1656 = vadd.f32 %v1184, %v1655
        %v1657 = vpop.f32.mrb[0].mxu0
        %v1658 = vpop.f32.mrb[0].mxu0
        %v1659 = vadd.f32 %v1184, %v1658
        %v1660 = vpop.f32.mrb[0].mxu0
        %1661 = vmatprep.mubr.bf16.mxu0 0
        %1662 = vmatmul.mubr.bf16.gmra.mrb[0].mxu0 %v1286
        %v1663 = vpop.f32.mrb[0].mxu0
        %v1664 = vadd.f32 %v1184, %v1663
        %v1665 = vpop.f32.mrb[0].mxu0
        %v1666 = vpop.f32.mrb[0].mxu0
        %v1667 = vadd.f32 %v1184, %v1666
        %v1668 = vpop.f32.mrb[0].mxu0
        %1669 = vmatprep.mubr.bf16.mxu0 0
        %1670 = vmatmul.mubr.bf16.gmra.mrb[0].mxu0 %v1289
        %v1671 = vpop.f32.mrb[0].mxu0
        %v1672 = vadd.f32 %v1184, %v1671
        %v1673 = vpop.f32.mrb[0].mxu0
        %v1674 = vpop.f32.mrb[0].mxu0
        %v1675 = vadd.f32 %v1184, %v1674
        %v1676 = vpop.f32.mrb[0].mxu0
        %1677 = vmatprep.mubr.bf16.mxu0 0
        %1678 = vmatmul.mubr.bf16.gmra.mrb[0].mxu0 %v1292
        %v1679 = vpop.f32.mrb[0].mxu0
        %v1680 = vadd.f32 %v1184, %v1679
        %v1681 = vpop.f32.mrb[0].mxu0
        %v1682 = vpop.f32.mrb[0].mxu0
        %v1683 = vadd.f32 %v1184, %v1682
        %v1684 = vpop.f32.mrb[0].mxu0
        %1685 = vmatprep.mubr.bf16.mxu0 0
        %1686 = vmatmul.mubr.bf16.gmra.mrb[0].mxu0 %v1295
        %v1687 = vpop.f32.mrb[0].mxu0
        %v1688 = vadd.f32 %v1184, %v1687
        %v1689 = vpop.f32.mrb[0].mxu0
        %v1690 = vpop.f32.mrb[0].mxu0
        %v1691 = vadd.f32 %v1184, %v1690
        %v1692 = vpop.f32.mrb[0].mxu0
        %1693 = vmatprep.mubr.bf16.mxu0 0
        %1694 = vmatmul.mubr.bf16.gmra.mrb[0].mxu0 %v1298
        %v1695 = vpop.f32.mrb[0].mxu0
        %v1696 = vadd.f32 %v1184, %v1695
        %v1697 = vpop.f32.mrb[0].mxu0
        %v1698 = vpop.f32.mrb[0].mxu0
        %v1699 = vadd.f32 %v1184, %v1698
        %v1700 = vpop.f32.mrb[0].mxu0
        %1701 = vmatprep.mubr.bf16.mxu0 0
        %1702 = vmatmul.mubr.bf16.gmra.mrb[0].mxu0 %v1301
        %v1703 = vpop.f32.mrb[0].mxu0
        %v1704 = vadd.f32 %v1184, %v1703
        %v1705 = vpop.f32.mrb[0].mxu0
        %v1706 = vpop.f32.mrb[0].mxu0
        %v1707 = vadd.f32 %v1184, %v1706
        %v1708 = vpop.f32.mrb[0].mxu0
        %1709 = vmatprep.mubr.bf16.mxu0 0
        %1710 = vmatmul.mubr.bf16.gmra.mrb[0].mxu0 %v1304
        %v1711 = vpop.f32.mrb[0].mxu0
        %v1712 = vadd.f32 %v1184, %v1711
        %v1713 = vpop.f32.mrb[0].mxu0
        %v1714 = vpop.f32.mrb[0].mxu0
        %v1715 = vadd.f32 %v1184, %v1714
        %v1716 = vpop.f32.mrb[0].mxu0
        %1717 = vmatprep.mubr.bf16.mxu0 0
        %1718 = vmatmul.mubr.bf16.gmra.mrb[0].mxu0 %v1307
        %v1719 = vpop.f32.mrb[0].mxu0
        %v1720 = vadd.f32 %v1184, %v1719
        %v1721 = vpop.f32.mrb[0].mxu0
        %v1722 = vpop.f32.mrb[0].mxu0
        %v1723 = vadd.f32 %v1184, %v1722
        %v1724 = vpop.f32.mrb[0].mxu0
        %1725 = vmatprep.mubr.bf16.mxu0 0
        %1726 = vmatmul.mubr.bf16.gmra.mrb[0].mxu0 %v1310
        %v1727 = vpop.f32.mrb[0].mxu0
        %v1728 = vadd.f32 %v1184, %v1727
        %v1729 = vpop.f32.mrb[0].mxu0
        %v1730 = vpop.f32.mrb[0].mxu0
        %v1731 = vadd.f32 %v1184, %v1730
        %v1732 = vpop.f32.mrb[0].mxu0
        %1733 = vmatprep.mubr.bf16.mxu0 0
        %1734 = vmatmul.mubr.bf16.gmra.mrb[0].mxu0 %v1313
        %v1735 = vpop.f32.mrb[0].mxu0
        %v1736 = vadd.f32 %v1184, %v1735
        %v1737 = vpop.f32.mrb[0].mxu0
        %v1738 = vpop.f32.mrb[0].mxu0
        %v1739 = vadd.f32 %v1184, %v1738
        %v1740 = vpop.f32.mrb[0].mxu0
        %1741 = vmatprep.mubr.bf16.mxu0 0
        %1742 = vmatmul.mubr.bf16.gmra.mrb[0].mxu0 %v1316
        %v1743 = vpop.f32.mrb[0].mxu0
        %v1744 = vadd.f32 %v1184, %v1743
        %v1745 = vpop.f32.mrb[0].mxu0
        %v1746 = vpop.f32.mrb[0].mxu0
        %v1747 = vadd.f32 %v1184, %v1746
        %v1748 = vpop.f32.mrb[0].mxu0
        %1749 = vmatprep.mubr.bf16.mxu0 0
        %1750 = vmatmul.mubr.bf16.gmra.mrb[0].mxu0 %v1319
        %v1751 = vpop.f32.mrb[0].mxu0
        %v1752 = vadd.f32 %v1184, %v1751
        %v1753 = vpop.f32.mrb[0].mxu0
        %v1754 = vpop.f32.mrb[0].mxu0
        %v1755 = vadd.f32 %v1184, %v1754
        %v1756 = vpop.f32.mrb[0].mxu0
        %1757 = vmatprep.mubr.bf16.mxu0 0
        %1758 = vmatmul.mubr.bf16.gmra.mrb[0].mxu0 %v1322
        %v1759 = vpop.f32.mrb[0].mxu0
        %v1760 = vadd.f32 %v1184, %v1759
        %v1761 = vpop.f32.mrb[0].mxu0
        %v1762 = vpop.f32.mrb[0].mxu0
        %v1763 = vadd.f32 %v1184, %v1762
        %v1764 = vpop.f32.mrb[0].mxu0
        %1765 = vmatprep.mubr.bf16.mxu0 0
        %1766 = vmatmul.mubr.bf16.gmra.mrb[0].mxu0 %v1325
        %v1767 = vpop.f32.mrb[0].mxu0
        %v1768 = vadd.f32 %v1184, %v1767
        %v1769 = vpop.f32.mrb[0].mxu0
        %v1770 = vpop.f32.mrb[0].mxu0
        %v1771 = vadd.f32 %v1184, %v1770
        %v1772 = vpop.f32.mrb[0].mxu0
        %1773 = vmatprep.mubr.bf16.mxu0 0
        %1774 = vmatmul.mubr.bf16.gmra.mrb[0].mxu0 %v1328
        %v1775 = vpop.f32.mrb[0].mxu0
        %v1776 = vadd.f32 %v1184, %v1775
        %v1777 = vpop.f32.mrb[0].mxu0
        %v1778 = vpop.f32.mrb[0].mxu0
        %v1779 = vadd.f32 %v1184, %v1778
        %v1780 = vpop.f32.mrb[0].mxu0
        %1781 = vmatprep.mubr.bf16.mxu0 0
        %1782 = vmatmul.mubr.bf16.gmra.mrb[0].mxu0 %v1331
        %v1783 = vpop.f32.mrb[0].mxu0
        %v1784 = vadd.f32 %v1184, %v1783
        %v1785 = vpop.f32.mrb[0].mxu0
        %v1786 = vpop.f32.mrb[0].mxu0
        %v1787 = vadd.f32 %v1184, %v1786
        %v1788 = vpop.f32.mrb[0].mxu0
        %1789 = vmatprep.mubr.bf16.mxu0 0
        %1790 = vmatmul.mubr.bf16.gmra.mrb[0].mxu0 %v1334
        %v1791 = vpop.f32.mrb[0].mxu0
        %v1792 = vadd.f32 %v1184, %v1791
        %v1793 = vpop.f32.mrb[0].mxu0
        %v1794 = vpop.f32.mrb[0].mxu0
        %v1795 = vadd.f32 %v1184, %v1794
        %v1796 = vpop.f32.mrb[0].mxu0
        %1797 = vmatprep.mubr.bf16.mxu0 0
        %1798 = vmatmul.mubr.bf16.gmra.mrb[0].mxu0 %v1337
        %v1799 = vpop.f32.mrb[0].mxu0
        %v1800 = vadd.f32 %v1184, %v1799
        %v1801 = vpop.f32.mrb[0].mxu0
        %v1802 = vpop.f32.mrb[0].mxu0
        %v1803 = vadd.f32 %v1184, %v1802
        %v1804 = vpop.f32.mrb[0].mxu0
        %1805 = vmatprep.mubr.bf16.mxu0 0
        %1806 = vmatmul.mubr.bf16.gmra.mrb[0].mxu0 %v1340
        %v1807 = vpop.f32.mrb[0].mxu0
        %v1808 = vadd.f32 %v1184, %v1807
        %v1809 = vpop.f32.mrb[0].mxu0
        %v1810 = vpop.f32.mrb[0].mxu0
        %v1811 = vadd.f32 %v1184, %v1810
        %v1812 = vpop.f32.mrb[0].mxu0
        %1813 = vmatprep.mubr.bf16.mxu0 0
        %1814 = vmatmul.mubr.bf16.gmra.mrb[0].mxu0 %v1343
        %v1815 = vpop.f32.mrb[0].mxu0
        %v1816 = vadd.f32 %v1184, %v1815
        %v1817 = vpop.f32.mrb[0].mxu0
        %v1818 = vpop.f32.mrb[0].mxu0
        %v1819 = vadd.f32 %v1184, %v1818
        %v1820 = vpop.f32.mrb[0].mxu0
        %1821 = vmatprep.mubr.bf16.mxu0 0
        %1822 = vmatmul.mubr.bf16.gmra.mrb[0].mxu0 %v1346
        %v1823 = vpop.f32.mrb[0].mxu0
        %v1824 = vadd.f32 %v1184, %v1823
        %v1825 = vpop.f32.mrb[0].mxu0
        %v1826 = vpop.f32.mrb[0].mxu0
        %v1827 = vadd.f32 %v1184, %v1826
        %v1828 = vpop.f32.mrb[0].mxu0
        %1829 = vmatprep.mubr.bf16.mxu0 0
        %1830 = vmatmul.mubr.bf16.gmra.mrb[0].mxu0 %v1349
        %v1831 = vpop.f32.mrb[0].mxu0
        %v1832 = vadd.f32 %v1184, %v1831
        %v1833 = vpop.f32.mrb[0].mxu0
        %v1834 = vpop.f32.mrb[0].mxu0
        %v1835 = vadd.f32 %v1184, %v1834
        %v1836 = vpop.f32.mrb[0].mxu0
        %1837 = vmatprep.mubr.bf16.mxu0 0
        %1838 = vmatmul.mubr.bf16.gmra.mrb[0].mxu0 %v1352
        %v1839 = vpop.f32.mrb[0].mxu0
        %v1840 = vadd.f32 %v1184, %v1839
        %v1841 = vpop.f32.mrb[0].mxu0
        %v1842 = vpop.f32.mrb[0].mxu0
        %v1843 = vadd.f32 %v1184, %v1842
        %v1844 = vpop.f32.mrb[0].mxu0
        %1845 = vmatprep.mubr.bf16.mxu0 0
        %1846 = vmatmul.mubr.bf16.gmra.mrb[0].mxu0 %v1355
        %v1847 = vpop.f32.mrb[0].mxu0
        %v1848 = vadd.f32 %v1184, %v1847
        %v1849 = vpop.f32.mrb[0].mxu0
        %v1850 = vpop.f32.mrb[0].mxu0
        %v1851 = vadd.f32 %v1184, %v1850
        %v1852 = vpop.f32.mrb[0].mxu0
        %1853 = vmatprep.mubr.bf16.mxu0 0
        %1854 = vmatmul.mubr.bf16.gmra.mrb[0].mxu0 %v1358
        %v1855 = vpop.f32.mrb[0].mxu0
        %v1856 = vadd.f32 %v1184, %v1855
        %v1857 = vpop.f32.mrb[0].mxu0
        %v1858 = vpop.f32.mrb[0].mxu0
        %v1859 = vadd.f32 %v1184, %v1858
        %v1860 = vpop.f32.mrb[0].mxu0
        %1861 = vmatprep.mubr.bf16.mxu0 0
        %1862 = vmatmul.mubr.bf16.gmra.mrb[0].mxu0 %v1361
        %v1863 = vpop.f32.mrb[0].mxu0
        %v1864 = vadd.f32 %v1184, %v1863
        %v1865 = vpop.f32.mrb[0].mxu0
        %v1866 = vpop.f32.mrb[0].mxu0
        %v1867 = vadd.f32 %v1184, %v1866
        %v1868 = vpop.f32.mrb[0].mxu0
        %1869 = vmatprep.mubr.bf16.mxu0 0
        %1870 = vmatmul.mubr.bf16.gmra.mrb[0].mxu0 %v1364
        %v1871 = vpop.f32.mrb[0].mxu0
        %v1872 = vadd.f32 %v1184, %v1871
        %v1873 = vpop.f32.mrb[0].mxu0
        %v1874 = vpop.f32.mrb[0].mxu0
        %v1875 = vadd.f32 %v1184, %v1874
        %v1876 = vpop.f32.mrb[0].mxu0
        %1877 = vmatprep.mubr.bf16.mxu0 0
        %1878 = vmatmul.mubr.bf16.gmra.mrb[0].mxu0 %v1367
        %v1879 = vpop.f32.mrb[0].mxu0
        %v1880 = vadd.f32 %v1184, %v1879
        %v1881 = vpop.f32.mrb[0].mxu0
        %v1882 = vpop.f32.mrb[0].mxu0
        %v1883 = vadd.f32 %v1184, %v1882
        %v1884 = vpop.f32.mrb[0].mxu0
        %1885 = vmatprep.mubr.bf16.mxu0 0
        %1886 = vmatmul.mubr.bf16.gmra.mrb[0].mxu0 %v1370
        %v1887 = vpop.f32.mrb[0].mxu0
        %v1888 = vadd.f32 %v1184, %v1887
        %v1889 = vpop.f32.mrb[0].mxu0
        %v1890 = vpop.f32.mrb[0].mxu0
        %v1891 = vadd.f32 %v1184, %v1890
        %v1892 = vpop.f32.mrb[0].mxu0
        %1893 = vmatprep.mubr.bf16.mxu0 0
        %1894 = vmatmul.mubr.bf16.gmra.mrb[0].mxu0 %v1373
        %v1895 = vpop.f32.mrb[0].mxu0
        %v1896 = vadd.f32 %v1184, %v1895
        %v1897 = vpop.f32.mrb[0].mxu0
        %v1898 = vpop.f32.mrb[0].mxu0
        %v1899 = vadd.f32 %v1184, %v1898
        %v1900 = vpop.f32.mrb[0].mxu0
        %1901 = vmatprep.mubr.bf16.mxu0 0
        %1902 = vmatmul.mubr.bf16.gmra.mrb[0].mxu0 %v1376
        %v1903 = vpop.f32.mrb[0].mxu0
        %v1904 = vadd.f32 %v1184, %v1903
        %v1905 = vpop.f32.mrb[0].mxu0
        %v1906 = vpop.f32.mrb[0].mxu0
        %v1907 = vadd.f32 %v1184, %v1906
        %v1908 = vpop.f32.mrb[0].mxu0
        %1909 = vmatprep.mubr.bf16.mxu0 0
        %1910 = vmatmul.mubr.bf16.gmra.mrb[0].mxu0 %v1379
        %v1911 = vpop.f32.mrb[0].mxu0
        %v1912 = vadd.f32 %v1184, %v1911
        %v1913 = vpop.f32.mrb[0].mxu0
        %v1914 = vpop.f32.mrb[0].mxu0
        %v1915 = vadd.f32 %v1184, %v1914
        %v1916 = vpop.f32.mrb[0].mxu0
        %1917 = vmatprep.mubr.bf16.mxu0 0
        %1918 = vmatmul.mubr.bf16.gmra.mrb[0].mxu0 %v1382
        %v1919 = vpop.f32.mrb[0].mxu0
        %v1920 = vadd.f32 %v1184, %v1919
        %v1921 = vpop.f32.mrb[0].mxu0
        %v1922 = vpop.f32.mrb[0].mxu0
        %v1923 = vadd.f32 %v1184, %v1922
        %v1924 = vpop.f32.mrb[0].mxu0
        %1925 = vmatprep.mubr.bf16.mxu0 0
        %1926 = vmatmul.mubr.bf16.gmra.mrb[0].mxu0 %v1385
        %v1927 = vpop.f32.mrb[0].mxu0
        %v1928 = vadd.f32 %v1184, %v1927
        %v1929 = vpop.f32.mrb[0].mxu0
        %v1930 = vpop.f32.mrb[0].mxu0
        %v1931 = vadd.f32 %v1184, %v1930
        %v1932 = vpop.f32.mrb[0].mxu0
        %1933 = vmatprep.mubr.bf16.mxu0 0
        %1934 = vmatmul.mubr.bf16.gmra.mrb[0].mxu0 %v1388
        %v1935 = vpop.f32.mrb[0].mxu0
        %v1936 = vadd.f32 %v1184, %v1935
        %v1937 = vpop.f32.mrb[0].mxu0
        %v1938 = vpop.f32.mrb[0].mxu0
        %v1939 = vadd.f32 %v1184, %v1938
        %v1940 = vpop.f32.mrb[0].mxu0
        %1941 = vdwg.mxu0
        %v1942 = vmax.f32 %v1432, 0.0
        %v1943 = vmax.f32 %v1435, 0.0
        %v1944 = vmax.f32 %v1440, 0.0
        %v1945 = vmax.f32 %v1443, 0.0
        %v1946 = vmax.f32 %v1448, 0.0
        %v1947 = vmax.f32 %v1451, 0.0
        %v1948 = vmax.f32 %v1456, 0.0
        %v1949 = vmax.f32 %v1459, 0.0
        %v1950 = vmax.f32 %v1464, 0.0
        %v1951 = vmax.f32 %v1467, 0.0
        %v1952 = vmax.f32 %v1472, 0.0
        %v1953 = vmax.f32 %v1475, 0.0
        %v1954 = vmax.f32 %v1480, 0.0
        %v1955 = vmax.f32 %v1483, 0.0
        %v1956 = vmax.f32 %v1488, 0.0
        %v1957 = vmax.f32 %v1491, 0.0
        %v1958 = vmax.f32 %v1496, 0.0
        %v1959 = vmax.f32 %v1499, 0.0
        %v1960 = vmax.f32 %v1504, 0.0
        %v1961 = vmax.f32 %v1507, 0.0
        %v1962 = vmax.f32 %v1512, 0.0
        %v1963 = vmax.f32 %v1515, 0.0
        %v1964 = vmax.f32 %v1520, 0.0
        %v1965 = vmax.f32 %v1523, 0.0
        %v1966 = vmax.f32 %v1528, 0.0
        %v1967 = vmax.f32 %v1531, 0.0
        %v1968 = vmax.f32 %v1536, 0.0
        %v1969 = vmax.f32 %v1539, 0.0
        %v1970 = vmax.f32 %v1544, 0.0
        %v1971 = vmax.f32 %v1547, 0.0
        %v1972 = vmax.f32 %v1552, 0.0
        %v1973 = vmax.f32 %v1555, 0.0
        %v1974 = vmax.f32 %v1560, 0.0
        %v1975 = vmax.f32 %v1563, 0.0
        %v1976 = vmax.f32 %v1568, 0.0
        %v1977 = vmax.f32 %v1571, 0.0
        %v1978 = vmax.f32 %v1576, 0.0
        %v1979 = vmax.f32 %v1579, 0.0
        %v1980 = vmax.f32 %v1584, 0.0
        %v1981 = vmax.f32 %v1587, 0.0
        %v1982 = vmax.f32 %v1592, 0.0
        %v1983 = vmax.f32 %v1595, 0.0
        %v1984 = vmax.f32 %v1600, 0.0
        %v1985 = vmax.f32 %v1603, 0.0
        %v1986 = vmax.f32 %v1608, 0.0
        %v1987 = vmax.f32 %v1611, 0.0
        %v1988 = vmax.f32 %v1616, 0.0
        %v1989 = vmax.f32 %v1619, 0.0
        %v1990 = vmax.f32 %v1624, 0.0
        %v1991 = vmax.f32 %v1627, 0.0
        %v1992 = vmax.f32 %v1632, 0.0
        %v1993 = vmax.f32 %v1635, 0.0
        %v1994 = vmax.f32 %v1640, 0.0
        %v1995 = vmax.f32 %v1643, 0.0
        %v1996 = vmax.f32 %v1648, 0.0
        %v1997 = vmax.f32 %v1651, 0.0
        %v1998 = vmax.f32 %v1656, 0.0
        %v1999 = vmax.f32 %v1659, 0.0
        %v2000 = vmax.f32 %v1664, 0.0
        %v2001 = vmax.f32 %v1667, 0.0
        %v2002 = vmax.f32 %v1672, 0.0
        %v2003 = vmax.f32 %v1675, 0.0
        %v2004 = vmax.f32 %v1680, 0.0
        %v2005 = vmax.f32 %v1683, 0.0
        %v2006 = vmax.f32 %v1688, 0.0
        %v2007 = vmax.f32 %v1691, 0.0
        %v2008 = vmax.f32 %v1696, 0.0
        %v2009 = vmax.f32 %v1699, 0.0
        %v2010 = vmax.f32 %v1704, 0.0
        %v2011 = vmax.f32 %v1707, 0.0
        %v2012 = vmax.f32 %v1712, 0.0
        %v2013 = vmax.f32 %v1715, 0.0
        %v2014 = vmax.f32 %v1720, 0.0
        %v2015 = vmax.f32 %v1723, 0.0
        %v2016 = vmax.f32 %v1728, 0.0
        %v2017 = vmax.f32 %v1731, 0.0
        %v2018 = vmax.f32 %v1736, 0.0
        %v2019 = vmax.f32 %v1739, 0.0
        %v2020 = vmax.f32 %v1744, 0.0
        %v2021 = vmax.f32 %v1747, 0.0
        %v2022 = vmax.f32 %v1752, 0.0
        %v2023 = vmax.f32 %v1755, 0.0
        %v2024 = vmax.f32 %v1760, 0.0
        %v2025 = vmax.f32 %v1763, 0.0
        %v2026 = vmax.f32 %v1768, 0.0
        %v2027 = vmax.f32 %v1771, 0.0
        %v2028 = vmax.f32 %v1776, 0.0
        %v2029 = vmax.f32 %v1779, 0.0
        %v2030 = vmax.f32 %v1784, 0.0
        %v2031 = vmax.f32 %v1787, 0.0
        %v2032 = vmax.f32 %v1792, 0.0
        %v2033 = vmax.f32 %v1795, 0.0
        %v2034 = vmax.f32 %v1800, 0.0
        %v2035 = vmax.f32 %v1803, 0.0
        %v2036 = vmax.f32 %v1808, 0.0
        %v2037 = vmax.f32 %v1811, 0.0
        %v2038 = vmax.f32 %v1816, 0.0
        %v2039 = vmax.f32 %v1819, 0.0
        %v2040 = vmax.f32 %v1824, 0.0
        %v2041 = vmax.f32 %v1827, 0.0
        %v2042 = vmax.f32 %v1832, 0.0
        %v2043 = vmax.f32 %v1835, 0.0
        %v2044 = vmax.f32 %v1840, 0.0
        %v2045 = vmax.f32 %v1843, 0.0
        %v2046 = vmax.f32 %v1848, 0.0
        %v2047 = vmax.f32 %v1851, 0.0
        %v2048 = vmax.f32 %v1856, 0.0
        %v2049 = vmax.f32 %v1859, 0.0
        %v2050 = vmax.f32 %v1864, 0.0
        %v2051 = vmax.f32 %v1867, 0.0
        %v2052 = vmax.f32 %v1872, 0.0
        %v2053 = vmax.f32 %v1875, 0.0
        %v2054 = vmax.f32 %v1880, 0.0
        %v2055 = vmax.f32 %v1883, 0.0
        %v2056 = vmax.f32 %v1888, 0.0
        %v2057 = vmax.f32 %v1891, 0.0
        %v2058 = vmax.f32 %v1896, 0.0
        %v2059 = vmax.f32 %v1899, 0.0
        %v2060 = vmax.f32 %v1904, 0.0
        %v2061 = vmax.f32 %v1907, 0.0
        %v2062 = vmax.f32 %v1912, 0.0
        %v2063 = vmax.f32 %v1915, 0.0
        %v2064 = vmax.f32 %v1920, 0.0
        %v2065 = vmax.f32 %v1923, 0.0
        %v2066 = vmax.f32 %v1928, 0.0
        %v2067 = vmax.f32 %v1931, 0.0
        %v2068 = vmax.f32 %v1936, 0.0
        %v2069 = vmax.f32 %v1939, 0.0
        %v2070 = vmax.f32 %v1942, %v1974
        %v2071 = vmax.f32 %v1943, %v1975
        %v2072 = vmax.f32 %v1944, %v1976
        %v2073 = vmax.f32 %v1945, %v1977
        %v2074 = vmax.f32 %v1946, %v1978
        %v2075 = vmax.f32 %v1947, %v1979
        %v2076 = vmax.f32 %v1948, %v1980
        %v2077 = vmax.f32 %v1949, %v1981
        %v2078 = vmax.f32 %v1950, %v1982
        %v2079 = vmax.f32 %v1951, %v1983
        %v2080 = vmax.f32 %v1952, %v1984
        %v2081 = vmax.f32 %v1953, %v1985
        %v2082 = vmax.f32 %v1954, %v1986
        %v2083 = vmax.f32 %v1955, %v1987
        %v2084 = vmax.f32 %v1956, %v1988
        %v2085 = vmax.f32 %v1957, %v1989
        %v2086 = vmax.f32 %v1958, %v1990
        %v2087 = vmax.f32 %v1959, %v1991
        %v2088 = vmax.f32 %v1960, %v1992
        %v2089 = vmax.f32 %v1961, %v1993
        %v2090 = vmax.f32 %v1962, %v1994
        %v2091 = vmax.f32 %v1963, %v1995
        %v2092 = vmax.f32 %v1964, %v1996
        %v2093 = vmax.f32 %v1965, %v1997
        %v2094 = vmax.f32 %v1966, %v1998
        %v2095 = vmax.f32 %v1967, %v1999
        %v2096 = vmax.f32 %v1968, %v2000
        %v2097 = vmax.f32 %v1969, %v2001
        %v2098 = vmax.f32 %v1970, %v2002
        %v2099 = vmax.f32 %v1971, %v2003
        %v2100 = vmax.f32 %v1972, %v2004
        %v2101 = vmax.f32 %v1973, %v2005
        %v2102 = vmax.f32 %v2006, %v2038
        %v2103 = vmax.f32 %v2007, %v2039
        %v2104 = vmax.f32 %v2008, %v2040
        %v2105 = vmax.f32 %v2009, %v2041
        %v2106 = vmax.f32 %v2010, %v2042
        %v2107 = vmax.f32 %v2011, %v2043
        %v2108 = vmax.f32 %v2012, %v2044
        %v2109 = vmax.f32 %v2013, %v2045
        %v2110 = vmax.f32 %v2014, %v2046
        %v2111 = vmax.f32 %v2015, %v2047
        %v2112 = vmax.f32 %v2016, %v2048
        %v2113 = vmax.f32 %v2017, %v2049
        %v2114 = vmax.f32 %v2018, %v2050
        %v2115 = vmax.f32 %v2019, %v2051
        %v2116 = vmax.f32 %v2020, %v2052
        %v2117 = vmax.f32 %v2021, %v2053
        %v2118 = vmax.f32 %v2022, %v2054
        %v2119 = vmax.f32 %v2023, %v2055
        %v2120 = vmax.f32 %v2024, %v2056
        %v2121 = vmax.f32 %v2025, %v2057
        %v2122 = vmax.f32 %v2026, %v2058
        %v2123 = vmax.f32 %v2027, %v2059
        %v2124 = vmax.f32 %v2028, %v2060
        %v2125 = vmax.f32 %v2029, %v2061
        %v2126 = vmax.f32 %v2030, %v2062
        %v2127 = vmax.f32 %v2031, %v2063
        %v2128 = vmax.f32 %v2032, %v2064
        %v2129 = vmax.f32 %v2033, %v2065
        %v2130 = vmax.f32 %v2034, %v2066
        %v2131 = vmax.f32 %v2035, %v2067
        %v2132 = vmax.f32 %v2036, %v2068
        %v2133 = vmax.f32 %v2037, %v2069
        %v2134 = vmax.f32 %v2070, %v2102
        %v2135 = vmax.f32 %v2071, %v2103
        %v2136 = vmax.f32 %v2072, %v2104
        %v2137 = vmax.f32 %v2073, %v2105
        %v2138 = vmax.f32 %v2074, %v2106
        %v2139 = vmax.f32 %v2075, %v2107
        %v2140 = vmax.f32 %v2076, %v2108
        %v2141 = vmax.f32 %v2077, %v2109
        %v2142 = vmax.f32 %v2078, %v2110
        %v2143 = vmax.f32 %v2079, %v2111
        %v2144 = vmax.f32 %v2080, %v2112
        %v2145 = vmax.f32 %v2081, %v2113
        %v2146 = vmax.f32 %v2082, %v2114
        %v2147 = vmax.f32 %v2083, %v2115
        %v2148 = vmax.f32 %v2084, %v2116
        %v2149 = vmax.f32 %v2085, %v2117
        %v2150 = vmax.f32 %v2086, %v2118
        %v2151 = vmax.f32 %v2087, %v2119
        %v2152 = vmax.f32 %v2088, %v2120
        %v2153 = vmax.f32 %v2089, %v2121
        %v2154 = vmax.f32 %v2090, %v2122
        %v2155 = vmax.f32 %v2091, %v2123
        %v2156 = vmax.f32 %v2092, %v2124
        %v2157 = vmax.f32 %v2093, %v2125
        %v2158 = vmax.f32 %v2094, %v2126
        %v2159 = vmax.f32 %v2095, %v2127
        %v2160 = vmax.f32 %v2096, %v2128
        %v2161 = vmax.f32 %v2097, %v2129
        %v2162 = vmax.f32 %v2098, %v2130
        %v2163 = vmax.f32 %v2099, %v2131
        %v2164 = vmax.f32 %v2100, %v2132
        %v2165 = vmax.f32 %v2101, %v2133
        %v2166 = vpack.c.bf16 %v2135, %v2134
        %v2167 = vpack.c.bf16 %v2137, %v2136
        %v2168 = vpack.c.bf16 %v2139, %v2138
        %v2169 = vpack.c.bf16 %v2141, %v2140
        %v2170 = vpack.c.bf16 %v2143, %v2142
        %v2171 = vpack.c.bf16 %v2145, %v2144
        %v2172 = vpack.c.bf16 %v2147, %v2146
        %v2173 = vpack.c.bf16 %v2149, %v2148
        %v2174 = vpack.c.bf16 %v2151, %v2150
        %v2175 = vpack.c.bf16 %v2153, %v2152
        %v2176 = vpack.c.bf16 %v2155, %v2154
        %v2177 = vpack.c.bf16 %v2157, %v2156
        %v2178 = vpack.c.bf16 %v2159, %v2158
        %v2179 = vpack.c.bf16 %v2161, %v2160
        %v2180 = vpack.c.bf16 %v2163, %v2162
        %v2181 = vpack.c.bf16 %v2165, %v2164
        %v2198 = vunpack.c.l.b16 %v2166
        %v2199 = vunpack.c.h.b16 %v2166
        %v2200 = vunpack.c.l.b16 %v2167
        %v2201 = vunpack.c.h.b16 %v2167
        %v2202 = vunpack.c.l.b16 %v2168
        %v2203 = vunpack.c.h.b16 %v2168
        %v2204 = vunpack.c.l.b16 %v2169
        %v2205 = vunpack.c.h.b16 %v2169
        %v2206 = vunpack.c.l.b16 %v2170
        %v2207 = vunpack.c.h.b16 %v2170
        %v2208 = vunpack.c.l.b16 %v2171
        %v2209 = vunpack.c.h.b16 %v2171
        %v2210 = vunpack.c.l.b16 %v2172
        %v2211 = vunpack.c.h.b16 %v2172
        %v2212 = vunpack.c.l.b16 %v2173
        %v2213 = vunpack.c.h.b16 %v2173
        %v2214 = vunpack.c.l.b16 %v2174
        %v2215 = vunpack.c.h.b16 %v2174
        %v2216 = vunpack.c.l.b16 %v2175
        %v2217 = vunpack.c.h.b16 %v2175
        %v2218 = vunpack.c.l.b16 %v2176
        %v2219 = vunpack.c.h.b16 %v2176
        %v2220 = vunpack.c.l.b16 %v2177
        %v2221 = vunpack.c.h.b16 %v2177
        %v2222 = vunpack.c.l.b16 %v2178
        %v2223 = vunpack.c.h.b16 %v2178
        %v2224 = vunpack.c.l.b16 %v2179
        %v2225 = vunpack.c.h.b16 %v2179
        %v2226 = vunpack.c.l.b16 %v2180
        %v2227 = vunpack.c.h.b16 %v2180
        %v2228 = vunpack.c.l.b16 %v2181
        %v2229 = vunpack.c.h.b16 %v2181
        %v2230 = vpack.c.b16 %v2198, %v2198
        %v2231 = vpack.c.b16 %v2199, %v2199
        %v2232 = vpack.c.b16 %v2200, %v2200
        %v2233 = vpack.c.b16 %v2201, %v2201
        %v2234 = vpack.c.b16 %v2202, %v2202
        %v2235 = vpack.c.b16 %v2203, %v2203
        %v2236 = vpack.c.b16 %v2204, %v2204
        %v2237 = vpack.c.b16 %v2205, %v2205
        %v2238 = vpack.c.b16 %v2206, %v2206
        %v2239 = vpack.c.b16 %v2207, %v2207
        %v2240 = vpack.c.b16 %v2208, %v2208
        %v2241 = vpack.c.b16 %v2209, %v2209
        %v2242 = vpack.c.b16 %v2210, %v2210
        %v2243 = vpack.c.b16 %v2211, %v2211
        %v2244 = vpack.c.b16 %v2212, %v2212
        %v2245 = vpack.c.b16 %v2213, %v2213
        %v2246 = vpack.c.b16 %v2214, %v2214
        %v2247 = vpack.c.b16 %v2215, %v2215
        %v2248 = vpack.c.b16 %v2216, %v2216
        %v2249 = vpack.c.b16 %v2217, %v2217
        %v2250 = vpack.c.b16 %v2218, %v2218
        %v2251 = vpack.c.b16 %v2219, %v2219
        %v2252 = vpack.c.b16 %v2220, %v2220
        %v2253 = vpack.c.b16 %v2221, %v2221
        %v2254 = vpack.c.b16 %v2222, %v2222
        %v2255 = vpack.c.b16 %v2223, %v2223
        %v2256 = vpack.c.b16 %v2224, %v2224
        %v2257 = vpack.c.b16 %v2225, %v2225
        %v2258 = vpack.c.b16 %v2226, %v2226
        %v2259 = vpack.c.b16 %v2227, %v2227
        %v2260 = vpack.c.b16 %v2228, %v2228
        %v2261 = vpack.c.b16 %v2229, %v2229
        %vm2294 = vcmask 257024
        %2295 = vst.msk [vmem:[%s721] sm:$0xf] %vm2294, %v2230
        %2296 = vst.msk [vmem:[%s721 + $0x4] sm:$0xf] %vm2294, %v2231
        %2297 = vst.msk [vmem:[%s721 + $0x8] sm:$0xf] %vm2294, %v2232
        %2298 = vst.msk [vmem:[%s721 + $0xc] sm:$0xf] %vm2294, %v2233
        %2299 = vst.msk [vmem:[%s721 + $0x10] sm:$0xf] %vm2294, %v2234
        %2300 = vst.msk [vmem:[%s721 + $0x14] sm:$0xf] %vm2294, %v2235
        %2301 = vst.msk [vmem:[%s721 + $0x18] sm:$0xf] %vm2294, %v2236
        %2302 = vst.msk [vmem:[%s721 + $0x1c] sm:$0xf] %vm2294, %v2237
        %2303 = vst.msk [vmem:[%s721 + $0x20] sm:$0xf] %vm2294, %v2238
        %2304 = vst.msk [vmem:[%s721 + $0x24] sm:$0xf] %vm2294, %v2239
        %2305 = vst.msk [vmem:[%s721 + $0x28] sm:$0xf] %vm2294, %v2240
        %2306 = vst.msk [vmem:[%s721 + $0x2c] sm:$0xf] %vm2294, %v2241
        %2307 = vst.msk [vmem:[%s721 + $0x30] sm:$0xf] %vm2294, %v2242
        %2308 = vst.msk [vmem:[%s721 + $0x34] sm:$0xf] %vm2294, %v2243
        %2309 = vst.msk [vmem:[%s721 + $0x38] sm:$0xf] %vm2294, %v2244
        %2310 = vst.msk [vmem:[%s721 + $0x3c] sm:$0xf] %vm2294, %v2245
        %2311 = vst.msk [vmem:[%s721 + $0x40] sm:$0xf] %vm2294, %v2246
        %2312 = vst.msk [vmem:[%s721 + $0x44] sm:$0xf] %vm2294, %v2247
        %2313 = vst.msk [vmem:[%s721 + $0x48] sm:$0xf] %vm2294, %v2248
        %2314 = vst.msk [vmem:[%s721 + $0x4c] sm:$0xf] %vm2294, %v2249
        %2315 = vst.msk [vmem:[%s721 + $0x50] sm:$0xf] %vm2294, %v2250
        %2316 = vst.msk [vmem:[%s721 + $0x54] sm:$0xf] %vm2294, %v2251
        %2317 = vst.msk [vmem:[%s721 + $0x58] sm:$0xf] %vm2294, %v2252
        %2318 = vst.msk [vmem:[%s721 + $0x5c] sm:$0xf] %vm2294, %v2253
        %2319 = vst.msk [vmem:[%s721 + $0x60] sm:$0xf] %vm2294, %v2254
        %2320 = vst.msk [vmem:[%s721 + $0x64] sm:$0xf] %vm2294, %v2255
        %2321 = vst.msk [vmem:[%s721 + $0x68] sm:$0xf] %vm2294, %v2256
        %2322 = vst.msk [vmem:[%s721 + $0x6c] sm:$0xf] %vm2294, %v2257
        %2323 = vst.msk [vmem:[%s721 + $0x70] sm:$0xf] %vm2294, %v2258
        %2324 = vst.msk [vmem:[%s721 + $0x74] sm:$0xf] %vm2294, %v2259
        %2325 = vst.msk [vmem:[%s721 + $0x78] sm:$0xf] %vm2294, %v2260
        %2326 = vst.msk [vmem:[%s721 + $0x7c] sm:$0xf] %vm2294, %v2261
        %s2327 = smul.u32 32, %s14
        %p2328 = scmp.lt.s32.totalorder %s2327, 159
        %s2329 = scalar_select %p2328, %s2327, 159
        %s2330 = smul.addr %s2329, 4
        %s2331 = scalar_lea.vmem %s3, %s2330
        // Predicated region
        $region74: #{net_forward.4} parent=68 // pred_check
          %p2332 = pneg %p100
        $region75: #{net_forward.4} parent=68 // pred_check_branch
          %2334 = sbr.rel (%p2332) target = $region77
        $region76: #{net_forward.4} parent=68 // pred_region
          %s2335 = smul.u32 32, %s14
        $region77: #{net_forward.4} parent=68 // pred_fallthru
          _
      $region69: #{net_forward.4} parent=5 // pred_fallthru
        _
      %p2336 = scmp.le.s32.totalorder 2, %s9
      // Predicated region
      $region78: #{net_forward.4} parent=5 // pred_check
        %p2337 = pneg %p2336
      $region79: #{net_forward.4} parent=5 // pred_check_branch
        %2339 = sbr.rel (%p2337) target = $region81
      $region80: #{net_forward.4} parent=5 // pred_region
        %s2340 = ssub.s32 %s9, 2
        // Predicated region
        $region82: #{net_forward.4} parent=80 // pred_check
          %p2341 = pneg %p106
        $region83: #{net_forward.4} parent=80 // pred_check_branch
          %2343 = sbr.rel (%p2341) target = $region85
        $region84: #{net_forward.4} parent=80 // pred_region
          %s2344 = smul.u32 32, %s15
          %p2345 = scmp.lt.s32.totalorder %s2344, 159
          %s2346 = scalar_select %p2345, %s2344, 159
          %s2347 = smul.addr %s2346, 4
          %s2348 = scalar_lea.vmem %s3, %s2347
        $region85: #{net_forward.4} parent=80 // pred_fallthru
          _
      $region81: #{net_forward.4} parent=5 // pred_fallthru
        _
    $region6: #{net_forward.4} parent=1 // loop_footer
      %s13 = sadd.s32 1, %s9
    $region7: #{net_forward.4} parent=1 // loop_footer_branch
      %8 = sbr.rel target = $region3
    $region8: #{net_forward.4} parent=1 // loop_exit
      _

// kernel: net_forward.5
$region0: #{net_forward.5}
  #allocation0 [shape = 'u32[]', space=smem, size = 0x4, offset = 0x4, fixed_abs, tag = 'smem constant byte address 0x4 - core index']
  #allocation1 [shape = 'u32[144,128]{1,0:T(1,128)}', space=vmem, size = 0x12000, scoped, tag = 'internal scratch']
  %s0 = inlined_call_operand.vmem [shape: bf16[4,176,800], index: 0, kind: input, shape index: {}]
  %s1 = inlined_call_operand.vmem [shape: bf16[800,64], index: 1, kind: input, shape index: {}]
  %s2 = inlined_call_operand.vmem [shape: f32[1,64], index: 2, kind: input, shape index: {}]
  %s3 = inlined_call_operand.vmem [shape: bf16[176,64], index: 3, kind: output, shape index: {}]
  %s4 = sld [smem:[#allocation0]]
  $region22: #{net_forward.5} parent=0
    _
  %s6 = ssub.s32 1, %s4
  %s7 = scalar_select 0, %s6, %s4
  // Predicated region
  $region2: #{net_forward.5} parent=0 // pred_check
    _
  $region3: #{net_forward.5} parent=0 // pred_check_branch
    %9 = sbr.rel (0) target = $region5
  $region4: #{net_forward.5} parent=0 // pred_region
    _
  $region5: #{net_forward.5} parent=0 // pred_fallthru
    _
  // Predicated region
  $region6: #{net_forward.5} parent=0 // pred_check
    _
  $region7: #{net_forward.5} parent=0 // pred_check_branch
    %11 = sbr.rel (0) target = $region9
  $region8: #{net_forward.5} parent=0 // pred_region
    _
  $region9: #{net_forward.5} parent=0 // pred_fallthru
    _
  // Predicated region
  $region10: #{net_forward.5} parent=0 // pred_check
    _
  $region11: #{net_forward.5} parent=0 // pred_check_branch
    %13 = sbr.rel (0) target = $region13
  $region12: #{net_forward.5} parent=0 // pred_region
    _
  $region13: #{net_forward.5} parent=0 // pred_fallthru
    _
  %v15 = vld [vmem:[%s0] sm:$0xff]
  %v16 = vld [vmem:[%s0 + $0x8] sm:$0xff]
  %v17 = vld [vmem:[%s0 + $0x10] sm:$0xff]
  %v18 = vld [vmem:[%s0 + $0x18] sm:$0xf]
  %v19 = vld [vmem:[%s0 + $0x1c] sm:$0xff]
  %v20 = vld [vmem:[%s0 + $0x24] sm:$0xff]
  %v21 = vld [vmem:[%s0 + $0x2c] sm:$0xff]
  %v22 = vld [vmem:[%s0 + $0x34] sm:$0xf]
  %v23 = vld [vmem:[%s0 + $0x38] sm:$0xff]
  %v24 = vld [vmem:[%s0 + $0x40] sm:$0xff]
  %v25 = vld [vmem:[%s0 + $0x48] sm:$0xff]
  %v26 = vld [vmem:[%s0 + $0x50] sm:$0xf]
  %v27 = vld [vmem:[%s0 + $0x54] sm:$0xff]
  %v28 = vld [vmem:[%s0 + $0x5c] sm:$0xff]
  %v29 = vld [vmem:[%s0 + $0x64] sm:$0xff]
  %v30 = vld [vmem:[%s0 + $0x6c] sm:$0xf]
  %v31 = vld [vmem:[%s0 + $0x70] sm:$0xff]
  %v32 = vld [vmem:[%s0 + $0x78] sm:$0xff]
  %v33 = vld [vmem:[%s0 + $0x80] sm:$0xff]
  %v34 = vld [vmem:[%s0 + $0x88] sm:$0xf]
  %v35 = vld [vmem:[%s0 + $0x8c] sm:$0xff]
  %v36 = vld [vmem:[%s0 + $0x94] sm:$0xff]
  %v37 = vld [vmem:[%s0 + $0x9c] sm:$0xff]
  %v38 = vld [vmem:[%s0 + $0xa4] sm:$0xf]
  %v39 = vld [vmem:[%s0 + $0xa8] sm:$0xff]
  %v40 = vld [vmem:[%s0 + $0xb0] sm:$0xff]
  %v41 = vld [vmem:[%s0 + $0xb8] sm:$0xff]
  %v42 = vld [vmem:[%s0 + $0xc0] sm:$0xf]
  %v43 = vld [vmem:[%s0 + $0xc4] sm:$0xff]
  %v44 = vld [vmem:[%s0 + $0xcc] sm:$0xff]
  %v45 = vld [vmem:[%s0 + $0xd4] sm:$0xff]
  %v46 = vld [vmem:[%s0 + $0xdc] sm:$0xf]
  %v47 = vld [vmem:[%s0 + $0xe0] sm:$0xff]
  %v48 = vld [vmem:[%s0 + $0xe8] sm:$0xff]
  %v49 = vld [vmem:[%s0 + $0xf0] sm:$0xff]
  %v50 = vld [vmem:[%s0 + $0xf8] sm:$0xf]
  %v51 = vld [vmem:[%s0 + $0xfc] sm:$0xff]
  %v52 = vld [vmem:[%s0 + $0x104] sm:$0xff]
  %v53 = vld [vmem:[%s0 + $0x10c] sm:$0xff]
  %v54 = vld [vmem:[%s0 + $0x114] sm:$0xf]
  %v55 = vld [vmem:[%s0 + $0x118] sm:$0xff]
  %v56 = vld [vmem:[%s0 + $0x120] sm:$0xff]
  %v57 = vld [vmem:[%s0 + $0x128] sm:$0xff]
  %v58 = vld [vmem:[%s0 + $0x130] sm:$0xf]
  %v59 = vld [vmem:[%s0 + $0x134] sm:$0xff]
  %v60 = vld [vmem:[%s0 + $0x13c] sm:$0xff]
  %v61 = vld [vmem:[%s0 + $0x144] sm:$0xff]
  %v62 = vld [vmem:[%s0 + $0x14c] sm:$0xf]
  %v63 = vld [vmem:[%s0 + $0x150] sm:$0xff]
  %v64 = vld [vmem:[%s0 + $0x158] sm:$0xff]
  %v65 = vld [vmem:[%s0 + $0x160] sm:$0xff]
  %v66 = vld [vmem:[%s0 + $0x168] sm:$0xf]
  %v67 = vld [vmem:[%s0 + $0x16c] sm:$0xff]
  %v68 = vld [vmem:[%s0 + $0x174] sm:$0xff]
  %v69 = vld [vmem:[%s0 + $0x17c] sm:$0xff]
  %v70 = vld [vmem:[%s0 + $0x184] sm:$0xf]
  %v71 = vld [vmem:[%s0 + $0x188] sm:$0xff]
  %v72 = vld [vmem:[%s0 + $0x190] sm:$0xff]
  %v73 = vld [vmem:[%s0 + $0x198] sm:$0xff]
  %v74 = vld [vmem:[%s0 + $0x1a0] sm:$0xf]
  %v75 = vld [vmem:[%s0 + $0x1a4] sm:$0xff]
  %v76 = vld [vmem:[%s0 + $0x1ac] sm:$0xff]
  %v77 = vld [vmem:[%s0 + $0x1b4] sm:$0xff]
  %v78 = vld [vmem:[%s0 + $0x1bc] sm:$0xf]
  %v79 = vld [vmem:[%s0 + $0x1c0] sm:$0xff]
  %v80 = vld [vmem:[%s0 + $0x1c8] sm:$0xff]
  %v81 = vld [vmem:[%s0 + $0x1d0] sm:$0xff]
  %v82 = vld [vmem:[%s0 + $0x1d8] sm:$0xf]
  %v83 = vld [vmem:[%s0 + $0x1dc] sm:$0xff]
  %v84 = vld [vmem:[%s0 + $0x1e4] sm:$0xff]
  %v85 = vld [vmem:[%s0 + $0x1ec] sm:$0xff]
  %v86 = vld [vmem:[%s0 + $0x1f4] sm:$0xf]
  %v87 = vld [vmem:[%s0 + $0x1f8] sm:$0xff]
  %v88 = vld [vmem:[%s0 + $0x200] sm:$0xff]
  %v89 = vld [vmem:[%s0 + $0x208] sm:$0xff]
  %v90 = vld [vmem:[%s0 + $0x210] sm:$0xf]
  %v91 = vld [vmem:[%s0 + $0x214] sm:$0xff]
  %v92 = vld [vmem:[%s0 + $0x21c] sm:$0xff]
  %v93 = vld [vmem:[%s0 + $0x224] sm:$0xff]
  %v94 = vld [vmem:[%s0 + $0x22c] sm:$0xf]
  %v95 = vld [vmem:[%s0 + $0x230] sm:$0xff]
  %v96 = vld [vmem:[%s0 + $0x238] sm:$0xff]
  %v97 = vld [vmem:[%s0 + $0x240] sm:$0xff]
  %v98 = vld [vmem:[%s0 + $0x248] sm:$0xf]
  %v99 = vld [vmem:[%s0 + $0x24c] sm:$0xff]
  %v100 = vld [vmem:[%s0 + $0x254] sm:$0xff]
  %v101 = vld [vmem:[%s0 + $0x25c] sm:$0xff]
  %v102 = vld [vmem:[%s0 + $0x264] sm:$0xf]
  %s103 = scalar_lea.vmem %s0, 616
  %v104 = vld [vmem:[%s103] sm:$0xff]
  %v105 = vld [vmem:[%s103 + $0x8] sm:$0xff]
  %v106 = vld [vmem:[%s103 + $0x10] sm:$0xff]
  %v107 = vld [vmem:[%s103 + $0x18] sm:$0xf]
  %v108 = vld [vmem:[%s103 + $0x1c] sm:$0xff]
  %v109 = vld [vmem:[%s103 + $0x24] sm:$0xff]
  %v110 = vld [vmem:[%s103 + $0x2c] sm:$0xff]
  %v111 = vld [vmem:[%s103 + $0x34] sm:$0xf]
  %v112 = vld [vmem:[%s103 + $0x38] sm:$0xff]
  %v113 = vld [vmem:[%s103 + $0x40] sm:$0xff]
  %v114 = vld [vmem:[%s103 + $0x48] sm:$0xff]
  %v115 = vld [vmem:[%s103 + $0x50] sm:$0xf]
  %v116 = vld [vmem:[%s103 + $0x54] sm:$0xff]
  %v117 = vld [vmem:[%s103 + $0x5c] sm:$0xff]
  %v118 = vld [vmem:[%s103 + $0x64] sm:$0xff]
  %v119 = vld [vmem:[%s103 + $0x6c] sm:$0xf]
  %v120 = vld [vmem:[%s103 + $0x70] sm:$0xff]
  %v121 = vld [vmem:[%s103 + $0x78] sm:$0xff]
  %v122 = vld [vmem:[%s103 + $0x80] sm:$0xff]
  %v123 = vld [vmem:[%s103 + $0x88] sm:$0xf]
  %v124 = vld [vmem:[%s103 + $0x8c] sm:$0xff]
  %v125 = vld [vmem:[%s103 + $0x94] sm:$0xff]
  %v126 = vld [vmem:[%s103 + $0x9c] sm:$0xff]
  %v127 = vld [vmem:[%s103 + $0xa4] sm:$0xf]
  %v128 = vld [vmem:[%s103 + $0xa8] sm:$0xff]
  %v129 = vld [vmem:[%s103 + $0xb0] sm:$0xff]
  %v130 = vld [vmem:[%s103 + $0xb8] sm:$0xff]
  %v131 = vld [vmem:[%s103 + $0xc0] sm:$0xf]
  %v132 = vld [vmem:[%s103 + $0xc4] sm:$0xff]
  %v133 = vld [vmem:[%s103 + $0xcc] sm:$0xff]
  %v134 = vld [vmem:[%s103 + $0xd4] sm:$0xff]
  %v135 = vld [vmem:[%s103 + $0xdc] sm:$0xf]
  %v136 = vld [vmem:[%s103 + $0xe0] sm:$0xff]
  %v137 = vld [vmem:[%s103 + $0xe8] sm:$0xff]
  %v138 = vld [vmem:[%s103 + $0xf0] sm:$0xff]
  %v139 = vld [vmem:[%s103 + $0xf8] sm:$0xf]
  %v140 = vld [vmem:[%s103 + $0xfc] sm:$0xff]
  %v141 = vld [vmem:[%s103 + $0x104] sm:$0xff]
  %v142 = vld [vmem:[%s103 + $0x10c] sm:$0xff]
  %v143 = vld [vmem:[%s103 + $0x114] sm:$0xf]
  %v144 = vld [vmem:[%s103 + $0x118] sm:$0xff]
  %v145 = vld [vmem:[%s103 + $0x120] sm:$0xff]
  %v146 = vld [vmem:[%s103 + $0x128] sm:$0xff]
  %v147 = vld [vmem:[%s103 + $0x130] sm:$0xf]
  %v148 = vld [vmem:[%s103 + $0x134] sm:$0xff]
  %v149 = vld [vmem:[%s103 + $0x13c] sm:$0xff]
  %v150 = vld [vmem:[%s103 + $0x144] sm:$0xff]
  %v151 = vld [vmem:[%s103 + $0x14c] sm:$0xf]
  %v152 = vld [vmem:[%s103 + $0x150] sm:$0xff]
  %v153 = vld [vmem:[%s103 + $0x158] sm:$0xff]
  %v154 = vld [vmem:[%s103 + $0x160] sm:$0xff]
  %v155 = vld [vmem:[%s103 + $0x168] sm:$0xf]
  %v156 = vld [vmem:[%s103 + $0x16c] sm:$0xff]
  %v157 = vld [vmem:[%s103 + $0x174] sm:$0xff]
  %v158 = vld [vmem:[%s103 + $0x17c] sm:$0xff]
  %v159 = vld [vmem:[%s103 + $0x184] sm:$0xf]
  %v160 = vld [vmem:[%s103 + $0x188] sm:$0xff]
  %v161 = vld [vmem:[%s103 + $0x190] sm:$0xff]
  %v162 = vld [vmem:[%s103 + $0x198] sm:$0xff]
  %v163 = vld [vmem:[%s103 + $0x1a0] sm:$0xf]
  %v164 = vld [vmem:[%s103 + $0x1a4] sm:$0xff]
  %v165 = vld [vmem:[%s103 + $0x1ac] sm:$0xff]
  %v166 = vld [vmem:[%s103 + $0x1b4] sm:$0xff]
  %v167 = vld [vmem:[%s103 + $0x1bc] sm:$0xf]
  %v168 = vld [vmem:[%s103 + $0x1c0] sm:$0xff]
  %v169 = vld [vmem:[%s103 + $0x1c8] sm:$0xff]
  %v170 = vld [vmem:[%s103 + $0x1d0] sm:$0xff]
  %v171 = vld [vmem:[%s103 + $0x1d8] sm:$0xf]
  %v172 = vld [vmem:[%s103 + $0x1dc] sm:$0xff]
  %v173 = vld [vmem:[%s103 + $0x1e4] sm:$0xff]
  %v174 = vld [vmem:[%s103 + $0x1ec] sm:$0xff]
  %v175 = vld [vmem:[%s103 + $0x1f4] sm:$0xf]
  %v176 = vld [vmem:[%s103 + $0x1f8] sm:$0xff]
  %v177 = vld [vmem:[%s103 + $0x200] sm:$0xff]
  %v178 = vld [vmem:[%s103 + $0x208] sm:$0xff]
  %v179 = vld [vmem:[%s103 + $0x210] sm:$0xf]
  %v180 = vld [vmem:[%s103 + $0x214] sm:$0xff]
  %v181 = vld [vmem:[%s103 + $0x21c] sm:$0xff]
  %v182 = vld [vmem:[%s103 + $0x224] sm:$0xff]
  %v183 = vld [vmem:[%s103 + $0x22c] sm:$0xf]
  %v184 = vld [vmem:[%s103 + $0x230] sm:$0xff]
  %v185 = vld [vmem:[%s103 + $0x238] sm:$0xff]
  %v186 = vld [vmem:[%s103 + $0x240] sm:$0xff]
  %v187 = vld [vmem:[%s103 + $0x248] sm:$0xf]
  %v188 = vld [vmem:[%s103 + $0x24c] sm:$0xff]
  %v189 = vld [vmem:[%s103 + $0x254] sm:$0xff]
  %v190 = vld [vmem:[%s103 + $0x25c] sm:$0xff]
  %v191 = vld [vmem:[%s103 + $0x264] sm:$0xf]
  %s192 = scalar_lea.vmem %s0, 1232
  %v193 = vld [vmem:[%s192] sm:$0xff]
  %v194 = vld [vmem:[%s192 + $0x8] sm:$0xff]
  %v195 = vld [vmem:[%s192 + $0x10] sm:$0xff]
  %v196 = vld [vmem:[%s192 + $0x18] sm:$0xf]
  %v197 = vld [vmem:[%s192 + $0x1c] sm:$0xff]
  %v198 = vld [vmem:[%s192 + $0x24] sm:$0xff]
  %v199 = vld [vmem:[%s192 + $0x2c] sm:$0xff]
  %v200 = vld [vmem:[%s192 + $0x34] sm:$0xf]
  %v201 = vld [vmem:[%s192 + $0x38] sm:$0xff]
  %v202 = vld [vmem:[%s192 + $0x40] sm:$0xff]
  %v203 = vld [vmem:[%s192 + $0x48] sm:$0xff]
  %v204 = vld [vmem:[%s192 + $0x50] sm:$0xf]
  %v205 = vld [vmem:[%s192 + $0x54] sm:$0xff]
  %v206 = vld [vmem:[%s192 + $0x5c] sm:$0xff]
  %v207 = vld [vmem:[%s192 + $0x64] sm:$0xff]
  %v208 = vld [vmem:[%s192 + $0x6c] sm:$0xf]
  %v209 = vld [vmem:[%s192 + $0x70] sm:$0xff]
  %v210 = vld [vmem:[%s192 + $0x78] sm:$0xff]
  %v211 = vld [vmem:[%s192 + $0x80] sm:$0xff]
  %v212 = vld [vmem:[%s192 + $0x88] sm:$0xf]
  %v213 = vld [vmem:[%s192 + $0x8c] sm:$0xff]
  %v214 = vld [vmem:[%s192 + $0x94] sm:$0xff]
  %v215 = vld [vmem:[%s192 + $0x9c] sm:$0xff]
  %v216 = vld [vmem:[%s192 + $0xa4] sm:$0xf]
  %v217 = vld [vmem:[%s192 + $0xa8] sm:$0xff]
  %v218 = vld [vmem:[%s192 + $0xb0] sm:$0xff]
  %v219 = vld [vmem:[%s192 + $0xb8] sm:$0xff]
  %v220 = vld [vmem:[%s192 + $0xc0] sm:$0xf]
  %v221 = vld [vmem:[%s192 + $0xc4] sm:$0xff]
  %v222 = vld [vmem:[%s192 + $0xcc] sm:$0xff]
  %v223 = vld [vmem:[%s192 + $0xd4] sm:$0xff]
  %v224 = vld [vmem:[%s192 + $0xdc] sm:$0xf]
  %v225 = vld [vmem:[%s192 + $0xe0] sm:$0xff]
  %v226 = vld [vmem:[%s192 + $0xe8] sm:$0xff]
  %v227 = vld [vmem:[%s192 + $0xf0] sm:$0xff]
  %v228 = vld [vmem:[%s192 + $0xf8] sm:$0xf]
  %v229 = vld [vmem:[%s192 + $0xfc] sm:$0xff]
  %v230 = vld [vmem:[%s192 + $0x104] sm:$0xff]
  %v231 = vld [vmem:[%s192 + $0x10c] sm:$0xff]
  %v232 = vld [vmem:[%s192 + $0x114] sm:$0xf]
  %v233 = vld [vmem:[%s192 + $0x118] sm:$0xff]
  %v234 = vld [vmem:[%s192 + $0x120] sm:$0xff]
  %v235 = vld [vmem:[%s192 + $0x128] sm:$0xff]
  %v236 = vld [vmem:[%s192 + $0x130] sm:$0xf]
  %v237 = vld [vmem:[%s192 + $0x134] sm:$0xff]
  %v238 = vld [vmem:[%s192 + $0x13c] sm:$0xff]
  %v239 = vld [vmem:[%s192 + $0x144] sm:$0xff]
  %v240 = vld [vmem:[%s192 + $0x14c] sm:$0xf]
  %v241 = vld [vmem:[%s192 + $0x150] sm:$0xff]
  %v242 = vld [vmem:[%s192 + $0x158] sm:$0xff]
  %v243 = vld [vmem:[%s192 + $0x160] sm:$0xff]
  %v244 = vld [vmem:[%s192 + $0x168] sm:$0xf]
  %v245 = vld [vmem:[%s192 + $0x16c] sm:$0xff]
  %v246 = vld [vmem:[%s192 + $0x174] sm:$0xff]
  %v247 = vld [vmem:[%s192 + $0x17c] sm:$0xff]
  %v248 = vld [vmem:[%s192 + $0x184] sm:$0xf]
  %v249 = vld [vmem:[%s192 + $0x188] sm:$0xff]
  %v250 = vld [vmem:[%s192 + $0x190] sm:$0xff]
  %v251 = vld [vmem:[%s192 + $0x198] sm:$0xff]
  %v252 = vld [vmem:[%s192 + $0x1a0] sm:$0xf]
  %v253 = vld [vmem:[%s192 + $0x1a4] sm:$0xff]
  %v254 = vld [vmem:[%s192 + $0x1ac] sm:$0xff]
  %v255 = vld [vmem:[%s192 + $0x1b4] sm:$0xff]
  %v256 = vld [vmem:[%s192 + $0x1bc] sm:$0xf]
  %v257 = vld [vmem:[%s192 + $0x1c0] sm:$0xff]
  %v258 = vld [vmem:[%s192 + $0x1c8] sm:$0xff]
  %v259 = vld [vmem:[%s192 + $0x1d0] sm:$0xff]
  %v260 = vld [vmem:[%s192 + $0x1d8] sm:$0xf]
  %v261 = vld [vmem:[%s192 + $0x1dc] sm:$0xff]
  %v262 = vld [vmem:[%s192 + $0x1e4] sm:$0xff]
  %v263 = vld [vmem:[%s192 + $0x1ec] sm:$0xff]
  %v264 = vld [vmem:[%s192 + $0x1f4] sm:$0xf]
  %v265 = vld [vmem:[%s192 + $0x1f8] sm:$0xff]
  %v266 = vld [vmem:[%s192 + $0x200] sm:$0xff]
  %v267 = vld [vmem:[%s192 + $0x208] sm:$0xff]
  %v268 = vld [vmem:[%s192 + $0x210] sm:$0xf]
  %v269 = vld [vmem:[%s192 + $0x214] sm:$0xff]
  %v270 = vld [vmem:[%s192 + $0x21c] sm:$0xff]
  %v271 = vld [vmem:[%s192 + $0x224] sm:$0xff]
  %v272 = vld [vmem:[%s192 + $0x22c] sm:$0xf]
  %v273 = vld [vmem:[%s192 + $0x230] sm:$0xff]
  %v274 = vld [vmem:[%s192 + $0x238] sm:$0xff]
  %v275 = vld [vmem:[%s192 + $0x240] sm:$0xff]
  %v276 = vld [vmem:[%s192 + $0x248] sm:$0xf]
  %v277 = vld [vmem:[%s192 + $0x24c] sm:$0xff]
  %v278 = vld [vmem:[%s192 + $0x254] sm:$0xff]
  %v279 = vld [vmem:[%s192 + $0x25c] sm:$0xff]
  %v280 = vld [vmem:[%s192 + $0x264] sm:$0xf]
  %s281 = scalar_lea.vmem %s0, 1848
  %v282 = vld [vmem:[%s281] sm:$0xff]
  %v283 = vld [vmem:[%s281 + $0x8] sm:$0xff]
  %v284 = vld [vmem:[%s281 + $0x10] sm:$0xff]
  %v285 = vld [vmem:[%s281 + $0x18] sm:$0xf]
  %v286 = vld [vmem:[%s281 + $0x1c] sm:$0xff]
  %v287 = vld [vmem:[%s281 + $0x24] sm:$0xff]
  %v288 = vld [vmem:[%s281 + $0x2c] sm:$0xff]
  %v289 = vld [vmem:[%s281 + $0x34] sm:$0xf]
  %v290 = vld [vmem:[%s281 + $0x38] sm:$0xff]
  %v291 = vld [vmem:[%s281 + $0x40] sm:$0xff]
  %v292 = vld [vmem:[%s281 + $0x48] sm:$0xff]
  %v293 = vld [vmem:[%s281 + $0x50] sm:$0xf]
  %v294 = vld [vmem:[%s281 + $0x54] sm:$0xff]
  %v295 = vld [vmem:[%s281 + $0x5c] sm:$0xff]
  %v296 = vld [vmem:[%s281 + $0x64] sm:$0xff]
  %v297 = vld [vmem:[%s281 + $0x6c] sm:$0xf]
  %v298 = vld [vmem:[%s281 + $0x70] sm:$0xff]
  %v299 = vld [vmem:[%s281 + $0x78] sm:$0xff]
  %v300 = vld [vmem:[%s281 + $0x80] sm:$0xff]
  %v301 = vld [vmem:[%s281 + $0x88] sm:$0xf]
  %v302 = vld [vmem:[%s281 + $0x8c] sm:$0xff]
  %v303 = vld [vmem:[%s281 + $0x94] sm:$0xff]
  %v304 = vld [vmem:[%s281 + $0x9c] sm:$0xff]
  %v305 = vld [vmem:[%s281 + $0xa4] sm:$0xf]
  %v306 = vld [vmem:[%s281 + $0xa8] sm:$0xff]
  %v307 = vld [vmem:[%s281 + $0xb0] sm:$0xff]
  %v308 = vld [vmem:[%s281 + $0xb8] sm:$0xff]
  %v309 = vld [vmem:[%s281 + $0xc0] sm:$0xf]
  %v310 = vld [vmem:[%s281 + $0xc4] sm:$0xff]
  %v311 = vld [vmem:[%s281 + $0xcc] sm:$0xff]
  %v312 = vld [vmem:[%s281 + $0xd4] sm:$0xff]
  %v313 = vld [vmem:[%s281 + $0xdc] sm:$0xf]
  %v314 = vld [vmem:[%s281 + $0xe0] sm:$0xff]
  %v315 = vld [vmem:[%s281 + $0xe8] sm:$0xff]
  %v316 = vld [vmem:[%s281 + $0xf0] sm:$0xff]
  %v317 = vld [vmem:[%s281 + $0xf8] sm:$0xf]
  %v318 = vld [vmem:[%s281 + $0xfc] sm:$0xff]
  %v319 = vld [vmem:[%s281 + $0x104] sm:$0xff]
  %v320 = vld [vmem:[%s281 + $0x10c] sm:$0xff]
  %v321 = vld [vmem:[%s281 + $0x114] sm:$0xf]
  %v322 = vld [vmem:[%s281 + $0x118] sm:$0xff]
  %v323 = vld [vmem:[%s281 + $0x120] sm:$0xff]
  %v324 = vld [vmem:[%s281 + $0x128] sm:$0xff]
  %v325 = vld [vmem:[%s281 + $0x130] sm:$0xf]
  %v326 = vld [vmem:[%s281 + $0x134] sm:$0xff]
  %v327 = vld [vmem:[%s281 + $0x13c] sm:$0xff]
  %v328 = vld [vmem:[%s281 + $0x144] sm:$0xff]
  %v329 = vld [vmem:[%s281 + $0x14c] sm:$0xf]
  %v330 = vld [vmem:[%s281 + $0x150] sm:$0xff]
  %v331 = vld [vmem:[%s281 + $0x158] sm:$0xff]
  %v332 = vld [vmem:[%s281 + $0x160] sm:$0xff]
  %v333 = vld [vmem:[%s281 + $0x168] sm:$0xf]
  %v334 = vld [vmem:[%s281 + $0x16c] sm:$0xff]
  %v335 = vld [vmem:[%s281 + $0x174] sm:$0xff]
  %v336 = vld [vmem:[%s281 + $0x17c] sm:$0xff]
  %v337 = vld [vmem:[%s281 + $0x184] sm:$0xf]
  %v338 = vld [vmem:[%s281 + $0x188] sm:$0xff]
  %v339 = vld [vmem:[%s281 + $0x190] sm:$0xff]
  %v340 = vld [vmem:[%s281 + $0x198] sm:$0xff]
  %v341 = vld [vmem:[%s281 + $0x1a0] sm:$0xf]
  %v342 = vld [vmem:[%s281 + $0x1a4] sm:$0xff]
  %v343 = vld [vmem:[%s281 + $0x1ac] sm:$0xff]
  %v344 = vld [vmem:[%s281 + $0x1b4] sm:$0xff]
  %v345 = vld [vmem:[%s281 + $0x1bc] sm:$0xf]
  %v346 = vld [vmem:[%s281 + $0x1c0] sm:$0xff]
  %v347 = vld [vmem:[%s281 + $0x1c8] sm:$0xff]
  %v348 = vld [vmem:[%s281 + $0x1d0] sm:$0xff]
  %v349 = vld [vmem:[%s281 + $0x1d8] sm:$0xf]
  %v350 = vld [vmem:[%s281 + $0x1dc] sm:$0xff]
  %v351 = vld [vmem:[%s281 + $0x1e4] sm:$0xff]
  %v352 = vld [vmem:[%s281 + $0x1ec] sm:$0xff]
  %v353 = vld [vmem:[%s281 + $0x1f4] sm:$0xf]
  %v354 = vld [vmem:[%s281 + $0x1f8] sm:$0xff]
  %v355 = vld [vmem:[%s281 + $0x200] sm:$0xff]
  %v356 = vld [vmem:[%s281 + $0x208] sm:$0xff]
  %v357 = vld [vmem:[%s281 + $0x210] sm:$0xf]
  %v358 = vld [vmem:[%s281 + $0x214] sm:$0xff]
  %v359 = vld [vmem:[%s281 + $0x21c] sm:$0xff]
  %v360 = vld [vmem:[%s281 + $0x224] sm:$0xff]
  %v361 = vld [vmem:[%s281 + $0x22c] sm:$0xf]
  %v362 = vld [vmem:[%s281 + $0x230] sm:$0xff]
  %v363 = vld [vmem:[%s281 + $0x238] sm:$0xff]
  %v364 = vld [vmem:[%s281 + $0x240] sm:$0xff]
  %v365 = vld [vmem:[%s281 + $0x248] sm:$0xf]
  %v366 = vld [vmem:[%s281 + $0x24c] sm:$0xff]
  %v367 = vld [vmem:[%s281 + $0x254] sm:$0xff]
  %v368 = vld [vmem:[%s281 + $0x25c] sm:$0xff]
  %v369 = vld [vmem:[%s281 + $0x264] sm:$0xf]
  %v458 = vunpack.c.l.b16 %v15
  %v459 = vunpack.c.h.b16 %v15
  %v460 = vunpack.c.l.b16 %v16
  %v461 = vunpack.c.h.b16 %v16
  %v462 = vunpack.c.l.b16 %v17
  %v463 = vunpack.c.h.b16 %v17
  %v464 = vunpack.c.l.b16 %v18
  %v465 = vunpack.c.l.b16 %v19
  %v466 = vunpack.c.h.b16 %v19
  %v467 = vunpack.c.l.b16 %v20
  %v468 = vunpack.c.h.b16 %v20
  %v469 = vunpack.c.l.b16 %v21
  %v470 = vunpack.c.h.b16 %v21
  %v471 = vunpack.c.l.b16 %v22
  %v472 = vunpack.c.l.b16 %v23
  %v473 = vunpack.c.h.b16 %v23
  %v474 = vunpack.c.l.b16 %v24
  %v475 = vunpack.c.h.b16 %v24
  %v476 = vunpack.c.l.b16 %v25
  %v477 = vunpack.c.h.b16 %v25
  %v478 = vunpack.c.l.b16 %v26
  %v479 = vunpack.c.l.b16 %v27
  %v480 = vunpack.c.h.b16 %v27
  %v481 = vunpack.c.l.b16 %v28
  %v482 = vunpack.c.h.b16 %v28
  %v483 = vunpack.c.l.b16 %v29
  %v484 = vunpack.c.h.b16 %v29
  %v485 = vunpack.c.l.b16 %v30
  %v486 = vunpack.c.l.b16 %v31
  %v487 = vunpack.c.h.b16 %v31
  %v488 = vunpack.c.l.b16 %v32
  %v489 = vunpack.c.h.b16 %v32
  %v490 = vunpack.c.l.b16 %v33
  %v491 = vunpack.c.h.b16 %v33
  %v492 = vunpack.c.l.b16 %v34
  %v493 = vunpack.c.l.b16 %v35
  %v494 = vunpack.c.h.b16 %v35
  %v495 = vunpack.c.l.b16 %v36
  %v496 = vunpack.c.h.b16 %v36
  %v497 = vunpack.c.l.b16 %v37
  %v498 = vunpack.c.h.b16 %v37
  %v499 = vunpack.c.l.b16 %v38
  %v500 = vunpack.c.l.b16 %v39
  %v501 = vunpack.c.h.b16 %v39
  %v502 = vunpack.c.l.b16 %v40
  %v503 = vunpack.c.h.b16 %v40
  %v504 = vunpack.c.l.b16 %v41
  %v505 = vunpack.c.h.b16 %v41
  %v506 = vunpack.c.l.b16 %v42
  %v507 = vunpack.c.l.b16 %v43
  %v508 = vunpack.c.h.b16 %v43
  %v509 = vunpack.c.l.b16 %v44
  %v510 = vunpack.c.h.b16 %v44
  %v511 = vunpack.c.l.b16 %v45
  %v512 = vunpack.c.h.b16 %v45
  %v513 = vunpack.c.l.b16 %v46
  %v514 = vunpack.c.l.b16 %v47
  %v515 = vunpack.c.h.b16 %v47
  %v516 = vunpack.c.l.b16 %v48
  %v517 = vunpack.c.h.b16 %v48
  %v518 = vunpack.c.l.b16 %v49
  %v519 = vunpack.c.h.b16 %v49
  %v520 = vunpack.c.l.b16 %v50
  %v521 = vunpack.c.l.b16 %v51
  %v522 = vunpack.c.h.b16 %v51
  %v523 = vunpack.c.l.b16 %v52
  %v524 = vunpack.c.h.b16 %v52
  %v525 = vunpack.c.l.b16 %v53
  %v526 = vunpack.c.h.b16 %v53
  %v527 = vunpack.c.l.b16 %v54
  %v528 = vunpack.c.l.b16 %v55
  %v529 = vunpack.c.h.b16 %v55
  %v530 = vunpack.c.l.b16 %v56
  %v531 = vunpack.c.h.b16 %v56
  %v532 = vunpack.c.l.b16 %v57
  %v533 = vunpack.c.h.b16 %v57
  %v534 = vunpack.c.l.b16 %v58
  %v535 = vunpack.c.l.b16 %v59
  %v536 = vunpack.c.h.b16 %v59
  %v537 = vunpack.c.l.b16 %v60
  %v538 = vunpack.c.h.b16 %v60
  %v539 = vunpack.c.l.b16 %v61
  %v540 = vunpack.c.h.b16 %v61
  %v541 = vunpack.c.l.b16 %v62
  %v542 = vunpack.c.l.b16 %v63
  %v543 = vunpack.c.h.b16 %v63
  %v544 = vunpack.c.l.b16 %v64
  %v545 = vunpack.c.h.b16 %v64
  %v546 = vunpack.c.l.b16 %v65
  %v547 = vunpack.c.h.b16 %v65
  %v548 = vunpack.c.l.b16 %v66
  %v549 = vunpack.c.l.b16 %v67
  %v550 = vunpack.c.h.b16 %v67
  %v551 = vunpack.c.l.b16 %v68
  %v552 = vunpack.c.h.b16 %v68
  %v553 = vunpack.c.l.b16 %v69
  %v554 = vunpack.c.h.b16 %v69
  %v555 = vunpack.c.l.b16 %v70
  %v556 = vunpack.c.l.b16 %v71
  %v557 = vunpack.c.h.b16 %v71
  %v558 = vunpack.c.l.b16 %v72
  %v559 = vunpack.c.h.b16 %v72
  %v560 = vunpack.c.l.b16 %v73
  %v561 = vunpack.c.h.b16 %v73
  %v562 = vunpack.c.l.b16 %v74
  %v563 = vunpack.c.l.b16 %v75
  %v564 = vunpack.c.h.b16 %v75
  %v565 = vunpack.c.l.b16 %v76
  %v566 = vunpack.c.h.b16 %v76
  %v567 = vunpack.c.l.b16 %v77
  %v568 = vunpack.c.h.b16 %v77
  %v569 = vunpack.c.l.b16 %v78
  %v570 = vunpack.c.l.b16 %v79
  %v571 = vunpack.c.h.b16 %v79
  %v572 = vunpack.c.l.b16 %v80
  %v573 = vunpack.c.h.b16 %v80
  %v574 = vunpack.c.l.b16 %v81
  %v575 = vunpack.c.h.b16 %v81
  %v576 = vunpack.c.l.b16 %v82
  %v577 = vunpack.c.l.b16 %v83
  %v578 = vunpack.c.h.b16 %v83
  %v579 = vunpack.c.l.b16 %v84
  %v580 = vunpack.c.h.b16 %v84
  %v581 = vunpack.c.l.b16 %v85
  %v582 = vunpack.c.h.b16 %v85
  %v583 = vunpack.c.l.b16 %v86
  %v584 = vunpack.c.l.b16 %v87
  %v585 = vunpack.c.h.b16 %v87
  %v586 = vunpack.c.l.b16 %v88
  %v587 = vunpack.c.h.b16 %v88
  %v588 = vunpack.c.l.b16 %v89
  %v589 = vunpack.c.h.b16 %v89
  %v590 = vunpack.c.l.b16 %v90
  %v591 = vunpack.c.l.b16 %v91
  %v592 = vunpack.c.h.b16 %v91
  %v593 = vunpack.c.l.b16 %v92
  %v594 = vunpack.c.h.b16 %v92
  %v595 = vunpack.c.l.b16 %v93
  %v596 = vunpack.c.h.b16 %v93
  %v597 = vunpack.c.l.b16 %v94
  %v598 = vunpack.c.l.b16 %v95
  %v599 = vunpack.c.h.b16 %v95
  %v600 = vunpack.c.l.b16 %v96
  %v601 = vunpack.c.h.b16 %v96
  %v602 = vunpack.c.l.b16 %v97
  %v603 = vunpack.c.h.b16 %v97
  %v604 = vunpack.c.l.b16 %v98
  %v605 = vunpack.c.l.b16 %v99
  %v606 = vunpack.c.h.b16 %v99
  %v607 = vunpack.c.l.b16 %v100
  %v608 = vunpack.c.h.b16 %v100
  %v609 = vunpack.c.l.b16 %v101
  %v610 = vunpack.c.h.b16 %v101
  %v611 = vunpack.c.l.b16 %v102
  %v612 = vpack.c.b16 %v465, %v458
  %v613 = vpack.c.b16 %v466, %v459
  %v614 = vpack.c.b16 %v467, %v460
  %v615 = vpack.c.b16 %v468, %v461
  %v616 = vpack.c.b16 %v469, %v462
  %v617 = vpack.c.b16 %v470, %v463
  %v618 = vpack.c.b16 %v471, %v464
  %v619 = vpack.c.b16 %v479, %v472
  %v620 = vpack.c.b16 %v480, %v473
  %v621 = vpack.c.b16 %v481, %v474
  %v622 = vpack.c.b16 %v482, %v475
  %v623 = vpack.c.b16 %v483, %v476
  %v624 = vpack.c.b16 %v484, %v477
  %v625 = vpack.c.b16 %v485, %v478
  %v626 = vpack.c.b16 %v493, %v486
  %v627 = vpack.c.b16 %v494, %v487
  %v628 = vpack.c.b16 %v495, %v488
  %v629 = vpack.c.b16 %v496, %v489
  %v630 = vpack.c.b16 %v497, %v490
  %v631 = vpack.c.b16 %v498, %v491
  %v632 = vpack.c.b16 %v499, %v492
  %v633 = vpack.c.b16 %v507, %v500
  %v634 = vpack.c.b16 %v508, %v501
  %v635 = vpack.c.b16 %v509, %v502
  %v636 = vpack.c.b16 %v510, %v503
  %v637 = vpack.c.b16 %v511, %v504
  %v638 = vpack.c.b16 %v512, %v505
  %v639 = vpack.c.b16 %v513, %v506
  %v640 = vpack.c.b16 %v521, %v514
  %v641 = vpack.c.b16 %v522, %v515
  %v642 = vpack.c.b16 %v523, %v516
  %v643 = vpack.c.b16 %v524, %v517
  %v644 = vpack.c.b16 %v525, %v518
  %v645 = vpack.c.b16 %v526, %v519
  %v646 = vpack.c.b16 %v527, %v520
  %v647 = vpack.c.b16 %v535, %v528
  %v648 = vpack.c.b16 %v536, %v529
  %v649 = vpack.c.b16 %v537, %v530
  %v650 = vpack.c.b16 %v538, %v531
  %v651 = vpack.c.b16 %v539, %v532
  %v652 = vpack.c.b16 %v540, %v533
  %v653 = vpack.c.b16 %v541, %v534
  %v654 = vpack.c.b16 %v549, %v542
  %v655 = vpack.c.b16 %v550, %v543
  %v656 = vpack.c.b16 %v551, %v544
  %v657 = vpack.c.b16 %v552, %v545
  %v658 = vpack.c.b16 %v553, %v546
  %v659 = vpack.c.b16 %v554, %v547
  %v660 = vpack.c.b16 %v555, %v548
  %v661 = vpack.c.b16 %v563, %v556
  %v662 = vpack.c.b16 %v564, %v557
  %v663 = vpack.c.b16 %v565, %v558
  %v664 = vpack.c.b16 %v566, %v559
  %v665 = vpack.c.b16 %v567, %v560
  %v666 = vpack.c.b16 %v568, %v561
  %v667 = vpack.c.b16 %v569, %v562
  %v668 = vpack.c.b16 %v577, %v570
  %v669 = vpack.c.b16 %v578, %v571
  %v670 = vpack.c.b16 %v579, %v572
  %v671 = vpack.c.b16 %v580, %v573
  %v672 = vpack.c.b16 %v581, %v574
  %v673 = vpack.c.b16 %v582, %v575
  %v674 = vpack.c.b16 %v583, %v576
  %v675 = vpack.c.b16 %v591, %v584
  %v676 = vpack.c.b16 %v592, %v585
  %v677 = vpack.c.b16 %v593, %v586
  %v678 = vpack.c.b16 %v594, %v587
  %v679 = vpack.c.b16 %v595, %v588
  %v680 = vpack.c.b16 %v596, %v589
  %v681 = vpack.c.b16 %v597, %v590
  %v682 = vpack.c.b16 %v605, %v598
  %v683 = vpack.c.b16 %v606, %v599
  %v684 = vpack.c.b16 %v607, %v600
  %v685 = vpack.c.b16 %v608, %v601
  %v686 = vpack.c.b16 %v609, %v602
  %v687 = vpack.c.b16 %v610, %v603
  %v688 = vpack.c.b16 %v611, %v604
  %v843 = vunpack.c.l.b16 %v104
  %v844 = vunpack.c.h.b16 %v104
  %v845 = vunpack.c.l.b16 %v105
  %v846 = vunpack.c.h.b16 %v105
  %v847 = vunpack.c.l.b16 %v106
  %v848 = vunpack.c.h.b16 %v106
  %v849 = vunpack.c.l.b16 %v107
  %v850 = vunpack.c.l.b16 %v108
  %v851 = vunpack.c.h.b16 %v108
  %v852 = vunpack.c.l.b16 %v109
  %v853 = vunpack.c.h.b16 %v109
  %v854 = vunpack.c.l.b16 %v110
  %v855 = vunpack.c.h.b16 %v110
  %v856 = vunpack.c.l.b16 %v111
  %v857 = vunpack.c.l.b16 %v112
  %v858 = vunpack.c.h.b16 %v112
  %v859 = vunpack.c.l.b16 %v113
  %v860 = vunpack.c.h.b16 %v113
  %v861 = vunpack.c.l.b16 %v114
  %v862 = vunpack.c.h.b16 %v114
  %v863 = vunpack.c.l.b16 %v115
  %v864 = vunpack.c.l.b16 %v116
  %v865 = vunpack.c.h.b16 %v116
  %v866 = vunpack.c.l.b16 %v117
  %v867 = vunpack.c.h.b16 %v117
  %v868 = vunpack.c.l.b16 %v118
  %v869 = vunpack.c.h.b16 %v118
  %v870 = vunpack.c.l.b16 %v119
  %v871 = vunpack.c.l.b16 %v120
  %v872 = vunpack.c.h.b16 %v120
  %v873 = vunpack.c.l.b16 %v121
  %v874 = vunpack.c.h.b16 %v121
  %v875 = vunpack.c.l.b16 %v122
  %v876 = vunpack.c.h.b16 %v122
  %v877 = vunpack.c.l.b16 %v123
  %v878 = vunpack.c.l.b16 %v124
  %v879 = vunpack.c.h.b16 %v124
  %v880 = vunpack.c.l.b16 %v125
  %v881 = vunpack.c.h.b16 %v125
  %v882 = vunpack.c.l.b16 %v126
  %v883 = vunpack.c.h.b16 %v126
  %v884 = vunpack.c.l.b16 %v127
  %v885 = vunpack.c.l.b16 %v128
  %v886 = vunpack.c.h.b16 %v128
  %v887 = vunpack.c.l.b16 %v129
  %v888 = vunpack.c.h.b16 %v129
  %v889 = vunpack.c.l.b16 %v130
  %v890 = vunpack.c.h.b16 %v130
  %v891 = vunpack.c.l.b16 %v131
  %v892 = vunpack.c.l.b16 %v132
  %v893 = vunpack.c.h.b16 %v132
  %v894 = vunpack.c.l.b16 %v133
  %v895 = vunpack.c.h.b16 %v133
  %v896 = vunpack.c.l.b16 %v134
  %v897 = vunpack.c.h.b16 %v134
  %v898 = vunpack.c.l.b16 %v135
  %v899 = vunpack.c.l.b16 %v136
  %v900 = vunpack.c.h.b16 %v136
  %v901 = vunpack.c.l.b16 %v137
  %v902 = vunpack.c.h.b16 %v137
  %v903 = vunpack.c.l.b16 %v138
  %v904 = vunpack.c.h.b16 %v138
  %v905 = vunpack.c.l.b16 %v139
  %v906 = vunpack.c.l.b16 %v140
  %v907 = vunpack.c.h.b16 %v140
  %v908 = vunpack.c.l.b16 %v141
  %v909 = vunpack.c.h.b16 %v141
  %v910 = vunpack.c.l.b16 %v142
  %v911 = vunpack.c.h.b16 %v142
  %v912 = vunpack.c.l.b16 %v143
  %v913 = vunpack.c.l.b16 %v144
  %v914 = vunpack.c.h.b16 %v144
  %v915 = vunpack.c.l.b16 %v145
  %v916 = vunpack.c.h.b16 %v145
  %v917 = vunpack.c.l.b16 %v146
  %v918 = vunpack.c.h.b16 %v146
  %v919 = vunpack.c.l.b16 %v147
  %v920 = vunpack.c.l.b16 %v148
  %v921 = vunpack.c.h.b16 %v148
  %v922 = vunpack.c.l.b16 %v149
  %v923 = vunpack.c.h.b16 %v149
  %v924 = vunpack.c.l.b16 %v150
  %v925 = vunpack.c.h.b16 %v150
  %v926 = vunpack.c.l.b16 %v151
  %v927 = vunpack.c.l.b16 %v152
  %v928 = vunpack.c.h.b16 %v152
  %v929 = vunpack.c.l.b16 %v153
  %v930 = vunpack.c.h.b16 %v153
  %v931 = vunpack.c.l.b16 %v154
  %v932 = vunpack.c.h.b16 %v154
  %v933 = vunpack.c.l.b16 %v155
  %v934 = vunpack.c.l.b16 %v156
  %v935 = vunpack.c.h.b16 %v156
  %v936 = vunpack.c.l.b16 %v157
  %v937 = vunpack.c.h.b16 %v157
  %v938 = vunpack.c.l.b16 %v158
  %v939 = vunpack.c.h.b16 %v158
  %v940 = vunpack.c.l.b16 %v159
  %v941 = vunpack.c.l.b16 %v160
  %v942 = vunpack.c.h.b16 %v160
  %v943 = vunpack.c.l.b16 %v161
  %v944 = vunpack.c.h.b16 %v161
  %v945 = vunpack.c.l.b16 %v162
  %v946 = vunpack.c.h.b16 %v162
  %v947 = vunpack.c.l.b16 %v163
  %v948 = vunpack.c.l.b16 %v164
  %v949 = vunpack.c.h.b16 %v164
  %v950 = vunpack.c.l.b16 %v165
  %v951 = vunpack.c.h.b16 %v165
  %v952 = vunpack.c.l.b16 %v166
  %v953 = vunpack.c.h.b16 %v166
  %v954 = vunpack.c.l.b16 %v167
  %v955 = vunpack.c.l.b16 %v168
  %v956 = vunpack.c.h.b16 %v168
  %v957 = vunpack.c.l.b16 %v169
  %v958 = vunpack.c.h.b16 %v169
  %v959 = vunpack.c.l.b16 %v170
  %v960 = vunpack.c.h.b16 %v170
  %v961 = vunpack.c.l.b16 %v171
  %v962 = vunpack.c.l.b16 %v172
  %v963 = vunpack.c.h.b16 %v172
  %v964 = vunpack.c.l.b16 %v173
  %v965 = vunpack.c.h.b16 %v173
  %v966 = vunpack.c.l.b16 %v174
  %v967 = vunpack.c.h.b16 %v174
  %v968 = vunpack.c.l.b16 %v175
  %v969 = vunpack.c.l.b16 %v176
  %v970 = vunpack.c.h.b16 %v176
  %v971 = vunpack.c.l.b16 %v177
  %v972 = vunpack.c.h.b16 %v177
  %v973 = vunpack.c.l.b16 %v178
  %v974 = vunpack.c.h.b16 %v178
  %v975 = vunpack.c.l.b16 %v179
  %v976 = vunpack.c.l.b16 %v180
  %v977 = vunpack.c.h.b16 %v180
  %v978 = vunpack.c.l.b16 %v181
  %v979 = vunpack.c.h.b16 %v181
  %v980 = vunpack.c.l.b16 %v182
  %v981 = vunpack.c.h.b16 %v182
  %v982 = vunpack.c.l.b16 %v183
  %v983 = vunpack.c.l.b16 %v184
  %v984 = vunpack.c.h.b16 %v184
  %v985 = vunpack.c.l.b16 %v185
  %v986 = vunpack.c.h.b16 %v185
  %v987 = vunpack.c.l.b16 %v186
  %v988 = vunpack.c.h.b16 %v186
  %v989 = vunpack.c.l.b16 %v187
  %v990 = vunpack.c.l.b16 %v188
  %v991 = vunpack.c.h.b16 %v188
  %v992 = vunpack.c.l.b16 %v189
  %v993 = vunpack.c.h.b16 %v189
  %v994 = vunpack.c.l.b16 %v190
  %v995 = vunpack.c.h.b16 %v190
  %v996 = vunpack.c.l.b16 %v191
  %v997 = vpack.c.b16 %v850, %v843
  %v998 = vpack.c.b16 %v851, %v844
  %v999 = vpack.c.b16 %v852, %v845
  %v1000 = vpack.c.b16 %v853, %v846
  %v1001 = vpack.c.b16 %v854, %v847
  %v1002 = vpack.c.b16 %v855, %v848
  %v1003 = vpack.c.b16 %v856, %v849
  %v1004 = vpack.c.b16 %v864, %v857
  %v1005 = vpack.c.b16 %v865, %v858
  %v1006 = vpack.c.b16 %v866, %v859
  %v1007 = vpack.c.b16 %v867, %v860
  %v1008 = vpack.c.b16 %v868, %v861
  %v1009 = vpack.c.b16 %v869, %v862
  %v1010 = vpack.c.b16 %v870, %v863
  %v1011 = vpack.c.b16 %v878, %v871
  %v1012 = vpack.c.b16 %v879, %v872
  %v1013 = vpack.c.b16 %v880, %v873
  %v1014 = vpack.c.b16 %v881, %v874
  %v1015 = vpack.c.b16 %v882, %v875
  %v1016 = vpack.c.b16 %v883, %v876
  %v1017 = vpack.c.b16 %v884, %v877
  %v1018 = vpack.c.b16 %v892, %v885
  %v1019 = vpack.c.b16 %v893, %v886
  %v1020 = vpack.c.b16 %v894, %v887
  %v1021 = vpack.c.b16 %v895, %v888
  %v1022 = vpack.c.b16 %v896, %v889
  %v1023 = vpack.c.b16 %v897, %v890
  %v1024 = vpack.c.b16 %v898, %v891
  %v1025 = vpack.c.b16 %v906, %v899
  %v1026 = vpack.c.b16 %v907, %v900
  %v1027 = vpack.c.b16 %v908, %v901
  %v1028 = vpack.c.b16 %v909, %v902
  %v1029 = vpack.c.b16 %v910, %v903
  %v1030 = vpack.c.b16 %v911, %v904
  %v1031 = vpack.c.b16 %v912, %v905
  %v1032 = vpack.c.b16 %v920, %v913
  %v1033 = vpack.c.b16 %v921, %v914
  %v1034 = vpack.c.b16 %v922, %v915
  %v1035 = vpack.c.b16 %v923, %v916
  %v1036 = vpack.c.b16 %v924, %v917
  %v1037 = vpack.c.b16 %v925, %v918
  %v1038 = vpack.c.b16 %v926, %v919
  %v1039 = vpack.c.b16 %v934, %v927
  %v1040 = vpack.c.b16 %v935, %v928
  %v1041 = vpack.c.b16 %v936, %v929
  %v1042 = vpack.c.b16 %v937, %v930
  %v1043 = vpack.c.b16 %v938, %v931
  %v1044 = vpack.c.b16 %v939, %v932
  %v1045 = vpack.c.b16 %v940, %v933
  %v1046 = vpack.c.b16 %v948, %v941
  %v1047 = vpack.c.b16 %v949, %v942
  %v1048 = vpack.c.b16 %v950, %v943
  %v1049 = vpack.c.b16 %v951, %v944
  %v1050 = vpack.c.b16 %v952, %v945
  %v1051 = vpack.c.b16 %v953, %v946
  %v1052 = vpack.c.b16 %v954, %v947
  %v1053 = vpack.c.b16 %v962, %v955
  %v1054 = vpack.c.b16 %v963, %v956
  %v1055 = vpack.c.b16 %v964, %v957
  %v1056 = vpack.c.b16 %v965, %v958
  %v1057 = vpack.c.b16 %v966, %v959
  %v1058 = vpack.c.b16 %v967, %v960
  %v1059 = vpack.c.b16 %v968, %v961
  %v1060 = vpack.c.b16 %v976, %v969
  %v1061 = vpack.c.b16 %v977, %v970
  %v1062 = vpack.c.b16 %v978, %v971
  %v1063 = vpack.c.b16 %v979, %v972
  %v1064 = vpack.c.b16 %v980, %v973
  %v1065 = vpack.c.b16 %v981, %v974
  %v1066 = vpack.c.b16 %v982, %v975
  %v1067 = vpack.c.b16 %v990, %v983
  %v1068 = vpack.c.b16 %v991, %v984
  %v1069 = vpack.c.b16 %v992, %v985
  %v1070 = vpack.c.b16 %v993, %v986
  %v1071 = vpack.c.b16 %v994, %v987
  %v1072 = vpack.c.b16 %v995, %v988
  %v1073 = vpack.c.b16 %v996, %v989
  %v1228 = vunpack.c.l.b16 %v193
  %v1229 = vunpack.c.h.b16 %v193
  %v1230 = vunpack.c.l.b16 %v194
  %v1231 = vunpack.c.h.b16 %v194
  %v1232 = vunpack.c.l.b16 %v195
  %v1233 = vunpack.c.h.b16 %v195
  %v1234 = vunpack.c.l.b16 %v196
  %v1235 = vunpack.c.l.b16 %v197
  %v1236 = vunpack.c.h.b16 %v197
  %v1237 = vunpack.c.l.b16 %v198
  %v1238 = vunpack.c.h.b16 %v198
  %v1239 = vunpack.c.l.b16 %v199
  %v1240 = vunpack.c.h.b16 %v199
  %v1241 = vunpack.c.l.b16 %v200
  %v1242 = vunpack.c.l.b16 %v201
  %v1243 = vunpack.c.h.b16 %v201
  %v1244 = vunpack.c.l.b16 %v202
  %v1245 = vunpack.c.h.b16 %v202
  %v1246 = vunpack.c.l.b16 %v203
  %v1247 = vunpack.c.h.b16 %v203
  %v1248 = vunpack.c.l.b16 %v204
  %v1249 = vunpack.c.l.b16 %v205
  %v1250 = vunpack.c.h.b16 %v205
  %v1251 = vunpack.c.l.b16 %v206
  %v1252 = vunpack.c.h.b16 %v206
  %v1253 = vunpack.c.l.b16 %v207
  %v1254 = vunpack.c.h.b16 %v207
  %v1255 = vunpack.c.l.b16 %v208
  %v1256 = vunpack.c.l.b16 %v209
  %v1257 = vunpack.c.h.b16 %v209
  %v1258 = vunpack.c.l.b16 %v210
  %v1259 = vunpack.c.h.b16 %v210
  %v1260 = vunpack.c.l.b16 %v211
  %v1261 = vunpack.c.h.b16 %v211
  %v1262 = vunpack.c.l.b16 %v212
  %v1263 = vunpack.c.l.b16 %v213
  %v1264 = vunpack.c.h.b16 %v213
  %v1265 = vunpack.c.l.b16 %v214
  %v1266 = vunpack.c.h.b16 %v214
  %v1267 = vunpack.c.l.b16 %v215
  %v1268 = vunpack.c.h.b16 %v215
  %v1269 = vunpack.c.l.b16 %v216
  %v1270 = vunpack.c.l.b16 %v217
  %v1271 = vunpack.c.h.b16 %v217
  %v1272 = vunpack.c.l.b16 %v218
  %v1273 = vunpack.c.h.b16 %v218
  %v1274 = vunpack.c.l.b16 %v219
  %v1275 = vunpack.c.h.b16 %v219
  %v1276 = vunpack.c.l.b16 %v220
  %v1277 = vunpack.c.l.b16 %v221
  %v1278 = vunpack.c.h.b16 %v221
  %v1279 = vunpack.c.l.b16 %v222
  %v1280 = vunpack.c.h.b16 %v222
  %v1281 = vunpack.c.l.b16 %v223
  %v1282 = vunpack.c.h.b16 %v223
  %v1283 = vunpack.c.l.b16 %v224
  %v1284 = vunpack.c.l.b16 %v225
  %v1285 = vunpack.c.h.b16 %v225
  %v1286 = vunpack.c.l.b16 %v226
  %v1287 = vunpack.c.h.b16 %v226
  %v1288 = vunpack.c.l.b16 %v227
  %v1289 = vunpack.c.h.b16 %v227
  %v1290 = vunpack.c.l.b16 %v228
  %v1291 = vunpack.c.l.b16 %v229
  %v1292 = vunpack.c.h.b16 %v229
  %v1293 = vunpack.c.l.b16 %v230
  %v1294 = vunpack.c.h.b16 %v230
  %v1295 = vunpack.c.l.b16 %v231
  %v1296 = vunpack.c.h.b16 %v231
  %v1297 = vunpack.c.l.b16 %v232
  %v1298 = vunpack.c.l.b16 %v233
  %v1299 = vunpack.c.h.b16 %v233
  %v1300 = vunpack.c.l.b16 %v234
  %v1301 = vunpack.c.h.b16 %v234
  %v1302 = vunpack.c.l.b16 %v235
  %v1303 = vunpack.c.h.b16 %v235
  %v1304 = vunpack.c.l.b16 %v236
  %v1305 = vunpack.c.l.b16 %v237
  %v1306 = vunpack.c.h.b16 %v237
  %v1307 = vunpack.c.l.b16 %v238
  %v1308 = vunpack.c.h.b16 %v238
  %v1309 = vunpack.c.l.b16 %v239
  %v1310 = vunpack.c.h.b16 %v239
  %v1311 = vunpack.c.l.b16 %v240
  %v1312 = vunpack.c.l.b16 %v241
  %v1313 = vunpack.c.h.b16 %v241
  %v1314 = vunpack.c.l.b16 %v242
  %v1315 = vunpack.c.h.b16 %v242
  %v1316 = vunpack.c.l.b16 %v243
  %v1317 = vunpack.c.h.b16 %v243
  %v1318 = vunpack.c.l.b16 %v244
  %v1319 = vunpack.c.l.b16 %v245
  %v1320 = vunpack.c.h.b16 %v245
  %v1321 = vunpack.c.l.b16 %v246
  %v1322 = vunpack.c.h.b16 %v246
  %v1323 = vunpack.c.l.b16 %v247
  %v1324 = vunpack.c.h.b16 %v247
  %v1325 = vunpack.c.l.b16 %v248
  %v1326 = vunpack.c.l.b16 %v249
  %v1327 = vunpack.c.h.b16 %v249
  %v1328 = vunpack.c.l.b16 %v250
  %v1329 = vunpack.c.h.b16 %v250
  %v1330 = vunpack.c.l.b16 %v251
  %v1331 = vunpack.c.h.b16 %v251
  %v1332 = vunpack.c.l.b16 %v252
  %v1333 = vunpack.c.l.b16 %v253
  %v1334 = vunpack.c.h.b16 %v253
  %v1335 = vunpack.c.l.b16 %v254
  %v1336 = vunpack.c.h.b16 %v254
  %v1337 = vunpack.c.l.b16 %v255
  %v1338 = vunpack.c.h.b16 %v255
  %v1339 = vunpack.c.l.b16 %v256
  %v1340 = vunpack.c.l.b16 %v257
  %v1341 = vunpack.c.h.b16 %v257
  %v1342 = vunpack.c.l.b16 %v258
  %v1343 = vunpack.c.h.b16 %v258
  %v1344 = vunpack.c.l.b16 %v259
  %v1345 = vunpack.c.h.b16 %v259
  %v1346 = vunpack.c.l.b16 %v260
  %v1347 = vunpack.c.l.b16 %v261
  %v1348 = vunpack.c.h.b16 %v261
  %v1349 = vunpack.c.l.b16 %v262
  %v1350 = vunpack.c.h.b16 %v262
  %v1351 = vunpack.c.l.b16 %v263
  %v1352 = vunpack.c.h.b16 %v263
  %v1353 = vunpack.c.l.b16 %v264
  %v1354 = vunpack.c.l.b16 %v265
  %v1355 = vunpack.c.h.b16 %v265
  %v1356 = vunpack.c.l.b16 %v266
  %v1357 = vunpack.c.h.b16 %v266
  %v1358 = vunpack.c.l.b16 %v267
  %v1359 = vunpack.c.h.b16 %v267
  %v1360 = vunpack.c.l.b16 %v268
  %v1361 = vunpack.c.l.b16 %v269
  %v1362 = vunpack.c.h.b16 %v269
  %v1363 = vunpack.c.l.b16 %v270
  %v1364 = vunpack.c.h.b16 %v270
  %v1365 = vunpack.c.l.b16 %v271
  %v1366 = vunpack.c.h.b16 %v271
  %v1367 = vunpack.c.l.b16 %v272
  %v1368 = vunpack.c.l.b16 %v273
  %v1369 = vunpack.c.h.b16 %v273
  %v1370 = vunpack.c.l.b16 %v274
  %v1371 = vunpack.c.h.b16 %v274
  %v1372 = vunpack.c.l.b16 %v275
  %v1373 = vunpack.c.h.b16 %v275
  %v1374 = vunpack.c.l.b16 %v276
  %v1375 = vunpack.c.l.b16 %v277
  %v1376 = vunpack.c.h.b16 %v277
  %v1377 = vunpack.c.l.b16 %v278
  %v1378 = vunpack.c.h.b16 %v278
  %v1379 = vunpack.c.l.b16 %v279
  %v1380 = vunpack.c.h.b16 %v279
  %v1381 = vunpack.c.l.b16 %v280
  %v1382 = vpack.c.b16 %v1235, %v1228
  %v1383 = vpack.c.b16 %v1236, %v1229
  %v1384 = vpack.c.b16 %v1237, %v1230
  %v1385 = vpack.c.b16 %v1238, %v1231
  %v1386 = vpack.c.b16 %v1239, %v1232
  %v1387 = vpack.c.b16 %v1240, %v1233
  %v1388 = vpack.c.b16 %v1241, %v1234
  %v1389 = vpack.c.b16 %v1249, %v1242
  %v1390 = vpack.c.b16 %v1250, %v1243
  %v1391 = vpack.c.b16 %v1251, %v1244
  %v1392 = vpack.c.b16 %v1252, %v1245
  %v1393 = vpack.c.b16 %v1253, %v1246
  %v1394 = vpack.c.b16 %v1254, %v1247
  %v1395 = vpack.c.b16 %v1255, %v1248
  %v1396 = vpack.c.b16 %v1263, %v1256
  %v1397 = vpack.c.b16 %v1264, %v1257
  %v1398 = vpack.c.b16 %v1265, %v1258
  %v1399 = vpack.c.b16 %v1266, %v1259
  %v1400 = vpack.c.b16 %v1267, %v1260
  %v1401 = vpack.c.b16 %v1268, %v1261
  %v1402 = vpack.c.b16 %v1269, %v1262
  %v1403 = vpack.c.b16 %v1277, %v1270
  %v1404 = vpack.c.b16 %v1278, %v1271
  %v1405 = vpack.c.b16 %v1279, %v1272
  %v1406 = vpack.c.b16 %v1280, %v1273
  %v1407 = vpack.c.b16 %v1281, %v1274
  %v1408 = vpack.c.b16 %v1282, %v1275
  %v1409 = vpack.c.b16 %v1283, %v1276
  %v1410 = vpack.c.b16 %v1291, %v1284
  %v1411 = vpack.c.b16 %v1292, %v1285
  %v1412 = vpack.c.b16 %v1293, %v1286
  %v1413 = vpack.c.b16 %v1294, %v1287
  %v1414 = vpack.c.b16 %v1295, %v1288
  %v1415 = vpack.c.b16 %v1296, %v1289
  %v1416 = vpack.c.b16 %v1297, %v1290
  %v1417 = vpack.c.b16 %v1305, %v1298
  %v1418 = vpack.c.b16 %v1306, %v1299
  %v1419 = vpack.c.b16 %v1307, %v1300
  %v1420 = vpack.c.b16 %v1308, %v1301
  %v1421 = vpack.c.b16 %v1309, %v1302
  %v1422 = vpack.c.b16 %v1310, %v1303
  %v1423 = vpack.c.b16 %v1311, %v1304
  %v1424 = vpack.c.b16 %v1319, %v1312
  %v1425 = vpack.c.b16 %v1320, %v1313
  %v1426 = vpack.c.b16 %v1321, %v1314
  %v1427 = vpack.c.b16 %v1322, %v1315
  %v1428 = vpack.c.b16 %v1323, %v1316
  %v1429 = vpack.c.b16 %v1324, %v1317
  %v1430 = vpack.c.b16 %v1325, %v1318
  %v1431 = vpack.c.b16 %v1333, %v1326
  %v1432 = vpack.c.b16 %v1334, %v1327
  %v1433 = vpack.c.b16 %v1335, %v1328
  %v1434 = vpack.c.b16 %v1336, %v1329
  %v1435 = vpack.c.b16 %v1337, %v1330
  %v1436 = vpack.c.b16 %v1338, %v1331
  %v1437 = vpack.c.b16 %v1339, %v1332
  %v1438 = vpack.c.b16 %v1347, %v1340
  %v1439 = vpack.c.b16 %v1348, %v1341
  %v1440 = vpack.c.b16 %v1349, %v1342
  %v1441 = vpack.c.b16 %v1350, %v1343
  %v1442 = vpack.c.b16 %v1351, %v1344
  %v1443 = vpack.c.b16 %v1352, %v1345
  %v1444 = vpack.c.b16 %v1353, %v1346
  %v1445 = vpack.c.b16 %v1361, %v1354
  %v1446 = vpack.c.b16 %v1362, %v1355
  %v1447 = vpack.c.b16 %v1363, %v1356
  %v1448 = vpack.c.b16 %v1364, %v1357
  %v1449 = vpack.c.b16 %v1365, %v1358
  %v1450 = vpack.c.b16 %v1366, %v1359
  %v1451 = vpack.c.b16 %v1367, %v1360
  %v1452 = vpack.c.b16 %v1375, %v1368
  %v1453 = vpack.c.b16 %v1376, %v1369
  %v1454 = vpack.c.b16 %v1377, %v1370
  %v1455 = vpack.c.b16 %v1378, %v1371
  %v1456 = vpack.c.b16 %v1379, %v1372
  %v1457 = vpack.c.b16 %v1380, %v1373
  %v1458 = vpack.c.b16 %v1381, %v1374
  %v1613 = vunpack.c.l.b16 %v282
  %v1614 = vunpack.c.h.b16 %v282
  %v1615 = vunpack.c.l.b16 %v283
  %v1616 = vunpack.c.h.b16 %v283
  %v1617 = vunpack.c.l.b16 %v284
  %v1618 = vunpack.c.h.b16 %v284
  %v1619 = vunpack.c.l.b16 %v285
  %v1620 = vunpack.c.l.b16 %v286
  %v1621 = vunpack.c.h.b16 %v286
  %v1622 = vunpack.c.l.b16 %v287
  %v1623 = vunpack.c.h.b16 %v287
  %v1624 = vunpack.c.l.b16 %v288
  %v1625 = vunpack.c.h.b16 %v288
  %v1626 = vunpack.c.l.b16 %v289
  %v1627 = vunpack.c.l.b16 %v290
  %v1628 = vunpack.c.h.b16 %v290
  %v1629 = vunpack.c.l.b16 %v291
  %v1630 = vunpack.c.h.b16 %v291
  %v1631 = vunpack.c.l.b16 %v292
  %v1632 = vunpack.c.h.b16 %v292
  %v1633 = vunpack.c.l.b16 %v293
  %v1634 = vunpack.c.l.b16 %v294
  %v1635 = vunpack.c.h.b16 %v294
  %v1636 = vunpack.c.l.b16 %v295
  %v1637 = vunpack.c.h.b16 %v295
  %v1638 = vunpack.c.l.b16 %v296
  %v1639 = vunpack.c.h.b16 %v296
  %v1640 = vunpack.c.l.b16 %v297
  %v1641 = vunpack.c.l.b16 %v298
  %v1642 = vunpack.c.h.b16 %v298
  %v1643 = vunpack.c.l.b16 %v299
  %v1644 = vunpack.c.h.b16 %v299
  %v1645 = vunpack.c.l.b16 %v300
  %v1646 = vunpack.c.h.b16 %v300
  %v1647 = vunpack.c.l.b16 %v301
  %v1648 = vunpack.c.l.b16 %v302
  %v1649 = vunpack.c.h.b16 %v302
  %v1650 = vunpack.c.l.b16 %v303
  %v1651 = vunpack.c.h.b16 %v303
  %v1652 = vunpack.c.l.b16 %v304
  %v1653 = vunpack.c.h.b16 %v304
  %v1654 = vunpack.c.l.b16 %v305
  %v1655 = vunpack.c.l.b16 %v306
  %v1656 = vunpack.c.h.b16 %v306
  %v1657 = vunpack.c.l.b16 %v307
  %v1658 = vunpack.c.h.b16 %v307
  %v1659 = vunpack.c.l.b16 %v308
  %v1660 = vunpack.c.h.b16 %v308
  %v1661 = vunpack.c.l.b16 %v309
  %v1662 = vunpack.c.l.b16 %v310
  %v1663 = vunpack.c.h.b16 %v310
  %v1664 = vunpack.c.l.b16 %v311
  %v1665 = vunpack.c.h.b16 %v311
  %v1666 = vunpack.c.l.b16 %v312
  %v1667 = vunpack.c.h.b16 %v312
  %v1668 = vunpack.c.l.b16 %v313
  %v1669 = vunpack.c.l.b16 %v314
  %v1670 = vunpack.c.h.b16 %v314
  %v1671 = vunpack.c.l.b16 %v315
  %v1672 = vunpack.c.h.b16 %v315
  %v1673 = vunpack.c.l.b16 %v316
  %v1674 = vunpack.c.h.b16 %v316
  %v1675 = vunpack.c.l.b16 %v317
  %v1676 = vunpack.c.l.b16 %v318
  %v1677 = vunpack.c.h.b16 %v318
  %v1678 = vunpack.c.l.b16 %v319
  %v1679 = vunpack.c.h.b16 %v319
  %v1680 = vunpack.c.l.b16 %v320
  %v1681 = vunpack.c.h.b16 %v320
  %v1682 = vunpack.c.l.b16 %v321
  %v1683 = vunpack.c.l.b16 %v322
  %v1684 = vunpack.c.h.b16 %v322
  %v1685 = vunpack.c.l.b16 %v323
  %v1686 = vunpack.c.h.b16 %v323
  %v1687 = vunpack.c.l.b16 %v324
  %v1688 = vunpack.c.h.b16 %v324
  %v1689 = vunpack.c.l.b16 %v325
  %v1690 = vunpack.c.l.b16 %v326
  %v1691 = vunpack.c.h.b16 %v326
  %v1692 = vunpack.c.l.b16 %v327
  %v1693 = vunpack.c.h.b16 %v327
  %v1694 = vunpack.c.l.b16 %v328
  %v1695 = vunpack.c.h.b16 %v328
  %v1696 = vunpack.c.l.b16 %v329
  %v1697 = vunpack.c.l.b16 %v330
  %v1698 = vunpack.c.h.b16 %v330
  %v1699 = vunpack.c.l.b16 %v331
  %v1700 = vunpack.c.h.b16 %v331
  %v1701 = vunpack.c.l.b16 %v332
  %v1702 = vunpack.c.h.b16 %v332
  %v1703 = vunpack.c.l.b16 %v333
  %v1704 = vunpack.c.l.b16 %v334
  %v1705 = vunpack.c.h.b16 %v334
  %v1706 = vunpack.c.l.b16 %v335
  %v1707 = vunpack.c.h.b16 %v335
  %v1708 = vunpack.c.l.b16 %v336
  %v1709 = vunpack.c.h.b16 %v336
  %v1710 = vunpack.c.l.b16 %v337
  %v1711 = vunpack.c.l.b16 %v338
  %v1712 = vunpack.c.h.b16 %v338
  %v1713 = vunpack.c.l.b16 %v339
  %v1714 = vunpack.c.h.b16 %v339
  %v1715 = vunpack.c.l.b16 %v340
  %v1716 = vunpack.c.h.b16 %v340
  %v1717 = vunpack.c.l.b16 %v341
  %v1718 = vunpack.c.l.b16 %v342
  %v1719 = vunpack.c.h.b16 %v342
  %v1720 = vunpack.c.l.b16 %v343
  %v1721 = vunpack.c.h.b16 %v343
  %v1722 = vunpack.c.l.b16 %v344
  %v1723 = vunpack.c.h.b16 %v344
  %v1724 = vunpack.c.l.b16 %v345
  %v1725 = vunpack.c.l.b16 %v346
  %v1726 = vunpack.c.h.b16 %v346
  %v1727 = vunpack.c.l.b16 %v347
  %v1728 = vunpack.c.h.b16 %v347
  %v1729 = vunpack.c.l.b16 %v348
  %v1730 = vunpack.c.h.b16 %v348
  %v1731 = vunpack.c.l.b16 %v349
  %v1732 = vunpack.c.l.b16 %v350
  %v1733 = vunpack.c.h.b16 %v350
  %v1734 = vunpack.c.l.b16 %v351
  %v1735 = vunpack.c.h.b16 %v351
  %v1736 = vunpack.c.l.b16 %v352
  %v1737 = vunpack.c.h.b16 %v352
  %v1738 = vunpack.c.l.b16 %v353
  %v1739 = vunpack.c.l.b16 %v354
  %v1740 = vunpack.c.h.b16 %v354
  %v1741 = vunpack.c.l.b16 %v355
  %v1742 = vunpack.c.h.b16 %v355
  %v1743 = vunpack.c.l.b16 %v356
  %v1744 = vunpack.c.h.b16 %v356
  %v1745 = vunpack.c.l.b16 %v357
  %v1746 = vunpack.c.l.b16 %v358
  %v1747 = vunpack.c.h.b16 %v358
  %v1748 = vunpack.c.l.b16 %v359
  %v1749 = vunpack.c.h.b16 %v359
  %v1750 = vunpack.c.l.b16 %v360
  %v1751 = vunpack.c.h.b16 %v360
  %v1752 = vunpack.c.l.b16 %v361
  %v1753 = vunpack.c.l.b16 %v362
  %v1754 = vunpack.c.h.b16 %v362
  %v1755 = vunpack.c.l.b16 %v363
  %v1756 = vunpack.c.h.b16 %v363
  %v1757 = vunpack.c.l.b16 %v364
  %v1758 = vunpack.c.h.b16 %v364
  %v1759 = vunpack.c.l.b16 %v365
  %v1760 = vunpack.c.l.b16 %v366
  %v1761 = vunpack.c.h.b16 %v366
  %v1762 = vunpack.c.l.b16 %v367
  %v1763 = vunpack.c.h.b16 %v367
  %v1764 = vunpack.c.l.b16 %v368
  %v1765 = vunpack.c.h.b16 %v368
  %v1766 = vunpack.c.l.b16 %v369
  %v1767 = vpack.c.b16 %v1620, %v1613
  %v1768 = vpack.c.b16 %v1621, %v1614
  %v1769 = vpack.c.b16 %v1622, %v1615
  %v1770 = vpack.c.b16 %v1623, %v1616
  %v1771 = vpack.c.b16 %v1624, %v1617
  %v1772 = vpack.c.b16 %v1625, %v1618
  %v1773 = vpack.c.b16 %v1626, %v1619
  %v1774 = vpack.c.b16 %v1634, %v1627
  %v1775 = vpack.c.b16 %v1635, %v1628
  %v1776 = vpack.c.b16 %v1636, %v1629
  %v1777 = vpack.c.b16 %v1637, %v1630
  %v1778 = vpack.c.b16 %v1638, %v1631
  %v1779 = vpack.c.b16 %v1639, %v1632
  %v1780 = vpack.c.b16 %v1640, %v1633
  %v1781 = vpack.c.b16 %v1648, %v1641
  %v1782 = vpack.c.b16 %v1649, %v1642
  %v1783 = vpack.c.b16 %v1650, %v1643
  %v1784 = vpack.c.b16 %v1651, %v1644
  %v1785 = vpack.c.b16 %v1652, %v1645
  %v1786 = vpack.c.b16 %v1653, %v1646
  %v1787 = vpack.c.b16 %v1654, %v1647
  %v1788 = vpack.c.b16 %v1662, %v1655
  %v1789 = vpack.c.b16 %v1663, %v1656
  %v1790 = vpack.c.b16 %v1664, %v1657
  %v1791 = vpack.c.b16 %v1665, %v1658
  %v1792 = vpack.c.b16 %v1666, %v1659
  %v1793 = vpack.c.b16 %v1667, %v1660
  %v1794 = vpack.c.b16 %v1668, %v1661
  %v1795 = vpack.c.b16 %v1676, %v1669
  %v1796 = vpack.c.b16 %v1677, %v1670
  %v1797 = vpack.c.b16 %v1678, %v1671
  %v1798 = vpack.c.b16 %v1679, %v1672
  %v1799 = vpack.c.b16 %v1680, %v1673
  %v1800 = vpack.c.b16 %v1681, %v1674
  %v1801 = vpack.c.b16 %v1682, %v1675
  %v1802 = vpack.c.b16 %v1690, %v1683
  %v1803 = vpack.c.b16 %v1691, %v1684
  %v1804 = vpack.c.b16 %v1692, %v1685
  %v1805 = vpack.c.b16 %v1693, %v1686
  %v1806 = vpack.c.b16 %v1694, %v1687
  %v1807 = vpack.c.b16 %v1695, %v1688
  %v1808 = vpack.c.b16 %v1696, %v1689
  %v1809 = vpack.c.b16 %v1704, %v1697
  %v1810 = vpack.c.b16 %v1705, %v1698
  %v1811 = vpack.c.b16 %v1706, %v1699
  %v1812 = vpack.c.b16 %v1707, %v1700
  %v1813 = vpack.c.b16 %v1708, %v1701
  %v1814 = vpack.c.b16 %v1709, %v1702
  %v1815 = vpack.c.b16 %v1710, %v1703
  %v1816 = vpack.c.b16 %v1718, %v1711
  %v1817 = vpack.c.b16 %v1719, %v1712
  %v1818 = vpack.c.b16 %v1720, %v1713
  %v1819 = vpack.c.b16 %v1721, %v1714
  %v1820 = vpack.c.b16 %v1722, %v1715
  %v1821 = vpack.c.b16 %v1723, %v1716
  %v1822 = vpack.c.b16 %v1724, %v1717
  %v1823 = vpack.c.b16 %v1732, %v1725
  %v1824 = vpack.c.b16 %v1733, %v1726
  %v1825 = vpack.c.b16 %v1734, %v1727
  %v1826 = vpack.c.b16 %v1735, %v1728
  %v1827 = vpack.c.b16 %v1736, %v1729
  %v1828 = vpack.c.b16 %v1737, %v1730
  %v1829 = vpack.c.b16 %v1738, %v1731
  %v1830 = vpack.c.b16 %v1746, %v1739
  %v1831 = vpack.c.b16 %v1747, %v1740
  %v1832 = vpack.c.b16 %v1748, %v1741
  %v1833 = vpack.c.b16 %v1749, %v1742
  %v1834 = vpack.c.b16 %v1750, %v1743
  %v1835 = vpack.c.b16 %v1751, %v1744
  %v1836 = vpack.c.b16 %v1752, %v1745
  %v1837 = vpack.c.b16 %v1760, %v1753
  %v1838 = vpack.c.b16 %v1761, %v1754
  %v1839 = vpack.c.b16 %v1762, %v1755
  %v1840 = vpack.c.b16 %v1763, %v1756
  %v1841 = vpack.c.b16 %v1764, %v1757
  %v1842 = vpack.c.b16 %v1765, %v1758
  %v1843 = vpack.c.b16 %v1766, %v1759
  %v1910 = vld [vmem:[%s1] sm:$0xf]
  %v1911 = vld [vmem:[%s1 + $0x4] sm:$0xf]
  %v1912 = vld [vmem:[%s1 + $0x8] sm:$0xf]
  %v1913 = vld [vmem:[%s1 + $0xc] sm:$0xf]
  %v1914 = vld [vmem:[%s1 + $0x10] sm:$0xf]
  %v1915 = vld [vmem:[%s1 + $0x14] sm:$0xf]
  %v1916 = vld [vmem:[%s1 + $0x18] sm:$0xf]
  %v1917 = vld [vmem:[%s1 + $0x1c] sm:$0xf]
  %v1918 = vld [vmem:[%s1 + $0x20] sm:$0xf]
  %v1919 = vld [vmem:[%s1 + $0x24] sm:$0xf]
  %v1920 = vld [vmem:[%s1 + $0x28] sm:$0xf]
  %v1921 = vld [vmem:[%s1 + $0x2c] sm:$0xf]
  %v1922 = vld [vmem:[%s1 + $0x30] sm:$0xf]
  %v1923 = vld [vmem:[%s1 + $0x34] sm:$0xf]
  %v1924 = vld [vmem:[%s1 + $0x38] sm:$0xf]
  %v1925 = vld [vmem:[%s1 + $0x3c] sm:$0xf]
  %v1926 = vld [vmem:[%s1 + $0x40] sm:$0xf]
  %v1927 = vld [vmem:[%s1 + $0x44] sm:$0xf]
  %v1928 = vld [vmem:[%s1 + $0x48] sm:$0xf]
  %v1929 = vld [vmem:[%s1 + $0x4c] sm:$0xf]
  %v1930 = vld [vmem:[%s1 + $0x50] sm:$0xf]
  %v1931 = vld [vmem:[%s1 + $0x54] sm:$0xf]
  %v1932 = vld [vmem:[%s1 + $0x58] sm:$0xf]
  %v1933 = vld [vmem:[%s1 + $0x5c] sm:$0xf]
  %v1934 = vld [vmem:[%s1 + $0x60] sm:$0xf]
  %v1935 = vld [vmem:[%s1 + $0x64] sm:$0xf]
  %v1936 = vld [vmem:[%s1 + $0x68] sm:$0xf]
  %v1937 = vld [vmem:[%s1 + $0x6c] sm:$0xf]
  %v1938 = vld [vmem:[%s1 + $0x70] sm:$0xf]
  %v1939 = vld [vmem:[%s1 + $0x74] sm:$0xf]
  %v1940 = vld [vmem:[%s1 + $0x78] sm:$0xf]
  %v1941 = vld [vmem:[%s1 + $0x7c] sm:$0xf]
  %v1942 = vld [vmem:[%s1 + $0x80] sm:$0xf]
  %v1943 = vld [vmem:[%s1 + $0x84] sm:$0xf]
  %v1944 = vld [vmem:[%s1 + $0x88] sm:$0xf]
  %v1945 = vld [vmem:[%s1 + $0x8c] sm:$0xf]
  %v1946 = vld [vmem:[%s1 + $0x90] sm:$0xf]
  %v1947 = vld [vmem:[%s1 + $0x94] sm:$0xf]
  %v1948 = vld [vmem:[%s1 + $0x98] sm:$0xf]
  %v1949 = vld [vmem:[%s1 + $0x9c] sm:$0xf]
  %v1950 = vld [vmem:[%s1 + $0xa0] sm:$0xf]
  %v1951 = vld [vmem:[%s1 + $0xa4] sm:$0xf]
  %v1952 = vld [vmem:[%s1 + $0xa8] sm:$0xf]
  %v1953 = vld [vmem:[%s1 + $0xac] sm:$0xf]
  %v1954 = vld [vmem:[%s1 + $0xb0] sm:$0xf]
  %v1955 = vld [vmem:[%s1 + $0xb4] sm:$0xf]
  %v1956 = vld [vmem:[%s1 + $0xb8] sm:$0xf]
  %v1957 = vld [vmem:[%s1 + $0xbc] sm:$0xf]
  %v1958 = vld [vmem:[%s1 + $0xc0] sm:$0xf]
  %v1959 = vld [vmem:[%s1 + $0xc4] sm:$0xf]
  %v1960 = vld [vmem:[%s1 + $0xc8] sm:$0xf]
  %v1961 = vld [vmem:[%s1 + $0xcc] sm:$0xf]
  %v1962 = vld [vmem:[%s1 + $0xd0] sm:$0xf]
  %v1963 = vld [vmem:[%s1 + $0xd4] sm:$0xf]
  %v1964 = vld [vmem:[%s1 + $0xd8] sm:$0xf]
  %v1965 = vld [vmem:[%s1 + $0xdc] sm:$0xf]
  %v1966 = vld [vmem:[%s1 + $0xe0] sm:$0xf]
  %v1967 = vld [vmem:[%s1 + $0xe4] sm:$0xf]
  %v1968 = vld [vmem:[%s1 + $0xe8] sm:$0xf]
  %v1969 = vld [vmem:[%s1 + $0xec] sm:$0xf]
  %v1970 = vld [vmem:[%s1 + $0xf0] sm:$0xf]
  %v1971 = vld [vmem:[%s1 + $0xf4] sm:$0xf]
  %v1972 = vld [vmem:[%s1 + $0xf8] sm:$0xf]
  %v1973 = vld [vmem:[%s1 + $0xfc] sm:$0xf]
  %v1974 = vld [vmem:[%s1 + $0x100] sm:$0xf]
  %v1975 = vld [vmem:[%s1 + $0x104] sm:$0xf]
  %v1976 = vld [vmem:[%s1 + $0x108] sm:$0xf]
  %v1977 = vld [vmem:[%s1 + $0x10c] sm:$0xf]
  %v1978 = vld [vmem:[%s1 + $0x110] sm:$0xf]
  %v1979 = vld [vmem:[%s1 + $0x114] sm:$0xf]
  %v1980 = vld [vmem:[%s1 + $0x118] sm:$0xf]
  %v1981 = vld [vmem:[%s1 + $0x11c] sm:$0xf]
  %v1982 = vld [vmem:[%s1 + $0x120] sm:$0xf]
  %v1983 = vld [vmem:[%s1 + $0x124] sm:$0xf]
  %v1984 = vld [vmem:[%s1 + $0x128] sm:$0xf]
  %v1985 = vld [vmem:[%s1 + $0x12c] sm:$0xf]
  %v1986 = vld [vmem:[%s1 + $0x130] sm:$0xf]
  %v1987 = vld [vmem:[%s1 + $0x134] sm:$0xf]
  %v1988 = vld [vmem:[%s1 + $0x138] sm:$0xf]
  %v1989 = vld [vmem:[%s1 + $0x13c] sm:$0xf]
  %v1990 = vld [vmem:[%s1 + $0x140] sm:$0xf]
  %v1991 = vld [vmem:[%s1 + $0x144] sm:$0xf]
  %v1992 = vld [vmem:[%s1 + $0x148] sm:$0xf]
  %v1993 = vld [vmem:[%s1 + $0x14c] sm:$0xf]
  %v1994 = vld [vmem:[%s1 + $0x150] sm:$0xf]
  %v1995 = vld [vmem:[%s1 + $0x154] sm:$0xf]
  %v1996 = vld [vmem:[%s1 + $0x158] sm:$0xf]
  %v1997 = vld [vmem:[%s1 + $0x15c] sm:$0xf]
  %v1998 = vld [vmem:[%s1 + $0x160] sm:$0xf]
  %v1999 = vld [vmem:[%s1 + $0x164] sm:$0xf]
  %v2000 = vld [vmem:[%s1 + $0x168] sm:$0xf]
  %v2001 = vld [vmem:[%s1 + $0x16c] sm:$0xf]
  %v2002 = vld [vmem:[%s1 + $0x170] sm:$0xf]
  %v2003 = vld [vmem:[%s1 + $0x174] sm:$0xf]
  %v2004 = vld [vmem:[%s1 + $0x178] sm:$0xf]
  %v2005 = vld [vmem:[%s1 + $0x17c] sm:$0xf]
  %v2006 = vld [vmem:[%s1 + $0x180] sm:$0xf]
  %v2007 = vld [vmem:[%s1 + $0x184] sm:$0xf]
  %v2008 = vld [vmem:[%s1 + $0x188] sm:$0xf]
  %v2009 = vld [vmem:[%s1 + $0x18c] sm:$0xf]
  %v2010 = vld [vmem:[%s2] sm:$0x1]
  %v2012 = vlaneseq
  %v2013 = vshrl.u32 %v2012, 7
  %v2014 = vsub.s32 0, %v2013
  %v2015 = vrot.slane %v2010, %v2014
  %v2117 = vunpack.c.l.b16 %v1910
  %v2118 = vunpack.c.l.b16 %v1911
  %v2119 = vunpack.c.l.b16 %v1912
  %v2120 = vunpack.c.l.b16 %v1913
  %v2121 = vunpack.c.l.b16 %v1914
  %v2122 = vunpack.c.l.b16 %v1915
  %v2123 = vunpack.c.l.b16 %v1916
  %v2124 = vunpack.c.l.b16 %v1917
  %v2125 = vunpack.c.l.b16 %v1918
  %v2126 = vunpack.c.l.b16 %v1919
  %v2127 = vunpack.c.l.b16 %v1920
  %v2128 = vunpack.c.l.b16 %v1921
  %v2129 = vunpack.c.l.b16 %v1922
  %v2130 = vunpack.c.l.b16 %v1923
  %v2131 = vunpack.c.l.b16 %v1924
  %v2132 = vunpack.c.l.b16 %v1925
  %v2133 = vunpack.c.l.b16 %v1926
  %v2134 = vunpack.c.l.b16 %v1927
  %v2135 = vunpack.c.l.b16 %v1928
  %v2136 = vunpack.c.l.b16 %v1929
  %v2137 = vunpack.c.l.b16 %v1930
  %v2138 = vunpack.c.l.b16 %v1931
  %v2139 = vunpack.c.l.b16 %v1932
  %v2140 = vunpack.c.l.b16 %v1933
  %v2141 = vunpack.c.l.b16 %v1934
  %v2142 = vunpack.c.l.b16 %v1935
  %v2143 = vunpack.c.l.b16 %v1936
  %v2144 = vunpack.c.l.b16 %v1937
  %v2145 = vunpack.c.l.b16 %v1938
  %v2146 = vunpack.c.l.b16 %v1939
  %v2147 = vunpack.c.l.b16 %v1940
  %v2148 = vunpack.c.l.b16 %v1941
  %v2149 = vunpack.c.l.b16 %v1942
  %v2150 = vunpack.c.l.b16 %v1943
  %v2151 = vunpack.c.l.b16 %v1944
  %v2152 = vunpack.c.l.b16 %v1945
  %v2153 = vunpack.c.l.b16 %v1946
  %v2154 = vunpack.c.l.b16 %v1947
  %v2155 = vunpack.c.l.b16 %v1948
  %v2156 = vunpack.c.l.b16 %v1949
  %v2157 = vunpack.c.l.b16 %v1950
  %v2158 = vunpack.c.l.b16 %v1951
  %v2159 = vunpack.c.l.b16 %v1952
  %v2160 = vunpack.c.l.b16 %v1953
  %v2161 = vunpack.c.l.b16 %v1954
  %v2162 = vunpack.c.l.b16 %v1955
  %v2163 = vunpack.c.l.b16 %v1956
  %v2164 = vunpack.c.l.b16 %v1957
  %v2165 = vunpack.c.l.b16 %v1958
  %v2166 = vunpack.c.l.b16 %v1959
  %v2167 = vunpack.c.l.b16 %v1960
  %v2168 = vunpack.c.l.b16 %v1961
  %v2169 = vunpack.c.l.b16 %v1962
  %v2170 = vunpack.c.l.b16 %v1963
  %v2171 = vunpack.c.l.b16 %v1964
  %v2172 = vunpack.c.l.b16 %v1965
  %v2173 = vunpack.c.l.b16 %v1966
  %v2174 = vunpack.c.l.b16 %v1967
  %v2175 = vunpack.c.l.b16 %v1968
  %v2176 = vunpack.c.l.b16 %v1969
  %v2177 = vunpack.c.l.b16 %v1970
  %v2178 = vunpack.c.l.b16 %v1971
  %v2179 = vunpack.c.l.b16 %v1972
  %v2180 = vunpack.c.l.b16 %v1973
  %v2181 = vunpack.c.l.b16 %v1974
  %v2182 = vunpack.c.l.b16 %v1975
  %v2183 = vunpack.c.l.b16 %v1976
  %v2184 = vunpack.c.l.b16 %v1977
  %v2185 = vunpack.c.l.b16 %v1978
  %v2186 = vunpack.c.l.b16 %v1979
  %v2187 = vunpack.c.l.b16 %v1980
  %v2188 = vunpack.c.l.b16 %v1981
  %v2189 = vunpack.c.l.b16 %v1982
  %v2190 = vunpack.c.l.b16 %v1983
  %v2191 = vunpack.c.l.b16 %v1984
  %v2192 = vunpack.c.l.b16 %v1985
  %v2193 = vunpack.c.l.b16 %v1986
  %v2194 = vunpack.c.l.b16 %v1987
  %v2195 = vunpack.c.l.b16 %v1988
  %v2196 = vunpack.c.l.b16 %v1989
  %v2197 = vunpack.c.l.b16 %v1990
  %v2198 = vunpack.c.l.b16 %v1991
  %v2199 = vunpack.c.l.b16 %v1992
  %v2200 = vunpack.c.l.b16 %v1993
  %v2201 = vunpack.c.l.b16 %v1994
  %v2202 = vunpack.c.l.b16 %v1995
  %v2203 = vunpack.c.l.b16 %v1996
  %v2204 = vunpack.c.l.b16 %v1997
  %v2205 = vunpack.c.l.b16 %v1998
  %v2206 = vunpack.c.l.b16 %v1999
  %v2207 = vunpack.c.l.b16 %v2000
  %v2208 = vunpack.c.l.b16 %v2001
  %v2209 = vunpack.c.l.b16 %v2002
  %v2210 = vunpack.c.l.b16 %v2003
  %v2211 = vunpack.c.l.b16 %v2004
  %v2212 = vunpack.c.l.b16 %v2005
  %v2213 = vunpack.c.l.b16 %v2006
  %v2214 = vunpack.c.l.b16 %v2007
  %v2215 = vunpack.c.l.b16 %v2008
  %v2216 = vunpack.c.l.b16 %v2009
  %v2217 = vpack.c.b16 %v2118, %v2117
  %v2218 = vpack.c.b16 %v2120, %v2119
  %v2219 = vpack.c.b16 %v2122, %v2121
  %v2220 = vpack.c.b16 %v2124, %v2123
  %v2221 = vpack.c.b16 %v2126, %v2125
  %v2222 = vpack.c.b16 %v2128, %v2127
  %v2223 = vpack.c.b16 %v2130, %v2129
  %v2224 = vpack.c.b16 %v2132, %v2131
  %v2225 = vpack.c.b16 %v2134, %v2133
  %v2226 = vpack.c.b16 %v2136, %v2135
  %v2227 = vpack.c.b16 %v2138, %v2137
  %v2228 = vpack.c.b16 %v2140, %v2139
  %v2229 = vpack.c.b16 %v2142, %v2141
  %v2230 = vpack.c.b16 %v2144, %v2143
  %v2231 = vpack.c.b16 %v2146, %v2145
  %v2232 = vpack.c.b16 %v2148, %v2147
  %v2233 = vpack.c.b16 %v2150, %v2149
  %v2234 = vpack.c.b16 %v2152, %v2151
  %v2235 = vpack.c.b16 %v2154, %v2153
  %v2236 = vpack.c.b16 %v2156, %v2155
  %v2237 = vpack.c.b16 %v2158, %v2157
  %v2238 = vpack.c.b16 %v2160, %v2159
  %v2239 = vpack.c.b16 %v2162, %v2161
  %v2240 = vpack.c.b16 %v2164, %v2163
  %v2241 = vpack.c.b16 %v2166, %v2165
  %v2242 = vpack.c.b16 %v2168, %v2167
  %v2243 = vpack.c.b16 %v2170, %v2169
  %v2244 = vpack.c.b16 %v2172, %v2171
  %v2245 = vpack.c.b16 %v2174, %v2173
  %v2246 = vpack.c.b16 %v2176, %v2175
  %v2247 = vpack.c.b16 %v2178, %v2177
  %v2248 = vpack.c.b16 %v2180, %v2179
  %v2249 = vpack.c.b16 %v2182, %v2181
  %v2250 = vpack.c.b16 %v2184, %v2183
  %v2251 = vpack.c.b16 %v2186, %v2185
  %v2252 = vpack.c.b16 %v2188, %v2187
  %v2253 = vpack.c.b16 %v2190, %v2189
  %v2254 = vpack.c.b16 %v2192, %v2191
  %v2255 = vpack.c.b16 %v2194, %v2193
  %v2256 = vpack.c.b16 %v2196, %v2195
  %v2257 = vpack.c.b16 %v2198, %v2197
  %v2258 = vpack.c.b16 %v2200, %v2199
  %v2259 = vpack.c.b16 %v2202, %v2201
  %v2260 = vpack.c.b16 %v2204, %v2203
  %v2261 = vpack.c.b16 %v2206, %v2205
  %v2262 = vpack.c.b16 %v2208, %v2207
  %v2263 = vpack.c.b16 %v2210, %v2209
  %v2264 = vpack.c.b16 %v2212, %v2211
  %v2265 = vpack.c.b16 %v2214, %v2213
  %v2266 = vpack.c.b16 %v2216, %v2215
  %vm2317 = vcmask 261120
  %v2319 = vsel %vm2317, %v618, 0
  %v2322 = vsel %vm2317, %v625, 0
  %v2325 = vsel %vm2317, %v632, 0
  %v2328 = vsel %vm2317, %v639, 0
  %v2331 = vsel %vm2317, %v646, 0
  %v2334 = vsel %vm2317, %v653, 0
  %v2337 = vsel %vm2317, %v660, 0
  %v2340 = vsel %vm2317, %v667, 0
  %v2343 = vsel %vm2317, %v674, 0
  %v2346 = vsel %vm2317, %v681, 0
  %v2349 = vsel %vm2317, %v688, 0
  %v2352 = vsel %vm2317, %v1003, 0
  %v2355 = vsel %vm2317, %v1010, 0
  %v2358 = vsel %vm2317, %v1017, 0
  %v2361 = vsel %vm2317, %v1024, 0
  %v2364 = vsel %vm2317, %v1031, 0
  %v2367 = vsel %vm2317, %v1038, 0
  %v2370 = vsel %vm2317, %v1045, 0
  %v2373 = vsel %vm2317, %v1052, 0
  %v2376 = vsel %vm2317, %v1059, 0
  %v2379 = vsel %vm2317, %v1066, 0
  %v2382 = vsel %vm2317, %v1073, 0
  %v2385 = vsel %vm2317, %v1388, 0
  %v2388 = vsel %vm2317, %v1395, 0
  %v2391 = vsel %vm2317, %v1402, 0
  %v2394 = vsel %vm2317, %v1409, 0
  %v2397 = vsel %vm2317, %v1416, 0
  %v2400 = vsel %vm2317, %v1423, 0
  %v2403 = vsel %vm2317, %v1430, 0
  %v2406 = vsel %vm2317, %v1437, 0
  %v2409 = vsel %vm2317, %v1444, 0
  %v2412 = vsel %vm2317, %v1451, 0
  %v2415 = vsel %vm2317, %v1458, 0
  %v2418 = vsel %vm2317, %v1773, 0
  %v2421 = vsel %vm2317, %v1780, 0
  %v2424 = vsel %vm2317, %v1787, 0
  %v2427 = vsel %vm2317, %v1794, 0
  %v2430 = vsel %vm2317, %v1801, 0
  %v2433 = vsel %vm2317, %v1808, 0
  %v2436 = vsel %vm2317, %v1815, 0
  %v2439 = vsel %vm2317, %v1822, 0
  %v2442 = vsel %vm2317, %v1829, 0
  %v2445 = vsel %vm2317, %v1836, 0
  %v2448 = vsel %vm2317, %v1843, 0
  %2450 = vmatprep.subr.bf16.mxu0 0
  %2451 = vmatpush1.bf16.msra.mxu0 %v2217
  %2452 = vmatprep.subr.bf16.mxu0 0
  %2453 = vmatpush1.bf16.msra.mxu0 %v2218
  %2454 = vmatprep.subr.bf16.mxu0 0
  %2455 = vmatpush1.bf16.msra.mxu0 %v2219
  %2456 = vmatprep.subr.bf16.mxu0 0
  %2457 = vmatpush1.bf16.msra.mxu0 %v2220
  %2458 = vmatprep.subr.bf16.mxu0 0
  %2459 = vmatpush1.bf16.msra.mxu0 %v2221
  %2460 = vmatprep.subr.bf16.mxu0 0
  %2461 = vmatpush1.bf16.msra.mxu0 %v2222
  %2462 = vmatprep.subr.bf16.mxu0 0
  %2463 = vmatpush1.bf16.msra.mxu0 %v2223
  %2464 = vmatprep.subr.bf16.mxu0 0
  %2465 = vmatpush1.bf16.msra.mxu0 %v2224
  %2466 = vmatprep.subr.bf16.mxu0 0
  %2467 = vmatpush1.bf16.msra.mxu0 %v2225
  %2468 = vmatprep.subr.bf16.mxu0 0
  %2469 = vmatpush1.bf16.msra.mxu0 %v2226
  %2470 = vmatprep.subr.bf16.mxu0 0
  %2471 = vmatpush1.bf16.msra.mxu0 %v2227
  %2472 = vmatprep.subr.bf16.mxu0 0
  %2473 = vmatpush1.bf16.msra.mxu0 %v2228
  %2474 = vmatprep.subr.bf16.mxu0 0
  %2475 = vmatpush1.bf16.msra.mxu0 %v2229
  %2476 = vmatprep.subr.bf16.mxu0 0
  %2477 = vmatpush1.bf16.msra.mxu0 %v2230
  %2478 = vmatprep.subr.bf16.mxu0 0
  %2479 = vmatpush1.bf16.msra.mxu0 %v2231
  %2480 = vmatprep.subr.bf16.mxu0 0
  %2481 = vmatpush1.bf16.msra.mxu0 %v2232
  %2482 = vmatprep.mubr.bf16.mxu0 %v613
  %2483 = vmatmul.mubr.bf16.gmra.mrb[0].mxu0 %v612
  %v2484 = vpop.f32.mrb[0].mxu0
  %v2485 = vadd.f32 %v2015, %v2484
  %v2486 = vpop.f32.mrb[0].mxu0
  %v2487 = vpop.f32.mrb[0].mxu0
  %v2488 = vadd.f32 %v2015, %v2487
  %v2489 = vpop.f32.mrb[0].mxu0
  %2490 = vmatprep.mubr.bf16.mxu0 %v620
  %2491 = vmatmul.mubr.bf16.gmra.mrb[0].mxu0 %v619
  %v2492 = vpop.f32.mrb[0].mxu0
  %v2493 = vadd.f32 %v2015, %v2492
  %v2494 = vpop.f32.mrb[0].mxu0
  %v2495 = vpop.f32.mrb[0].mxu0
  %v2496 = vadd.f32 %v2015, %v2495
  %v2497 = vpop.f32.mrb[0].mxu0
  %2498 = vmatprep.mubr.bf16.mxu0 %v627
  %2499 = vmatmul.mubr.bf16.gmra.mrb[0].mxu0 %v626
  %v2500 = vpop.f32.mrb[0].mxu0
  %v2501 = vadd.f32 %v2015, %v2500
  %v2502 = vpop.f32.mrb[0].mxu0
  %v2503 = vpop.f32.mrb[0].mxu0
  %v2504 = vadd.f32 %v2015, %v2503
  %v2505 = vpop.f32.mrb[0].mxu0
  %2506 = vmatprep.mubr.bf16.mxu0 %v634
  %2507 = vmatmul.mubr.bf16.gmra.mrb[0].mxu0 %v633
  %v2508 = vpop.f32.mrb[0].mxu0
  %v2509 = vadd.f32 %v2015, %v2508
  %v2510 = vpop.f32.mrb[0].mxu0
  %v2511 = vpop.f32.mrb[0].mxu0
  %v2512 = vadd.f32 %v2015, %v2511
  %v2513 = vpop.f32.mrb[0].mxu0
  %2514 = vmatprep.mubr.bf16.mxu0 %v641
  %2515 = vmatmul.mubr.bf16.gmra.mrb[0].mxu0 %v640
  %v2516 = vpop.f32.mrb[0].mxu0
  %v2517 = vadd.f32 %v2015, %v2516
  %v2518 = vpop.f32.mrb[0].mxu0
  %v2519 = vpop.f32.mrb[0].mxu0
  %v2520 = vadd.f32 %v2015, %v2519
  %v2521 = vpop.f32.mrb[0].mxu0
  %2522 = vmatprep.mubr.bf16.mxu0 %v648
  %2523 = vmatmul.mubr.bf16.gmra.mrb[0].mxu0 %v647
  %v2524 = vpop.f32.mrb[0].mxu0
  %v2525 = vadd.f32 %v2015, %v2524
  %v2526 = vpop.f32.mrb[0].mxu0
  %v2527 = vpop.f32.mrb[0].mxu0
  %v2528 = vadd.f32 %v2015, %v2527
  %v2529 = vpop.f32.mrb[0].mxu0
  %2530 = vmatprep.mubr.bf16.mxu0 %v655
  %2531 = vmatmul.mubr.bf16.gmra.mrb[0].mxu0 %v654
  %v2532 = vpop.f32.mrb[0].mxu0
  %v2533 = vadd.f32 %v2015, %v2532
  %v2534 = vpop.f32.mrb[0].mxu0
  %v2535 = vpop.f32.mrb[0].mxu0
  %v2536 = vadd.f32 %v2015, %v2535
  %v2537 = vpop.f32.mrb[0].mxu0
  %2538 = vmatprep.mubr.bf16.mxu0 %v662
  %2539 = vmatmul.mubr.bf16.gmra.mrb[0].mxu0 %v661
  %v2540 = vpop.f32.mrb[0].mxu0
  %v2541 = vadd.f32 %v2015, %v2540
  %v2542 = vpop.f32.mrb[0].mxu0
  %v2543 = vpop.f32.mrb[0].mxu0
  %v2544 = vadd.f32 %v2015, %v2543
  %v2545 = vpop.f32.mrb[0].mxu0
  %2546 = vmatprep.mubr.bf16.mxu0 %v669
  %2547 = vmatmul.mubr.bf16.gmra.mrb[0].mxu0 %v668
  %v2548 = vpop.f32.mrb[0].mxu0
  %v2549 = vadd.f32 %v2015, %v2548
  %v2550 = vpop.f32.mrb[0].mxu0
  %v2551 = vpop.f32.mrb[0].mxu0
  %v2552 = vadd.f32 %v2015, %v2551
  %v2553 = vpop.f32.mrb[0].mxu0
  %2554 = vmatprep.mubr.bf16.mxu0 %v676
  %2555 = vmatmul.mubr.bf16.gmra.mrb[0].mxu0 %v675
  %v2556 = vpop.f32.mrb[0].mxu0
  %v2557 = vadd.f32 %v2015, %v2556
  %v2558 = vpop.f32.mrb[0].mxu0
  %v2559 = vpop.f32.mrb[0].mxu0
  %v2560 = vadd.f32 %v2015, %v2559
  %v2561 = vpop.f32.mrb[0].mxu0
  %2562 = vmatprep.mubr.bf16.mxu0 %v683
  %2563 = vmatmul.mubr.bf16.gmra.mrb[0].mxu0 %v682
  %v2564 = vpop.f32.mrb[0].mxu0
  %v2565 = vadd.f32 %v2015, %v2564
  %v2566 = vpop.f32.mrb[0].mxu0
  %v2567 = vpop.f32.mrb[0].mxu0
  %v2568 = vadd.f32 %v2015, %v2567
  %v2569 = vpop.f32.mrb[0].mxu0
  %2570 = vmatprep.mubr.bf16.mxu0 %v998
  %2571 = vmatmul.mubr.bf16.gmra.mrb[0].mxu0 %v997
  %v2572 = vpop.f32.mrb[0].mxu0
  %v2573 = vadd.f32 %v2015, %v2572
  %v2574 = vpop.f32.mrb[0].mxu0
  %v2575 = vpop.f32.mrb[0].mxu0
  %v2576 = vadd.f32 %v2015, %v2575
  %v2577 = vpop.f32.mrb[0].mxu0
  %2578 = vmatprep.mubr.bf16.mxu0 %v1005
  %2579 = vmatmul.mubr.bf16.gmra.mrb[0].mxu0 %v1004
  %v2580 = vpop.f32.mrb[0].mxu0
  %v2581 = vadd.f32 %v2015, %v2580
  %v2582 = vpop.f32.mrb[0].mxu0
  %v2583 = vpop.f32.mrb[0].mxu0
  %v2584 = vadd.f32 %v2015, %v2583
  %v2585 = vpop.f32.mrb[0].mxu0
  %2586 = vmatprep.mubr.bf16.mxu0 %v1012
  %2587 = vmatmul.mubr.bf16.gmra.mrb[0].mxu0 %v1011
  %v2588 = vpop.f32.mrb[0].mxu0
  %v2589 = vadd.f32 %v2015, %v2588
  %v2590 = vpop.f32.mrb[0].mxu0
  %v2591 = vpop.f32.mrb[0].mxu0
  %v2592 = vadd.f32 %v2015, %v2591
  %v2593 = vpop.f32.mrb[0].mxu0
  %2594 = vmatprep.mubr.bf16.mxu0 %v1019
  %2595 = vmatmul.mubr.bf16.gmra.mrb[0].mxu0 %v1018
  %v2596 = vpop.f32.mrb[0].mxu0
  %v2597 = vadd.f32 %v2015, %v2596
  %v2598 = vpop.f32.mrb[0].mxu0
  %v2599 = vpop.f32.mrb[0].mxu0
  %v2600 = vadd.f32 %v2015, %v2599
  %v2601 = vpop.f32.mrb[0].mxu0
  %2602 = vmatprep.mubr.bf16.mxu0 %v1026
  %2603 = vmatmul.mubr.bf16.gmra.mrb[0].mxu0 %v1025
  %v2604 = vpop.f32.mrb[0].mxu0
  %v2605 = vadd.f32 %v2015, %v2604
  %v2606 = vpop.f32.mrb[0].mxu0
  %v2607 = vpop.f32.mrb[0].mxu0
  %v2608 = vadd.f32 %v2015, %v2607
  %v2609 = vpop.f32.mrb[0].mxu0
  %2610 = vmatprep.mubr.bf16.mxu0 %v1033
  %2611 = vmatmul.mubr.bf16.gmra.mrb[0].mxu0 %v1032
  %v2612 = vpop.f32.mrb[0].mxu0
  %v2613 = vadd.f32 %v2015, %v2612
  %v2614 = vpop.f32.mrb[0].mxu0
  %v2615 = vpop.f32.mrb[0].mxu0
  %v2616 = vadd.f32 %v2015, %v2615
  %v2617 = vpop.f32.mrb[0].mxu0
  %2618 = vmatprep.mubr.bf16.mxu0 %v1040
  %2619 = vmatmul.mubr.bf16.gmra.mrb[0].mxu0 %v1039
  %v2620 = vpop.f32.mrb[0].mxu0
  %v2621 = vadd.f32 %v2015, %v2620
  %v2622 = vpop.f32.mrb[0].mxu0
  %v2623 = vpop.f32.mrb[0].mxu0
  %v2624 = vadd.f32 %v2015, %v2623
  %v2625 = vpop.f32.mrb[0].mxu0
  %2626 = vmatprep.mubr.bf16.mxu0 %v1047
  %2627 = vmatmul.mubr.bf16.gmra.mrb[0].mxu0 %v1046
  %v2628 = vpop.f32.mrb[0].mxu0
  %v2629 = vadd.f32 %v2015, %v2628
  %v2630 = vpop.f32.mrb[0].mxu0
  %v2631 = vpop.f32.mrb[0].mxu0
  %v2632 = vadd.f32 %v2015, %v2631
  %v2633 = vpop.f32.mrb[0].mxu0
  %2634 = vmatprep.mubr.bf16.mxu0 %v1054
  %2635 = vmatmul.mubr.bf16.gmra.mrb[0].mxu0 %v1053
  %v2636 = vpop.f32.mrb[0].mxu0
  %v2637 = vadd.f32 %v2015, %v2636
  %v2638 = vpop.f32.mrb[0].mxu0
  %v2639 = vpop.f32.mrb[0].mxu0
  %v2640 = vadd.f32 %v2015, %v2639
  %v2641 = vpop.f32.mrb[0].mxu0
  %2642 = vmatprep.mubr.bf16.mxu0 %v1061
  %2643 = vmatmul.mubr.bf16.gmra.mrb[0].mxu0 %v1060
  %v2644 = vpop.f32.mrb[0].mxu0
  %v2645 = vadd.f32 %v2015, %v2644
  %v2646 = vpop.f32.mrb[0].mxu0
  %v2647 = vpop.f32.mrb[0].mxu0
  %v2648 = vadd.f32 %v2015, %v2647
  %v2649 = vpop.f32.mrb[0].mxu0
  %2650 = vmatprep.mubr.bf16.mxu0 %v1068
  %2651 = vmatmul.mubr.bf16.gmra.mrb[0].mxu0 %v1067
  %v2652 = vpop.f32.mrb[0].mxu0
  %v2653 = vadd.f32 %v2015, %v2652
  %v2654 = vpop.f32.mrb[0].mxu0
  %v2655 = vpop.f32.mrb[0].mxu0
  %v2656 = vadd.f32 %v2015, %v2655
  %v2657 = vpop.f32.mrb[0].mxu0
  %2658 = vmatprep.mubr.bf16.mxu0 %v1383
  %2659 = vmatmul.mubr.bf16.gmra.mrb[0].mxu0 %v1382
  %v2660 = vpop.f32.mrb[0].mxu0
  %v2661 = vadd.f32 %v2015, %v2660
  %v2662 = vpop.f32.mrb[0].mxu0
  %v2663 = vpop.f32.mrb[0].mxu0
  %v2664 = vadd.f32 %v2015, %v2663
  %v2665 = vpop.f32.mrb[0].mxu0
  %2666 = vmatprep.mubr.bf16.mxu0 %v1390
  %2667 = vmatmul.mubr.bf16.gmra.mrb[0].mxu0 %v1389
  %v2668 = vpop.f32.mrb[0].mxu0
  %v2669 = vadd.f32 %v2015, %v2668
  %v2670 = vpop.f32.mrb[0].mxu0
  %v2671 = vpop.f32.mrb[0].mxu0
  %v2672 = vadd.f32 %v2015, %v2671
  %v2673 = vpop.f32.mrb[0].mxu0
  %2674 = vmatprep.mubr.bf16.mxu0 %v1397
  %2675 = vmatmul.mubr.bf16.gmra.mrb[0].mxu0 %v1396
  %v2676 = vpop.f32.mrb[0].mxu0
  %v2677 = vadd.f32 %v2015, %v2676
  %v2678 = vpop.f32.mrb[0].mxu0
  %v2679 = vpop.f32.mrb[0].mxu0
  %v2680 = vadd.f32 %v2015, %v2679
  %v2681 = vpop.f32.mrb[0].mxu0
  %2682 = vmatprep.mubr.bf16.mxu0 %v1404
  %2683 = vmatmul.mubr.bf16.gmra.mrb[0].mxu0 %v1403
  %v2684 = vpop.f32.mrb[0].mxu0
  %v2685 = vadd.f32 %v2015, %v2684
  %v2686 = vpop.f32.mrb[0].mxu0
  %v2687 = vpop.f32.mrb[0].mxu0
  %v2688 = vadd.f32 %v2015, %v2687
  %v2689 = vpop.f32.mrb[0].mxu0
  %2690 = vmatprep.mubr.bf16.mxu0 %v1411
  %2691 = vmatmul.mubr.bf16.gmra.mrb[0].mxu0 %v1410
  %v2692 = vpop.f32.mrb[0].mxu0
  %v2693 = vadd.f32 %v2015, %v2692
  %v2694 = vpop.f32.mrb[0].mxu0
  %v2695 = vpop.f32.mrb[0].mxu0
  %v2696 = vadd.f32 %v2015, %v2695
  %v2697 = vpop.f32.mrb[0].mxu0
  %2698 = vmatprep.mubr.bf16.mxu0 %v1418
  %2699 = vmatmul.mubr.bf16.gmra.mrb[0].mxu0 %v1417
  %v2700 = vpop.f32.mrb[0].mxu0
  %v2701 = vadd.f32 %v2015, %v2700
  %v2702 = vpop.f32.mrb[0].mxu0
  %v2703 = vpop.f32.mrb[0].mxu0
  %v2704 = vadd.f32 %v2015, %v2703
  %v2705 = vpop.f32.mrb[0].mxu0
  %2706 = vmatprep.mubr.bf16.mxu0 %v1425
  %2707 = vmatmul.mubr.bf16.gmra.mrb[0].mxu0 %v1424
  %v2708 = vpop.f32.mrb[0].mxu0
  %v2709 = vadd.f32 %v2015, %v2708
  %v2710 = vpop.f32.mrb[0].mxu0
  %v2711 = vpop.f32.mrb[0].mxu0
  %v2712 = vadd.f32 %v2015, %v2711
  %v2713 = vpop.f32.mrb[0].mxu0
  %2714 = vmatprep.mubr.bf16.mxu0 %v1432
  %2715 = vmatmul.mubr.bf16.gmra.mrb[0].mxu0 %v1431
  %v2716 = vpop.f32.mrb[0].mxu0
  %v2717 = vadd.f32 %v2015, %v2716
  %v2718 = vpop.f32.mrb[0].mxu0
  %v2719 = vpop.f32.mrb[0].mxu0
  %v2720 = vadd.f32 %v2015, %v2719
  %v2721 = vpop.f32.mrb[0].mxu0
  %2722 = vmatprep.mubr.bf16.mxu0 %v1439
  %2723 = vmatmul.mubr.bf16.gmra.mrb[0].mxu0 %v1438
  %v2724 = vpop.f32.mrb[0].mxu0
  %v2725 = vadd.f32 %v2015, %v2724
  %v2726 = vpop.f32.mrb[0].mxu0
  %v2727 = vpop.f32.mrb[0].mxu0
  %v2728 = vadd.f32 %v2015, %v2727
  %v2729 = vpop.f32.mrb[0].mxu0
  %2730 = vmatprep.mubr.bf16.mxu0 %v1446
  %2731 = vmatmul.mubr.bf16.gmra.mrb[0].mxu0 %v1445
  %v2732 = vpop.f32.mrb[0].mxu0
  %v2733 = vadd.f32 %v2015, %v2732
  %v2734 = vpop.f32.mrb[0].mxu0
  %v2735 = vpop.f32.mrb[0].mxu0
  %v2736 = vadd.f32 %v2015, %v2735
  %v2737 = vpop.f32.mrb[0].mxu0
  %2738 = vmatprep.mubr.bf16.mxu0 %v1453
  %2739 = vmatmul.mubr.bf16.gmra.mrb[0].mxu0 %v1452
  %v2740 = vpop.f32.mrb[0].mxu0
  %v2741 = vadd.f32 %v2015, %v2740
  %v2742 = vpop.f32.mrb[0].mxu0
  %v2743 = vpop.f32.mrb[0].mxu0
  %v2744 = vadd.f32 %v2015, %v2743
  %v2745 = vpop.f32.mrb[0].mxu0
  %2746 = vmatprep.mubr.bf16.mxu0 %v1768
  %2747 = vmatmul.mubr.bf16.gmra.mrb[0].mxu0 %v1767
  %v2748 = vpop.f32.mrb[0].mxu0
  %v2749 = vadd.f32 %v2015, %v2748
  %v2750 = vpop.f32.mrb[0].mxu0
  %v2751 = vpop.f32.mrb[0].mxu0
  %v2752 = vadd.f32 %v2015, %v2751
  %v2753 = vpop.f32.mrb[0].mxu0
  %2754 = vmatprep.mubr.bf16.mxu0 %v1775
  %2755 = vmatmul.mubr.bf16.gmra.mrb[0].mxu0 %v1774
  %v2756 = vpop.f32.mrb[0].mxu0
  %v2757 = vadd.f32 %v2015, %v2756
  %v2758 = vpop.f32.mrb[0].mxu0
  %v2759 = vpop.f32.mrb[0].mxu0
  %v2760 = vadd.f32 %v2015, %v2759
  %v2761 = vpop.f32.mrb[0].mxu0
  %2762 = vmatprep.mubr.bf16.mxu0 %v1782
  %2763 = vmatmul.mubr.bf16.gmra.mrb[0].mxu0 %v1781
  %v2764 = vpop.f32.mrb[0].mxu0
  %v2765 = vadd.f32 %v2015, %v2764
  %v2766 = vpop.f32.mrb[0].mxu0
  %v2767 = vpop.f32.mrb[0].mxu0
  %v2768 = vadd.f32 %v2015, %v2767
  %v2769 = vpop.f32.mrb[0].mxu0
  %2770 = vmatprep.mubr.bf16.mxu0 %v1789
  %2771 = vmatmul.mubr.bf16.gmra.mrb[0].mxu0 %v1788
  %v2772 = vpop.f32.mrb[0].mxu0
  %v2773 = vadd.f32 %v2015, %v2772
  %v2774 = vpop.f32.mrb[0].mxu0
  %v2775 = vpop.f32.mrb[0].mxu0
  %v2776 = vadd.f32 %v2015, %v2775
  %v2777 = vpop.f32.mrb[0].mxu0
  %2778 = vmatprep.mubr.bf16.mxu0 %v1796
  %2779 = vmatmul.mubr.bf16.gmra.mrb[0].mxu0 %v1795
  %v2780 = vpop.f32.mrb[0].mxu0
  %v2781 = vadd.f32 %v2015, %v2780
  %v2782 = vpop.f32.mrb[0].mxu0
  %v2783 = vpop.f32.mrb[0].mxu0
  %v2784 = vadd.f32 %v2015, %v2783
  %v2785 = vpop.f32.mrb[0].mxu0
  %2786 = vmatprep.mubr.bf16.mxu0 %v1803
  %2787 = vmatmul.mubr.bf16.gmra.mrb[0].mxu0 %v1802
  %v2788 = vpop.f32.mrb[0].mxu0
  %v2789 = vadd.f32 %v2015, %v2788
  %v2790 = vpop.f32.mrb[0].mxu0
  %v2791 = vpop.f32.mrb[0].mxu0
  %v2792 = vadd.f32 %v2015, %v2791
  %v2793 = vpop.f32.mrb[0].mxu0
  %2794 = vmatprep.mubr.bf16.mxu0 %v1810
  %2795 = vmatmul.mubr.bf16.gmra.mrb[0].mxu0 %v1809
  %v2796 = vpop.f32.mrb[0].mxu0
  %v2797 = vadd.f32 %v2015, %v2796
  %v2798 = vpop.f32.mrb[0].mxu0
  %v2799 = vpop.f32.mrb[0].mxu0
  %v2800 = vadd.f32 %v2015, %v2799
  %v2801 = vpop.f32.mrb[0].mxu0
  %2802 = vmatprep.mubr.bf16.mxu0 %v1817
  %2803 = vmatmul.mubr.bf16.gmra.mrb[0].mxu0 %v1816
  %v2804 = vpop.f32.mrb[0].mxu0
  %v2805 = vadd.f32 %v2015, %v2804
  %v2806 = vpop.f32.mrb[0].mxu0
  %v2807 = vpop.f32.mrb[0].mxu0
  %v2808 = vadd.f32 %v2015, %v2807
  %v2809 = vpop.f32.mrb[0].mxu0
  %2810 = vmatprep.mubr.bf16.mxu0 %v1824
  %2811 = vmatmul.mubr.bf16.gmra.mrb[0].mxu0 %v1823
  %v2812 = vpop.f32.mrb[0].mxu0
  %v2813 = vadd.f32 %v2015, %v2812
  %v2814 = vpop.f32.mrb[0].mxu0
  %v2815 = vpop.f32.mrb[0].mxu0
  %v2816 = vadd.f32 %v2015, %v2815
  %v2817 = vpop.f32.mrb[0].mxu0
  %2818 = vmatprep.mubr.bf16.mxu0 %v1831
  %2819 = vmatmul.mubr.bf16.gmra.mrb[0].mxu0 %v1830
  %v2820 = vpop.f32.mrb[0].mxu0
  %v2821 = vadd.f32 %v2015, %v2820
  %v2822 = vpop.f32.mrb[0].mxu0
  %v2823 = vpop.f32.mrb[0].mxu0
  %v2824 = vadd.f32 %v2015, %v2823
  %v2825 = vpop.f32.mrb[0].mxu0
  %2826 = vmatprep.mubr.bf16.mxu0 %v1838
  %2827 = vmatmul.mubr.bf16.gmra.mrb[0].mxu0 %v1837
  %v2828 = vpop.f32.mrb[0].mxu0
  %v2829 = vadd.f32 %v2015, %v2828
  %v2830 = vpop.f32.mrb[0].mxu0
  %v2831 = vpop.f32.mrb[0].mxu0
  %v2832 = vadd.f32 %v2015, %v2831
  %v2833 = vpop.f32.mrb[0].mxu0
  %2834 = vdwg.mxu0
  %2835 = vmatprep.subr.bf16.mxu0 0
  %2836 = vmatpush1.bf16.msra.mxu0 %v2233
  %2837 = vmatprep.subr.bf16.mxu0 0
  %2838 = vmatpush1.bf16.msra.mxu0 %v2234
  %2839 = vmatprep.subr.bf16.mxu0 0
  %2840 = vmatpush1.bf16.msra.mxu0 %v2235
  %2841 = vmatprep.subr.bf16.mxu0 0
  %2842 = vmatpush1.bf16.msra.mxu0 %v2236
  %2843 = vmatprep.subr.bf16.mxu0 0
  %2844 = vmatpush1.bf16.msra.mxu0 %v2237
  %2845 = vmatprep.subr.bf16.mxu0 0
  %2846 = vmatpush1.bf16.msra.mxu0 %v2238
  %2847 = vmatprep.subr.bf16.mxu0 0
  %2848 = vmatpush1.bf16.msra.mxu0 %v2239
  %2849 = vmatprep.subr.bf16.mxu0 0
  %2850 = vmatpush1.bf16.msra.mxu0 %v2240
  %2851 = vmatprep.subr.bf16.mxu0 0
  %2852 = vmatpush1.bf16.msra.mxu0 %v2241
  %2853 = vmatprep.subr.bf16.mxu0 0
  %2854 = vmatpush1.bf16.msra.mxu0 %v2242
  %2855 = vmatprep.subr.bf16.mxu0 0
  %2856 = vmatpush1.bf16.msra.mxu0 %v2243
  %2857 = vmatprep.subr.bf16.mxu0 0
  %2858 = vmatpush1.bf16.msra.mxu0 %v2244
  %2859 = vmatprep.subr.bf16.mxu0 0
  %2860 = vmatpush1.bf16.msra.mxu0 %v2245
  %2861 = vmatprep.subr.bf16.mxu0 0
  %2862 = vmatpush1.bf16.msra.mxu0 %v2246
  %2863 = vmatprep.subr.bf16.mxu0 0
  %2864 = vmatpush1.bf16.msra.mxu0 %v2247
  %2865 = vmatprep.subr.bf16.mxu0 0
  %2866 = vmatpush1.bf16.msra.mxu0 %v2248
  %2867 = vmatprep.mubr.bf16.mxu0 %v615
  %2868 = vmatmul.mubr.bf16.gmra.mrb[0].mxu0 %v614
  %v2869 = vpop.f32.mrb[0].mxu0
  %v2870 = vadd.f32 %v2485, %v2869
  %v2871 = vpop.f32.mrb[0].mxu0
  %v2872 = vpop.f32.mrb[0].mxu0
  %v2873 = vadd.f32 %v2488, %v2872
  %v2874 = vpop.f32.mrb[0].mxu0
  %2875 = vmatprep.mubr.bf16.mxu0 %v622
  %2876 = vmatmul.mubr.bf16.gmra.mrb[0].mxu0 %v621
  %v2877 = vpop.f32.mrb[0].mxu0
  %v2878 = vadd.f32 %v2493, %v2877
  %v2879 = vpop.f32.mrb[0].mxu0
  %v2880 = vpop.f32.mrb[0].mxu0
  %v2881 = vadd.f32 %v2496, %v2880
  %v2882 = vpop.f32.mrb[0].mxu0
  %2883 = vmatprep.mubr.bf16.mxu0 %v629
  %2884 = vmatmul.mubr.bf16.gmra.mrb[0].mxu0 %v628
  %v2885 = vpop.f32.mrb[0].mxu0
  %v2886 = vadd.f32 %v2501, %v2885
  %v2887 = vpop.f32.mrb[0].mxu0
  %v2888 = vpop.f32.mrb[0].mxu0
  %v2889 = vadd.f32 %v2504, %v2888
  %v2890 = vpop.f32.mrb[0].mxu0
  %2891 = vmatprep.mubr.bf16.mxu0 %v636
  %2892 = vmatmul.mubr.bf16.gmra.mrb[0].mxu0 %v635
  %v2893 = vpop.f32.mrb[0].mxu0
  %v2894 = vadd.f32 %v2509, %v2893
  %v2895 = vpop.f32.mrb[0].mxu0
  %v2896 = vpop.f32.mrb[0].mxu0
  %v2897 = vadd.f32 %v2512, %v2896
  %v2898 = vpop.f32.mrb[0].mxu0
  %2899 = vmatprep.mubr.bf16.mxu0 %v643
  %2900 = vmatmul.mubr.bf16.gmra.mrb[0].mxu0 %v642
  %v2901 = vpop.f32.mrb[0].mxu0
  %v2902 = vadd.f32 %v2517, %v2901
  %v2903 = vpop.f32.mrb[0].mxu0
  %v2904 = vpop.f32.mrb[0].mxu0
  %v2905 = vadd.f32 %v2520, %v2904
  %v2906 = vpop.f32.mrb[0].mxu0
  %2907 = vmatprep.mubr.bf16.mxu0 %v650
  %2908 = vmatmul.mubr.bf16.gmra.mrb[0].mxu0 %v649
  %v2909 = vpop.f32.mrb[0].mxu0
  %v2910 = vadd.f32 %v2525, %v2909
  %v2911 = vpop.f32.mrb[0].mxu0
  %v2912 = vpop.f32.mrb[0].mxu0
  %v2913 = vadd.f32 %v2528, %v2912
  %v2914 = vpop.f32.mrb[0].mxu0
  %2915 = vmatprep.mubr.bf16.mxu0 %v657
  %2916 = vmatmul.mubr.bf16.gmra.mrb[0].mxu0 %v656
  %v2917 = vpop.f32.mrb[0].mxu0
  %v2918 = vadd.f32 %v2533, %v2917
  %v2919 = vpop.f32.mrb[0].mxu0
  %v2920 = vpop.f32.mrb[0].mxu0
  %v2921 = vadd.f32 %v2536, %v2920
  %v2922 = vpop.f32.mrb[0].mxu0
  %2923 = vmatprep.mubr.bf16.mxu0 %v664
  %2924 = vmatmul.mubr.bf16.gmra.mrb[0].mxu0 %v663
  %v2925 = vpop.f32.mrb[0].mxu0
  %v2926 = vadd.f32 %v2541, %v2925
  %v2927 = vpop.f32.mrb[0].mxu0
  %v2928 = vpop.f32.mrb[0].mxu0
  %v2929 = vadd.f32 %v2544, %v2928
  %v2930 = vpop.f32.mrb[0].mxu0
  %2931 = vmatprep.mubr.bf16.mxu0 %v671
  %2932 = vmatmul.mubr.bf16.gmra.mrb[0].mxu0 %v670
  %v2933 = vpop.f32.mrb[0].mxu0
  %v2934 = vadd.f32 %v2549, %v2933
  %v2935 = vpop.f32.mrb[0].mxu0
  %v2936 = vpop.f32.mrb[0].mxu0
  %v2937 = vadd.f32 %v2552, %v2936
  %v2938 = vpop.f32.mrb[0].mxu0
  %2939 = vmatprep.mubr.bf16.mxu0 %v678
  %2940 = vmatmul.mubr.bf16.gmra.mrb[0].mxu0 %v677
  %v2941 = vpop.f32.mrb[0].mxu0
  %v2942 = vadd.f32 %v2557, %v2941
  %v2943 = vpop.f32.mrb[0].mxu0
  %v2944 = vpop.f32.mrb[0].mxu0
  %v2945 = vadd.f32 %v2560, %v2944
  %v2946 = vpop.f32.mrb[0].mxu0
  %2947 = vmatprep.mubr.bf16.mxu0 %v685
  %2948 = vmatmul.mubr.bf16.gmra.mrb[0].mxu0 %v684
  %v2949 = vpop.f32.mrb[0].mxu0
  %v2950 = vadd.f32 %v2565, %v2949
  %v2951 = vpop.f32.mrb[0].mxu0
  %v2952 = vpop.f32.mrb[0].mxu0
  %v2953 = vadd.f32 %v2568, %v2952
  %v2954 = vpop.f32.mrb[0].mxu0
  %2955 = vmatprep.mubr.bf16.mxu0 %v1000
  %2956 = vmatmul.mubr.bf16.gmra.mrb[0].mxu0 %v999
  %v2957 = vpop.f32.mrb[0].mxu0
  %v2958 = vadd.f32 %v2573, %v2957
  %v2959 = vpop.f32.mrb[0].mxu0
  %v2960 = vpop.f32.mrb[0].mxu0
  %v2961 = vadd.f32 %v2576, %v2960
  %v2962 = vpop.f32.mrb[0].mxu0
  %2963 = vmatprep.mubr.bf16.mxu0 %v1007
  %2964 = vmatmul.mubr.bf16.gmra.mrb[0].mxu0 %v1006
  %v2965 = vpop.f32.mrb[0].mxu0
  %v2966 = vadd.f32 %v2581, %v2965
  %v2967 = vpop.f32.mrb[0].mxu0
  %v2968 = vpop.f32.mrb[0].mxu0
  %v2969 = vadd.f32 %v2584, %v2968
  %v2970 = vpop.f32.mrb[0].mxu0
  %2971 = vmatprep.mubr.bf16.mxu0 %v1014
  %2972 = vmatmul.mubr.bf16.gmra.mrb[0].mxu0 %v1013
  %v2973 = vpop.f32.mrb[0].mxu0
  %v2974 = vadd.f32 %v2589, %v2973
  %v2975 = vpop.f32.mrb[0].mxu0
  %v2976 = vpop.f32.mrb[0].mxu0
  %v2977 = vadd.f32 %v2592, %v2976
  %v2978 = vpop.f32.mrb[0].mxu0
  %2979 = vmatprep.mubr.bf16.mxu0 %v1021
  %2980 = vmatmul.mubr.bf16.gmra.mrb[0].mxu0 %v1020
  %v2981 = vpop.f32.mrb[0].mxu0
  %v2982 = vadd.f32 %v2597, %v2981
  %v2983 = vpop.f32.mrb[0].mxu0
  %v2984 = vpop.f32.mrb[0].mxu0
  %v2985 = vadd.f32 %v2600, %v2984
  %v2986 = vpop.f32.mrb[0].mxu0
  %2987 = vmatprep.mubr.bf16.mxu0 %v1028
  %2988 = vmatmul.mubr.bf16.gmra.mrb[0].mxu0 %v1027
  %v2989 = vpop.f32.mrb[0].mxu0
  %v2990 = vadd.f32 %v2605, %v2989
  %v2991 = vpop.f32.mrb[0].mxu0
  %v2992 = vpop.f32.mrb[0].mxu0
  %v2993 = vadd.f32 %v2608, %v2992
  %v2994 = vpop.f32.mrb[0].mxu0
  %2995 = vmatprep.mubr.bf16.mxu0 %v1035
  %2996 = vmatmul.mubr.bf16.gmra.mrb[0].mxu0 %v1034
  %v2997 = vpop.f32.mrb[0].mxu0
  %v2998 = vadd.f32 %v2613, %v2997
  %v2999 = vpop.f32.mrb[0].mxu0
  %v3000 = vpop.f32.mrb[0].mxu0
  %v3001 = vadd.f32 %v2616, %v3000
  %v3002 = vpop.f32.mrb[0].mxu0
  %3003 = vmatprep.mubr.bf16.mxu0 %v1042
  %3004 = vmatmul.mubr.bf16.gmra.mrb[0].mxu0 %v1041
  %v3005 = vpop.f32.mrb[0].mxu0
  %v3006 = vadd.f32 %v2621, %v3005
  %v3007 = vpop.f32.mrb[0].mxu0
  %v3008 = vpop.f32.mrb[0].mxu0
  %v3009 = vadd.f32 %v2624, %v3008
  %v3010 = vpop.f32.mrb[0].mxu0
  %3011 = vmatprep.mubr.bf16.mxu0 %v1049
  %3012 = vmatmul.mubr.bf16.gmra.mrb[0].mxu0 %v1048
  %v3013 = vpop.f32.mrb[0].mxu0
  %v3014 = vadd.f32 %v2629, %v3013
  %v3015 = vpop.f32.mrb[0].mxu0
  %v3016 = vpop.f32.mrb[0].mxu0
  %v3017 = vadd.f32 %v2632, %v3016
  %v3018 = vpop.f32.mrb[0].mxu0
  %3019 = vmatprep.mubr.bf16.mxu0 %v1056
  %3020 = vmatmul.mubr.bf16.gmra.mrb[0].mxu0 %v1055
  %v3021 = vpop.f32.mrb[0].mxu0
  %v3022 = vadd.f32 %v2637, %v3021
  %v3023 = vpop.f32.mrb[0].mxu0
  %v3024 = vpop.f32.mrb[0].mxu0
  %v3025 = vadd.f32 %v2640, %v3024
  %v3026 = vpop.f32.mrb[0].mxu0
  %3027 = vmatprep.mubr.bf16.mxu0 %v1063
  %3028 = vmatmul.mubr.bf16.gmra.mrb[0].mxu0 %v1062
  %v3029 = vpop.f32.mrb[0].mxu0
  %v3030 = vadd.f32 %v2645, %v3029
  %v3031 = vpop.f32.mrb[0].mxu0
  %v3032 = vpop.f32.mrb[0].mxu0
  %v3033 = vadd.f32 %v2648, %v3032
  %v3034 = vpop.f32.mrb[0].mxu0
  %3035 = vmatprep.mubr.bf16.mxu0 %v1070
  %3036 = vmatmul.mubr.bf16.gmra.mrb[0].mxu0 %v1069
  %v3037 = vpop.f32.mrb[0].mxu0
  %v3038 = vadd.f32 %v2653, %v3037
  %v3039 = vpop.f32.mrb[0].mxu0
  %v3040 = vpop.f32.mrb[0].mxu0
  %v3041 = vadd.f32 %v2656, %v3040
  %v3042 = vpop.f32.mrb[0].mxu0
  %3043 = vmatprep.mubr.bf16.mxu0 %v1385
  %3044 = vmatmul.mubr.bf16.gmra.mrb[0].mxu0 %v1384
  %v3045 = vpop.f32.mrb[0].mxu0
  %v3046 = vadd.f32 %v2661, %v3045
  %v3047 = vpop.f32.mrb[0].mxu0
  %v3048 = vpop.f32.mrb[0].mxu0
  %v3049 = vadd.f32 %v2664, %v3048
  %v3050 = vpop.f32.mrb[0].mxu0
  %3051 = vmatprep.mubr.bf16.mxu0 %v1392
  %3052 = vmatmul.mubr.bf16.gmra.mrb[0].mxu0 %v1391
  %v3053 = vpop.f32.mrb[0].mxu0
  %v3054 = vadd.f32 %v2669, %v3053
  %v3055 = vpop.f32.mrb[0].mxu0
  %v3056 = vpop.f32.mrb[0].mxu0
  %v3057 = vadd.f32 %v2672, %v3056
  %v3058 = vpop.f32.mrb[0].mxu0
  %3059 = vmatprep.mubr.bf16.mxu0 %v1399
  %3060 = vmatmul.mubr.bf16.gmra.mrb[0].mxu0 %v1398
  %v3061 = vpop.f32.mrb[0].mxu0
  %v3062 = vadd.f32 %v2677, %v3061
  %v3063 = vpop.f32.mrb[0].mxu0
  %v3064 = vpop.f32.mrb[0].mxu0
  %v3065 = vadd.f32 %v2680, %v3064
  %v3066 = vpop.f32.mrb[0].mxu0
  %3067 = vmatprep.mubr.bf16.mxu0 %v1406
  %3068 = vmatmul.mubr.bf16.gmra.mrb[0].mxu0 %v1405
  %v3069 = vpop.f32.mrb[0].mxu0
  %v3070 = vadd.f32 %v2685, %v3069
  %v3071 = vpop.f32.mrb[0].mxu0
  %v3072 = vpop.f32.mrb[0].mxu0
  %v3073 = vadd.f32 %v2688, %v3072
  %v3074 = vpop.f32.mrb[0].mxu0
  %3075 = vmatprep.mubr.bf16.mxu0 %v1413
  %3076 = vmatmul.mubr.bf16.gmra.mrb[0].mxu0 %v1412
  %v3077 = vpop.f32.mrb[0].mxu0
  %v3078 = vadd.f32 %v2693, %v3077
  %v3079 = vpop.f32.mrb[0].mxu0
  %v3080 = vpop.f32.mrb[0].mxu0
  %v3081 = vadd.f32 %v2696, %v3080
  %v3082 = vpop.f32.mrb[0].mxu0
  %3083 = vmatprep.mubr.bf16.mxu0 %v1420
  %3084 = vmatmul.mubr.bf16.gmra.mrb[0].mxu0 %v1419
  %v3085 = vpop.f32.mrb[0].mxu0
  %v3086 = vadd.f32 %v2701, %v3085
  %v3087 = vpop.f32.mrb[0].mxu0
  %v3088 = vpop.f32.mrb[0].mxu0
  %v3089 = vadd.f32 %v2704, %v3088
  %v3090 = vpop.f32.mrb[0].mxu0
  %3091 = vmatprep.mubr.bf16.mxu0 %v1427
  %3092 = vmatmul.mubr.bf16.gmra.mrb[0].mxu0 %v1426
  %v3093 = vpop.f32.mrb[0].mxu0
  %v3094 = vadd.f32 %v2709, %v3093
  %v3095 = vpop.f32.mrb[0].mxu0
  %v3096 = vpop.f32.mrb[0].mxu0
  %v3097 = vadd.f32 %v2712, %v3096
  %v3098 = vpop.f32.mrb[0].mxu0
  %3099 = vmatprep.mubr.bf16.mxu0 %v1434
  %3100 = vmatmul.mubr.bf16.gmra.mrb[0].mxu0 %v1433
  %v3101 = vpop.f32.mrb[0].mxu0
  %v3102 = vadd.f32 %v2717, %v3101
  %v3103 = vpop.f32.mrb[0].mxu0
  %v3104 = vpop.f32.mrb[0].mxu0
  %v3105 = vadd.f32 %v2720, %v3104
  %v3106 = vpop.f32.mrb[0].mxu0
  %3107 = vmatprep.mubr.bf16.mxu0 %v1441
  %3108 = vmatmul.mubr.bf16.gmra.mrb[0].mxu0 %v1440
  %v3109 = vpop.f32.mrb[0].mxu0
  %v3110 = vadd.f32 %v2725, %v3109
  %v3111 = vpop.f32.mrb[0].mxu0
  %v3112 = vpop.f32.mrb[0].mxu0
  %v3113 = vadd.f32 %v2728, %v3112
  %v3114 = vpop.f32.mrb[0].mxu0
  %3115 = vmatprep.mubr.bf16.mxu0 %v1448
  %3116 = vmatmul.mubr.bf16.gmra.mrb[0].mxu0 %v1447
  %v3117 = vpop.f32.mrb[0].mxu0
  %v3118 = vadd.f32 %v2733, %v3117
  %v3119 = vpop.f32.mrb[0].mxu0
  %v3120 = vpop.f32.mrb[0].mxu0
  %v3121 = vadd.f32 %v2736, %v3120
  %v3122 = vpop.f32.mrb[0].mxu0
  %3123 = vmatprep.mubr.bf16.mxu0 %v1455
  %3124 = vmatmul.mubr.bf16.gmra.mrb[0].mxu0 %v1454
  %v3125 = vpop.f32.mrb[0].mxu0
  %v3126 = vadd.f32 %v2741, %v3125
  %v3127 = vpop.f32.mrb[0].mxu0
  %v3128 = vpop.f32.mrb[0].mxu0
  %v3129 = vadd.f32 %v2744, %v3128
  %v3130 = vpop.f32.mrb[0].mxu0
  %3131 = vmatprep.mubr.bf16.mxu0 %v1770
  %3132 = vmatmul.mubr.bf16.gmra.mrb[0].mxu0 %v1769
  %v3133 = vpop.f32.mrb[0].mxu0
  %v3134 = vadd.f32 %v2749, %v3133
  %v3135 = vpop.f32.mrb[0].mxu0
  %v3136 = vpop.f32.mrb[0].mxu0
  %v3137 = vadd.f32 %v2752, %v3136
  %v3138 = vpop.f32.mrb[0].mxu0
  %3139 = vmatprep.mubr.bf16.mxu0 %v1777
  %3140 = vmatmul.mubr.bf16.gmra.mrb[0].mxu0 %v1776
  %v3141 = vpop.f32.mrb[0].mxu0
  %v3142 = vadd.f32 %v2757, %v3141
  %v3143 = vpop.f32.mrb[0].mxu0
  %v3144 = vpop.f32.mrb[0].mxu0
  %v3145 = vadd.f32 %v2760, %v3144
  %v3146 = vpop.f32.mrb[0].mxu0
  %3147 = vmatprep.mubr.bf16.mxu0 %v1784
  %3148 = vmatmul.mubr.bf16.gmra.mrb[0].mxu0 %v1783
  %v3149 = vpop.f32.mrb[0].mxu0
  %v3150 = vadd.f32 %v2765, %v3149
  %v3151 = vpop.f32.mrb[0].mxu0
  %v3152 = vpop.f32.mrb[0].mxu0
  %v3153 = vadd.f32 %v2768, %v3152
  %v3154 = vpop.f32.mrb[0].mxu0
  %3155 = vmatprep.mubr.bf16.mxu0 %v1791
  %3156 = vmatmul.mubr.bf16.gmra.mrb[0].mxu0 %v1790
  %v3157 = vpop.f32.mrb[0].mxu0
  %v3158 = vadd.f32 %v2773, %v3157
  %v3159 = vpop.f32.mrb[0].mxu0
  %v3160 = vpop.f32.mrb[0].mxu0
  %v3161 = vadd.f32 %v2776, %v3160
  %v3162 = vpop.f32.mrb[0].mxu0
  %3163 = vmatprep.mubr.bf16.mxu0 %v1798
  %3164 = vmatmul.mubr.bf16.gmra.mrb[0].mxu0 %v1797
  %v3165 = vpop.f32.mrb[0].mxu0
  %v3166 = vadd.f32 %v2781, %v3165
  %v3167 = vpop.f32.mrb[0].mxu0
  %v3168 = vpop.f32.mrb[0].mxu0
  %v3169 = vadd.f32 %v2784, %v3168
  %v3170 = vpop.f32.mrb[0].mxu0
  %3171 = vmatprep.mubr.bf16.mxu0 %v1805
  %3172 = vmatmul.mubr.bf16.gmra.mrb[0].mxu0 %v1804
  %v3173 = vpop.f32.mrb[0].mxu0
  %v3174 = vadd.f32 %v2789, %v3173
  %v3175 = vpop.f32.mrb[0].mxu0
  %v3176 = vpop.f32.mrb[0].mxu0
  %v3177 = vadd.f32 %v2792, %v3176
  %v3178 = vpop.f32.mrb[0].mxu0
  %3179 = vmatprep.mubr.bf16.mxu0 %v1812
  %3180 = vmatmul.mubr.bf16.gmra.mrb[0].mxu0 %v1811
  %v3181 = vpop.f32.mrb[0].mxu0
  %v3182 = vadd.f32 %v2797, %v3181
  %v3183 = vpop.f32.mrb[0].mxu0
  %v3184 = vpop.f32.mrb[0].mxu0
  %v3185 = vadd.f32 %v2800, %v3184
  %v3186 = vpop.f32.mrb[0].mxu0
  %3187 = vmatprep.mubr.bf16.mxu0 %v1819
  %3188 = vmatmul.mubr.bf16.gmra.mrb[0].mxu0 %v1818
  %v3189 = vpop.f32.mrb[0].mxu0
  %v3190 = vadd.f32 %v2805, %v3189
  %v3191 = vpop.f32.mrb[0].mxu0
  %v3192 = vpop.f32.mrb[0].mxu0
  %v3193 = vadd.f32 %v2808, %v3192
  %v3194 = vpop.f32.mrb[0].mxu0
  %3195 = vmatprep.mubr.bf16.mxu0 %v1826
  %3196 = vmatmul.mubr.bf16.gmra.mrb[0].mxu0 %v1825
  %v3197 = vpop.f32.mrb[0].mxu0
  %v3198 = vadd.f32 %v2813, %v3197
  %v3199 = vpop.f32.mrb[0].mxu0
  %v3200 = vpop.f32.mrb[0].mxu0
  %v3201 = vadd.f32 %v2816, %v3200
  %v3202 = vpop.f32.mrb[0].mxu0
  %3203 = vmatprep.mubr.bf16.mxu0 %v1833
  %3204 = vmatmul.mubr.bf16.gmra.mrb[0].mxu0 %v1832
  %v3205 = vpop.f32.mrb[0].mxu0
  %v3206 = vadd.f32 %v2821, %v3205
  %v3207 = vpop.f32.mrb[0].mxu0
  %v3208 = vpop.f32.mrb[0].mxu0
  %v3209 = vadd.f32 %v2824, %v3208
  %v3210 = vpop.f32.mrb[0].mxu0
  %3211 = vmatprep.mubr.bf16.mxu0 %v1840
  %3212 = vmatmul.mubr.bf16.gmra.mrb[0].mxu0 %v1839
  %v3213 = vpop.f32.mrb[0].mxu0
  %v3214 = vadd.f32 %v2829, %v3213
  %v3215 = vpop.f32.mrb[0].mxu0
  %v3216 = vpop.f32.mrb[0].mxu0
  %v3217 = vadd.f32 %v2832, %v3216
  %v3218 = vpop.f32.mrb[0].mxu0
  %3219 = vdwg.mxu0
  %3220 = vmatprep.subr.bf16.mxu0 0
  %3221 = vmatpush1.bf16.msra.mxu0 %v2249
  %3222 = vmatprep.subr.bf16.mxu0 0
  %3223 = vmatpush1.bf16.msra.mxu0 %v2250
  %3224 = vmatprep.subr.bf16.mxu0 0
  %3225 = vmatpush1.bf16.msra.mxu0 %v2251
  %3226 = vmatprep.subr.bf16.mxu0 0
  %3227 = vmatpush1.bf16.msra.mxu0 %v2252
  %3228 = vmatprep.subr.bf16.mxu0 0
  %3229 = vmatpush1.bf16.msra.mxu0 %v2253
  %3230 = vmatprep.subr.bf16.mxu0 0
  %3231 = vmatpush1.bf16.msra.mxu0 %v2254
  %3232 = vmatprep.subr.bf16.mxu0 0
  %3233 = vmatpush1.bf16.msra.mxu0 %v2255
  %3234 = vmatprep.subr.bf16.mxu0 0
  %3235 = vmatpush1.bf16.msra.mxu0 %v2256
  %3236 = vmatprep.subr.bf16.mxu0 0
  %3237 = vmatpush1.bf16.msra.mxu0 %v2257
  %3238 = vmatprep.subr.bf16.mxu0 0
  %3239 = vmatpush1.bf16.msra.mxu0 %v2258
  %3240 = vmatprep.subr.bf16.mxu0 0
  %3241 = vmatpush1.bf16.msra.mxu0 %v2259
  %3242 = vmatprep.subr.bf16.mxu0 0
  %3243 = vmatpush1.bf16.msra.mxu0 %v2260
  %3244 = vmatprep.subr.bf16.mxu0 0
  %3245 = vmatpush1.bf16.msra.mxu0 %v2261
  %3246 = vmatprep.subr.bf16.mxu0 0
  %3247 = vmatpush1.bf16.msra.mxu0 %v2262
  %3248 = vmatprep.subr.bf16.mxu0 0
  %3249 = vmatpush1.bf16.msra.mxu0 %v2263
  %3250 = vmatprep.subr.bf16.mxu0 0
  %3251 = vmatpush1.bf16.msra.mxu0 %v2264
  %3252 = vmatprep.mubr.bf16.mxu0 %v617
  %3253 = vmatmul.mubr.bf16.gmra.mrb[0].mxu0 %v616
  %v3254 = vpop.f32.mrb[0].mxu0
  %v3255 = vadd.f32 %v2870, %v3254
  %v3256 = vpop.f32.mrb[0].mxu0
  %v3257 = vpop.f32.mrb[0].mxu0
  %v3258 = vadd.f32 %v2873, %v3257
  %v3259 = vpop.f32.mrb[0].mxu0
  %3260 = vmatprep.mubr.bf16.mxu0 %v624
  %3261 = vmatmul.mubr.bf16.gmra.mrb[0].mxu0 %v623
  %v3262 = vpop.f32.mrb[0].mxu0
  %v3263 = vadd.f32 %v2878, %v3262
  %v3264 = vpop.f32.mrb[0].mxu0
  %v3265 = vpop.f32.mrb[0].mxu0
  %v3266 = vadd.f32 %v2881, %v3265
  %v3267 = vpop.f32.mrb[0].mxu0
  %3268 = vmatprep.mubr.bf16.mxu0 %v631
  %3269 = vmatmul.mubr.bf16.gmra.mrb[0].mxu0 %v630
  %v3270 = vpop.f32.mrb[0].mxu0
  %v3271 = vadd.f32 %v2886, %v3270
  %v3272 = vpop.f32.mrb[0].mxu0
  %v3273 = vpop.f32.mrb[0].mxu0
  %v3274 = vadd.f32 %v2889, %v3273
  %v3275 = vpop.f32.mrb[0].mxu0
  %3276 = vmatprep.mubr.bf16.mxu0 %v638
  %3277 = vmatmul.mubr.bf16.gmra.mrb[0].mxu0 %v637
  %v3278 = vpop.f32.mrb[0].mxu0
  %v3279 = vadd.f32 %v2894, %v3278
  %v3280 = vpop.f32.mrb[0].mxu0
  %v3281 = vpop.f32.mrb[0].mxu0
  %v3282 = vadd.f32 %v2897, %v3281
  %v3283 = vpop.f32.mrb[0].mxu0
  %3284 = vmatprep.mubr.bf16.mxu0 %v645
  %3285 = vmatmul.mubr.bf16.gmra.mrb[0].mxu0 %v644
  %v3286 = vpop.f32.mrb[0].mxu0
  %v3287 = vadd.f32 %v2902, %v3286
  %v3288 = vpop.f32.mrb[0].mxu0
  %v3289 = vpop.f32.mrb[0].mxu0
  %v3290 = vadd.f32 %v2905, %v3289
  %v3291 = vpop.f32.mrb[0].mxu0
  %3292 = vmatprep.mubr.bf16.mxu0 %v652
  %3293 = vmatmul.mubr.bf16.gmra.mrb[0].mxu0 %v651
  %v3294 = vpop.f32.mrb[0].mxu0
  %v3295 = vadd.f32 %v2910, %v3294
  %v3296 = vpop.f32.mrb[0].mxu0
  %v3297 = vpop.f32.mrb[0].mxu0
  %v3298 = vadd.f32 %v2913, %v3297
  %v3299 = vpop.f32.mrb[0].mxu0
  %3300 = vmatprep.mubr.bf16.mxu0 %v659
  %3301 = vmatmul.mubr.bf16.gmra.mrb[0].mxu0 %v658
  %v3302 = vpop.f32.mrb[0].mxu0
  %v3303 = vadd.f32 %v2918, %v3302
  %v3304 = vpop.f32.mrb[0].mxu0
  %v3305 = vpop.f32.mrb[0].mxu0
  %v3306 = vadd.f32 %v2921, %v3305
  %v3307 = vpop.f32.mrb[0].mxu0
  %3308 = vmatprep.mubr.bf16.mxu0 %v666
  %3309 = vmatmul.mubr.bf16.gmra.mrb[0].mxu0 %v665
  %v3310 = vpop.f32.mrb[0].mxu0
  %v3311 = vadd.f32 %v2926, %v3310
  %v3312 = vpop.f32.mrb[0].mxu0
  %v3313 = vpop.f32.mrb[0].mxu0
  %v3314 = vadd.f32 %v2929, %v3313
  %v3315 = vpop.f32.mrb[0].mxu0
  %3316 = vmatprep.mubr.bf16.mxu0 %v673
  %3317 = vmatmul.mubr.bf16.gmra.mrb[0].mxu0 %v672
  %v3318 = vpop.f32.mrb[0].mxu0
  %v3319 = vadd.f32 %v2934, %v3318
  %v3320 = vpop.f32.mrb[0].mxu0
  %v3321 = vpop.f32.mrb[0].mxu0
  %v3322 = vadd.f32 %v2937, %v3321
  %v3323 = vpop.f32.mrb[0].mxu0
  %3324 = vmatprep.mubr.bf16.mxu0 %v680
  %3325 = vmatmul.mubr.bf16.gmra.mrb[0].mxu0 %v679
  %v3326 = vpop.f32.mrb[0].mxu0
  %v3327 = vadd.f32 %v2942, %v3326
  %v3328 = vpop.f32.mrb[0].mxu0
  %v3329 = vpop.f32.mrb[0].mxu0
  %v3330 = vadd.f32 %v2945, %v3329
  %v3331 = vpop.f32.mrb[0].mxu0
  %3332 = vmatprep.mubr.bf16.mxu0 %v687
  %3333 = vmatmul.mubr.bf16.gmra.mrb[0].mxu0 %v686
  %v3334 = vpop.f32.mrb[0].mxu0
  %v3335 = vadd.f32 %v2950, %v3334
  %v3336 = vpop.f32.mrb[0].mxu0
  %v3337 = vpop.f32.mrb[0].mxu0
  %v3338 = vadd.f32 %v2953, %v3337
  %v3339 = vpop.f32.mrb[0].mxu0
  %3340 = vmatprep.mubr.bf16.mxu0 %v1002
  %3341 = vmatmul.mubr.bf16.gmra.mrb[0].mxu0 %v1001
  %v3342 = vpop.f32.mrb[0].mxu0
  %v3343 = vadd.f32 %v2958, %v3342
  %v3344 = vpop.f32.mrb[0].mxu0
  %v3345 = vpop.f32.mrb[0].mxu0
  %v3346 = vadd.f32 %v2961, %v3345
  %v3347 = vpop.f32.mrb[0].mxu0
  %3348 = vmatprep.mubr.bf16.mxu0 %v1009
  %3349 = vmatmul.mubr.bf16.gmra.mrb[0].mxu0 %v1008
  %v3350 = vpop.f32.mrb[0].mxu0
  %v3351 = vadd.f32 %v2966, %v3350
  %v3352 = vpop.f32.mrb[0].mxu0
  %v3353 = vpop.f32.mrb[0].mxu0
  %v3354 = vadd.f32 %v2969, %v3353
  %v3355 = vpop.f32.mrb[0].mxu0
  %3356 = vmatprep.mubr.bf16.mxu0 %v1016
  %3357 = vmatmul.mubr.bf16.gmra.mrb[0].mxu0 %v1015
  %v3358 = vpop.f32.mrb[0].mxu0
  %v3359 = vadd.f32 %v2974, %v3358
  %v3360 = vpop.f32.mrb[0].mxu0
  %v3361 = vpop.f32.mrb[0].mxu0
  %v3362 = vadd.f32 %v2977, %v3361
  %v3363 = vpop.f32.mrb[0].mxu0
  %3364 = vmatprep.mubr.bf16.mxu0 %v1023
  %3365 = vmatmul.mubr.bf16.gmra.mrb[0].mxu0 %v1022
  %v3366 = vpop.f32.mrb[0].mxu0
  %v3367 = vadd.f32 %v2982, %v3366
  %v3368 = vpop.f32.mrb[0].mxu0
  %v3369 = vpop.f32.mrb[0].mxu0
  %v3370 = vadd.f32 %v2985, %v3369
  %v3371 = vpop.f32.mrb[0].mxu0
  %3372 = vmatprep.mubr.bf16.mxu0 %v1030
  %3373 = vmatmul.mubr.bf16.gmra.mrb[0].mxu0 %v1029
  %v3374 = vpop.f32.mrb[0].mxu0
  %v3375 = vadd.f32 %v2990, %v3374
  %v3376 = vpop.f32.mrb[0].mxu0
  %v3377 = vpop.f32.mrb[0].mxu0
  %v3378 = vadd.f32 %v2993, %v3377
  %v3379 = vpop.f32.mrb[0].mxu0
  %3380 = vmatprep.mubr.bf16.mxu0 %v1037
  %3381 = vmatmul.mubr.bf16.gmra.mrb[0].mxu0 %v1036
  %v3382 = vpop.f32.mrb[0].mxu0
  %v3383 = vadd.f32 %v2998, %v3382
  %v3384 = vpop.f32.mrb[0].mxu0
  %v3385 = vpop.f32.mrb[0].mxu0
  %v3386 = vadd.f32 %v3001, %v3385
  %v3387 = vpop.f32.mrb[0].mxu0
  %3388 = vmatprep.mubr.bf16.mxu0 %v1044
  %3389 = vmatmul.mubr.bf16.gmra.mrb[0].mxu0 %v1043
  %v3390 = vpop.f32.mrb[0].mxu0
  %v3391 = vadd.f32 %v3006, %v3390
  %v3392 = vpop.f32.mrb[0].mxu0
  %v3393 = vpop.f32.mrb[0].mxu0
  %v3394 = vadd.f32 %v3009, %v3393
  %v3395 = vpop.f32.mrb[0].mxu0
  %3396 = vmatprep.mubr.bf16.mxu0 %v1051
  %3397 = vmatmul.mubr.bf16.gmra.mrb[0].mxu0 %v1050
  %v3398 = vpop.f32.mrb[0].mxu0
  %v3399 = vadd.f32 %v3014, %v3398
  %v3400 = vpop.f32.mrb[0].mxu0
  %v3401 = vpop.f32.mrb[0].mxu0
  %v3402 = vadd.f32 %v3017, %v3401
  %v3403 = vpop.f32.mrb[0].mxu0
  %3404 = vmatprep.mubr.bf16.mxu0 %v1058
  %3405 = vmatmul.mubr.bf16.gmra.mrb[0].mxu0 %v1057
  %v3406 = vpop.f32.mrb[0].mxu0
  %v3407 = vadd.f32 %v3022, %v3406
  %v3408 = vpop.f32.mrb[0].mxu0
  %v3409 = vpop.f32.mrb[0].mxu0
  %v3410 = vadd.f32 %v3025, %v3409
  %v3411 = vpop.f32.mrb[0].mxu0
  %3412 = vmatprep.mubr.bf16.mxu0 %v1065
  %3413 = vmatmul.mubr.bf16.gmra.mrb[0].mxu0 %v1064
  %v3414 = vpop.f32.mrb[0].mxu0
  %v3415 = vadd.f32 %v3030, %v3414
  %v3416 = vpop.f32.mrb[0].mxu0
  %v3417 = vpop.f32.mrb[0].mxu0
  %v3418 = vadd.f32 %v3033, %v3417
  %v3419 = vpop.f32.mrb[0].mxu0
  %3420 = vmatprep.mubr.bf16.mxu0 %v1072
  %3421 = vmatmul.mubr.bf16.gmra.mrb[0].mxu0 %v1071
  %v3422 = vpop.f32.mrb[0].mxu0
  %v3423 = vadd.f32 %v3038, %v3422
  %v3424 = vpop.f32.mrb[0].mxu0
  %v3425 = vpop.f32.mrb[0].mxu0
  %v3426 = vadd.f32 %v3041, %v3425
  %v3427 = vpop.f32.mrb[0].mxu0
  %3428 = vmatprep.mubr.bf16.mxu0 %v1387
  %3429 = vmatmul.mubr.bf16.gmra.mrb[0].mxu0 %v1386
  %v3430 = vpop.f32.mrb[0].mxu0
  %v3431 = vadd.f32 %v3046, %v3430
  %v3432 = vpop.f32.mrb[0].mxu0
  %v3433 = vpop.f32.mrb[0].mxu0
  %v3434 = vadd.f32 %v3049, %v3433
  %v3435 = vpop.f32.mrb[0].mxu0
  %3436 = vmatprep.mubr.bf16.mxu0 %v1394
  %3437 = vmatmul.mubr.bf16.gmra.mrb[0].mxu0 %v1393
  %v3438 = vpop.f32.mrb[0].mxu0
  %v3439 = vadd.f32 %v3054, %v3438
  %v3440 = vpop.f32.mrb[0].mxu0
  %v3441 = vpop.f32.mrb[0].mxu0
  %v3442 = vadd.f32 %v3057, %v3441
  %v3443 = vpop.f32.mrb[0].mxu0
  %3444 = vmatprep.mubr.bf16.mxu0 %v1401
  %3445 = vmatmul.mubr.bf16.gmra.mrb[0].mxu0 %v1400
  %v3446 = vpop.f32.mrb[0].mxu0
  %v3447 = vadd.f32 %v3062, %v3446
  %v3448 = vpop.f32.mrb[0].mxu0
  %v3449 = vpop.f32.mrb[0].mxu0
  %v3450 = vadd.f32 %v3065, %v3449
  %v3451 = vpop.f32.mrb[0].mxu0
  %3452 = vmatprep.mubr.bf16.mxu0 %v1408
  %3453 = vmatmul.mubr.bf16.gmra.mrb[0].mxu0 %v1407
  %v3454 = vpop.f32.mrb[0].mxu0
  %v3455 = vadd.f32 %v3070, %v3454
  %v3456 = vpop.f32.mrb[0].mxu0
  %v3457 = vpop.f32.mrb[0].mxu0
  %v3458 = vadd.f32 %v3073, %v3457
  %v3459 = vpop.f32.mrb[0].mxu0
  %3460 = vmatprep.mubr.bf16.mxu0 %v1415
  %3461 = vmatmul.mubr.bf16.gmra.mrb[0].mxu0 %v1414
  %v3462 = vpop.f32.mrb[0].mxu0
  %v3463 = vadd.f32 %v3078, %v3462
  %v3464 = vpop.f32.mrb[0].mxu0
  %v3465 = vpop.f32.mrb[0].mxu0
  %v3466 = vadd.f32 %v3081, %v3465
  %v3467 = vpop.f32.mrb[0].mxu0
  %3468 = vmatprep.mubr.bf16.mxu0 %v1422
  %3469 = vmatmul.mubr.bf16.gmra.mrb[0].mxu0 %v1421
  %v3470 = vpop.f32.mrb[0].mxu0
  %v3471 = vadd.f32 %v3086, %v3470
  %v3472 = vpop.f32.mrb[0].mxu0
  %v3473 = vpop.f32.mrb[0].mxu0
  %v3474 = vadd.f32 %v3089, %v3473
  %v3475 = vpop.f32.mrb[0].mxu0
  %3476 = vmatprep.mubr.bf16.mxu0 %v1429
  %3477 = vmatmul.mubr.bf16.gmra.mrb[0].mxu0 %v1428
  %v3478 = vpop.f32.mrb[0].mxu0
  %v3479 = vadd.f32 %v3094, %v3478
  %v3480 = vpop.f32.mrb[0].mxu0
  %v3481 = vpop.f32.mrb[0].mxu0
  %v3482 = vadd.f32 %v3097, %v3481
  %v3483 = vpop.f32.mrb[0].mxu0
  %3484 = vmatprep.mubr.bf16.mxu0 %v1436
  %3485 = vmatmul.mubr.bf16.gmra.mrb[0].mxu0 %v1435
  %v3486 = vpop.f32.mrb[0].mxu0
  %v3487 = vadd.f32 %v3102, %v3486
  %v3488 = vpop.f32.mrb[0].mxu0
  %v3489 = vpop.f32.mrb[0].mxu0
  %v3490 = vadd.f32 %v3105, %v3489
  %v3491 = vpop.f32.mrb[0].mxu0
  %3492 = vmatprep.mubr.bf16.mxu0 %v1443
  %3493 = vmatmul.mubr.bf16.gmra.mrb[0].mxu0 %v1442
  %v3494 = vpop.f32.mrb[0].mxu0
  %v3495 = vadd.f32 %v3110, %v3494
  %v3496 = vpop.f32.mrb[0].mxu0
  %v3497 = vpop.f32.mrb[0].mxu0
  %v3498 = vadd.f32 %v3113, %v3497
  %v3499 = vpop.f32.mrb[0].mxu0
  %3500 = vmatprep.mubr.bf16.mxu0 %v1450
  %3501 = vmatmul.mubr.bf16.gmra.mrb[0].mxu0 %v1449
  %v3502 = vpop.f32.mrb[0].mxu0
  %v3503 = vadd.f32 %v3118, %v3502
  %v3504 = vpop.f32.mrb[0].mxu0
  %v3505 = vpop.f32.mrb[0].mxu0
  %v3506 = vadd.f32 %v3121, %v3505
  %v3507 = vpop.f32.mrb[0].mxu0
  %3508 = vmatprep.mubr.bf16.mxu0 %v1457
  %3509 = vmatmul.mubr.bf16.gmra.mrb[0].mxu0 %v1456
  %v3510 = vpop.f32.mrb[0].mxu0
  %v3511 = vadd.f32 %v3126, %v3510
  %v3512 = vpop.f32.mrb[0].mxu0
  %v3513 = vpop.f32.mrb[0].mxu0
  %v3514 = vadd.f32 %v3129, %v3513
  %v3515 = vpop.f32.mrb[0].mxu0
  %3516 = vmatprep.mubr.bf16.mxu0 %v1772
  %3517 = vmatmul.mubr.bf16.gmra.mrb[0].mxu0 %v1771
  %v3518 = vpop.f32.mrb[0].mxu0
  %v3519 = vadd.f32 %v3134, %v3518
  %v3520 = vpop.f32.mrb[0].mxu0
  %v3521 = vpop.f32.mrb[0].mxu0
  %v3522 = vadd.f32 %v3137, %v3521
  %v3523 = vpop.f32.mrb[0].mxu0
  %3524 = vmatprep.mubr.bf16.mxu0 %v1779
  %3525 = vmatmul.mubr.bf16.gmra.mrb[0].mxu0 %v1778
  %v3526 = vpop.f32.mrb[0].mxu0
  %v3527 = vadd.f32 %v3142, %v3526
  %v3528 = vpop.f32.mrb[0].mxu0
  %v3529 = vpop.f32.mrb[0].mxu0
  %v3530 = vadd.f32 %v3145, %v3529
  %v3531 = vpop.f32.mrb[0].mxu0
  %3532 = vmatprep.mubr.bf16.mxu0 %v1786
  %3533 = vmatmul.mubr.bf16.gmra.mrb[0].mxu0 %v1785
  %v3534 = vpop.f32.mrb[0].mxu0
  %v3535 = vadd.f32 %v3150, %v3534
  %v3536 = vpop.f32.mrb[0].mxu0
  %v3537 = vpop.f32.mrb[0].mxu0
  %v3538 = vadd.f32 %v3153, %v3537
  %v3539 = vpop.f32.mrb[0].mxu0
  %3540 = vmatprep.mubr.bf16.mxu0 %v1793
  %3541 = vmatmul.mubr.bf16.gmra.mrb[0].mxu0 %v1792
  %v3542 = vpop.f32.mrb[0].mxu0
  %v3543 = vadd.f32 %v3158, %v3542
  %v3544 = vpop.f32.mrb[0].mxu0
  %v3545 = vpop.f32.mrb[0].mxu0
  %v3546 = vadd.f32 %v3161, %v3545
  %v3547 = vpop.f32.mrb[0].mxu0
  %3548 = vmatprep.mubr.bf16.mxu0 %v1800
  %3549 = vmatmul.mubr.bf16.gmra.mrb[0].mxu0 %v1799
  %v3550 = vpop.f32.mrb[0].mxu0
  %v3551 = vadd.f32 %v3166, %v3550
  %v3552 = vpop.f32.mrb[0].mxu0
  %v3553 = vpop.f32.mrb[0].mxu0
  %v3554 = vadd.f32 %v3169, %v3553
  %v3555 = vpop.f32.mrb[0].mxu0
  %3556 = vmatprep.mubr.bf16.mxu0 %v1807
  %3557 = vmatmul.mubr.bf16.gmra.mrb[0].mxu0 %v1806
  %v3558 = vpop.f32.mrb[0].mxu0
  %v3559 = vadd.f32 %v3174, %v3558
  %v3560 = vpop.f32.mrb[0].mxu0
  %v3561 = vpop.f32.mrb[0].mxu0
  %v3562 = vadd.f32 %v3177, %v3561
  %v3563 = vpop.f32.mrb[0].mxu0
  %3564 = vmatprep.mubr.bf16.mxu0 %v1814
  %3565 = vmatmul.mubr.bf16.gmra.mrb[0].mxu0 %v1813
  %v3566 = vpop.f32.mrb[0].mxu0
  %v3567 = vadd.f32 %v3182, %v3566
  %v3568 = vpop.f32.mrb[0].mxu0
  %v3569 = vpop.f32.mrb[0].mxu0
  %v3570 = vadd.f32 %v3185, %v3569
  %v3571 = vpop.f32.mrb[0].mxu0
  %3572 = vmatprep.mubr.bf16.mxu0 %v1821
  %3573 = vmatmul.mubr.bf16.gmra.mrb[0].mxu0 %v1820
  %v3574 = vpop.f32.mrb[0].mxu0
  %v3575 = vadd.f32 %v3190, %v3574
  %v3576 = vpop.f32.mrb[0].mxu0
  %v3577 = vpop.f32.mrb[0].mxu0
  %v3578 = vadd.f32 %v3193, %v3577
  %v3579 = vpop.f32.mrb[0].mxu0
  %3580 = vmatprep.mubr.bf16.mxu0 %v1828
  %3581 = vmatmul.mubr.bf16.gmra.mrb[0].mxu0 %v1827
  %v3582 = vpop.f32.mrb[0].mxu0
  %v3583 = vadd.f32 %v3198, %v3582
  %v3584 = vpop.f32.mrb[0].mxu0
  %v3585 = vpop.f32.mrb[0].mxu0
  %v3586 = vadd.f32 %v3201, %v3585
  %v3587 = vpop.f32.mrb[0].mxu0
  %3588 = vmatprep.mubr.bf16.mxu0 %v1835
  %3589 = vmatmul.mubr.bf16.gmra.mrb[0].mxu0 %v1834
  %v3590 = vpop.f32.mrb[0].mxu0
  %v3591 = vadd.f32 %v3206, %v3590
  %v3592 = vpop.f32.mrb[0].mxu0
  %v3593 = vpop.f32.mrb[0].mxu0
  %v3594 = vadd.f32 %v3209, %v3593
  %v3595 = vpop.f32.mrb[0].mxu0
  %3596 = vmatprep.mubr.bf16.mxu0 %v1842
  %3597 = vmatmul.mubr.bf16.gmra.mrb[0].mxu0 %v1841
  %v3598 = vpop.f32.mrb[0].mxu0
  %v3599 = vadd.f32 %v3214, %v3598
  %v3600 = vpop.f32.mrb[0].mxu0
  %v3601 = vpop.f32.mrb[0].mxu0
  %v3602 = vadd.f32 %v3217, %v3601
  %v3603 = vpop.f32.mrb[0].mxu0
  %3604 = vdwg.mxu0
  %3605 = vmatprep.subr.bf16.mxu0 0
  %3606 = vmatpush1.bf16.msra.mxu0 %v2265
  %3607 = vmatprep.subr.bf16.mxu0 0
  %3608 = vmatpush1.bf16.msra.mxu0 %v2266
  %3609 = vmatprep.subr.bf16.mxu0 0
  %3610 = vmatpush1.bf16.msra.mxu0 0
  %3611 = vmatprep.subr.bf16.mxu0 0
  %3612 = vmatpush1.bf16.msra.mxu0 0
  %3613 = vmatprep.subr.bf16.mxu0 0
  %3614 = vmatpush1.bf16.msra.mxu0 0
  %3615 = vmatprep.subr.bf16.mxu0 0
  %3616 = vmatpush1.bf16.msra.mxu0 0
  %3617 = vmatprep.subr.bf16.mxu0 0
  %3618 = vmatpush1.bf16.msra.mxu0 0
  %3619 = vmatprep.subr.bf16.mxu0 0
  %3620 = vmatpush1.bf16.msra.mxu0 0
  %3621 = vmatprep.subr.bf16.mxu0 0
  %3622 = vmatpush1.bf16.msra.mxu0 0
  %3623 = vmatprep.subr.bf16.mxu0 0
  %3624 = vmatpush1.bf16.msra.mxu0 0
  %3625 = vmatprep.subr.bf16.mxu0 0
  %3626 = vmatpush1.bf16.msra.mxu0 0
  %3627 = vmatprep.subr.bf16.mxu0 0
  %3628 = vmatpush1.bf16.msra.mxu0 0
  %3629 = vmatprep.subr.bf16.mxu0 0
  %3630 = vmatpush1.bf16.msra.mxu0 0
  %3631 = vmatprep.subr.bf16.mxu0 0
  %3632 = vmatpush1.bf16.msra.mxu0 0
  %3633 = vmatprep.subr.bf16.mxu0 0
  %3634 = vmatpush1.bf16.msra.mxu0 0
  %3635 = vmatprep.subr.bf16.mxu0 0
  %3636 = vmatpush1.bf16.msra.mxu0 0
  %3637 = vmatprep.mubr.bf16.mxu0 0
  %3638 = vmatmul.mubr.bf16.gmra.mrb[0].mxu0 %v2319
  %v3639 = vpop.f32.mrb[0].mxu0
  %v3640 = vadd.f32 %v3255, %v3639
  %v3641 = vpop.f32.mrb[0].mxu0
  %v3642 = vpop.f32.mrb[0].mxu0
  %v3643 = vadd.f32 %v3258, %v3642
  %v3644 = vpop.f32.mrb[0].mxu0
  %3645 = vmatprep.mubr.bf16.mxu0 0
  %3646 = vmatmul.mubr.bf16.gmra.mrb[0].mxu0 %v2322
  %v3647 = vpop.f32.mrb[0].mxu0
  %v3648 = vadd.f32 %v3263, %v3647
  %v3649 = vpop.f32.mrb[0].mxu0
  %v3650 = vpop.f32.mrb[0].mxu0
  %v3651 = vadd.f32 %v3266, %v3650
  %v3652 = vpop.f32.mrb[0].mxu0
  %3653 = vmatprep.mubr.bf16.mxu0 0
  %3654 = vmatmul.mubr.bf16.gmra.mrb[0].mxu0 %v2325
  %v3655 = vpop.f32.mrb[0].mxu0
  %v3656 = vadd.f32 %v3271, %v3655
  %v3657 = vpop.f32.mrb[0].mxu0
  %v3658 = vpop.f32.mrb[0].mxu0
  %v3659 = vadd.f32 %v3274, %v3658
  %v3660 = vpop.f32.mrb[0].mxu0
  %3661 = vmatprep.mubr.bf16.mxu0 0
  %3662 = vmatmul.mubr.bf16.gmra.mrb[0].mxu0 %v2328
  %v3663 = vpop.f32.mrb[0].mxu0
  %v3664 = vadd.f32 %v3279, %v3663
  %v3665 = vpop.f32.mrb[0].mxu0
  %v3666 = vpop.f32.mrb[0].mxu0
  %v3667 = vadd.f32 %v3282, %v3666
  %v3668 = vpop.f32.mrb[0].mxu0
  %3669 = vmatprep.mubr.bf16.mxu0 0
  %3670 = vmatmul.mubr.bf16.gmra.mrb[0].mxu0 %v2331
  %v3671 = vpop.f32.mrb[0].mxu0
  %v3672 = vadd.f32 %v3287, %v3671
  %v3673 = vpop.f32.mrb[0].mxu0
  %v3674 = vpop.f32.mrb[0].mxu0
  %v3675 = vadd.f32 %v3290, %v3674
  %v3676 = vpop.f32.mrb[0].mxu0
  %3677 = vmatprep.mubr.bf16.mxu0 0
  %3678 = vmatmul.mubr.bf16.gmra.mrb[0].mxu0 %v2334
  %v3679 = vpop.f32.mrb[0].mxu0
  %v3680 = vadd.f32 %v3295, %v3679
  %v3681 = vpop.f32.mrb[0].mxu0
  %v3682 = vpop.f32.mrb[0].mxu0
  %v3683 = vadd.f32 %v3298, %v3682
  %v3684 = vpop.f32.mrb[0].mxu0
  %3685 = vmatprep.mubr.bf16.mxu0 0
  %3686 = vmatmul.mubr.bf16.gmra.mrb[0].mxu0 %v2337
  %v3687 = vpop.f32.mrb[0].mxu0
  %v3688 = vadd.f32 %v3303, %v3687
  %v3689 = vpop.f32.mrb[0].mxu0
  %v3690 = vpop.f32.mrb[0].mxu0
  %v3691 = vadd.f32 %v3306, %v3690
  %v3692 = vpop.f32.mrb[0].mxu0
  %3693 = vmatprep.mubr.bf16.mxu0 0
  %3694 = vmatmul.mubr.bf16.gmra.mrb[0].mxu0 %v2340
  %v3695 = vpop.f32.mrb[0].mxu0
  %v3696 = vadd.f32 %v3311, %v3695
  %v3697 = vpop.f32.mrb[0].mxu0
  %v3698 = vpop.f32.mrb[0].mxu0
  %v3699 = vadd.f32 %v3314, %v3698
  %v3700 = vpop.f32.mrb[0].mxu0
  %3701 = vmatprep.mubr.bf16.mxu0 0
  %3702 = vmatmul.mubr.bf16.gmra.mrb[0].mxu0 %v2343
  %v3703 = vpop.f32.mrb[0].mxu0
  %v3704 = vadd.f32 %v3319, %v3703
  %v3705 = vpop.f32.mrb[0].mxu0
  %v3706 = vpop.f32.mrb[0].mxu0
  %v3707 = vadd.f32 %v3322, %v3706
  %v3708 = vpop.f32.mrb[0].mxu0
  %3709 = vmatprep.mubr.bf16.mxu0 0
  %3710 = vmatmul.mubr.bf16.gmra.mrb[0].mxu0 %v2346
  %v3711 = vpop.f32.mrb[0].mxu0
  %v3712 = vadd.f32 %v3327, %v3711
  %v3713 = vpop.f32.mrb[0].mxu0
  %v3714 = vpop.f32.mrb[0].mxu0
  %v3715 = vadd.f32 %v3330, %v3714
  %v3716 = vpop.f32.mrb[0].mxu0
  %3717 = vmatprep.mubr.bf16.mxu0 0
  %3718 = vmatmul.mubr.bf16.gmra.mrb[0].mxu0 %v2349
  %v3719 = vpop.f32.mrb[0].mxu0
  %v3720 = vadd.f32 %v3335, %v3719
  %v3721 = vpop.f32.mrb[0].mxu0
  %v3722 = vpop.f32.mrb[0].mxu0
  %v3723 = vadd.f32 %v3338, %v3722
  %v3724 = vpop.f32.mrb[0].mxu0
  %3725 = vmatprep.mubr.bf16.mxu0 0
  %3726 = vmatmul.mubr.bf16.gmra.mrb[0].mxu0 %v2352
  %v3727 = vpop.f32.mrb[0].mxu0
  %v3728 = vadd.f32 %v3343, %v3727
  %v3729 = vpop.f32.mrb[0].mxu0
  %v3730 = vpop.f32.mrb[0].mxu0
  %v3731 = vadd.f32 %v3346, %v3730
  %v3732 = vpop.f32.mrb[0].mxu0
  %3733 = vmatprep.mubr.bf16.mxu0 0
  %3734 = vmatmul.mubr.bf16.gmra.mrb[0].mxu0 %v2355
  %v3735 = vpop.f32.mrb[0].mxu0
  %v3736 = vadd.f32 %v3351, %v3735
  %v3737 = vpop.f32.mrb[0].mxu0
  %v3738 = vpop.f32.mrb[0].mxu0
  %v3739 = vadd.f32 %v3354, %v3738
  %v3740 = vpop.f32.mrb[0].mxu0
  %3741 = vmatprep.mubr.bf16.mxu0 0
  %3742 = vmatmul.mubr.bf16.gmra.mrb[0].mxu0 %v2358
  %v3743 = vpop.f32.mrb[0].mxu0
  %v3744 = vadd.f32 %v3359, %v3743
  %v3745 = vpop.f32.mrb[0].mxu0
  %v3746 = vpop.f32.mrb[0].mxu0
  %v3747 = vadd.f32 %v3362, %v3746
  %v3748 = vpop.f32.mrb[0].mxu0
  %3749 = vmatprep.mubr.bf16.mxu0 0
  %3750 = vmatmul.mubr.bf16.gmra.mrb[0].mxu0 %v2361
  %v3751 = vpop.f32.mrb[0].mxu0
  %v3752 = vadd.f32 %v3367, %v3751
  %v3753 = vpop.f32.mrb[0].mxu0
  %v3754 = vpop.f32.mrb[0].mxu0
  %v3755 = vadd.f32 %v3370, %v3754
  %v3756 = vpop.f32.mrb[0].mxu0
  %3757 = vmatprep.mubr.bf16.mxu0 0
  %3758 = vmatmul.mubr.bf16.gmra.mrb[0].mxu0 %v2364
  %v3759 = vpop.f32.mrb[0].mxu0
  %v3760 = vadd.f32 %v3375, %v3759
  %v3761 = vpop.f32.mrb[0].mxu0
  %v3762 = vpop.f32.mrb[0].mxu0
  %v3763 = vadd.f32 %v3378, %v3762
  %v3764 = vpop.f32.mrb[0].mxu0
  %3765 = vmatprep.mubr.bf16.mxu0 0
  %3766 = vmatmul.mubr.bf16.gmra.mrb[0].mxu0 %v2367
  %v3767 = vpop.f32.mrb[0].mxu0
  %v3768 = vadd.f32 %v3383, %v3767
  %v3769 = vpop.f32.mrb[0].mxu0
  %v3770 = vpop.f32.mrb[0].mxu0
  %v3771 = vadd.f32 %v3386, %v3770
  %v3772 = vpop.f32.mrb[0].mxu0
  %3773 = vmatprep.mubr.bf16.mxu0 0
  %3774 = vmatmul.mubr.bf16.gmra.mrb[0].mxu0 %v2370
  %v3775 = vpop.f32.mrb[0].mxu0
  %v3776 = vadd.f32 %v3391, %v3775
  %v3777 = vpop.f32.mrb[0].mxu0
  %v3778 = vpop.f32.mrb[0].mxu0
  %v3779 = vadd.f32 %v3394, %v3778
  %v3780 = vpop.f32.mrb[0].mxu0
  %3781 = vmatprep.mubr.bf16.mxu0 0
  %3782 = vmatmul.mubr.bf16.gmra.mrb[0].mxu0 %v2373
  %v3783 = vpop.f32.mrb[0].mxu0
  %v3784 = vadd.f32 %v3399, %v3783
  %v3785 = vpop.f32.mrb[0].mxu0
  %v3786 = vpop.f32.mrb[0].mxu0
  %v3787 = vadd.f32 %v3402, %v3786
  %v3788 = vpop.f32.mrb[0].mxu0
  %3789 = vmatprep.mubr.bf16.mxu0 0
  %3790 = vmatmul.mubr.bf16.gmra.mrb[0].mxu0 %v2376
  %v3791 = vpop.f32.mrb[0].mxu0
  %v3792 = vadd.f32 %v3407, %v3791
  %v3793 = vpop.f32.mrb[0].mxu0
  %v3794 = vpop.f32.mrb[0].mxu0
  %v3795 = vadd.f32 %v3410, %v3794
  %v3796 = vpop.f32.mrb[0].mxu0
  %3797 = vmatprep.mubr.bf16.mxu0 0
  %3798 = vmatmul.mubr.bf16.gmra.mrb[0].mxu0 %v2379
  %v3799 = vpop.f32.mrb[0].mxu0
  %v3800 = vadd.f32 %v3415, %v3799
  %v3801 = vpop.f32.mrb[0].mxu0
  %v3802 = vpop.f32.mrb[0].mxu0
  %v3803 = vadd.f32 %v3418, %v3802
  %v3804 = vpop.f32.mrb[0].mxu0
  %3805 = vmatprep.mubr.bf16.mxu0 0
  %3806 = vmatmul.mubr.bf16.gmra.mrb[0].mxu0 %v2382
  %v3807 = vpop.f32.mrb[0].mxu0
  %v3808 = vadd.f32 %v3423, %v3807
  %v3809 = vpop.f32.mrb[0].mxu0
  %v3810 = vpop.f32.mrb[0].mxu0
  %v3811 = vadd.f32 %v3426, %v3810
  %v3812 = vpop.f32.mrb[0].mxu0
  %3813 = vmatprep.mubr.bf16.mxu0 0
  %3814 = vmatmul.mubr.bf16.gmra.mrb[0].mxu0 %v2385
  %v3815 = vpop.f32.mrb[0].mxu0
  %v3816 = vadd.f32 %v3431, %v3815
  %v3817 = vpop.f32.mrb[0].mxu0
  %v3818 = vpop.f32.mrb[0].mxu0
  %v3819 = vadd.f32 %v3434, %v3818
  %v3820 = vpop.f32.mrb[0].mxu0
  %3821 = vmatprep.mubr.bf16.mxu0 0
  %3822 = vmatmul.mubr.bf16.gmra.mrb[0].mxu0 %v2388
  %v3823 = vpop.f32.mrb[0].mxu0
  %v3824 = vadd.f32 %v3439, %v3823
  %v3825 = vpop.f32.mrb[0].mxu0
  %v3826 = vpop.f32.mrb[0].mxu0
  %v3827 = vadd.f32 %v3442, %v3826
  %v3828 = vpop.f32.mrb[0].mxu0
  %3829 = vmatprep.mubr.bf16.mxu0 0
  %3830 = vmatmul.mubr.bf16.gmra.mrb[0].mxu0 %v2391
  %v3831 = vpop.f32.mrb[0].mxu0
  %v3832 = vadd.f32 %v3447, %v3831
  %v3833 = vpop.f32.mrb[0].mxu0
  %v3834 = vpop.f32.mrb[0].mxu0
  %v3835 = vadd.f32 %v3450, %v3834
  %v3836 = vpop.f32.mrb[0].mxu0
  %3837 = vmatprep.mubr.bf16.mxu0 0
  %3838 = vmatmul.mubr.bf16.gmra.mrb[0].mxu0 %v2394
  %v3839 = vpop.f32.mrb[0].mxu0
  %v3840 = vadd.f32 %v3455, %v3839
  %v3841 = vpop.f32.mrb[0].mxu0
  %v3842 = vpop.f32.mrb[0].mxu0
  %v3843 = vadd.f32 %v3458, %v3842
  %v3844 = vpop.f32.mrb[0].mxu0
  %3845 = vmatprep.mubr.bf16.mxu0 0
  %3846 = vmatmul.mubr.bf16.gmra.mrb[0].mxu0 %v2397
  %v3847 = vpop.f32.mrb[0].mxu0
  %v3848 = vadd.f32 %v3463, %v3847
  %v3849 = vpop.f32.mrb[0].mxu0
  %v3850 = vpop.f32.mrb[0].mxu0
  %v3851 = vadd.f32 %v3466, %v3850
  %v3852 = vpop.f32.mrb[0].mxu0
  %3853 = vmatprep.mubr.bf16.mxu0 0
  %3854 = vmatmul.mubr.bf16.gmra.mrb[0].mxu0 %v2400
  %v3855 = vpop.f32.mrb[0].mxu0
  %v3856 = vadd.f32 %v3471, %v3855
  %v3857 = vpop.f32.mrb[0].mxu0
  %v3858 = vpop.f32.mrb[0].mxu0
  %v3859 = vadd.f32 %v3474, %v3858
  %v3860 = vpop.f32.mrb[0].mxu0
  %3861 = vmatprep.mubr.bf16.mxu0 0
  %3862 = vmatmul.mubr.bf16.gmra.mrb[0].mxu0 %v2403
  %v3863 = vpop.f32.mrb[0].mxu0
  %v3864 = vadd.f32 %v3479, %v3863
  %v3865 = vpop.f32.mrb[0].mxu0
  %v3866 = vpop.f32.mrb[0].mxu0
  %v3867 = vadd.f32 %v3482, %v3866
  %v3868 = vpop.f32.mrb[0].mxu0
  %3869 = vmatprep.mubr.bf16.mxu0 0
  %3870 = vmatmul.mubr.bf16.gmra.mrb[0].mxu0 %v2406
  %v3871 = vpop.f32.mrb[0].mxu0
  %v3872 = vadd.f32 %v3487, %v3871
  %v3873 = vpop.f32.mrb[0].mxu0
  %v3874 = vpop.f32.mrb[0].mxu0
  %v3875 = vadd.f32 %v3490, %v3874
  %v3876 = vpop.f32.mrb[0].mxu0
  %3877 = vmatprep.mubr.bf16.mxu0 0
  %3878 = vmatmul.mubr.bf16.gmra.mrb[0].mxu0 %v2409
  %v3879 = vpop.f32.mrb[0].mxu0
  %v3880 = vadd.f32 %v3495, %v3879
  %v3881 = vpop.f32.mrb[0].mxu0
  %v3882 = vpop.f32.mrb[0].mxu0
  %v3883 = vadd.f32 %v3498, %v3882
  %v3884 = vpop.f32.mrb[0].mxu0
  %3885 = vmatprep.mubr.bf16.mxu0 0
  %3886 = vmatmul.mubr.bf16.gmra.mrb[0].mxu0 %v2412
  %v3887 = vpop.f32.mrb[0].mxu0
  %v3888 = vadd.f32 %v3503, %v3887
  %v3889 = vpop.f32.mrb[0].mxu0
  %v3890 = vpop.f32.mrb[0].mxu0
  %v3891 = vadd.f32 %v3506, %v3890
  %v3892 = vpop.f32.mrb[0].mxu0
  %3893 = vmatprep.mubr.bf16.mxu0 0
  %3894 = vmatmul.mubr.bf16.gmra.mrb[0].mxu0 %v2415
  %v3895 = vpop.f32.mrb[0].mxu0
  %v3896 = vadd.f32 %v3511, %v3895
  %v3897 = vpop.f32.mrb[0].mxu0
  %v3898 = vpop.f32.mrb[0].mxu0
  %v3899 = vadd.f32 %v3514, %v3898
  %v3900 = vpop.f32.mrb[0].mxu0
  %3901 = vmatprep.mubr.bf16.mxu0 0
  %3902 = vmatmul.mubr.bf16.gmra.mrb[0].mxu0 %v2418
  %v3903 = vpop.f32.mrb[0].mxu0
  %v3904 = vadd.f32 %v3519, %v3903
  %v3905 = vpop.f32.mrb[0].mxu0
  %v3906 = vpop.f32.mrb[0].mxu0
  %v3907 = vadd.f32 %v3522, %v3906
  %v3908 = vpop.f32.mrb[0].mxu0
  %3909 = vmatprep.mubr.bf16.mxu0 0
  %3910 = vmatmul.mubr.bf16.gmra.mrb[0].mxu0 %v2421
  %v3911 = vpop.f32.mrb[0].mxu0
  %v3912 = vadd.f32 %v3527, %v3911
  %v3913 = vpop.f32.mrb[0].mxu0
  %v3914 = vpop.f32.mrb[0].mxu0
  %v3915 = vadd.f32 %v3530, %v3914
  %v3916 = vpop.f32.mrb[0].mxu0
  %3917 = vmatprep.mubr.bf16.mxu0 0
  %3918 = vmatmul.mubr.bf16.gmra.mrb[0].mxu0 %v2424
  %v3919 = vpop.f32.mrb[0].mxu0
  %v3920 = vadd.f32 %v3535, %v3919
  %v3921 = vpop.f32.mrb[0].mxu0
  %v3922 = vpop.f32.mrb[0].mxu0
  %v3923 = vadd.f32 %v3538, %v3922
  %v3924 = vpop.f32.mrb[0].mxu0
  %3925 = vmatprep.mubr.bf16.mxu0 0
  %3926 = vmatmul.mubr.bf16.gmra.mrb[0].mxu0 %v2427
  %v3927 = vpop.f32.mrb[0].mxu0
  %v3928 = vadd.f32 %v3543, %v3927
  %v3929 = vpop.f32.mrb[0].mxu0
  %v3930 = vpop.f32.mrb[0].mxu0
  %v3931 = vadd.f32 %v3546, %v3930
  %v3932 = vpop.f32.mrb[0].mxu0
  %3933 = vmatprep.mubr.bf16.mxu0 0
  %3934 = vmatmul.mubr.bf16.gmra.mrb[0].mxu0 %v2430
  %v3935 = vpop.f32.mrb[0].mxu0
  %v3936 = vadd.f32 %v3551, %v3935
  %v3937 = vpop.f32.mrb[0].mxu0
  %v3938 = vpop.f32.mrb[0].mxu0
  %v3939 = vadd.f32 %v3554, %v3938
  %v3940 = vpop.f32.mrb[0].mxu0
  %3941 = vmatprep.mubr.bf16.mxu0 0
  %3942 = vmatmul.mubr.bf16.gmra.mrb[0].mxu0 %v2433
  %v3943 = vpop.f32.mrb[0].mxu0
  %v3944 = vadd.f32 %v3559, %v3943
  %v3945 = vpop.f32.mrb[0].mxu0
  %v3946 = vpop.f32.mrb[0].mxu0
  %v3947 = vadd.f32 %v3562, %v3946
  %v3948 = vpop.f32.mrb[0].mxu0
  %3949 = vmatprep.mubr.bf16.mxu0 0
  %3950 = vmatmul.mubr.bf16.gmra.mrb[0].mxu0 %v2436
  %v3951 = vpop.f32.mrb[0].mxu0
  %v3952 = vadd.f32 %v3567, %v3951
  %v3953 = vpop.f32.mrb[0].mxu0
  %v3954 = vpop.f32.mrb[0].mxu0
  %v3955 = vadd.f32 %v3570, %v3954
  %v3956 = vpop.f32.mrb[0].mxu0
  %3957 = vmatprep.mubr.bf16.mxu0 0
  %3958 = vmatmul.mubr.bf16.gmra.mrb[0].mxu0 %v2439
  %v3959 = vpop.f32.mrb[0].mxu0
  %v3960 = vadd.f32 %v3575, %v3959
  %v3961 = vpop.f32.mrb[0].mxu0
  %v3962 = vpop.f32.mrb[0].mxu0
  %v3963 = vadd.f32 %v3578, %v3962
  %v3964 = vpop.f32.mrb[0].mxu0
  %3965 = vmatprep.mubr.bf16.mxu0 0
  %3966 = vmatmul.mubr.bf16.gmra.mrb[0].mxu0 %v2442
  %v3967 = vpop.f32.mrb[0].mxu0
  %v3968 = vadd.f32 %v3583, %v3967
  %v3969 = vpop.f32.mrb[0].mxu0
  %v3970 = vpop.f32.mrb[0].mxu0
  %v3971 = vadd.f32 %v3586, %v3970
  %v3972 = vpop.f32.mrb[0].mxu0
  %3973 = vmatprep.mubr.bf16.mxu0 0
  %3974 = vmatmul.mubr.bf16.gmra.mrb[0].mxu0 %v2445
  %v3975 = vpop.f32.mrb[0].mxu0
  %v3976 = vadd.f32 %v3591, %v3975
  %v3977 = vpop.f32.mrb[0].mxu0
  %v3978 = vpop.f32.mrb[0].mxu0
  %v3979 = vadd.f32 %v3594, %v3978
  %v3980 = vpop.f32.mrb[0].mxu0
  %3981 = vmatprep.mubr.bf16.mxu0 0
  %3982 = vmatmul.mubr.bf16.gmra.mrb[0].mxu0 %v2448
  %v3983 = vpop.f32.mrb[0].mxu0
  %v3984 = vadd.f32 %v3599, %v3983
  %v3985 = vpop.f32.mrb[0].mxu0
  %v3986 = vpop.f32.mrb[0].mxu0
  %v3987 = vadd.f32 %v3602, %v3986
  %v3988 = vpop.f32.mrb[0].mxu0
  %3989 = vdwg.mxu0
  %v3990 = vmax.f32 %v3640, 0.0
  %v3991 = vmax.f32 %v3643, 0.0
  %v3992 = vmax.f32 %v3648, 0.0
  %v3993 = vmax.f32 %v3651, 0.0
  %v3994 = vmax.f32 %v3656, 0.0
  %v3995 = vmax.f32 %v3659, 0.0
  %v3996 = vmax.f32 %v3664, 0.0
  %v3997 = vmax.f32 %v3667, 0.0
  %v3998 = vmax.f32 %v3672, 0.0
  %v3999 = vmax.f32 %v3675, 0.0
  %v4000 = vmax.f32 %v3680, 0.0
  %v4001 = vmax.f32 %v3683, 0.0
  %v4002 = vmax.f32 %v3688, 0.0
  %v4003 = vmax.f32 %v3691, 0.0
  %v4004 = vmax.f32 %v3696, 0.0
  %v4005 = vmax.f32 %v3699, 0.0
  %v4006 = vmax.f32 %v3704, 0.0
  %v4007 = vmax.f32 %v3707, 0.0
  %v4008 = vmax.f32 %v3712, 0.0
  %v4009 = vmax.f32 %v3715, 0.0
  %v4010 = vmax.f32 %v3720, 0.0
  %v4011 = vmax.f32 %v3723, 0.0
  %v4012 = vmax.f32 %v3728, 0.0
  %v4013 = vmax.f32 %v3731, 0.0
  %v4014 = vmax.f32 %v3736, 0.0
  %v4015 = vmax.f32 %v3739, 0.0
  %v4016 = vmax.f32 %v3744, 0.0
  %v4017 = vmax.f32 %v3747, 0.0
  %v4018 = vmax.f32 %v3752, 0.0
  %v4019 = vmax.f32 %v3755, 0.0
  %v4020 = vmax.f32 %v3760, 0.0
  %v4021 = vmax.f32 %v3763, 0.0
  %v4022 = vmax.f32 %v3768, 0.0
  %v4023 = vmax.f32 %v3771, 0.0
  %v4024 = vmax.f32 %v3776, 0.0
  %v4025 = vmax.f32 %v3779, 0.0
  %v4026 = vmax.f32 %v3784, 0.0
  %v4027 = vmax.f32 %v3787, 0.0
  %v4028 = vmax.f32 %v3792, 0.0
  %v4029 = vmax.f32 %v3795, 0.0
  %v4030 = vmax.f32 %v3800, 0.0
  %v4031 = vmax.f32 %v3803, 0.0
  %v4032 = vmax.f32 %v3808, 0.0
  %v4033 = vmax.f32 %v3811, 0.0
  %v4034 = vmax.f32 %v3816, 0.0
  %v4035 = vmax.f32 %v3819, 0.0
  %v4036 = vmax.f32 %v3824, 0.0
  %v4037 = vmax.f32 %v3827, 0.0
  %v4038 = vmax.f32 %v3832, 0.0
  %v4039 = vmax.f32 %v3835, 0.0
  %v4040 = vmax.f32 %v3840, 0.0
  %v4041 = vmax.f32 %v3843, 0.0
  %v4042 = vmax.f32 %v3848, 0.0
  %v4043 = vmax.f32 %v3851, 0.0
  %v4044 = vmax.f32 %v3856, 0.0
  %v4045 = vmax.f32 %v3859, 0.0
  %v4046 = vmax.f32 %v3864, 0.0
  %v4047 = vmax.f32 %v3867, 0.0
  %v4048 = vmax.f32 %v3872, 0.0
  %v4049 = vmax.f32 %v3875, 0.0
  %v4050 = vmax.f32 %v3880, 0.0
  %v4051 = vmax.f32 %v3883, 0.0
  %v4052 = vmax.f32 %v3888, 0.0
  %v4053 = vmax.f32 %v3891, 0.0
  %v4054 = vmax.f32 %v3896, 0.0
  %v4055 = vmax.f32 %v3899, 0.0
  %v4056 = vmax.f32 %v3904, 0.0
  %v4057 = vmax.f32 %v3907, 0.0
  %v4058 = vmax.f32 %v3912, 0.0
  %v4059 = vmax.f32 %v3915, 0.0
  %v4060 = vmax.f32 %v3920, 0.0
  %v4061 = vmax.f32 %v3923, 0.0
  %v4062 = vmax.f32 %v3928, 0.0
  %v4063 = vmax.f32 %v3931, 0.0
  %v4064 = vmax.f32 %v3936, 0.0
  %v4065 = vmax.f32 %v3939, 0.0
  %v4066 = vmax.f32 %v3944, 0.0
  %v4067 = vmax.f32 %v3947, 0.0
  %v4068 = vmax.f32 %v3952, 0.0
  %v4069 = vmax.f32 %v3955, 0.0
  %v4070 = vmax.f32 %v3960, 0.0
  %v4071 = vmax.f32 %v3963, 0.0
  %v4072 = vmax.f32 %v3968, 0.0
  %v4073 = vmax.f32 %v3971, 0.0
  %v4074 = vmax.f32 %v3976, 0.0
  %v4075 = vmax.f32 %v3979, 0.0
  %v4076 = vmax.f32 %v3984, 0.0
  %v4077 = vmax.f32 %v3987, 0.0
  %v4078 = vmax.f32 %v3990, %v4012
  %v4079 = vmax.f32 %v3991, %v4013
  %v4080 = vmax.f32 %v3992, %v4014
  %v4081 = vmax.f32 %v3993, %v4015
  %v4082 = vmax.f32 %v3994, %v4016
  %v4083 = vmax.f32 %v3995, %v4017
  %v4084 = vmax.f32 %v3996, %v4018
  %v4085 = vmax.f32 %v3997, %v4019
  %v4086 = vmax.f32 %v3998, %v4020
  %v4087 = vmax.f32 %v3999, %v4021
  %v4088 = vmax.f32 %v4000, %v4022
  %v4089 = vmax.f32 %v4001, %v4023
  %v4090 = vmax.f32 %v4002, %v4024
  %v4091 = vmax.f32 %v4003, %v4025
  %v4092 = vmax.f32 %v4004, %v4026
  %v4093 = vmax.f32 %v4005, %v4027
  %v4094 = vmax.f32 %v4006, %v4028
  %v4095 = vmax.f32 %v4007, %v4029
  %v4096 = vmax.f32 %v4008, %v4030
  %v4097 = vmax.f32 %v4009, %v4031
  %v4098 = vmax.f32 %v4010, %v4032
  %v4099 = vmax.f32 %v4011, %v4033
  %v4100 = vmax.f32 %v4034, %v4056
  %v4101 = vmax.f32 %v4035, %v4057
  %v4102 = vmax.f32 %v4036, %v4058
  %v4103 = vmax.f32 %v4037, %v4059
  %v4104 = vmax.f32 %v4038, %v4060
  %v4105 = vmax.f32 %v4039, %v4061
  %v4106 = vmax.f32 %v4040, %v4062
  %v4107 = vmax.f32 %v4041, %v4063
  %v4108 = vmax.f32 %v4042, %v4064
  %v4109 = vmax.f32 %v4043, %v4065
  %v4110 = vmax.f32 %v4044, %v4066
  %v4111 = vmax.f32 %v4045, %v4067
  %v4112 = vmax.f32 %v4046, %v4068
  %v4113 = vmax.f32 %v4047, %v4069
  %v4114 = vmax.f32 %v4048, %v4070
  %v4115 = vmax.f32 %v4049, %v4071
  %v4116 = vmax.f32 %v4050, %v4072
  %v4117 = vmax.f32 %v4051, %v4073
  %v4118 = vmax.f32 %v4052, %v4074
  %v4119 = vmax.f32 %v4053, %v4075
  %v4120 = vmax.f32 %v4054, %v4076
  %v4121 = vmax.f32 %v4055, %v4077
  %v4122 = vmax.f32 %v4078, %v4100
  %v4123 = vmax.f32 %v4079, %v4101
  %v4124 = vmax.f32 %v4080, %v4102
  %v4125 = vmax.f32 %v4081, %v4103
  %v4126 = vmax.f32 %v4082, %v4104
  %v4127 = vmax.f32 %v4083, %v4105
  %v4128 = vmax.f32 %v4084, %v4106
  %v4129 = vmax.f32 %v4085, %v4107
  %v4130 = vmax.f32 %v4086, %v4108
  %v4131 = vmax.f32 %v4087, %v4109
  %v4132 = vmax.f32 %v4088, %v4110
  %v4133 = vmax.f32 %v4089, %v4111
  %v4134 = vmax.f32 %v4090, %v4112
  %v4135 = vmax.f32 %v4091, %v4113
  %v4136 = vmax.f32 %v4092, %v4114
  %v4137 = vmax.f32 %v4093, %v4115
  %v4138 = vmax.f32 %v4094, %v4116
  %v4139 = vmax.f32 %v4095, %v4117
  %v4140 = vmax.f32 %v4096, %v4118
  %v4141 = vmax.f32 %v4097, %v4119
  %v4142 = vmax.f32 %v4098, %v4120
  %v4143 = vmax.f32 %v4099, %v4121
  %v4144 = vpack.c.bf16 %v4123, %v4122
  %v4145 = vpack.c.bf16 %v4125, %v4124
  %v4146 = vpack.c.bf16 %v4127, %v4126
  %v4147 = vpack.c.bf16 %v4129, %v4128
  %v4148 = vpack.c.bf16 %v4131, %v4130
  %v4149 = vpack.c.bf16 %v4133, %v4132
  %v4150 = vpack.c.bf16 %v4135, %v4134
  %v4151 = vpack.c.bf16 %v4137, %v4136
  %v4152 = vpack.c.bf16 %v4139, %v4138
  %v4153 = vpack.c.bf16 %v4141, %v4140
  %v4154 = vpack.c.bf16 %v4143, %v4142
  %v4166 = vunpack.c.l.b16 %v4144
  %v4167 = vunpack.c.h.b16 %v4144
  %v4168 = vunpack.c.l.b16 %v4145
  %v4169 = vunpack.c.h.b16 %v4145
  %v4170 = vunpack.c.l.b16 %v4146
  %v4171 = vunpack.c.h.b16 %v4146
  %v4172 = vunpack.c.l.b16 %v4147
  %v4173 = vunpack.c.h.b16 %v4147
  %v4174 = vunpack.c.l.b16 %v4148
  %v4175 = vunpack.c.h.b16 %v4148
  %v4176 = vunpack.c.l.b16 %v4149
  %v4177 = vunpack.c.h.b16 %v4149
  %v4178 = vunpack.c.l.b16 %v4150
  %v4179 = vunpack.c.h.b16 %v4150
  %v4180 = vunpack.c.l.b16 %v4151
  %v4181 = vunpack.c.h.b16 %v4151
  %v4182 = vunpack.c.l.b16 %v4152
  %v4183 = vunpack.c.h.b16 %v4152
  %v4184 = vunpack.c.l.b16 %v4153
  %v4185 = vunpack.c.h.b16 %v4153
  %v4186 = vunpack.c.l.b16 %v4154
  %v4187 = vunpack.c.h.b16 %v4154
  %v4188 = vpack.c.b16 %v4166, %v4166
  %v4189 = vpack.c.b16 %v4167, %v4167
  %v4190 = vpack.c.b16 %v4168, %v4168
  %v4191 = vpack.c.b16 %v4169, %v4169
  %v4192 = vpack.c.b16 %v4170, %v4170
  %v4193 = vpack.c.b16 %v4171, %v4171
  %v4194 = vpack.c.b16 %v4172, %v4172
  %v4195 = vpack.c.b16 %v4173, %v4173
  %v4196 = vpack.c.b16 %v4174, %v4174
  %v4197 = vpack.c.b16 %v4175, %v4175
  %v4198 = vpack.c.b16 %v4176, %v4176
  %v4199 = vpack.c.b16 %v4177, %v4177
  %v4200 = vpack.c.b16 %v4178, %v4178
  %v4201 = vpack.c.b16 %v4179, %v4179
  %v4202 = vpack.c.b16 %v4180, %v4180
  %v4203 = vpack.c.b16 %v4181, %v4181
  %v4204 = vpack.c.b16 %v4182, %v4182
  %v4205 = vpack.c.b16 %v4183, %v4183
  %v4206 = vpack.c.b16 %v4184, %v4184
  %v4207 = vpack.c.b16 %v4185, %v4185
  %v4208 = vpack.c.b16 %v4186, %v4186
  %v4209 = vpack.c.b16 %v4187, %v4187
  %vm4232 = vcmask 519168
  %4233 = vst.msk [vmem:[%s3] sm:$0xf] %vm4232, %v4188
  %4234 = vst.msk [vmem:[%s3 + $0x4] sm:$0xf] %vm4232, %v4189
  %4235 = vst.msk [vmem:[%s3 + $0x8] sm:$0xf] %vm4232, %v4190
  %4236 = vst.msk [vmem:[%s3 + $0xc] sm:$0xf] %vm4232, %v4191
  %4237 = vst.msk [vmem:[%s3 + $0x10] sm:$0xf] %vm4232, %v4192
  %4238 = vst.msk [vmem:[%s3 + $0x14] sm:$0xf] %vm4232, %v4193
  %4239 = vst.msk [vmem:[%s3 + $0x18] sm:$0xf] %vm4232, %v4194
  %4240 = vst.msk [vmem:[%s3 + $0x1c] sm:$0xf] %vm4232, %v4195
  %4241 = vst.msk [vmem:[%s3 + $0x20] sm:$0xf] %vm4232, %v4196
  %4242 = vst.msk [vmem:[%s3 + $0x24] sm:$0xf] %vm4232, %v4197
  %4243 = vst.msk [vmem:[%s3 + $0x28] sm:$0xf] %vm4232, %v4198
  %4244 = vst.msk [vmem:[%s3 + $0x2c] sm:$0xf] %vm4232, %v4199
  %4245 = vst.msk [vmem:[%s3 + $0x30] sm:$0xf] %vm4232, %v4200
  %4246 = vst.msk [vmem:[%s3 + $0x34] sm:$0xf] %vm4232, %v4201
  %4247 = vst.msk [vmem:[%s3 + $0x38] sm:$0xf] %vm4232, %v4202
  %4248 = vst.msk [vmem:[%s3 + $0x3c] sm:$0xf] %vm4232, %v4203
  %4249 = vst.msk [vmem:[%s3 + $0x40] sm:$0xf] %vm4232, %v4204
  %4250 = vst.msk [vmem:[%s3 + $0x44] sm:$0xf] %vm4232, %v4205
  %4251 = vst.msk [vmem:[%s3 + $0x48] sm:$0xf] %vm4232, %v4206
  %4252 = vst.msk [vmem:[%s3 + $0x4c] sm:$0xf] %vm4232, %v4207
  %4253 = vst.msk [vmem:[%s3 + $0x50] sm:$0xf] %vm4232, %v4208
  %4254 = vst.msk [vmem:[%s3 + $0x54] sm:$0xf] %vm4232, %v4209
  // Predicated region
  $region14: #{net_forward.5} parent=0 // pred_check
    _
  $region15: #{net_forward.5} parent=0 // pred_check_branch
    %4256 = sbr.rel (0) target = $region17
  $region16: #{net_forward.5} parent=0 // pred_region
    _
  $region17: #{net_forward.5} parent=0 // pred_fallthru
    _
  // Predicated region
  $region18: #{net_forward.5} parent=0 // pred_check
    _
  $region19: #{net_forward.5} parent=0 // pred_check_branch
    %4258 = sbr.rel (0) target = $region21
  $region20: #{net_forward.5} parent=0 // pred_region
    _
  $region21: #{net_forward.5} parent=0 // pred_fallthru
    _

// kernel: net_forward.6
$region0: #{net_forward.6}
  #allocation0 [shape = 'u32[]', space=smem, size = 0x4, offset = 0x4, fixed_abs, tag = 'smem constant byte address 0x4 - core index']
  #allocation1 [shape = 'u32[144,128]{1,0:T(1,128)}', space=vmem, size = 0x12000, scoped, tag = 'internal scratch']
  %s0 = inlined_call_operand.vmem [shape: bf16[4,16,1600], index: 0, kind: input, shape index: {}]
  %s1 = inlined_call_operand.vmem [shape: bf16[1600,128], index: 1, kind: input, shape index: {}]
  %s2 = inlined_call_operand.vmem [shape: f32[1,128], index: 2, kind: input, shape index: {}]
  %s3 = inlined_call_operand.vmem [shape: bf16[16,128], index: 3, kind: output, shape index: {}]
  %s4 = sld [smem:[#allocation0]]
  $region22: #{net_forward.6} parent=0
    _
  %s6 = ssub.s32 1, %s4
  %s7 = scalar_select 0, %s6, %s4
  // Predicated region
  $region2: #{net_forward.6} parent=0 // pred_check
    _
  $region3: #{net_forward.6} parent=0 // pred_check_branch
    %9 = sbr.rel (0) target = $region5
  $region4: #{net_forward.6} parent=0 // pred_region
    _
  $region5: #{net_forward.6} parent=0 // pred_fallthru
    _
  // Predicated region
  $region6: #{net_forward.6} parent=0 // pred_check
    _
  $region7: #{net_forward.6} parent=0 // pred_check_branch
    %11 = sbr.rel (0) target = $region9
  $region8: #{net_forward.6} parent=0 // pred_region
    _
  $region9: #{net_forward.6} parent=0 // pred_fallthru
    _
  // Predicated region
  $region10: #{net_forward.6} parent=0 // pred_check
    _
  $region11: #{net_forward.6} parent=0 // pred_check_branch
    %13 = sbr.rel (0) target = $region13
  $region12: #{net_forward.6} parent=0 // pred_region
    _
  $region13: #{net_forward.6} parent=0 // pred_fallthru
    _
  %v15 = vld [vmem:[%s0] sm:$0xff]
  %v16 = vld [vmem:[%s0 + $0x8] sm:$0xff]
  %v17 = vld [vmem:[%s0 + $0x10] sm:$0xff]
  %v18 = vld [vmem:[%s0 + $0x18] sm:$0xff]
  %v19 = vld [vmem:[%s0 + $0x20] sm:$0xff]
  %v20 = vld [vmem:[%s0 + $0x28] sm:$0xff]
  %v21 = vld [vmem:[%s0 + $0x30] sm:$0xf]
  %v22 = vld [vmem:[%s0 + $0x34] sm:$0xff]
  %v23 = vld [vmem:[%s0 + $0x3c] sm:$0xff]
  %v24 = vld [vmem:[%s0 + $0x44] sm:$0xff]
  %v25 = vld [vmem:[%s0 + $0x4c] sm:$0xff]
  %v26 = vld [vmem:[%s0 + $0x54] sm:$0xff]
  %v27 = vld [vmem:[%s0 + $0x5c] sm:$0xff]
  %v28 = vld [vmem:[%s0 + $0x64] sm:$0xf]
  %s29 = scalar_lea.vmem %s0, 104
  %v30 = vld [vmem:[%s29] sm:$0xff]
  %v31 = vld [vmem:[%s29 + $0x8] sm:$0xff]
  %v32 = vld [vmem:[%s29 + $0x10] sm:$0xff]
  %v33 = vld [vmem:[%s29 + $0x18] sm:$0xff]
  %v34 = vld [vmem:[%s29 + $0x20] sm:$0xff]
  %v35 = vld [vmem:[%s29 + $0x28] sm:$0xff]
  %v36 = vld [vmem:[%s29 + $0x30] sm:$0xf]
  %v37 = vld [vmem:[%s29 + $0x34] sm:$0xff]
  %v38 = vld [vmem:[%s29 + $0x3c] sm:$0xff]
  %v39 = vld [vmem:[%s29 + $0x44] sm:$0xff]
  %v40 = vld [vmem:[%s29 + $0x4c] sm:$0xff]
  %v41 = vld [vmem:[%s29 + $0x54] sm:$0xff]
  %v42 = vld [vmem:[%s29 + $0x5c] sm:$0xff]
  %v43 = vld [vmem:[%s29 + $0x64] sm:$0xf]
  %s44 = scalar_lea.vmem %s0, 208
  %v45 = vld [vmem:[%s44] sm:$0xff]
  %v46 = vld [vmem:[%s44 + $0x8] sm:$0xff]
  %v47 = vld [vmem:[%s44 + $0x10] sm:$0xff]
  %v48 = vld [vmem:[%s44 + $0x18] sm:$0xff]
  %v49 = vld [vmem:[%s44 + $0x20] sm:$0xff]
  %v50 = vld [vmem:[%s44 + $0x28] sm:$0xff]
  %v51 = vld [vmem:[%s44 + $0x30] sm:$0xf]
  %v52 = vld [vmem:[%s44 + $0x34] sm:$0xff]
  %v53 = vld [vmem:[%s44 + $0x3c] sm:$0xff]
  %v54 = vld [vmem:[%s44 + $0x44] sm:$0xff]
  %v55 = vld [vmem:[%s44 + $0x4c] sm:$0xff]
  %v56 = vld [vmem:[%s44 + $0x54] sm:$0xff]
  %v57 = vld [vmem:[%s44 + $0x5c] sm:$0xff]
  %v58 = vld [vmem:[%s44 + $0x64] sm:$0xf]
  %s59 = scalar_lea.vmem %s0, 312
  %v60 = vld [vmem:[%s59] sm:$0xff]
  %v61 = vld [vmem:[%s59 + $0x8] sm:$0xff]
  %v62 = vld [vmem:[%s59 + $0x10] sm:$0xff]
  %v63 = vld [vmem:[%s59 + $0x18] sm:$0xff]
  %v64 = vld [vmem:[%s59 + $0x20] sm:$0xff]
  %v65 = vld [vmem:[%s59 + $0x28] sm:$0xff]
  %v66 = vld [vmem:[%s59 + $0x30] sm:$0xf]
  %v67 = vld [vmem:[%s59 + $0x34] sm:$0xff]
  %v68 = vld [vmem:[%s59 + $0x3c] sm:$0xff]
  %v69 = vld [vmem:[%s59 + $0x44] sm:$0xff]
  %v70 = vld [vmem:[%s59 + $0x4c] sm:$0xff]
  %v71 = vld [vmem:[%s59 + $0x54] sm:$0xff]
  %v72 = vld [vmem:[%s59 + $0x5c] sm:$0xff]
  %v73 = vld [vmem:[%s59 + $0x64] sm:$0xf]
  %v88 = vunpack.c.l.b16 %v15
  %v89 = vunpack.c.h.b16 %v15
  %v90 = vunpack.c.l.b16 %v16
  %v91 = vunpack.c.h.b16 %v16
  %v92 = vunpack.c.l.b16 %v17
  %v93 = vunpack.c.h.b16 %v17
  %v94 = vunpack.c.l.b16 %v18
  %v95 = vunpack.c.h.b16 %v18
  %v96 = vunpack.c.l.b16 %v19
  %v97 = vunpack.c.h.b16 %v19
  %v98 = vunpack.c.l.b16 %v20
  %v99 = vunpack.c.h.b16 %v20
  %v100 = vunpack.c.l.b16 %v21
  %v101 = vunpack.c.l.b16 %v22
  %v102 = vunpack.c.h.b16 %v22
  %v103 = vunpack.c.l.b16 %v23
  %v104 = vunpack.c.h.b16 %v23
  %v105 = vunpack.c.l.b16 %v24
  %v106 = vunpack.c.h.b16 %v24
  %v107 = vunpack.c.l.b16 %v25
  %v108 = vunpack.c.h.b16 %v25
  %v109 = vunpack.c.l.b16 %v26
  %v110 = vunpack.c.h.b16 %v26
  %v111 = vunpack.c.l.b16 %v27
  %v112 = vunpack.c.h.b16 %v27
  %v113 = vunpack.c.l.b16 %v28
  %v114 = vpack.c.b16 %v101, %v88
  %v115 = vpack.c.b16 %v102, %v89
  %v116 = vpack.c.b16 %v103, %v90
  %v117 = vpack.c.b16 %v104, %v91
  %v118 = vpack.c.b16 %v105, %v92
  %v119 = vpack.c.b16 %v106, %v93
  %v120 = vpack.c.b16 %v107, %v94
  %v121 = vpack.c.b16 %v108, %v95
  %v122 = vpack.c.b16 %v109, %v96
  %v123 = vpack.c.b16 %v110, %v97
  %v124 = vpack.c.b16 %v111, %v98
  %v125 = vpack.c.b16 %v112, %v99
  %v126 = vpack.c.b16 %v113, %v100
  %v153 = vunpack.c.l.b16 %v30
  %v154 = vunpack.c.h.b16 %v30
  %v155 = vunpack.c.l.b16 %v31
  %v156 = vunpack.c.h.b16 %v31
  %v157 = vunpack.c.l.b16 %v32
  %v158 = vunpack.c.h.b16 %v32
  %v159 = vunpack.c.l.b16 %v33
  %v160 = vunpack.c.h.b16 %v33
  %v161 = vunpack.c.l.b16 %v34
  %v162 = vunpack.c.h.b16 %v34
  %v163 = vunpack.c.l.b16 %v35
  %v164 = vunpack.c.h.b16 %v35
  %v165 = vunpack.c.l.b16 %v36
  %v166 = vunpack.c.l.b16 %v37
  %v167 = vunpack.c.h.b16 %v37
  %v168 = vunpack.c.l.b16 %v38
  %v169 = vunpack.c.h.b16 %v38
  %v170 = vunpack.c.l.b16 %v39
  %v171 = vunpack.c.h.b16 %v39
  %v172 = vunpack.c.l.b16 %v40
  %v173 = vunpack.c.h.b16 %v40
  %v174 = vunpack.c.l.b16 %v41
  %v175 = vunpack.c.h.b16 %v41
  %v176 = vunpack.c.l.b16 %v42
  %v177 = vunpack.c.h.b16 %v42
  %v178 = vunpack.c.l.b16 %v43
  %v179 = vpack.c.b16 %v166, %v153
  %v180 = vpack.c.b16 %v167, %v154
  %v181 = vpack.c.b16 %v168, %v155
  %v182 = vpack.c.b16 %v169, %v156
  %v183 = vpack.c.b16 %v170, %v157
  %v184 = vpack.c.b16 %v171, %v158
  %v185 = vpack.c.b16 %v172, %v159
  %v186 = vpack.c.b16 %v173, %v160
  %v187 = vpack.c.b16 %v174, %v161
  %v188 = vpack.c.b16 %v175, %v162
  %v189 = vpack.c.b16 %v176, %v163
  %v190 = vpack.c.b16 %v177, %v164
  %v191 = vpack.c.b16 %v178, %v165
  %v218 = vunpack.c.l.b16 %v45
  %v219 = vunpack.c.h.b16 %v45
  %v220 = vunpack.c.l.b16 %v46
  %v221 = vunpack.c.h.b16 %v46
  %v222 = vunpack.c.l.b16 %v47
  %v223 = vunpack.c.h.b16 %v47
  %v224 = vunpack.c.l.b16 %v48
  %v225 = vunpack.c.h.b16 %v48
  %v226 = vunpack.c.l.b16 %v49
  %v227 = vunpack.c.h.b16 %v49
  %v228 = vunpack.c.l.b16 %v50
  %v229 = vunpack.c.h.b16 %v50
  %v230 = vunpack.c.l.b16 %v51
  %v231 = vunpack.c.l.b16 %v52
  %v232 = vunpack.c.h.b16 %v52
  %v233 = vunpack.c.l.b16 %v53
  %v234 = vunpack.c.h.b16 %v53
  %v235 = vunpack.c.l.b16 %v54
  %v236 = vunpack.c.h.b16 %v54
  %v237 = vunpack.c.l.b16 %v55
  %v238 = vunpack.c.h.b16 %v55
  %v239 = vunpack.c.l.b16 %v56
  %v240 = vunpack.c.h.b16 %v56
  %v241 = vunpack.c.l.b16 %v57
  %v242 = vunpack.c.h.b16 %v57
  %v243 = vunpack.c.l.b16 %v58
  %v244 = vpack.c.b16 %v231, %v218
  %v245 = vpack.c.b16 %v232, %v219
  %v246 = vpack.c.b16 %v233, %v220
  %v247 = vpack.c.b16 %v234, %v221
  %v248 = vpack.c.b16 %v235, %v222
  %v249 = vpack.c.b16 %v236, %v223
  %v250 = vpack.c.b16 %v237, %v224
  %v251 = vpack.c.b16 %v238, %v225
  %v252 = vpack.c.b16 %v239, %v226
  %v253 = vpack.c.b16 %v240, %v227
  %v254 = vpack.c.b16 %v241, %v228
  %v255 = vpack.c.b16 %v242, %v229
  %v256 = vpack.c.b16 %v243, %v230
  %v283 = vunpack.c.l.b16 %v60
  %v284 = vunpack.c.h.b16 %v60
  %v285 = vunpack.c.l.b16 %v61
  %v286 = vunpack.c.h.b16 %v61
  %v287 = vunpack.c.l.b16 %v62
  %v288 = vunpack.c.h.b16 %v62
  %v289 = vunpack.c.l.b16 %v63
  %v290 = vunpack.c.h.b16 %v63
  %v291 = vunpack.c.l.b16 %v64
  %v292 = vunpack.c.h.b16 %v64
  %v293 = vunpack.c.l.b16 %v65
  %v294 = vunpack.c.h.b16 %v65
  %v295 = vunpack.c.l.b16 %v66
  %v296 = vunpack.c.l.b16 %v67
  %v297 = vunpack.c.h.b16 %v67
  %v298 = vunpack.c.l.b16 %v68
  %v299 = vunpack.c.h.b16 %v68
  %v300 = vunpack.c.l.b16 %v69
  %v301 = vunpack.c.h.b16 %v69
  %v302 = vunpack.c.l.b16 %v70
  %v303 = vunpack.c.h.b16 %v70
  %v304 = vunpack.c.l.b16 %v71
  %v305 = vunpack.c.h.b16 %v71
  %v306 = vunpack.c.l.b16 %v72
  %v307 = vunpack.c.h.b16 %v72
  %v308 = vunpack.c.l.b16 %v73
  %v309 = vpack.c.b16 %v296, %v283
  %v310 = vpack.c.b16 %v297, %v284
  %v311 = vpack.c.b16 %v298, %v285
  %v312 = vpack.c.b16 %v299, %v286
  %v313 = vpack.c.b16 %v300, %v287
  %v314 = vpack.c.b16 %v301, %v288
  %v315 = vpack.c.b16 %v302, %v289
  %v316 = vpack.c.b16 %v303, %v290
  %v317 = vpack.c.b16 %v304, %v291
  %v318 = vpack.c.b16 %v305, %v292
  %v319 = vpack.c.b16 %v306, %v293
  %v320 = vpack.c.b16 %v307, %v294
  %v321 = vpack.c.b16 %v308, %v295
  %v334 = vld [vmem:[%s1] sm:$0xf]
  %v335 = vld [vmem:[%s1 + $0x4] sm:$0xf]
  %v336 = vld [vmem:[%s1 + $0x8] sm:$0xf]
  %v337 = vld [vmem:[%s1 + $0xc] sm:$0xf]
  %v338 = vld [vmem:[%s1 + $0x10] sm:$0xf]
  %v339 = vld [vmem:[%s1 + $0x14] sm:$0xf]
  %v340 = vld [vmem:[%s1 + $0x18] sm:$0xf]
  %v341 = vld [vmem:[%s1 + $0x1c] sm:$0xf]
  %v342 = vld [vmem:[%s1 + $0x20] sm:$0xf]
  %v343 = vld [vmem:[%s1 + $0x24] sm:$0xf]
  %v344 = vld [vmem:[%s1 + $0x28] sm:$0xf]
  %v345 = vld [vmem:[%s1 + $0x2c] sm:$0xf]
  %v346 = vld [vmem:[%s1 + $0x30] sm:$0xf]
  %v347 = vld [vmem:[%s1 + $0x34] sm:$0xf]
  %v348 = vld [vmem:[%s1 + $0x38] sm:$0xf]
  %v349 = vld [vmem:[%s1 + $0x3c] sm:$0xf]
  %v350 = vld [vmem:[%s1 + $0x40] sm:$0xf]
  %v351 = vld [vmem:[%s1 + $0x44] sm:$0xf]
  %v352 = vld [vmem:[%s1 + $0x48] sm:$0xf]
  %v353 = vld [vmem:[%s1 + $0x4c] sm:$0xf]
  %v354 = vld [vmem:[%s1 + $0x50] sm:$0xf]
  %v355 = vld [vmem:[%s1 + $0x54] sm:$0xf]
  %v356 = vld [vmem:[%s1 + $0x58] sm:$0xf]
  %v357 = vld [vmem:[%s1 + $0x5c] sm:$0xf]
  %v358 = vld [vmem:[%s1 + $0x60] sm:$0xf]
  %v359 = vld [vmem:[%s1 + $0x64] sm:$0xf]
  %v360 = vld [vmem:[%s1 + $0x68] sm:$0xf]
  %v361 = vld [vmem:[%s1 + $0x6c] sm:$0xf]
  %v362 = vld [vmem:[%s1 + $0x70] sm:$0xf]
  %v363 = vld [vmem:[%s1 + $0x74] sm:$0xf]
  %v364 = vld [vmem:[%s1 + $0x78] sm:$0xf]
  %v365 = vld [vmem:[%s1 + $0x7c] sm:$0xf]
  %v366 = vld [vmem:[%s1 + $0x80] sm:$0xf]
  %v367 = vld [vmem:[%s1 + $0x84] sm:$0xf]
  %v368 = vld [vmem:[%s1 + $0x88] sm:$0xf]
  %v369 = vld [vmem:[%s1 + $0x8c] sm:$0xf]
  %v370 = vld [vmem:[%s1 + $0x90] sm:$0xf]
  %v371 = vld [vmem:[%s1 + $0x94] sm:$0xf]
  %v372 = vld [vmem:[%s1 + $0x98] sm:$0xf]
  %v373 = vld [vmem:[%s1 + $0x9c] sm:$0xf]
  %v374 = vld [vmem:[%s1 + $0xa0] sm:$0xf]
  %v375 = vld [vmem:[%s1 + $0xa4] sm:$0xf]
  %v376 = vld [vmem:[%s1 + $0xa8] sm:$0xf]
  %v377 = vld [vmem:[%s1 + $0xac] sm:$0xf]
  %v378 = vld [vmem:[%s1 + $0xb0] sm:$0xf]
  %v379 = vld [vmem:[%s1 + $0xb4] sm:$0xf]
  %v380 = vld [vmem:[%s1 + $0xb8] sm:$0xf]
  %v381 = vld [vmem:[%s1 + $0xbc] sm:$0xf]
  %v382 = vld [vmem:[%s1 + $0xc0] sm:$0xf]
  %v383 = vld [vmem:[%s1 + $0xc4] sm:$0xf]
  %v384 = vld [vmem:[%s1 + $0xc8] sm:$0xf]
  %v385 = vld [vmem:[%s1 + $0xcc] sm:$0xf]
  %v386 = vld [vmem:[%s1 + $0xd0] sm:$0xf]
  %v387 = vld [vmem:[%s1 + $0xd4] sm:$0xf]
  %v388 = vld [vmem:[%s1 + $0xd8] sm:$0xf]
  %v389 = vld [vmem:[%s1 + $0xdc] sm:$0xf]
  %v390 = vld [vmem:[%s1 + $0xe0] sm:$0xf]
  %v391 = vld [vmem:[%s1 + $0xe4] sm:$0xf]
  %v392 = vld [vmem:[%s1 + $0xe8] sm:$0xf]
  %v393 = vld [vmem:[%s1 + $0xec] sm:$0xf]
  %v394 = vld [vmem:[%s1 + $0xf0] sm:$0xf]
  %v395 = vld [vmem:[%s1 + $0xf4] sm:$0xf]
  %v396 = vld [vmem:[%s1 + $0xf8] sm:$0xf]
  %v397 = vld [vmem:[%s1 + $0xfc] sm:$0xf]
  %v398 = vld [vmem:[%s1 + $0x100] sm:$0xf]
  %v399 = vld [vmem:[%s1 + $0x104] sm:$0xf]
  %v400 = vld [vmem:[%s1 + $0x108] sm:$0xf]
  %v401 = vld [vmem:[%s1 + $0x10c] sm:$0xf]
  %v402 = vld [vmem:[%s1 + $0x110] sm:$0xf]
  %v403 = vld [vmem:[%s1 + $0x114] sm:$0xf]
  %v404 = vld [vmem:[%s1 + $0x118] sm:$0xf]
  %v405 = vld [vmem:[%s1 + $0x11c] sm:$0xf]
  %v406 = vld [vmem:[%s1 + $0x120] sm:$0xf]
  %v407 = vld [vmem:[%s1 + $0x124] sm:$0xf]
  %v408 = vld [vmem:[%s1 + $0x128] sm:$0xf]
  %v409 = vld [vmem:[%s1 + $0x12c] sm:$0xf]
  %v410 = vld [vmem:[%s1 + $0x130] sm:$0xf]
  %v411 = vld [vmem:[%s1 + $0x134] sm:$0xf]
  %v412 = vld [vmem:[%s1 + $0x138] sm:$0xf]
  %v413 = vld [vmem:[%s1 + $0x13c] sm:$0xf]
  %v414 = vld [vmem:[%s1 + $0x140] sm:$0xf]
  %v415 = vld [vmem:[%s1 + $0x144] sm:$0xf]
  %v416 = vld [vmem:[%s1 + $0x148] sm:$0xf]
  %v417 = vld [vmem:[%s1 + $0x14c] sm:$0xf]
  %v418 = vld [vmem:[%s1 + $0x150] sm:$0xf]
  %v419 = vld [vmem:[%s1 + $0x154] sm:$0xf]
  %v420 = vld [vmem:[%s1 + $0x158] sm:$0xf]
  %v421 = vld [vmem:[%s1 + $0x15c] sm:$0xf]
  %v422 = vld [vmem:[%s1 + $0x160] sm:$0xf]
  %v423 = vld [vmem:[%s1 + $0x164] sm:$0xf]
  %v424 = vld [vmem:[%s1 + $0x168] sm:$0xf]
  %v425 = vld [vmem:[%s1 + $0x16c] sm:$0xf]
  %v426 = vld [vmem:[%s1 + $0x170] sm:$0xf]
  %v427 = vld [vmem:[%s1 + $0x174] sm:$0xf]
  %v428 = vld [vmem:[%s1 + $0x178] sm:$0xf]
  %v429 = vld [vmem:[%s1 + $0x17c] sm:$0xf]
  %v430 = vld [vmem:[%s1 + $0x180] sm:$0xf]
  %v431 = vld [vmem:[%s1 + $0x184] sm:$0xf]
  %v432 = vld [vmem:[%s1 + $0x188] sm:$0xf]
  %v433 = vld [vmem:[%s1 + $0x18c] sm:$0xf]
  %v434 = vld [vmem:[%s1 + $0x190] sm:$0xf]
  %v435 = vld [vmem:[%s1 + $0x194] sm:$0xf]
  %v436 = vld [vmem:[%s1 + $0x198] sm:$0xf]
  %v437 = vld [vmem:[%s1 + $0x19c] sm:$0xf]
  %v438 = vld [vmem:[%s1 + $0x1a0] sm:$0xf]
  %v439 = vld [vmem:[%s1 + $0x1a4] sm:$0xf]
  %v440 = vld [vmem:[%s1 + $0x1a8] sm:$0xf]
  %v441 = vld [vmem:[%s1 + $0x1ac] sm:$0xf]
  %v442 = vld [vmem:[%s1 + $0x1b0] sm:$0xf]
  %v443 = vld [vmem:[%s1 + $0x1b4] sm:$0xf]
  %v444 = vld [vmem:[%s1 + $0x1b8] sm:$0xf]
  %v445 = vld [vmem:[%s1 + $0x1bc] sm:$0xf]
  %v446 = vld [vmem:[%s1 + $0x1c0] sm:$0xf]
  %v447 = vld [vmem:[%s1 + $0x1c4] sm:$0xf]
  %v448 = vld [vmem:[%s1 + $0x1c8] sm:$0xf]
  %v449 = vld [vmem:[%s1 + $0x1cc] sm:$0xf]
  %v450 = vld [vmem:[%s1 + $0x1d0] sm:$0xf]
  %v451 = vld [vmem:[%s1 + $0x1d4] sm:$0xf]
  %v452 = vld [vmem:[%s1 + $0x1d8] sm:$0xf]
  %v453 = vld [vmem:[%s1 + $0x1dc] sm:$0xf]
  %v454 = vld [vmem:[%s1 + $0x1e0] sm:$0xf]
  %v455 = vld [vmem:[%s1 + $0x1e4] sm:$0xf]
  %v456 = vld [vmem:[%s1 + $0x1e8] sm:$0xf]
  %v457 = vld [vmem:[%s1 + $0x1ec] sm:$0xf]
  %v458 = vld [vmem:[%s1 + $0x1f0] sm:$0xf]
  %v459 = vld [vmem:[%s1 + $0x1f4] sm:$0xf]
  %v460 = vld [vmem:[%s1 + $0x1f8] sm:$0xf]
  %v461 = vld [vmem:[%s1 + $0x1fc] sm:$0xf]
  %v462 = vld [vmem:[%s1 + $0x200] sm:$0xf]
  %v463 = vld [vmem:[%s1 + $0x204] sm:$0xf]
  %v464 = vld [vmem:[%s1 + $0x208] sm:$0xf]
  %v465 = vld [vmem:[%s1 + $0x20c] sm:$0xf]
  %v466 = vld [vmem:[%s1 + $0x210] sm:$0xf]
  %v467 = vld [vmem:[%s1 + $0x214] sm:$0xf]
  %v468 = vld [vmem:[%s1 + $0x218] sm:$0xf]
  %v469 = vld [vmem:[%s1 + $0x21c] sm:$0xf]
  %v470 = vld [vmem:[%s1 + $0x220] sm:$0xf]
  %v471 = vld [vmem:[%s1 + $0x224] sm:$0xf]
  %v472 = vld [vmem:[%s1 + $0x228] sm:$0xf]
  %v473 = vld [vmem:[%s1 + $0x22c] sm:$0xf]
  %v474 = vld [vmem:[%s1 + $0x230] sm:$0xf]
  %v475 = vld [vmem:[%s1 + $0x234] sm:$0xf]
  %v476 = vld [vmem:[%s1 + $0x238] sm:$0xf]
  %v477 = vld [vmem:[%s1 + $0x23c] sm:$0xf]
  %v478 = vld [vmem:[%s1 + $0x240] sm:$0xf]
  %v479 = vld [vmem:[%s1 + $0x244] sm:$0xf]
  %v480 = vld [vmem:[%s1 + $0x248] sm:$0xf]
  %v481 = vld [vmem:[%s1 + $0x24c] sm:$0xf]
  %v482 = vld [vmem:[%s1 + $0x250] sm:$0xf]
  %v483 = vld [vmem:[%s1 + $0x254] sm:$0xf]
  %v484 = vld [vmem:[%s1 + $0x258] sm:$0xf]
  %v485 = vld [vmem:[%s1 + $0x25c] sm:$0xf]
  %v486 = vld [vmem:[%s1 + $0x260] sm:$0xf]
  %v487 = vld [vmem:[%s1 + $0x264] sm:$0xf]
  %v488 = vld [vmem:[%s1 + $0x268] sm:$0xf]
  %v489 = vld [vmem:[%s1 + $0x26c] sm:$0xf]
  %v490 = vld [vmem:[%s1 + $0x270] sm:$0xf]
  %v491 = vld [vmem:[%s1 + $0x274] sm:$0xf]
  %v492 = vld [vmem:[%s1 + $0x278] sm:$0xf]
  %v493 = vld [vmem:[%s1 + $0x27c] sm:$0xf]
  %v494 = vld [vmem:[%s1 + $0x280] sm:$0xf]
  %v495 = vld [vmem:[%s1 + $0x284] sm:$0xf]
  %v496 = vld [vmem:[%s1 + $0x288] sm:$0xf]
  %v497 = vld [vmem:[%s1 + $0x28c] sm:$0xf]
  %v498 = vld [vmem:[%s1 + $0x290] sm:$0xf]
  %v499 = vld [vmem:[%s1 + $0x294] sm:$0xf]
  %v500 = vld [vmem:[%s1 + $0x298] sm:$0xf]
  %v501 = vld [vmem:[%s1 + $0x29c] sm:$0xf]
  %v502 = vld [vmem:[%s1 + $0x2a0] sm:$0xf]
  %v503 = vld [vmem:[%s1 + $0x2a4] sm:$0xf]
  %v504 = vld [vmem:[%s1 + $0x2a8] sm:$0xf]
  %v505 = vld [vmem:[%s1 + $0x2ac] sm:$0xf]
  %v506 = vld [vmem:[%s1 + $0x2b0] sm:$0xf]
  %v507 = vld [vmem:[%s1 + $0x2b4] sm:$0xf]
  %v508 = vld [vmem:[%s1 + $0x2b8] sm:$0xf]
  %v509 = vld [vmem:[%s1 + $0x2bc] sm:$0xf]
  %v510 = vld [vmem:[%s1 + $0x2c0] sm:$0xf]
  %v511 = vld [vmem:[%s1 + $0x2c4] sm:$0xf]
  %v512 = vld [vmem:[%s1 + $0x2c8] sm:$0xf]
  %v513 = vld [vmem:[%s1 + $0x2cc] sm:$0xf]
  %v514 = vld [vmem:[%s1 + $0x2d0] sm:$0xf]
  %v515 = vld [vmem:[%s1 + $0x2d4] sm:$0xf]
  %v516 = vld [vmem:[%s1 + $0x2d8] sm:$0xf]
  %v517 = vld [vmem:[%s1 + $0x2dc] sm:$0xf]
  %v518 = vld [vmem:[%s1 + $0x2e0] sm:$0xf]
  %v519 = vld [vmem:[%s1 + $0x2e4] sm:$0xf]
  %v520 = vld [vmem:[%s1 + $0x2e8] sm:$0xf]
  %v521 = vld [vmem:[%s1 + $0x2ec] sm:$0xf]
  %v522 = vld [vmem:[%s1 + $0x2f0] sm:$0xf]
  %v523 = vld [vmem:[%s1 + $0x2f4] sm:$0xf]
  %v524 = vld [vmem:[%s1 + $0x2f8] sm:$0xf]
  %v525 = vld [vmem:[%s1 + $0x2fc] sm:$0xf]
  %v526 = vld [vmem:[%s1 + $0x300] sm:$0xf]
  %v527 = vld [vmem:[%s1 + $0x304] sm:$0xf]
  %v528 = vld [vmem:[%s1 + $0x308] sm:$0xf]
  %v529 = vld [vmem:[%s1 + $0x30c] sm:$0xf]
  %v530 = vld [vmem:[%s1 + $0x310] sm:$0xf]
  %v531 = vld [vmem:[%s1 + $0x314] sm:$0xf]
  %v532 = vld [vmem:[%s1 + $0x318] sm:$0xf]
  %v533 = vld [vmem:[%s1 + $0x31c] sm:$0xf]
  %v534 = vld [vmem:[%s2] sm:$0x1]
  %v536 = vlaneseq
  %v537 = vshrl.u32 %v536, 7
  %v538 = vsub.s32 0, %v537
  %v539 = vrot.slane %v534, %v538
  %v741 = vunpack.c.l.b16 %v334
  %v742 = vunpack.c.l.b16 %v335
  %v743 = vunpack.c.l.b16 %v336
  %v744 = vunpack.c.l.b16 %v337
  %v745 = vunpack.c.l.b16 %v338
  %v746 = vunpack.c.l.b16 %v339
  %v747 = vunpack.c.l.b16 %v340
  %v748 = vunpack.c.l.b16 %v341
  %v749 = vunpack.c.l.b16 %v342
  %v750 = vunpack.c.l.b16 %v343
  %v751 = vunpack.c.l.b16 %v344
  %v752 = vunpack.c.l.b16 %v345
  %v753 = vunpack.c.l.b16 %v346
  %v754 = vunpack.c.l.b16 %v347
  %v755 = vunpack.c.l.b16 %v348
  %v756 = vunpack.c.l.b16 %v349
  %v757 = vunpack.c.l.b16 %v350
  %v758 = vunpack.c.l.b16 %v351
  %v759 = vunpack.c.l.b16 %v352
  %v760 = vunpack.c.l.b16 %v353
  %v761 = vunpack.c.l.b16 %v354
  %v762 = vunpack.c.l.b16 %v355
  %v763 = vunpack.c.l.b16 %v356
  %v764 = vunpack.c.l.b16 %v357
  %v765 = vunpack.c.l.b16 %v358
  %v766 = vunpack.c.l.b16 %v359
  %v767 = vunpack.c.l.b16 %v360
  %v768 = vunpack.c.l.b16 %v361
  %v769 = vunpack.c.l.b16 %v362
  %v770 = vunpack.c.l.b16 %v363
  %v771 = vunpack.c.l.b16 %v364
  %v772 = vunpack.c.l.b16 %v365
  %v773 = vunpack.c.l.b16 %v366
  %v774 = vunpack.c.l.b16 %v367
  %v775 = vunpack.c.l.b16 %v368
  %v776 = vunpack.c.l.b16 %v369
  %v777 = vunpack.c.l.b16 %v370
  %v778 = vunpack.c.l.b16 %v371
  %v779 = vunpack.c.l.b16 %v372
  %v780 = vunpack.c.l.b16 %v373
  %v781 = vunpack.c.l.b16 %v374
  %v782 = vunpack.c.l.b16 %v375
  %v783 = vunpack.c.l.b16 %v376
  %v784 = vunpack.c.l.b16 %v377
  %v785 = vunpack.c.l.b16 %v378
  %v786 = vunpack.c.l.b16 %v379
  %v787 = vunpack.c.l.b16 %v380
  %v788 = vunpack.c.l.b16 %v381
  %v789 = vunpack.c.l.b16 %v382
  %v790 = vunpack.c.l.b16 %v383
  %v791 = vunpack.c.l.b16 %v384
  %v792 = vunpack.c.l.b16 %v385
  %v793 = vunpack.c.l.b16 %v386
  %v794 = vunpack.c.l.b16 %v387
  %v795 = vunpack.c.l.b16 %v388
  %v796 = vunpack.c.l.b16 %v389
  %v797 = vunpack.c.l.b16 %v390
  %v798 = vunpack.c.l.b16 %v391
  %v799 = vunpack.c.l.b16 %v392
  %v800 = vunpack.c.l.b16 %v393
  %v801 = vunpack.c.l.b16 %v394
  %v802 = vunpack.c.l.b16 %v395
  %v803 = vunpack.c.l.b16 %v396
  %v804 = vunpack.c.l.b16 %v397
  %v805 = vunpack.c.l.b16 %v398
  %v806 = vunpack.c.l.b16 %v399
  %v807 = vunpack.c.l.b16 %v400
  %v808 = vunpack.c.l.b16 %v401
  %v809 = vunpack.c.l.b16 %v402
  %v810 = vunpack.c.l.b16 %v403
  %v811 = vunpack.c.l.b16 %v404
  %v812 = vunpack.c.l.b16 %v405
  %v813 = vunpack.c.l.b16 %v406
  %v814 = vunpack.c.l.b16 %v407
  %v815 = vunpack.c.l.b16 %v408
  %v816 = vunpack.c.l.b16 %v409
  %v817 = vunpack.c.l.b16 %v410
  %v818 = vunpack.c.l.b16 %v411
  %v819 = vunpack.c.l.b16 %v412
  %v820 = vunpack.c.l.b16 %v413
  %v821 = vunpack.c.l.b16 %v414
  %v822 = vunpack.c.l.b16 %v415
  %v823 = vunpack.c.l.b16 %v416
  %v824 = vunpack.c.l.b16 %v417
  %v825 = vunpack.c.l.b16 %v418
  %v826 = vunpack.c.l.b16 %v419
  %v827 = vunpack.c.l.b16 %v420
  %v828 = vunpack.c.l.b16 %v421
  %v829 = vunpack.c.l.b16 %v422
  %v830 = vunpack.c.l.b16 %v423
  %v831 = vunpack.c.l.b16 %v424
  %v832 = vunpack.c.l.b16 %v425
  %v833 = vunpack.c.l.b16 %v426
  %v834 = vunpack.c.l.b16 %v427
  %v835 = vunpack.c.l.b16 %v428
  %v836 = vunpack.c.l.b16 %v429
  %v837 = vunpack.c.l.b16 %v430
  %v838 = vunpack.c.l.b16 %v431
  %v839 = vunpack.c.l.b16 %v432
  %v840 = vunpack.c.l.b16 %v433
  %v841 = vunpack.c.l.b16 %v434
  %v842 = vunpack.c.l.b16 %v435
  %v843 = vunpack.c.l.b16 %v436
  %v844 = vunpack.c.l.b16 %v437
  %v845 = vunpack.c.l.b16 %v438
  %v846 = vunpack.c.l.b16 %v439
  %v847 = vunpack.c.l.b16 %v440
  %v848 = vunpack.c.l.b16 %v441
  %v849 = vunpack.c.l.b16 %v442
  %v850 = vunpack.c.l.b16 %v443
  %v851 = vunpack.c.l.b16 %v444
  %v852 = vunpack.c.l.b16 %v445
  %v853 = vunpack.c.l.b16 %v446
  %v854 = vunpack.c.l.b16 %v447
  %v855 = vunpack.c.l.b16 %v448
  %v856 = vunpack.c.l.b16 %v449
  %v857 = vunpack.c.l.b16 %v450
  %v858 = vunpack.c.l.b16 %v451
  %v859 = vunpack.c.l.b16 %v452
  %v860 = vunpack.c.l.b16 %v453
  %v861 = vunpack.c.l.b16 %v454
  %v862 = vunpack.c.l.b16 %v455
  %v863 = vunpack.c.l.b16 %v456
  %v864 = vunpack.c.l.b16 %v457
  %v865 = vunpack.c.l.b16 %v458
  %v866 = vunpack.c.l.b16 %v459
  %v867 = vunpack.c.l.b16 %v460
  %v868 = vunpack.c.l.b16 %v461
  %v869 = vunpack.c.l.b16 %v462
  %v870 = vunpack.c.l.b16 %v463
  %v871 = vunpack.c.l.b16 %v464
  %v872 = vunpack.c.l.b16 %v465
  %v873 = vunpack.c.l.b16 %v466
  %v874 = vunpack.c.l.b16 %v467
  %v875 = vunpack.c.l.b16 %v468
  %v876 = vunpack.c.l.b16 %v469
  %v877 = vunpack.c.l.b16 %v470
  %v878 = vunpack.c.l.b16 %v471
  %v879 = vunpack.c.l.b16 %v472
  %v880 = vunpack.c.l.b16 %v473
  %v881 = vunpack.c.l.b16 %v474
  %v882 = vunpack.c.l.b16 %v475
  %v883 = vunpack.c.l.b16 %v476
  %v884 = vunpack.c.l.b16 %v477
  %v885 = vunpack.c.l.b16 %v478
  %v886 = vunpack.c.l.b16 %v479
  %v887 = vunpack.c.l.b16 %v480
  %v888 = vunpack.c.l.b16 %v481
  %v889 = vunpack.c.l.b16 %v482
  %v890 = vunpack.c.l.b16 %v483
  %v891 = vunpack.c.l.b16 %v484
  %v892 = vunpack.c.l.b16 %v485
  %v893 = vunpack.c.l.b16 %v486
  %v894 = vunpack.c.l.b16 %v487
  %v895 = vunpack.c.l.b16 %v488
  %v896 = vunpack.c.l.b16 %v489
  %v897 = vunpack.c.l.b16 %v490
  %v898 = vunpack.c.l.b16 %v491
  %v899 = vunpack.c.l.b16 %v492
  %v900 = vunpack.c.l.b16 %v493
  %v901 = vunpack.c.l.b16 %v494
  %v902 = vunpack.c.l.b16 %v495
  %v903 = vunpack.c.l.b16 %v496
  %v904 = vunpack.c.l.b16 %v497
  %v905 = vunpack.c.l.b16 %v498
  %v906 = vunpack.c.l.b16 %v499
  %v907 = vunpack.c.l.b16 %v500
  %v908 = vunpack.c.l.b16 %v501
  %v909 = vunpack.c.l.b16 %v502
  %v910 = vunpack.c.l.b16 %v503
  %v911 = vunpack.c.l.b16 %v504
  %v912 = vunpack.c.l.b16 %v505
  %v913 = vunpack.c.l.b16 %v506
  %v914 = vunpack.c.l.b16 %v507
  %v915 = vunpack.c.l.b16 %v508
  %v916 = vunpack.c.l.b16 %v509
  %v917 = vunpack.c.l.b16 %v510
  %v918 = vunpack.c.l.b16 %v511
  %v919 = vunpack.c.l.b16 %v512
  %v920 = vunpack.c.l.b16 %v513
  %v921 = vunpack.c.l.b16 %v514
  %v922 = vunpack.c.l.b16 %v515
  %v923 = vunpack.c.l.b16 %v516
  %v924 = vunpack.c.l.b16 %v517
  %v925 = vunpack.c.l.b16 %v518
  %v926 = vunpack.c.l.b16 %v519
  %v927 = vunpack.c.l.b16 %v520
  %v928 = vunpack.c.l.b16 %v521
  %v929 = vunpack.c.l.b16 %v522
  %v930 = vunpack.c.l.b16 %v523
  %v931 = vunpack.c.l.b16 %v524
  %v932 = vunpack.c.l.b16 %v525
  %v933 = vunpack.c.l.b16 %v526
  %v934 = vunpack.c.l.b16 %v527
  %v935 = vunpack.c.l.b16 %v528
  %v936 = vunpack.c.l.b16 %v529
  %v937 = vunpack.c.l.b16 %v530
  %v938 = vunpack.c.l.b16 %v531
  %v939 = vunpack.c.l.b16 %v532
  %v940 = vunpack.c.l.b16 %v533
  %v941 = vpack.c.b16 %v742, %v741
  %v942 = vpack.c.b16 %v744, %v743
  %v943 = vpack.c.b16 %v746, %v745
  %v944 = vpack.c.b16 %v748, %v747
  %v945 = vpack.c.b16 %v750, %v749
  %v946 = vpack.c.b16 %v752, %v751
  %v947 = vpack.c.b16 %v754, %v753
  %v948 = vpack.c.b16 %v756, %v755
  %v949 = vpack.c.b16 %v758, %v757
  %v950 = vpack.c.b16 %v760, %v759
  %v951 = vpack.c.b16 %v762, %v761
  %v952 = vpack.c.b16 %v764, %v763
  %v953 = vpack.c.b16 %v766, %v765
  %v954 = vpack.c.b16 %v768, %v767
  %v955 = vpack.c.b16 %v770, %v769
  %v956 = vpack.c.b16 %v772, %v771
  %v957 = vpack.c.b16 %v774, %v773
  %v958 = vpack.c.b16 %v776, %v775
  %v959 = vpack.c.b16 %v778, %v777
  %v960 = vpack.c.b16 %v780, %v779
  %v961 = vpack.c.b16 %v782, %v781
  %v962 = vpack.c.b16 %v784, %v783
  %v963 = vpack.c.b16 %v786, %v785
  %v964 = vpack.c.b16 %v788, %v787
  %v965 = vpack.c.b16 %v790, %v789
  %v966 = vpack.c.b16 %v792, %v791
  %v967 = vpack.c.b16 %v794, %v793
  %v968 = vpack.c.b16 %v796, %v795
  %v969 = vpack.c.b16 %v798, %v797
  %v970 = vpack.c.b16 %v800, %v799
  %v971 = vpack.c.b16 %v802, %v801
  %v972 = vpack.c.b16 %v804, %v803
  %v973 = vpack.c.b16 %v806, %v805
  %v974 = vpack.c.b16 %v808, %v807
  %v975 = vpack.c.b16 %v810, %v809
  %v976 = vpack.c.b16 %v812, %v811
  %v977 = vpack.c.b16 %v814, %v813
  %v978 = vpack.c.b16 %v816, %v815
  %v979 = vpack.c.b16 %v818, %v817
  %v980 = vpack.c.b16 %v820, %v819
  %v981 = vpack.c.b16 %v822, %v821
  %v982 = vpack.c.b16 %v824, %v823
  %v983 = vpack.c.b16 %v826, %v825
  %v984 = vpack.c.b16 %v828, %v827
  %v985 = vpack.c.b16 %v830, %v829
  %v986 = vpack.c.b16 %v832, %v831
  %v987 = vpack.c.b16 %v834, %v833
  %v988 = vpack.c.b16 %v836, %v835
  %v989 = vpack.c.b16 %v838, %v837
  %v990 = vpack.c.b16 %v840, %v839
  %v991 = vpack.c.b16 %v842, %v841
  %v992 = vpack.c.b16 %v844, %v843
  %v993 = vpack.c.b16 %v846, %v845
  %v994 = vpack.c.b16 %v848, %v847
  %v995 = vpack.c.b16 %v850, %v849
  %v996 = vpack.c.b16 %v852, %v851
  %v997 = vpack.c.b16 %v854, %v853
  %v998 = vpack.c.b16 %v856, %v855
  %v999 = vpack.c.b16 %v858, %v857
  %v1000 = vpack.c.b16 %v860, %v859
  %v1001 = vpack.c.b16 %v862, %v861
  %v1002 = vpack.c.b16 %v864, %v863
  %v1003 = vpack.c.b16 %v866, %v865
  %v1004 = vpack.c.b16 %v868, %v867
  %v1005 = vpack.c.b16 %v870, %v869
  %v1006 = vpack.c.b16 %v872, %v871
  %v1007 = vpack.c.b16 %v874, %v873
  %v1008 = vpack.c.b16 %v876, %v875
  %v1009 = vpack.c.b16 %v878, %v877
  %v1010 = vpack.c.b16 %v880, %v879
  %v1011 = vpack.c.b16 %v882, %v881
  %v1012 = vpack.c.b16 %v884, %v883
  %v1013 = vpack.c.b16 %v886, %v885
  %v1014 = vpack.c.b16 %v888, %v887
  %v1015 = vpack.c.b16 %v890, %v889
  %v1016 = vpack.c.b16 %v892, %v891
  %v1017 = vpack.c.b16 %v894, %v893
  %v1018 = vpack.c.b16 %v896, %v895
  %v1019 = vpack.c.b16 %v898, %v897
  %v1020 = vpack.c.b16 %v900, %v899
  %v1021 = vpack.c.b16 %v902, %v901
  %v1022 = vpack.c.b16 %v904, %v903
  %v1023 = vpack.c.b16 %v906, %v905
  %v1024 = vpack.c.b16 %v908, %v907
  %v1025 = vpack.c.b16 %v910, %v909
  %v1026 = vpack.c.b16 %v912, %v911
  %v1027 = vpack.c.b16 %v914, %v913
  %v1028 = vpack.c.b16 %v916, %v915
  %v1029 = vpack.c.b16 %v918, %v917
  %v1030 = vpack.c.b16 %v920, %v919
  %v1031 = vpack.c.b16 %v922, %v921
  %v1032 = vpack.c.b16 %v924, %v923
  %v1033 = vpack.c.b16 %v926, %v925
  %v1034 = vpack.c.b16 %v928, %v927
  %v1035 = vpack.c.b16 %v930, %v929
  %v1036 = vpack.c.b16 %v932, %v931
  %v1037 = vpack.c.b16 %v934, %v933
  %v1038 = vpack.c.b16 %v936, %v935
  %v1039 = vpack.c.b16 %v938, %v937
  %v1040 = vpack.c.b16 %v940, %v939
  %vm1141 = vcmask 523264
  %v1143 = vsel %vm1141, %v126, 0
  %v1146 = vsel %vm1141, %v191, 0
  %v1149 = vsel %vm1141, %v256, 0
  %v1152 = vsel %vm1141, %v321, 0
  %1154 = vmatprep.subr.bf16.mxu0 0
  %1155 = vmatpush1.bf16.msra.mxu0 %v941
  %1156 = vmatprep.subr.bf16.mxu0 0
  %1157 = vmatpush1.bf16.msra.mxu0 %v942
  %1158 = vmatprep.subr.bf16.mxu0 0
  %1159 = vmatpush1.bf16.msra.mxu0 %v943
  %1160 = vmatprep.subr.bf16.mxu0 0
  %1161 = vmatpush1.bf16.msra.mxu0 %v944
  %1162 = vmatprep.subr.bf16.mxu0 0
  %1163 = vmatpush1.bf16.msra.mxu0 %v945
  %1164 = vmatprep.subr.bf16.mxu0 0
  %1165 = vmatpush1.bf16.msra.mxu0 %v946
  %1166 = vmatprep.subr.bf16.mxu0 0
  %1167 = vmatpush1.bf16.msra.mxu0 %v947
  %1168 = vmatprep.subr.bf16.mxu0 0
  %1169 = vmatpush1.bf16.msra.mxu0 %v948
  %1170 = vmatprep.subr.bf16.mxu0 0
  %1171 = vmatpush1.bf16.msra.mxu0 %v949
  %1172 = vmatprep.subr.bf16.mxu0 0
  %1173 = vmatpush1.bf16.msra.mxu0 %v950
  %1174 = vmatprep.subr.bf16.mxu0 0
  %1175 = vmatpush1.bf16.msra.mxu0 %v951
  %1176 = vmatprep.subr.bf16.mxu0 0
  %1177 = vmatpush1.bf16.msra.mxu0 %v952
  %1178 = vmatprep.subr.bf16.mxu0 0
  %1179 = vmatpush1.bf16.msra.mxu0 %v953
  %1180 = vmatprep.subr.bf16.mxu0 0
  %1181 = vmatpush1.bf16.msra.mxu0 %v954
  %1182 = vmatprep.subr.bf16.mxu0 0
  %1183 = vmatpush1.bf16.msra.mxu0 %v955
  %1184 = vmatprep.subr.bf16.mxu0 0
  %1185 = vmatpush1.bf16.msra.mxu0 %v956
  %1186 = vmatprep.mubr.bf16.mxu0 %v115
  %1187 = vmatmul.mubr.bf16.gmra.mrb[0].mxu0 %v114
  %v1188 = vpop.f32.mrb[0].mxu0
  %v1189 = vadd.f32 %v539, %v1188
  %v1190 = vpop.f32.mrb[0].mxu0
  %v1191 = vpop.f32.mrb[0].mxu0
  %v1192 = vadd.f32 %v539, %v1191
  %v1193 = vpop.f32.mrb[0].mxu0
  %1194 = vmatprep.mubr.bf16.mxu0 %v180
  %1195 = vmatmul.mubr.bf16.gmra.mrb[0].mxu0 %v179
  %v1196 = vpop.f32.mrb[0].mxu0
  %v1197 = vadd.f32 %v539, %v1196
  %v1198 = vpop.f32.mrb[0].mxu0
  %v1199 = vpop.f32.mrb[0].mxu0
  %v1200 = vadd.f32 %v539, %v1199
  %v1201 = vpop.f32.mrb[0].mxu0
  %1202 = vmatprep.mubr.bf16.mxu0 %v245
  %1203 = vmatmul.mubr.bf16.gmra.mrb[0].mxu0 %v244
  %v1204 = vpop.f32.mrb[0].mxu0
  %v1205 = vadd.f32 %v539, %v1204
  %v1206 = vpop.f32.mrb[0].mxu0
  %v1207 = vpop.f32.mrb[0].mxu0
  %v1208 = vadd.f32 %v539, %v1207
  %v1209 = vpop.f32.mrb[0].mxu0
  %1210 = vmatprep.mubr.bf16.mxu0 %v310
  %1211 = vmatmul.mubr.bf16.gmra.mrb[0].mxu0 %v309
  %v1212 = vpop.f32.mrb[0].mxu0
  %v1213 = vadd.f32 %v539, %v1212
  %v1214 = vpop.f32.mrb[0].mxu0
  %v1215 = vpop.f32.mrb[0].mxu0
  %v1216 = vadd.f32 %v539, %v1215
  %v1217 = vpop.f32.mrb[0].mxu0
  %1218 = vdwg.mxu0
  %1219 = vmatprep.subr.bf16.mxu0 0
  %1220 = vmatpush1.bf16.msra.mxu0 %v957
  %1221 = vmatprep.subr.bf16.mxu0 0
  %1222 = vmatpush1.bf16.msra.mxu0 %v958
  %1223 = vmatprep.subr.bf16.mxu0 0
  %1224 = vmatpush1.bf16.msra.mxu0 %v959
  %1225 = vmatprep.subr.bf16.mxu0 0
  %1226 = vmatpush1.bf16.msra.mxu0 %v960
  %1227 = vmatprep.subr.bf16.mxu0 0
  %1228 = vmatpush1.bf16.msra.mxu0 %v961
  %1229 = vmatprep.subr.bf16.mxu0 0
  %1230 = vmatpush1.bf16.msra.mxu0 %v962
  %1231 = vmatprep.subr.bf16.mxu0 0
  %1232 = vmatpush1.bf16.msra.mxu0 %v963
  %1233 = vmatprep.subr.bf16.mxu0 0
  %1234 = vmatpush1.bf16.msra.mxu0 %v964
  %1235 = vmatprep.subr.bf16.mxu0 0
  %1236 = vmatpush1.bf16.msra.mxu0 %v965
  %1237 = vmatprep.subr.bf16.mxu0 0
  %1238 = vmatpush1.bf16.msra.mxu0 %v966
  %1239 = vmatprep.subr.bf16.mxu0 0
  %1240 = vmatpush1.bf16.msra.mxu0 %v967
  %1241 = vmatprep.subr.bf16.mxu0 0
  %1242 = vmatpush1.bf16.msra.mxu0 %v968
  %1243 = vmatprep.subr.bf16.mxu0 0
  %1244 = vmatpush1.bf16.msra.mxu0 %v969
  %1245 = vmatprep.subr.bf16.mxu0 0
  %1246 = vmatpush1.bf16.msra.mxu0 %v970
  %1247 = vmatprep.subr.bf16.mxu0 0
  %1248 = vmatpush1.bf16.msra.mxu0 %v971
  %1249 = vmatprep.subr.bf16.mxu0 0
  %1250 = vmatpush1.bf16.msra.mxu0 %v972
  %1251 = vmatprep.mubr.bf16.mxu0 %v117
  %1252 = vmatmul.mubr.bf16.gmra.mrb[0].mxu0 %v116
  %v1253 = vpop.f32.mrb[0].mxu0
  %v1254 = vadd.f32 %v1189, %v1253
  %v1255 = vpop.f32.mrb[0].mxu0
  %v1256 = vpop.f32.mrb[0].mxu0
  %v1257 = vadd.f32 %v1192, %v1256
  %v1258 = vpop.f32.mrb[0].mxu0
  %1259 = vmatprep.mubr.bf16.mxu0 %v182
  %1260 = vmatmul.mubr.bf16.gmra.mrb[0].mxu0 %v181
  %v1261 = vpop.f32.mrb[0].mxu0
  %v1262 = vadd.f32 %v1197, %v1261
  %v1263 = vpop.f32.mrb[0].mxu0
  %v1264 = vpop.f32.mrb[0].mxu0
  %v1265 = vadd.f32 %v1200, %v1264
  %v1266 = vpop.f32.mrb[0].mxu0
  %1267 = vmatprep.mubr.bf16.mxu0 %v247
  %1268 = vmatmul.mubr.bf16.gmra.mrb[0].mxu0 %v246
  %v1269 = vpop.f32.mrb[0].mxu0
  %v1270 = vadd.f32 %v1205, %v1269
  %v1271 = vpop.f32.mrb[0].mxu0
  %v1272 = vpop.f32.mrb[0].mxu0
  %v1273 = vadd.f32 %v1208, %v1272
  %v1274 = vpop.f32.mrb[0].mxu0
  %1275 = vmatprep.mubr.bf16.mxu0 %v312
  %1276 = vmatmul.mubr.bf16.gmra.mrb[0].mxu0 %v311
  %v1277 = vpop.f32.mrb[0].mxu0
  %v1278 = vadd.f32 %v1213, %v1277
  %v1279 = vpop.f32.mrb[0].mxu0
  %v1280 = vpop.f32.mrb[0].mxu0
  %v1281 = vadd.f32 %v1216, %v1280
  %v1282 = vpop.f32.mrb[0].mxu0
  %1283 = vdwg.mxu0
  %1284 = vmatprep.subr.bf16.mxu0 0
  %1285 = vmatpush1.bf16.msra.mxu0 %v973
  %1286 = vmatprep.subr.bf16.mxu0 0
  %1287 = vmatpush1.bf16.msra.mxu0 %v974
  %1288 = vmatprep.subr.bf16.mxu0 0
  %1289 = vmatpush1.bf16.msra.mxu0 %v975
  %1290 = vmatprep.subr.bf16.mxu0 0
  %1291 = vmatpush1.bf16.msra.mxu0 %v976
  %1292 = vmatprep.subr.bf16.mxu0 0
  %1293 = vmatpush1.bf16.msra.mxu0 %v977
  %1294 = vmatprep.subr.bf16.mxu0 0
  %1295 = vmatpush1.bf16.msra.mxu0 %v978
  %1296 = vmatprep.subr.bf16.mxu0 0
  %1297 = vmatpush1.bf16.msra.mxu0 %v979
  %1298 = vmatprep.subr.bf16.mxu0 0
  %1299 = vmatpush1.bf16.msra.mxu0 %v980
  %1300 = vmatprep.subr.bf16.mxu0 0
  %1301 = vmatpush1.bf16.msra.mxu0 %v981
  %1302 = vmatprep.subr.bf16.mxu0 0
  %1303 = vmatpush1.bf16.msra.mxu0 %v982
  %1304 = vmatprep.subr.bf16.mxu0 0
  %1305 = vmatpush1.bf16.msra.mxu0 %v983
  %1306 = vmatprep.subr.bf16.mxu0 0
  %1307 = vmatpush1.bf16.msra.mxu0 %v984
  %1308 = vmatprep.subr.bf16.mxu0 0
  %1309 = vmatpush1.bf16.msra.mxu0 %v985
  %1310 = vmatprep.subr.bf16.mxu0 0
  %1311 = vmatpush1.bf16.msra.mxu0 %v986
  %1312 = vmatprep.subr.bf16.mxu0 0
  %1313 = vmatpush1.bf16.msra.mxu0 %v987
  %1314 = vmatprep.subr.bf16.mxu0 0
  %1315 = vmatpush1.bf16.msra.mxu0 %v988
  %1316 = vmatprep.mubr.bf16.mxu0 %v119
  %1317 = vmatmul.mubr.bf16.gmra.mrb[0].mxu0 %v118
  %v1318 = vpop.f32.mrb[0].mxu0
  %v1319 = vadd.f32 %v1254, %v1318
  %v1320 = vpop.f32.mrb[0].mxu0
  %v1321 = vpop.f32.mrb[0].mxu0
  %v1322 = vadd.f32 %v1257, %v1321
  %v1323 = vpop.f32.mrb[0].mxu0
  %1324 = vmatprep.mubr.bf16.mxu0 %v184
  %1325 = vmatmul.mubr.bf16.gmra.mrb[0].mxu0 %v183
  %v1326 = vpop.f32.mrb[0].mxu0
  %v1327 = vadd.f32 %v1262, %v1326
  %v1328 = vpop.f32.mrb[0].mxu0
  %v1329 = vpop.f32.mrb[0].mxu0
  %v1330 = vadd.f32 %v1265, %v1329
  %v1331 = vpop.f32.mrb[0].mxu0
  %1332 = vmatprep.mubr.bf16.mxu0 %v249
  %1333 = vmatmul.mubr.bf16.gmra.mrb[0].mxu0 %v248
  %v1334 = vpop.f32.mrb[0].mxu0
  %v1335 = vadd.f32 %v1270, %v1334
  %v1336 = vpop.f32.mrb[0].mxu0
  %v1337 = vpop.f32.mrb[0].mxu0
  %v1338 = vadd.f32 %v1273, %v1337
  %v1339 = vpop.f32.mrb[0].mxu0
  %1340 = vmatprep.mubr.bf16.mxu0 %v314
  %1341 = vmatmul.mubr.bf16.gmra.mrb[0].mxu0 %v313
  %v1342 = vpop.f32.mrb[0].mxu0
  %v1343 = vadd.f32 %v1278, %v1342
  %v1344 = vpop.f32.mrb[0].mxu0
  %v1345 = vpop.f32.mrb[0].mxu0
  %v1346 = vadd.f32 %v1281, %v1345
  %v1347 = vpop.f32.mrb[0].mxu0
  %1348 = vdwg.mxu0
  %1349 = vmatprep.subr.bf16.mxu0 0
  %1350 = vmatpush1.bf16.msra.mxu0 %v989
  %1351 = vmatprep.subr.bf16.mxu0 0
  %1352 = vmatpush1.bf16.msra.mxu0 %v990
  %1353 = vmatprep.subr.bf16.mxu0 0
  %1354 = vmatpush1.bf16.msra.mxu0 %v991
  %1355 = vmatprep.subr.bf16.mxu0 0
  %1356 = vmatpush1.bf16.msra.mxu0 %v992
  %1357 = vmatprep.subr.bf16.mxu0 0
  %1358 = vmatpush1.bf16.msra.mxu0 %v993
  %1359 = vmatprep.subr.bf16.mxu0 0
  %1360 = vmatpush1.bf16.msra.mxu0 %v994
  %1361 = vmatprep.subr.bf16.mxu0 0
  %1362 = vmatpush1.bf16.msra.mxu0 %v995
  %1363 = vmatprep.subr.bf16.mxu0 0
  %1364 = vmatpush1.bf16.msra.mxu0 %v996
  %1365 = vmatprep.subr.bf16.mxu0 0
  %1366 = vmatpush1.bf16.msra.mxu0 %v997
  %1367 = vmatprep.subr.bf16.mxu0 0
  %1368 = vmatpush1.bf16.msra.mxu0 %v998
  %1369 = vmatprep.subr.bf16.mxu0 0
  %1370 = vmatpush1.bf16.msra.mxu0 %v999
  %1371 = vmatprep.subr.bf16.mxu0 0
  %1372 = vmatpush1.bf16.msra.mxu0 %v1000
  %1373 = vmatprep.subr.bf16.mxu0 0
  %1374 = vmatpush1.bf16.msra.mxu0 %v1001
  %1375 = vmatprep.subr.bf16.mxu0 0
  %1376 = vmatpush1.bf16.msra.mxu0 %v1002
  %1377 = vmatprep.subr.bf16.mxu0 0
  %1378 = vmatpush1.bf16.msra.mxu0 %v1003
  %1379 = vmatprep.subr.bf16.mxu0 0
  %1380 = vmatpush1.bf16.msra.mxu0 %v1004
  %1381 = vmatprep.mubr.bf16.mxu0 %v121
  %1382 = vmatmul.mubr.bf16.gmra.mrb[0].mxu0 %v120
  %v1383 = vpop.f32.mrb[0].mxu0
  %v1384 = vadd.f32 %v1319, %v1383
  %v1385 = vpop.f32.mrb[0].mxu0
  %v1386 = vpop.f32.mrb[0].mxu0
  %v1387 = vadd.f32 %v1322, %v1386
  %v1388 = vpop.f32.mrb[0].mxu0
  %1389 = vmatprep.mubr.bf16.mxu0 %v186
  %1390 = vmatmul.mubr.bf16.gmra.mrb[0].mxu0 %v185
  %v1391 = vpop.f32.mrb[0].mxu0
  %v1392 = vadd.f32 %v1327, %v1391
  %v1393 = vpop.f32.mrb[0].mxu0
  %v1394 = vpop.f32.mrb[0].mxu0
  %v1395 = vadd.f32 %v1330, %v1394
  %v1396 = vpop.f32.mrb[0].mxu0
  %1397 = vmatprep.mubr.bf16.mxu0 %v251
  %1398 = vmatmul.mubr.bf16.gmra.mrb[0].mxu0 %v250
  %v1399 = vpop.f32.mrb[0].mxu0
  %v1400 = vadd.f32 %v1335, %v1399
  %v1401 = vpop.f32.mrb[0].mxu0
  %v1402 = vpop.f32.mrb[0].mxu0
  %v1403 = vadd.f32 %v1338, %v1402
  %v1404 = vpop.f32.mrb[0].mxu0
  %1405 = vmatprep.mubr.bf16.mxu0 %v316
  %1406 = vmatmul.mubr.bf16.gmra.mrb[0].mxu0 %v315
  %v1407 = vpop.f32.mrb[0].mxu0
  %v1408 = vadd.f32 %v1343, %v1407
  %v1409 = vpop.f32.mrb[0].mxu0
  %v1410 = vpop.f32.mrb[0].mxu0
  %v1411 = vadd.f32 %v1346, %v1410
  %v1412 = vpop.f32.mrb[0].mxu0
  %1413 = vdwg.mxu0
  %1414 = vmatprep.subr.bf16.mxu0 0
  %1415 = vmatpush1.bf16.msra.mxu0 %v1005
  %1416 = vmatprep.subr.bf16.mxu0 0
  %1417 = vmatpush1.bf16.msra.mxu0 %v1006
  %1418 = vmatprep.subr.bf16.mxu0 0
  %1419 = vmatpush1.bf16.msra.mxu0 %v1007
  %1420 = vmatprep.subr.bf16.mxu0 0
  %1421 = vmatpush1.bf16.msra.mxu0 %v1008
  %1422 = vmatprep.subr.bf16.mxu0 0
  %1423 = vmatpush1.bf16.msra.mxu0 %v1009
  %1424 = vmatprep.subr.bf16.mxu0 0
  %1425 = vmatpush1.bf16.msra.mxu0 %v1010
  %1426 = vmatprep.subr.bf16.mxu0 0
  %1427 = vmatpush1.bf16.msra.mxu0 %v1011
  %1428 = vmatprep.subr.bf16.mxu0 0
  %1429 = vmatpush1.bf16.msra.mxu0 %v1012
  %1430 = vmatprep.subr.bf16.mxu0 0
  %1431 = vmatpush1.bf16.msra.mxu0 %v1013
  %1432 = vmatprep.subr.bf16.mxu0 0
  %1433 = vmatpush1.bf16.msra.mxu0 %v1014
  %1434 = vmatprep.subr.bf16.mxu0 0
  %1435 = vmatpush1.bf16.msra.mxu0 %v1015
  %1436 = vmatprep.subr.bf16.mxu0 0
  %1437 = vmatpush1.bf16.msra.mxu0 %v1016
  %1438 = vmatprep.subr.bf16.mxu0 0
  %1439 = vmatpush1.bf16.msra.mxu0 %v1017
  %1440 = vmatprep.subr.bf16.mxu0 0
  %1441 = vmatpush1.bf16.msra.mxu0 %v1018
  %1442 = vmatprep.subr.bf16.mxu0 0
  %1443 = vmatpush1.bf16.msra.mxu0 %v1019
  %1444 = vmatprep.subr.bf16.mxu0 0
  %1445 = vmatpush1.bf16.msra.mxu0 %v1020
  %1446 = vmatprep.mubr.bf16.mxu0 %v123
  %1447 = vmatmul.mubr.bf16.gmra.mrb[0].mxu0 %v122
  %v1448 = vpop.f32.mrb[0].mxu0
  %v1449 = vadd.f32 %v1384, %v1448
  %v1450 = vpop.f32.mrb[0].mxu0
  %v1451 = vpop.f32.mrb[0].mxu0
  %v1452 = vadd.f32 %v1387, %v1451
  %v1453 = vpop.f32.mrb[0].mxu0
  %1454 = vmatprep.mubr.bf16.mxu0 %v188
  %1455 = vmatmul.mubr.bf16.gmra.mrb[0].mxu0 %v187
  %v1456 = vpop.f32.mrb[0].mxu0
  %v1457 = vadd.f32 %v1392, %v1456
  %v1458 = vpop.f32.mrb[0].mxu0
  %v1459 = vpop.f32.mrb[0].mxu0
  %v1460 = vadd.f32 %v1395, %v1459
  %v1461 = vpop.f32.mrb[0].mxu0
  %1462 = vmatprep.mubr.bf16.mxu0 %v253
  %1463 = vmatmul.mubr.bf16.gmra.mrb[0].mxu0 %v252
  %v1464 = vpop.f32.mrb[0].mxu0
  %v1465 = vadd.f32 %v1400, %v1464
  %v1466 = vpop.f32.mrb[0].mxu0
  %v1467 = vpop.f32.mrb[0].mxu0
  %v1468 = vadd.f32 %v1403, %v1467
  %v1469 = vpop.f32.mrb[0].mxu0
  %1470 = vmatprep.mubr.bf16.mxu0 %v318
  %1471 = vmatmul.mubr.bf16.gmra.mrb[0].mxu0 %v317
  %v1472 = vpop.f32.mrb[0].mxu0
  %v1473 = vadd.f32 %v1408, %v1472
  %v1474 = vpop.f32.mrb[0].mxu0
  %v1475 = vpop.f32.mrb[0].mxu0
  %v1476 = vadd.f32 %v1411, %v1475
  %v1477 = vpop.f32.mrb[0].mxu0
  %1478 = vdwg.mxu0
  %1479 = vmatprep.subr.bf16.mxu0 0
  %1480 = vmatpush1.bf16.msra.mxu0 %v1021
  %1481 = vmatprep.subr.bf16.mxu0 0
  %1482 = vmatpush1.bf16.msra.mxu0 %v1022
  %1483 = vmatprep.subr.bf16.mxu0 0
  %1484 = vmatpush1.bf16.msra.mxu0 %v1023
  %1485 = vmatprep.subr.bf16.mxu0 0
  %1486 = vmatpush1.bf16.msra.mxu0 %v1024
  %1487 = vmatprep.subr.bf16.mxu0 0
  %1488 = vmatpush1.bf16.msra.mxu0 %v1025
  %1489 = vmatprep.subr.bf16.mxu0 0
  %1490 = vmatpush1.bf16.msra.mxu0 %v1026
  %1491 = vmatprep.subr.bf16.mxu0 0
  %1492 = vmatpush1.bf16.msra.mxu0 %v1027
  %1493 = vmatprep.subr.bf16.mxu0 0
  %1494 = vmatpush1.bf16.msra.mxu0 %v1028
  %1495 = vmatprep.subr.bf16.mxu0 0
  %1496 = vmatpush1.bf16.msra.mxu0 %v1029
  %1497 = vmatprep.subr.bf16.mxu0 0
  %1498 = vmatpush1.bf16.msra.mxu0 %v1030
  %1499 = vmatprep.subr.bf16.mxu0 0
  %1500 = vmatpush1.bf16.msra.mxu0 %v1031
  %1501 = vmatprep.subr.bf16.mxu0 0
  %1502 = vmatpush1.bf16.msra.mxu0 %v1032
  %1503 = vmatprep.subr.bf16.mxu0 0
  %1504 = vmatpush1.bf16.msra.mxu0 %v1033
  %1505 = vmatprep.subr.bf16.mxu0 0
  %1506 = vmatpush1.bf16.msra.mxu0 %v1034
  %1507 = vmatprep.subr.bf16.mxu0 0
  %1508 = vmatpush1.bf16.msra.mxu0 %v1035
  %1509 = vmatprep.subr.bf16.mxu0 0
  %1510 = vmatpush1.bf16.msra.mxu0 %v1036
  %1511 = vmatprep.mubr.bf16.mxu0 %v125
  %1512 = vmatmul.mubr.bf16.gmra.mrb[0].mxu0 %v124
  %v1513 = vpop.f32.mrb[0].mxu0
  %v1514 = vadd.f32 %v1449, %v1513
  %v1515 = vpop.f32.mrb[0].mxu0
  %v1516 = vpop.f32.mrb[0].mxu0
  %v1517 = vadd.f32 %v1452, %v1516
  %v1518 = vpop.f32.mrb[0].mxu0
  %1519 = vmatprep.mubr.bf16.mxu0 %v190
  %1520 = vmatmul.mubr.bf16.gmra.mrb[0].mxu0 %v189
  %v1521 = vpop.f32.mrb[0].mxu0
  %v1522 = vadd.f32 %v1457, %v1521
  %v1523 = vpop.f32.mrb[0].mxu0
  %v1524 = vpop.f32.mrb[0].mxu0
  %v1525 = vadd.f32 %v1460, %v1524
  %v1526 = vpop.f32.mrb[0].mxu0
  %1527 = vmatprep.mubr.bf16.mxu0 %v255
  %1528 = vmatmul.mubr.bf16.gmra.mrb[0].mxu0 %v254
  %v1529 = vpop.f32.mrb[0].mxu0
  %v1530 = vadd.f32 %v1465, %v1529
  %v1531 = vpop.f32.mrb[0].mxu0
  %v1532 = vpop.f32.mrb[0].mxu0
  %v1533 = vadd.f32 %v1468, %v1532
  %v1534 = vpop.f32.mrb[0].mxu0
  %1535 = vmatprep.mubr.bf16.mxu0 %v320
  %1536 = vmatmul.mubr.bf16.gmra.mrb[0].mxu0 %v319
  %v1537 = vpop.f32.mrb[0].mxu0
  %v1538 = vadd.f32 %v1473, %v1537
  %v1539 = vpop.f32.mrb[0].mxu0
  %v1540 = vpop.f32.mrb[0].mxu0
  %v1541 = vadd.f32 %v1476, %v1540
  %v1542 = vpop.f32.mrb[0].mxu0
  %1543 = vdwg.mxu0
  %1544 = vmatprep.subr.bf16.mxu0 0
  %1545 = vmatpush1.bf16.msra.mxu0 %v1037
  %1546 = vmatprep.subr.bf16.mxu0 0
  %1547 = vmatpush1.bf16.msra.mxu0 %v1038
  %1548 = vmatprep.subr.bf16.mxu0 0
  %1549 = vmatpush1.bf16.msra.mxu0 %v1039
  %1550 = vmatprep.subr.bf16.mxu0 0
  %1551 = vmatpush1.bf16.msra.mxu0 %v1040
  %1552 = vmatprep.subr.bf16.mxu0 0
  %1553 = vmatpush1.bf16.msra.mxu0 0
  %1554 = vmatprep.subr.bf16.mxu0 0
  %1555 = vmatpush1.bf16.msra.mxu0 0
  %1556 = vmatprep.subr.bf16.mxu0 0
  %1557 = vmatpush1.bf16.msra.mxu0 0
  %1558 = vmatprep.subr.bf16.mxu0 0
  %1559 = vmatpush1.bf16.msra.mxu0 0
  %1560 = vmatprep.subr.bf16.mxu0 0
  %1561 = vmatpush1.bf16.msra.mxu0 0
  %1562 = vmatprep.subr.bf16.mxu0 0
  %1563 = vmatpush1.bf16.msra.mxu0 0
  %1564 = vmatprep.subr.bf16.mxu0 0
  %1565 = vmatpush1.bf16.msra.mxu0 0
  %1566 = vmatprep.subr.bf16.mxu0 0
  %1567 = vmatpush1.bf16.msra.mxu0 0
  %1568 = vmatprep.subr.bf16.mxu0 0
  %1569 = vmatpush1.bf16.msra.mxu0 0
  %1570 = vmatprep.subr.bf16.mxu0 0
  %1571 = vmatpush1.bf16.msra.mxu0 0
  %1572 = vmatprep.subr.bf16.mxu0 0
  %1573 = vmatpush1.bf16.msra.mxu0 0
  %1574 = vmatprep.subr.bf16.mxu0 0
  %1575 = vmatpush1.bf16.msra.mxu0 0
  %1576 = vmatprep.mubr.bf16.mxu0 0
  %1577 = vmatmul.mubr.bf16.gmra.mrb[0].mxu0 %v1143
  %v1578 = vpop.f32.mrb[0].mxu0
  %v1579 = vadd.f32 %v1514, %v1578
  %v1580 = vpop.f32.mrb[0].mxu0
  %v1581 = vpop.f32.mrb[0].mxu0
  %v1582 = vadd.f32 %v1517, %v1581
  %v1583 = vpop.f32.mrb[0].mxu0
  %1584 = vmatprep.mubr.bf16.mxu0 0
  %1585 = vmatmul.mubr.bf16.gmra.mrb[0].mxu0 %v1146
  %v1586 = vpop.f32.mrb[0].mxu0
  %v1587 = vadd.f32 %v1522, %v1586
  %v1588 = vpop.f32.mrb[0].mxu0
  %v1589 = vpop.f32.mrb[0].mxu0
  %v1590 = vadd.f32 %v1525, %v1589
  %v1591 = vpop.f32.mrb[0].mxu0
  %1592 = vmatprep.mubr.bf16.mxu0 0
  %1593 = vmatmul.mubr.bf16.gmra.mrb[0].mxu0 %v1149
  %v1594 = vpop.f32.mrb[0].mxu0
  %v1595 = vadd.f32 %v1530, %v1594
  %v1596 = vpop.f32.mrb[0].mxu0
  %v1597 = vpop.f32.mrb[0].mxu0
  %v1598 = vadd.f32 %v1533, %v1597
  %v1599 = vpop.f32.mrb[0].mxu0
  %1600 = vmatprep.mubr.bf16.mxu0 0
  %1601 = vmatmul.mubr.bf16.gmra.mrb[0].mxu0 %v1152
  %v1602 = vpop.f32.mrb[0].mxu0
  %v1603 = vadd.f32 %v1538, %v1602
  %v1604 = vpop.f32.mrb[0].mxu0
  %v1605 = vpop.f32.mrb[0].mxu0
  %v1606 = vadd.f32 %v1541, %v1605
  %v1607 = vpop.f32.mrb[0].mxu0
  %1608 = vdwg.mxu0
  %v1609 = vmax.f32 %v1579, 0.0
  %v1610 = vmax.f32 %v1582, 0.0
  %v1611 = vmax.f32 %v1587, 0.0
  %v1612 = vmax.f32 %v1590, 0.0
  %v1613 = vmax.f32 %v1595, 0.0
  %v1614 = vmax.f32 %v1598, 0.0
  %v1615 = vmax.f32 %v1603, 0.0
  %v1616 = vmax.f32 %v1606, 0.0
  %v1617 = vmax.f32 %v1609, %v1611
  %v1618 = vmax.f32 %v1610, %v1612
  %v1619 = vmax.f32 %v1613, %v1615
  %v1620 = vmax.f32 %v1614, %v1616
  %v1621 = vmax.f32 %v1617, %v1619
  %v1622 = vmax.f32 %v1618, %v1620
  %v1623 = vpack.c.bf16 %v1622, %v1621
  %v1625 = vunpack.c.l.b16 %v1623
  %v1626 = vunpack.c.h.b16 %v1623
  %v1627 = vpack.c.b16 %v1625, %v1625
  %v1628 = vpack.c.b16 %v1626, %v1626
  %1631 = vst [vmem:[%s3] sm:$0xf] %v1627
  %1632 = vst [vmem:[%s3 + $0x4] sm:$0xf] %v1628
  // Predicated region
  $region14: #{net_forward.6} parent=0 // pred_check
    _
  $region15: #{net_forward.6} parent=0 // pred_check_branch
    %1634 = sbr.rel (0) target = $region17
  $region16: #{net_forward.6} parent=0 // pred_region
    _
  $region17: #{net_forward.6} parent=0 // pred_fallthru
    _
  // Predicated region
  $region18: #{net_forward.6} parent=0 // pred_check
    _
  $region19: #{net_forward.6} parent=0 // pred_check_branch
    %1636 = sbr.rel (0) target = $region21
  $region20: #{net_forward.6} parent=0 // pred_region
    _
  $region21: #{net_forward.6} parent=0 // pred_fallthru
    _

// kernel: net_forward.7
$region0: #{net_forward.7}
  #allocation0 [shape = 'u32[]', space=smem, size = 0x4, offset = 0x4, fixed_abs, tag = 'smem constant byte address 0x4 - core index']
  #allocation1 [shape = 'u32[144,128]{1,0:T(1,128)}', space=vmem, size = 0x12000, scoped, tag = 'internal scratch']
  %s0 = inlined_call_operand.vmem [shape: bf16[16,512], index: 0, kind: input, shape index: {}]
  %s1 = inlined_call_operand.vmem [shape: bf16[512,512], index: 1, kind: input, shape index: {}]
  %s2 = inlined_call_operand.vmem [shape: f32[1,512], index: 2, kind: input, shape index: {}]
  %s3 = inlined_call_operand.vmem [shape: bf16[512,2], index: 3, kind: input, shape index: {}]
  %s4 = inlined_call_operand.vmem [shape: f32[1,2], index: 4, kind: input, shape index: {}]
  %s5 = inlined_call_operand.vmem [shape: f32[16,2], index: 5, kind: output, shape index: {}]
  %s6 = sld [smem:[#allocation0]]
  $region30: #{net_forward.7} parent=0
    _
  %s8 = ssub.s32 1, %s6
  %s9 = scalar_select 0, %s8, %s6
  // Predicated region
  $region2: #{net_forward.7} parent=0 // pred_check
    _
  $region3: #{net_forward.7} parent=0 // pred_check_branch
    %11 = sbr.rel (0) target = $region5
  $region4: #{net_forward.7} parent=0 // pred_region
    _
  $region5: #{net_forward.7} parent=0 // pred_fallthru
    _
  // Predicated region
  $region6: #{net_forward.7} parent=0 // pred_check
    _
  $region7: #{net_forward.7} parent=0 // pred_check_branch
    %13 = sbr.rel (0) target = $region9
  $region8: #{net_forward.7} parent=0 // pred_region
    _
  $region9: #{net_forward.7} parent=0 // pred_fallthru
    _
  // Predicated region
  $region10: #{net_forward.7} parent=0 // pred_check
    _
  $region11: #{net_forward.7} parent=0 // pred_check_branch
    %15 = sbr.rel (0) target = $region13
  $region12: #{net_forward.7} parent=0 // pred_region
    _
  $region13: #{net_forward.7} parent=0 // pred_fallthru
    _
  // Predicated region
  $region14: #{net_forward.7} parent=0 // pred_check
    _
  $region15: #{net_forward.7} parent=0 // pred_check_branch
    %17 = sbr.rel (0) target = $region17
  $region16: #{net_forward.7} parent=0 // pred_region
    _
  $region17: #{net_forward.7} parent=0 // pred_fallthru
    _
  // Predicated region
  $region18: #{net_forward.7} parent=0 // pred_check
    _
  $region19: #{net_forward.7} parent=0 // pred_check_branch
    %19 = sbr.rel (0) target = $region21
  $region20: #{net_forward.7} parent=0 // pred_region
    _
  $region21: #{net_forward.7} parent=0 // pred_fallthru
    _
  %v21 = vld [vmem:[%s0] sm:$0xff]
  %v22 = vld [vmem:[%s0 + $0x8] sm:$0xff]
  %v23 = vld [vmem:[%s0 + $0x10] sm:$0xff]
  %v24 = vld [vmem:[%s0 + $0x18] sm:$0xff]
  %v25 = vld [vmem:[%s1] sm:$0xff]
  %v26 = vld [vmem:[%s1 + $0x8] sm:$0xff]
  %v27 = vld [vmem:[%s1 + $0x10] sm:$0xff]
  %v28 = vld [vmem:[%s1 + $0x18] sm:$0xff]
  %v29 = vld [vmem:[%s1 + $0x20] sm:$0xff]
  %v30 = vld [vmem:[%s1 + $0x28] sm:$0xff]
  %v31 = vld [vmem:[%s1 + $0x30] sm:$0xff]
  %v32 = vld [vmem:[%s1 + $0x38] sm:$0xff]
  %v33 = vld [vmem:[%s1 + $0x40] sm:$0xff]
  %v34 = vld [vmem:[%s1 + $0x48] sm:$0xff]
  %v35 = vld [vmem:[%s1 + $0x50] sm:$0xff]
  %v36 = vld [vmem:[%s1 + $0x58] sm:$0xff]
  %v37 = vld [vmem:[%s1 + $0x60] sm:$0xff]
  %v38 = vld [vmem:[%s1 + $0x68] sm:$0xff]
  %v39 = vld [vmem:[%s1 + $0x70] sm:$0xff]
  %v40 = vld [vmem:[%s1 + $0x78] sm:$0xff]
  %v41 = vld [vmem:[%s1 + $0x80] sm:$0xff]
  %v42 = vld [vmem:[%s1 + $0x88] sm:$0xff]
  %v43 = vld [vmem:[%s1 + $0x90] sm:$0xff]
  %v44 = vld [vmem:[%s1 + $0x98] sm:$0xff]
  %v45 = vld [vmem:[%s1 + $0xa0] sm:$0xff]
  %v46 = vld [vmem:[%s1 + $0xa8] sm:$0xff]
  %v47 = vld [vmem:[%s1 + $0xb0] sm:$0xff]
  %v48 = vld [vmem:[%s1 + $0xb8] sm:$0xff]
  %v49 = vld [vmem:[%s1 + $0xc0] sm:$0xff]
  %v50 = vld [vmem:[%s1 + $0xc8] sm:$0xff]
  %v51 = vld [vmem:[%s1 + $0xd0] sm:$0xff]
  %v52 = vld [vmem:[%s1 + $0xd8] sm:$0xff]
  %v53 = vld [vmem:[%s1 + $0xe0] sm:$0xff]
  %v54 = vld [vmem:[%s1 + $0xe8] sm:$0xff]
  %v55 = vld [vmem:[%s1 + $0xf0] sm:$0xff]
  %v56 = vld [vmem:[%s1 + $0xf8] sm:$0xff]
  %v57 = vld [vmem:[%s1 + $0x100] sm:$0xff]
  %v58 = vld [vmem:[%s1 + $0x108] sm:$0xff]
  %v59 = vld [vmem:[%s1 + $0x110] sm:$0xff]
  %v60 = vld [vmem:[%s1 + $0x118] sm:$0xff]
  %v61 = vld [vmem:[%s1 + $0x120] sm:$0xff]
  %v62 = vld [vmem:[%s1 + $0x128] sm:$0xff]
  %v63 = vld [vmem:[%s1 + $0x130] sm:$0xff]
  %v64 = vld [vmem:[%s1 + $0x138] sm:$0xff]
  %v65 = vld [vmem:[%s1 + $0x140] sm:$0xff]
  %v66 = vld [vmem:[%s1 + $0x148] sm:$0xff]
  %v67 = vld [vmem:[%s1 + $0x150] sm:$0xff]
  %v68 = vld [vmem:[%s1 + $0x158] sm:$0xff]
  %v69 = vld [vmem:[%s1 + $0x160] sm:$0xff]
  %v70 = vld [vmem:[%s1 + $0x168] sm:$0xff]
  %v71 = vld [vmem:[%s1 + $0x170] sm:$0xff]
  %v72 = vld [vmem:[%s1 + $0x178] sm:$0xff]
  %v73 = vld [vmem:[%s1 + $0x180] sm:$0xff]
  %v74 = vld [vmem:[%s1 + $0x188] sm:$0xff]
  %v75 = vld [vmem:[%s1 + $0x190] sm:$0xff]
  %v76 = vld [vmem:[%s1 + $0x198] sm:$0xff]
  %v77 = vld [vmem:[%s1 + $0x1a0] sm:$0xff]
  %v78 = vld [vmem:[%s1 + $0x1a8] sm:$0xff]
  %v79 = vld [vmem:[%s1 + $0x1b0] sm:$0xff]
  %v80 = vld [vmem:[%s1 + $0x1b8] sm:$0xff]
  %v81 = vld [vmem:[%s1 + $0x1c0] sm:$0xff]
  %v82 = vld [vmem:[%s1 + $0x1c8] sm:$0xff]
  %v83 = vld [vmem:[%s1 + $0x1d0] sm:$0xff]
  %v84 = vld [vmem:[%s1 + $0x1d8] sm:$0xff]
  %v85 = vld [vmem:[%s1 + $0x1e0] sm:$0xff]
  %v86 = vld [vmem:[%s1 + $0x1e8] sm:$0xff]
  %v87 = vld [vmem:[%s1 + $0x1f0] sm:$0xff]
  %v88 = vld [vmem:[%s1 + $0x1f8] sm:$0xff]
  %v89 = vld [vmem:[%s1 + $0x200] sm:$0xff]
  %v90 = vld [vmem:[%s1 + $0x208] sm:$0xff]
  %v91 = vld [vmem:[%s1 + $0x210] sm:$0xff]
  %v92 = vld [vmem:[%s1 + $0x218] sm:$0xff]
  %v93 = vld [vmem:[%s1 + $0x220] sm:$0xff]
  %v94 = vld [vmem:[%s1 + $0x228] sm:$0xff]
  %v95 = vld [vmem:[%s1 + $0x230] sm:$0xff]
  %v96 = vld [vmem:[%s1 + $0x238] sm:$0xff]
  %v97 = vld [vmem:[%s1 + $0x240] sm:$0xff]
  %v98 = vld [vmem:[%s1 + $0x248] sm:$0xff]
  %v99 = vld [vmem:[%s1 + $0x250] sm:$0xff]
  %v100 = vld [vmem:[%s1 + $0x258] sm:$0xff]
  %v101 = vld [vmem:[%s1 + $0x260] sm:$0xff]
  %v102 = vld [vmem:[%s1 + $0x268] sm:$0xff]
  %v103 = vld [vmem:[%s1 + $0x270] sm:$0xff]
  %v104 = vld [vmem:[%s1 + $0x278] sm:$0xff]
  %v105 = vld [vmem:[%s1 + $0x280] sm:$0xff]
  %v106 = vld [vmem:[%s1 + $0x288] sm:$0xff]
  %v107 = vld [vmem:[%s1 + $0x290] sm:$0xff]
  %v108 = vld [vmem:[%s1 + $0x298] sm:$0xff]
  %v109 = vld [vmem:[%s1 + $0x2a0] sm:$0xff]
  %v110 = vld [vmem:[%s1 + $0x2a8] sm:$0xff]
  %v111 = vld [vmem:[%s1 + $0x2b0] sm:$0xff]
  %v112 = vld [vmem:[%s1 + $0x2b8] sm:$0xff]
  %v113 = vld [vmem:[%s1 + $0x2c0] sm:$0xff]
  %v114 = vld [vmem:[%s1 + $0x2c8] sm:$0xff]
  %v115 = vld [vmem:[%s1 + $0x2d0] sm:$0xff]
  %v116 = vld [vmem:[%s1 + $0x2d8] sm:$0xff]
  %v117 = vld [vmem:[%s1 + $0x2e0] sm:$0xff]
  %v118 = vld [vmem:[%s1 + $0x2e8] sm:$0xff]
  %v119 = vld [vmem:[%s1 + $0x2f0] sm:$0xff]
  %v120 = vld [vmem:[%s1 + $0x2f8] sm:$0xff]
  %v121 = vld [vmem:[%s1 + $0x300] sm:$0xff]
  %v122 = vld [vmem:[%s1 + $0x308] sm:$0xff]
  %v123 = vld [vmem:[%s1 + $0x310] sm:$0xff]
  %v124 = vld [vmem:[%s1 + $0x318] sm:$0xff]
  %v125 = vld [vmem:[%s1 + $0x320] sm:$0xff]
  %v126 = vld [vmem:[%s1 + $0x328] sm:$0xff]
  %v127 = vld [vmem:[%s1 + $0x330] sm:$0xff]
  %v128 = vld [vmem:[%s1 + $0x338] sm:$0xff]
  %v129 = vld [vmem:[%s1 + $0x340] sm:$0xff]
  %v130 = vld [vmem:[%s1 + $0x348] sm:$0xff]
  %v131 = vld [vmem:[%s1 + $0x350] sm:$0xff]
  %v132 = vld [vmem:[%s1 + $0x358] sm:$0xff]
  %v133 = vld [vmem:[%s1 + $0x360] sm:$0xff]
  %v134 = vld [vmem:[%s1 + $0x368] sm:$0xff]
  %v135 = vld [vmem:[%s1 + $0x370] sm:$0xff]
  %v136 = vld [vmem:[%s1 + $0x378] sm:$0xff]
  %v137 = vld [vmem:[%s1 + $0x380] sm:$0xff]
  %v138 = vld [vmem:[%s1 + $0x388] sm:$0xff]
  %v139 = vld [vmem:[%s1 + $0x390] sm:$0xff]
  %v140 = vld [vmem:[%s1 + $0x398] sm:$0xff]
  %v141 = vld [vmem:[%s1 + $0x3a0] sm:$0xff]
  %v142 = vld [vmem:[%s1 + $0x3a8] sm:$0xff]
  %v143 = vld [vmem:[%s1 + $0x3b0] sm:$0xff]
  %v144 = vld [vmem:[%s1 + $0x3b8] sm:$0xff]
  %v145 = vld [vmem:[%s1 + $0x3c0] sm:$0xff]
  %v146 = vld [vmem:[%s1 + $0x3c8] sm:$0xff]
  %v147 = vld [vmem:[%s1 + $0x3d0] sm:$0xff]
  %v148 = vld [vmem:[%s1 + $0x3d8] sm:$0xff]
  %v149 = vld [vmem:[%s1 + $0x3e0] sm:$0xff]
  %v150 = vld [vmem:[%s1 + $0x3e8] sm:$0xff]
  %v151 = vld [vmem:[%s1 + $0x3f0] sm:$0xff]
  %v152 = vld [vmem:[%s1 + $0x3f8] sm:$0xff]
  %v153 = vld [vmem:[%s2] sm:$0xf]
  %v155 = vlaneseq
  %v156 = vshrl.u32 %v155, 7
  %v157 = vsub.s32 0, %v156
  %v158 = vrot.slane %v153, %v157
  %v159 = vlaneseq
  %v160 = vshrl.u32 %v159, 7
  %v161 = vsub.s32 1, %v160
  %v162 = vrot.slane %v153, %v161
  %v163 = vlaneseq
  %v164 = vshrl.u32 %v163, 7
  %v165 = vsub.s32 2, %v164
  %v166 = vrot.slane %v153, %v165
  %v167 = vlaneseq
  %v168 = vshrl.u32 %v167, 7
  %v169 = vsub.s32 3, %v168
  %v170 = vrot.slane %v153, %v169
  %v179 = vunpack.c.l.b16 %v21
  %v180 = vunpack.c.h.b16 %v21
  %v181 = vunpack.c.l.b16 %v22
  %v182 = vunpack.c.h.b16 %v22
  %v183 = vunpack.c.l.b16 %v23
  %v184 = vunpack.c.h.b16 %v23
  %v185 = vunpack.c.l.b16 %v24
  %v186 = vunpack.c.h.b16 %v24
  %v187 = vpack.c.b16 %v183, %v179
  %v188 = vpack.c.b16 %v184, %v180
  %v189 = vpack.c.b16 %v185, %v181
  %v190 = vpack.c.b16 %v186, %v182
  %v323 = vunpack.c.l.b16 %v25
  %v324 = vunpack.c.h.b16 %v25
  %v325 = vunpack.c.l.b16 %v26
  %v326 = vunpack.c.h.b16 %v26
  %v327 = vunpack.c.l.b16 %v27
  %v328 = vunpack.c.h.b16 %v27
  %v329 = vunpack.c.l.b16 %v28
  %v330 = vunpack.c.h.b16 %v28
  %v331 = vunpack.c.l.b16 %v29
  %v332 = vunpack.c.h.b16 %v29
  %v333 = vunpack.c.l.b16 %v30
  %v334 = vunpack.c.h.b16 %v30
  %v335 = vunpack.c.l.b16 %v31
  %v336 = vunpack.c.h.b16 %v31
  %v337 = vunpack.c.l.b16 %v32
  %v338 = vunpack.c.h.b16 %v32
  %v339 = vunpack.c.l.b16 %v33
  %v340 = vunpack.c.h.b16 %v33
  %v341 = vunpack.c.l.b16 %v34
  %v342 = vunpack.c.h.b16 %v34
  %v343 = vunpack.c.l.b16 %v35
  %v344 = vunpack.c.h.b16 %v35
  %v345 = vunpack.c.l.b16 %v36
  %v346 = vunpack.c.h.b16 %v36
  %v347 = vunpack.c.l.b16 %v37
  %v348 = vunpack.c.h.b16 %v37
  %v349 = vunpack.c.l.b16 %v38
  %v350 = vunpack.c.h.b16 %v38
  %v351 = vunpack.c.l.b16 %v39
  %v352 = vunpack.c.h.b16 %v39
  %v353 = vunpack.c.l.b16 %v40
  %v354 = vunpack.c.h.b16 %v40
  %v355 = vunpack.c.l.b16 %v41
  %v356 = vunpack.c.h.b16 %v41
  %v357 = vunpack.c.l.b16 %v42
  %v358 = vunpack.c.h.b16 %v42
  %v359 = vunpack.c.l.b16 %v43
  %v360 = vunpack.c.h.b16 %v43
  %v361 = vunpack.c.l.b16 %v44
  %v362 = vunpack.c.h.b16 %v44
  %v363 = vunpack.c.l.b16 %v45
  %v364 = vunpack.c.h.b16 %v45
  %v365 = vunpack.c.l.b16 %v46
  %v366 = vunpack.c.h.b16 %v46
  %v367 = vunpack.c.l.b16 %v47
  %v368 = vunpack.c.h.b16 %v47
  %v369 = vunpack.c.l.b16 %v48
  %v370 = vunpack.c.h.b16 %v48
  %v371 = vunpack.c.l.b16 %v49
  %v372 = vunpack.c.h.b16 %v49
  %v373 = vunpack.c.l.b16 %v50
  %v374 = vunpack.c.h.b16 %v50
  %v375 = vunpack.c.l.b16 %v51
  %v376 = vunpack.c.h.b16 %v51
  %v377 = vunpack.c.l.b16 %v52
  %v378 = vunpack.c.h.b16 %v52
  %v379 = vunpack.c.l.b16 %v53
  %v380 = vunpack.c.h.b16 %v53
  %v381 = vunpack.c.l.b16 %v54
  %v382 = vunpack.c.h.b16 %v54
  %v383 = vunpack.c.l.b16 %v55
  %v384 = vunpack.c.h.b16 %v55
  %v385 = vunpack.c.l.b16 %v56
  %v386 = vunpack.c.h.b16 %v56
  %v387 = vunpack.c.l.b16 %v57
  %v388 = vunpack.c.h.b16 %v57
  %v389 = vunpack.c.l.b16 %v58
  %v390 = vunpack.c.h.b16 %v58
  %v391 = vunpack.c.l.b16 %v59
  %v392 = vunpack.c.h.b16 %v59
  %v393 = vunpack.c.l.b16 %v60
  %v394 = vunpack.c.h.b16 %v60
  %v395 = vunpack.c.l.b16 %v61
  %v396 = vunpack.c.h.b16 %v61
  %v397 = vunpack.c.l.b16 %v62
  %v398 = vunpack.c.h.b16 %v62
  %v399 = vunpack.c.l.b16 %v63
  %v400 = vunpack.c.h.b16 %v63
  %v401 = vunpack.c.l.b16 %v64
  %v402 = vunpack.c.h.b16 %v64
  %v403 = vunpack.c.l.b16 %v65
  %v404 = vunpack.c.h.b16 %v65
  %v405 = vunpack.c.l.b16 %v66
  %v406 = vunpack.c.h.b16 %v66
  %v407 = vunpack.c.l.b16 %v67
  %v408 = vunpack.c.h.b16 %v67
  %v409 = vunpack.c.l.b16 %v68
  %v410 = vunpack.c.h.b16 %v68
  %v411 = vunpack.c.l.b16 %v69
  %v412 = vunpack.c.h.b16 %v69
  %v413 = vunpack.c.l.b16 %v70
  %v414 = vunpack.c.h.b16 %v70
  %v415 = vunpack.c.l.b16 %v71
  %v416 = vunpack.c.h.b16 %v71
  %v417 = vunpack.c.l.b16 %v72
  %v418 = vunpack.c.h.b16 %v72
  %v419 = vunpack.c.l.b16 %v73
  %v420 = vunpack.c.h.b16 %v73
  %v421 = vunpack.c.l.b16 %v74
  %v422 = vunpack.c.h.b16 %v74
  %v423 = vunpack.c.l.b16 %v75
  %v424 = vunpack.c.h.b16 %v75
  %v425 = vunpack.c.l.b16 %v76
  %v426 = vunpack.c.h.b16 %v76
  %v427 = vunpack.c.l.b16 %v77
  %v428 = vunpack.c.h.b16 %v77
  %v429 = vunpack.c.l.b16 %v78
  %v430 = vunpack.c.h.b16 %v78
  %v431 = vunpack.c.l.b16 %v79
  %v432 = vunpack.c.h.b16 %v79
  %v433 = vunpack.c.l.b16 %v80
  %v434 = vunpack.c.h.b16 %v80
  %v435 = vunpack.c.l.b16 %v81
  %v436 = vunpack.c.h.b16 %v81
  %v437 = vunpack.c.l.b16 %v82
  %v438 = vunpack.c.h.b16 %v82
  %v439 = vunpack.c.l.b16 %v83
  %v440 = vunpack.c.h.b16 %v83
  %v441 = vunpack.c.l.b16 %v84
  %v442 = vunpack.c.h.b16 %v84
  %v443 = vunpack.c.l.b16 %v85
  %v444 = vunpack.c.h.b16 %v85
  %v445 = vunpack.c.l.b16 %v86
  %v446 = vunpack.c.h.b16 %v86
  %v447 = vunpack.c.l.b16 %v87
  %v448 = vunpack.c.h.b16 %v87
  %v449 = vunpack.c.l.b16 %v88
  %v450 = vunpack.c.h.b16 %v88
  %v451 = vunpack.c.l.b16 %v89
  %v452 = vunpack.c.h.b16 %v89
  %v453 = vunpack.c.l.b16 %v90
  %v454 = vunpack.c.h.b16 %v90
  %v455 = vunpack.c.l.b16 %v91
  %v456 = vunpack.c.h.b16 %v91
  %v457 = vunpack.c.l.b16 %v92
  %v458 = vunpack.c.h.b16 %v92
  %v459 = vunpack.c.l.b16 %v93
  %v460 = vunpack.c.h.b16 %v93
  %v461 = vunpack.c.l.b16 %v94
  %v462 = vunpack.c.h.b16 %v94
  %v463 = vunpack.c.l.b16 %v95
  %v464 = vunpack.c.h.b16 %v95
  %v465 = vunpack.c.l.b16 %v96
  %v466 = vunpack.c.h.b16 %v96
  %v467 = vunpack.c.l.b16 %v97
  %v468 = vunpack.c.h.b16 %v97
  %v469 = vunpack.c.l.b16 %v98
  %v470 = vunpack.c.h.b16 %v98
  %v471 = vunpack.c.l.b16 %v99
  %v472 = vunpack.c.h.b16 %v99
  %v473 = vunpack.c.l.b16 %v100
  %v474 = vunpack.c.h.b16 %v100
  %v475 = vunpack.c.l.b16 %v101
  %v476 = vunpack.c.h.b16 %v101
  %v477 = vunpack.c.l.b16 %v102
  %v478 = vunpack.c.h.b16 %v102
  %v479 = vunpack.c.l.b16 %v103
  %v480 = vunpack.c.h.b16 %v103
  %v481 = vunpack.c.l.b16 %v104
  %v482 = vunpack.c.h.b16 %v104
  %v483 = vunpack.c.l.b16 %v105
  %v484 = vunpack.c.h.b16 %v105
  %v485 = vunpack.c.l.b16 %v106
  %v486 = vunpack.c.h.b16 %v106
  %v487 = vunpack.c.l.b16 %v107
  %v488 = vunpack.c.h.b16 %v107
  %v489 = vunpack.c.l.b16 %v108
  %v490 = vunpack.c.h.b16 %v108
  %v491 = vunpack.c.l.b16 %v109
  %v492 = vunpack.c.h.b16 %v109
  %v493 = vunpack.c.l.b16 %v110
  %v494 = vunpack.c.h.b16 %v110
  %v495 = vunpack.c.l.b16 %v111
  %v496 = vunpack.c.h.b16 %v111
  %v497 = vunpack.c.l.b16 %v112
  %v498 = vunpack.c.h.b16 %v112
  %v499 = vunpack.c.l.b16 %v113
  %v500 = vunpack.c.h.b16 %v113
  %v501 = vunpack.c.l.b16 %v114
  %v502 = vunpack.c.h.b16 %v114
  %v503 = vunpack.c.l.b16 %v115
  %v504 = vunpack.c.h.b16 %v115
  %v505 = vunpack.c.l.b16 %v116
  %v506 = vunpack.c.h.b16 %v116
  %v507 = vunpack.c.l.b16 %v117
  %v508 = vunpack.c.h.b16 %v117
  %v509 = vunpack.c.l.b16 %v118
  %v510 = vunpack.c.h.b16 %v118
  %v511 = vunpack.c.l.b16 %v119
  %v512 = vunpack.c.h.b16 %v119
  %v513 = vunpack.c.l.b16 %v120
  %v514 = vunpack.c.h.b16 %v120
  %v515 = vunpack.c.l.b16 %v121
  %v516 = vunpack.c.h.b16 %v121
  %v517 = vunpack.c.l.b16 %v122
  %v518 = vunpack.c.h.b16 %v122
  %v519 = vunpack.c.l.b16 %v123
  %v520 = vunpack.c.h.b16 %v123
  %v521 = vunpack.c.l.b16 %v124
  %v522 = vunpack.c.h.b16 %v124
  %v523 = vunpack.c.l.b16 %v125
  %v524 = vunpack.c.h.b16 %v125
  %v525 = vunpack.c.l.b16 %v126
  %v526 = vunpack.c.h.b16 %v126
  %v527 = vunpack.c.l.b16 %v127
  %v528 = vunpack.c.h.b16 %v127
  %v529 = vunpack.c.l.b16 %v128
  %v530 = vunpack.c.h.b16 %v128
  %v531 = vunpack.c.l.b16 %v129
  %v532 = vunpack.c.h.b16 %v129
  %v533 = vunpack.c.l.b16 %v130
  %v534 = vunpack.c.h.b16 %v130
  %v535 = vunpack.c.l.b16 %v131
  %v536 = vunpack.c.h.b16 %v131
  %v537 = vunpack.c.l.b16 %v132
  %v538 = vunpack.c.h.b16 %v132
  %v539 = vunpack.c.l.b16 %v133
  %v540 = vunpack.c.h.b16 %v133
  %v541 = vunpack.c.l.b16 %v134
  %v542 = vunpack.c.h.b16 %v134
  %v543 = vunpack.c.l.b16 %v135
  %v544 = vunpack.c.h.b16 %v135
  %v545 = vunpack.c.l.b16 %v136
  %v546 = vunpack.c.h.b16 %v136
  %v547 = vunpack.c.l.b16 %v137
  %v548 = vunpack.c.h.b16 %v137
  %v549 = vunpack.c.l.b16 %v138
  %v550 = vunpack.c.h.b16 %v138
  %v551 = vunpack.c.l.b16 %v139
  %v552 = vunpack.c.h.b16 %v139
  %v553 = vunpack.c.l.b16 %v140
  %v554 = vunpack.c.h.b16 %v140
  %v555 = vunpack.c.l.b16 %v141
  %v556 = vunpack.c.h.b16 %v141
  %v557 = vunpack.c.l.b16 %v142
  %v558 = vunpack.c.h.b16 %v142
  %v559 = vunpack.c.l.b16 %v143
  %v560 = vunpack.c.h.b16 %v143
  %v561 = vunpack.c.l.b16 %v144
  %v562 = vunpack.c.h.b16 %v144
  %v563 = vunpack.c.l.b16 %v145
  %v564 = vunpack.c.h.b16 %v145
  %v565 = vunpack.c.l.b16 %v146
  %v566 = vunpack.c.h.b16 %v146
  %v567 = vunpack.c.l.b16 %v147
  %v568 = vunpack.c.h.b16 %v147
  %v569 = vunpack.c.l.b16 %v148
  %v570 = vunpack.c.h.b16 %v148
  %v571 = vunpack.c.l.b16 %v149
  %v572 = vunpack.c.h.b16 %v149
  %v573 = vunpack.c.l.b16 %v150
  %v574 = vunpack.c.h.b16 %v150
  %v575 = vunpack.c.l.b16 %v151
  %v576 = vunpack.c.h.b16 %v151
  %v577 = vunpack.c.l.b16 %v152
  %v578 = vunpack.c.h.b16 %v152
  %v579 = vpack.c.b16 %v327, %v323
  %v580 = vpack.c.b16 %v328, %v324
  %v581 = vpack.c.b16 %v329, %v325
  %v582 = vpack.c.b16 %v330, %v326
  %v583 = vpack.c.b16 %v335, %v331
  %v584 = vpack.c.b16 %v336, %v332
  %v585 = vpack.c.b16 %v337, %v333
  %v586 = vpack.c.b16 %v338, %v334
  %v587 = vpack.c.b16 %v343, %v339
  %v588 = vpack.c.b16 %v344, %v340
  %v589 = vpack.c.b16 %v345, %v341
  %v590 = vpack.c.b16 %v346, %v342
  %v591 = vpack.c.b16 %v351, %v347
  %v592 = vpack.c.b16 %v352, %v348
  %v593 = vpack.c.b16 %v353, %v349
  %v594 = vpack.c.b16 %v354, %v350
  %v595 = vpack.c.b16 %v359, %v355
  %v596 = vpack.c.b16 %v360, %v356
  %v597 = vpack.c.b16 %v361, %v357
  %v598 = vpack.c.b16 %v362, %v358
  %v599 = vpack.c.b16 %v367, %v363
  %v600 = vpack.c.b16 %v368, %v364
  %v601 = vpack.c.b16 %v369, %v365
  %v602 = vpack.c.b16 %v370, %v366
  %v603 = vpack.c.b16 %v375, %v371
  %v604 = vpack.c.b16 %v376, %v372
  %v605 = vpack.c.b16 %v377, %v373
  %v606 = vpack.c.b16 %v378, %v374
  %v607 = vpack.c.b16 %v383, %v379
  %v608 = vpack.c.b16 %v384, %v380
  %v609 = vpack.c.b16 %v385, %v381
  %v610 = vpack.c.b16 %v386, %v382
  %v611 = vpack.c.b16 %v391, %v387
  %v612 = vpack.c.b16 %v392, %v388
  %v613 = vpack.c.b16 %v393, %v389
  %v614 = vpack.c.b16 %v394, %v390
  %v615 = vpack.c.b16 %v399, %v395
  %v616 = vpack.c.b16 %v400, %v396
  %v617 = vpack.c.b16 %v401, %v397
  %v618 = vpack.c.b16 %v402, %v398
  %v619 = vpack.c.b16 %v407, %v403
  %v620 = vpack.c.b16 %v408, %v404
  %v621 = vpack.c.b16 %v409, %v405
  %v622 = vpack.c.b16 %v410, %v406
  %v623 = vpack.c.b16 %v415, %v411
  %v624 = vpack.c.b16 %v416, %v412
  %v625 = vpack.c.b16 %v417, %v413
  %v626 = vpack.c.b16 %v418, %v414
  %v627 = vpack.c.b16 %v423, %v419
  %v628 = vpack.c.b16 %v424, %v420
  %v629 = vpack.c.b16 %v425, %v421
  %v630 = vpack.c.b16 %v426, %v422
  %v631 = vpack.c.b16 %v431, %v427
  %v632 = vpack.c.b16 %v432, %v428
  %v633 = vpack.c.b16 %v433, %v429
  %v634 = vpack.c.b16 %v434, %v430
  %v635 = vpack.c.b16 %v439, %v435
  %v636 = vpack.c.b16 %v440, %v436
  %v637 = vpack.c.b16 %v441, %v437
  %v638 = vpack.c.b16 %v442, %v438
  %v639 = vpack.c.b16 %v447, %v443
  %v640 = vpack.c.b16 %v448, %v444
  %v641 = vpack.c.b16 %v449, %v445
  %v642 = vpack.c.b16 %v450, %v446
  %v643 = vpack.c.b16 %v455, %v451
  %v644 = vpack.c.b16 %v456, %v452
  %v645 = vpack.c.b16 %v457, %v453
  %v646 = vpack.c.b16 %v458, %v454
  %v647 = vpack.c.b16 %v463, %v459
  %v648 = vpack.c.b16 %v464, %v460
  %v649 = vpack.c.b16 %v465, %v461
  %v650 = vpack.c.b16 %v466, %v462
  %v651 = vpack.c.b16 %v471, %v467
  %v652 = vpack.c.b16 %v472, %v468
  %v653 = vpack.c.b16 %v473, %v469
  %v654 = vpack.c.b16 %v474, %v470
  %v655 = vpack.c.b16 %v479, %v475
  %v656 = vpack.c.b16 %v480, %v476
  %v657 = vpack.c.b16 %v481, %v477
  %v658 = vpack.c.b16 %v482, %v478
  %v659 = vpack.c.b16 %v487, %v483
  %v660 = vpack.c.b16 %v488, %v484
  %v661 = vpack.c.b16 %v489, %v485
  %v662 = vpack.c.b16 %v490, %v486
  %v663 = vpack.c.b16 %v495, %v491
  %v664 = vpack.c.b16 %v496, %v492
  %v665 = vpack.c.b16 %v497, %v493
  %v666 = vpack.c.b16 %v498, %v494
  %v667 = vpack.c.b16 %v503, %v499
  %v668 = vpack.c.b16 %v504, %v500
  %v669 = vpack.c.b16 %v505, %v501
  %v670 = vpack.c.b16 %v506, %v502
  %v671 = vpack.c.b16 %v511, %v507
  %v672 = vpack.c.b16 %v512, %v508
  %v673 = vpack.c.b16 %v513, %v509
  %v674 = vpack.c.b16 %v514, %v510
  %v675 = vpack.c.b16 %v519, %v515
  %v676 = vpack.c.b16 %v520, %v516
  %v677 = vpack.c.b16 %v521, %v517
  %v678 = vpack.c.b16 %v522, %v518
  %v679 = vpack.c.b16 %v527, %v523
  %v680 = vpack.c.b16 %v528, %v524
  %v681 = vpack.c.b16 %v529, %v525
  %v682 = vpack.c.b16 %v530, %v526
  %v683 = vpack.c.b16 %v535, %v531
  %v684 = vpack.c.b16 %v536, %v532
  %v685 = vpack.c.b16 %v537, %v533
  %v686 = vpack.c.b16 %v538, %v534
  %v687 = vpack.c.b16 %v543, %v539
  %v688 = vpack.c.b16 %v544, %v540
  %v689 = vpack.c.b16 %v545, %v541
  %v690 = vpack.c.b16 %v546, %v542
  %v691 = vpack.c.b16 %v551, %v547
  %v692 = vpack.c.b16 %v552, %v548
  %v693 = vpack.c.b16 %v553, %v549
  %v694 = vpack.c.b16 %v554, %v550
  %v695 = vpack.c.b16 %v559, %v555
  %v696 = vpack.c.b16 %v560, %v556
  %v697 = vpack.c.b16 %v561, %v557
  %v698 = vpack.c.b16 %v562, %v558
  %v699 = vpack.c.b16 %v567, %v563
  %v700 = vpack.c.b16 %v568, %v564
  %v701 = vpack.c.b16 %v569, %v565
  %v702 = vpack.c.b16 %v570, %v566
  %v703 = vpack.c.b16 %v575, %v571
  %v704 = vpack.c.b16 %v576, %v572
  %v705 = vpack.c.b16 %v577, %v573
  %v706 = vpack.c.b16 %v578, %v574
  %835 = vmatprep.subr.bf16.mxu0 %v580
  %836 = vmatpush1.bf16.msra.mxu0 %v579
  %837 = vmatprep.subr.bf16.mxu0 %v584
  %838 = vmatpush1.bf16.msra.mxu0 %v583
  %839 = vmatprep.subr.bf16.mxu0 %v588
  %840 = vmatpush1.bf16.msra.mxu0 %v587
  %841 = vmatprep.subr.bf16.mxu0 %v592
  %842 = vmatpush1.bf16.msra.mxu0 %v591
  %843 = vmatprep.subr.bf16.mxu0 %v596
  %844 = vmatpush1.bf16.msra.mxu0 %v595
  %845 = vmatprep.subr.bf16.mxu0 %v600
  %846 = vmatpush1.bf16.msra.mxu0 %v599
  %847 = vmatprep.subr.bf16.mxu0 %v604
  %848 = vmatpush1.bf16.msra.mxu0 %v603
  %849 = vmatprep.subr.bf16.mxu0 %v608
  %850 = vmatpush1.bf16.msra.mxu0 %v607
  %851 = vmatprep.subr.bf16.mxu0 %v612
  %852 = vmatpush1.bf16.msra.mxu0 %v611
  %853 = vmatprep.subr.bf16.mxu0 %v616
  %854 = vmatpush1.bf16.msra.mxu0 %v615
  %855 = vmatprep.subr.bf16.mxu0 %v620
  %856 = vmatpush1.bf16.msra.mxu0 %v619
  %857 = vmatprep.subr.bf16.mxu0 %v624
  %858 = vmatpush1.bf16.msra.mxu0 %v623
  %859 = vmatprep.subr.bf16.mxu0 %v628
  %860 = vmatpush1.bf16.msra.mxu0 %v627
  %861 = vmatprep.subr.bf16.mxu0 %v632
  %862 = vmatpush1.bf16.msra.mxu0 %v631
  %863 = vmatprep.subr.bf16.mxu0 %v636
  %864 = vmatpush1.bf16.msra.mxu0 %v635
  %865 = vmatprep.subr.bf16.mxu0 %v640
  %866 = vmatpush1.bf16.msra.mxu0 %v639
  %867 = vmatprep.mubr.bf16.mxu0 %v188
  %868 = vmatmul.mubr.bf16.gmra.mrb[0].mxu0 %v187
  %v869 = vpop.f32.mrb[0].mxu0
  %v870 = vadd.f32 %v158, %v869
  %v871 = vpop.f32.mrb[0].mxu0
  %v872 = vadd.f32 %v162, %v871
  %v873 = vpop.f32.mrb[0].mxu0
  %v874 = vadd.f32 %v158, %v873
  %v875 = vpop.f32.mrb[0].mxu0
  %v876 = vadd.f32 %v162, %v875
  %877 = vdwg.mxu0
  %878 = vmatprep.subr.bf16.mxu0 %v644
  %879 = vmatpush1.bf16.msra.mxu0 %v643
  %880 = vmatprep.subr.bf16.mxu0 %v648
  %881 = vmatpush1.bf16.msra.mxu0 %v647
  %882 = vmatprep.subr.bf16.mxu0 %v652
  %883 = vmatpush1.bf16.msra.mxu0 %v651
  %884 = vmatprep.subr.bf16.mxu0 %v656
  %885 = vmatpush1.bf16.msra.mxu0 %v655
  %886 = vmatprep.subr.bf16.mxu0 %v660
  %887 = vmatpush1.bf16.msra.mxu0 %v659
  %888 = vmatprep.subr.bf16.mxu0 %v664
  %889 = vmatpush1.bf16.msra.mxu0 %v663
  %890 = vmatprep.subr.bf16.mxu0 %v668
  %891 = vmatpush1.bf16.msra.mxu0 %v667
  %892 = vmatprep.subr.bf16.mxu0 %v672
  %893 = vmatpush1.bf16.msra.mxu0 %v671
  %894 = vmatprep.subr.bf16.mxu0 %v676
  %895 = vmatpush1.bf16.msra.mxu0 %v675
  %896 = vmatprep.subr.bf16.mxu0 %v680
  %897 = vmatpush1.bf16.msra.mxu0 %v679
  %898 = vmatprep.subr.bf16.mxu0 %v684
  %899 = vmatpush1.bf16.msra.mxu0 %v683
  %900 = vmatprep.subr.bf16.mxu0 %v688
  %901 = vmatpush1.bf16.msra.mxu0 %v687
  %902 = vmatprep.subr.bf16.mxu0 %v692
  %903 = vmatpush1.bf16.msra.mxu0 %v691
  %904 = vmatprep.subr.bf16.mxu0 %v696
  %905 = vmatpush1.bf16.msra.mxu0 %v695
  %906 = vmatprep.subr.bf16.mxu0 %v700
  %907 = vmatpush1.bf16.msra.mxu0 %v699
  %908 = vmatprep.subr.bf16.mxu0 %v704
  %909 = vmatpush1.bf16.msra.mxu0 %v703
  %910 = vmatprep.mubr.bf16.mxu0 %v190
  %911 = vmatmul.mubr.bf16.gmra.mrb[0].mxu0 %v189
  %v912 = vpop.f32.mrb[0].mxu0
  %v913 = vadd.f32 %v870, %v912
  %v914 = vpop.f32.mrb[0].mxu0
  %v915 = vadd.f32 %v872, %v914
  %v916 = vpop.f32.mrb[0].mxu0
  %v917 = vadd.f32 %v874, %v916
  %v918 = vpop.f32.mrb[0].mxu0
  %v919 = vadd.f32 %v876, %v918
  %920 = vdwg.mxu0
  %921 = vmatprep.subr.bf16.mxu0 %v582
  %922 = vmatpush1.bf16.msra.mxu0 %v581
  %923 = vmatprep.subr.bf16.mxu0 %v586
  %924 = vmatpush1.bf16.msra.mxu0 %v585
  %925 = vmatprep.subr.bf16.mxu0 %v590
  %926 = vmatpush1.bf16.msra.mxu0 %v589
  %927 = vmatprep.subr.bf16.mxu0 %v594
  %928 = vmatpush1.bf16.msra.mxu0 %v593
  %929 = vmatprep.subr.bf16.mxu0 %v598
  %930 = vmatpush1.bf16.msra.mxu0 %v597
  %931 = vmatprep.subr.bf16.mxu0 %v602
  %932 = vmatpush1.bf16.msra.mxu0 %v601
  %933 = vmatprep.subr.bf16.mxu0 %v606
  %934 = vmatpush1.bf16.msra.mxu0 %v605
  %935 = vmatprep.subr.bf16.mxu0 %v610
  %936 = vmatpush1.bf16.msra.mxu0 %v609
  %937 = vmatprep.subr.bf16.mxu0 %v614
  %938 = vmatpush1.bf16.msra.mxu0 %v613
  %939 = vmatprep.subr.bf16.mxu0 %v618
  %940 = vmatpush1.bf16.msra.mxu0 %v617
  %941 = vmatprep.subr.bf16.mxu0 %v622
  %942 = vmatpush1.bf16.msra.mxu0 %v621
  %943 = vmatprep.subr.bf16.mxu0 %v626
  %944 = vmatpush1.bf16.msra.mxu0 %v625
  %945 = vmatprep.subr.bf16.mxu0 %v630
  %946 = vmatpush1.bf16.msra.mxu0 %v629
  %947 = vmatprep.subr.bf16.mxu0 %v634
  %948 = vmatpush1.bf16.msra.mxu0 %v633
  %949 = vmatprep.subr.bf16.mxu0 %v638
  %950 = vmatpush1.bf16.msra.mxu0 %v637
  %951 = vmatprep.subr.bf16.mxu0 %v642
  %952 = vmatpush1.bf16.msra.mxu0 %v641
  %953 = vmatprep.mubr.bf16.mxu0 %v188
  %954 = vmatmul.mubr.bf16.gmra.mrb[0].mxu0 %v187
  %v955 = vpop.f32.mrb[0].mxu0
  %v956 = vadd.f32 %v166, %v955
  %v957 = vpop.f32.mrb[0].mxu0
  %v958 = vadd.f32 %v170, %v957
  %v959 = vpop.f32.mrb[0].mxu0
  %v960 = vadd.f32 %v166, %v959
  %v961 = vpop.f32.mrb[0].mxu0
  %v962 = vadd.f32 %v170, %v961
  %963 = vdwg.mxu0
  %964 = vmatprep.subr.bf16.mxu0 %v646
  %965 = vmatpush1.bf16.msra.mxu0 %v645
  %966 = vmatprep.subr.bf16.mxu0 %v650
  %967 = vmatpush1.bf16.msra.mxu0 %v649
  %968 = vmatprep.subr.bf16.mxu0 %v654
  %969 = vmatpush1.bf16.msra.mxu0 %v653
  %970 = vmatprep.subr.bf16.mxu0 %v658
  %971 = vmatpush1.bf16.msra.mxu0 %v657
  %972 = vmatprep.subr.bf16.mxu0 %v662
  %973 = vmatpush1.bf16.msra.mxu0 %v661
  %974 = vmatprep.subr.bf16.mxu0 %v666
  %975 = vmatpush1.bf16.msra.mxu0 %v665
  %976 = vmatprep.subr.bf16.mxu0 %v670
  %977 = vmatpush1.bf16.msra.mxu0 %v669
  %978 = vmatprep.subr.bf16.mxu0 %v674
  %979 = vmatpush1.bf16.msra.mxu0 %v673
  %980 = vmatprep.subr.bf16.mxu0 %v678
  %981 = vmatpush1.bf16.msra.mxu0 %v677
  %982 = vmatprep.subr.bf16.mxu0 %v682
  %983 = vmatpush1.bf16.msra.mxu0 %v681
  %984 = vmatprep.subr.bf16.mxu0 %v686
  %985 = vmatpush1.bf16.msra.mxu0 %v685
  %986 = vmatprep.subr.bf16.mxu0 %v690
  %987 = vmatpush1.bf16.msra.mxu0 %v689
  %988 = vmatprep.subr.bf16.mxu0 %v694
  %989 = vmatpush1.bf16.msra.mxu0 %v693
  %990 = vmatprep.subr.bf16.mxu0 %v698
  %991 = vmatpush1.bf16.msra.mxu0 %v697
  %992 = vmatprep.subr.bf16.mxu0 %v702
  %993 = vmatpush1.bf16.msra.mxu0 %v701
  %994 = vmatprep.subr.bf16.mxu0 %v706
  %995 = vmatpush1.bf16.msra.mxu0 %v705
  %996 = vmatprep.mubr.bf16.mxu0 %v190
  %997 = vmatmul.mubr.bf16.gmra.mrb[0].mxu0 %v189
  %v998 = vpop.f32.mrb[0].mxu0
  %v999 = vadd.f32 %v956, %v998
  %v1000 = vpop.f32.mrb[0].mxu0
  %v1001 = vadd.f32 %v958, %v1000
  %v1002 = vpop.f32.mrb[0].mxu0
  %v1003 = vadd.f32 %v960, %v1002
  %v1004 = vpop.f32.mrb[0].mxu0
  %v1005 = vadd.f32 %v962, %v1004
  %1006 = vdwg.mxu0
  %v1007 = vmax.f32 %v913, 0.0
  %v1008 = vmax.f32 %v915, 0.0
  %v1009 = vmax.f32 %v999, 0.0
  %v1010 = vmax.f32 %v1001, 0.0
  %v1011 = vmax.f32 %v917, 0.0
  %v1012 = vmax.f32 %v919, 0.0
  %v1013 = vmax.f32 %v1003, 0.0
  %v1014 = vmax.f32 %v1005, 0.0
  %v1015 = vpack.c.bf16 %v1011, %v1007
  %v1016 = vpack.c.bf16 %v1012, %v1008
  %v1017 = vpack.c.bf16 %v1013, %v1009
  %v1018 = vpack.c.bf16 %v1014, %v1010
  %v1019 = vld [vmem:[%s3] sm:$0xf]
  %v1020 = vld [vmem:[%s3 + $0x4] sm:$0xf]
  %v1021 = vld [vmem:[%s3 + $0x8] sm:$0xf]
  %v1022 = vld [vmem:[%s3 + $0xc] sm:$0xf]
  %v1023 = vld [vmem:[%s3 + $0x10] sm:$0xf]
  %v1024 = vld [vmem:[%s3 + $0x14] sm:$0xf]
  %v1025 = vld [vmem:[%s3 + $0x18] sm:$0xf]
  %v1026 = vld [vmem:[%s3 + $0x1c] sm:$0xf]
  %v1027 = vld [vmem:[%s3 + $0x20] sm:$0xf]
  %v1028 = vld [vmem:[%s3 + $0x24] sm:$0xf]
  %v1029 = vld [vmem:[%s3 + $0x28] sm:$0xf]
  %v1030 = vld [vmem:[%s3 + $0x2c] sm:$0xf]
  %v1031 = vld [vmem:[%s3 + $0x30] sm:$0xf]
  %v1032 = vld [vmem:[%s3 + $0x34] sm:$0xf]
  %v1033 = vld [vmem:[%s3 + $0x38] sm:$0xf]
  %v1034 = vld [vmem:[%s3 + $0x3c] sm:$0xf]
  %v1035 = vld [vmem:[%s3 + $0x40] sm:$0xf]
  %v1036 = vld [vmem:[%s3 + $0x44] sm:$0xf]
  %v1037 = vld [vmem:[%s3 + $0x48] sm:$0xf]
  %v1038 = vld [vmem:[%s3 + $0x4c] sm:$0xf]
  %v1039 = vld [vmem:[%s3 + $0x50] sm:$0xf]
  %v1040 = vld [vmem:[%s3 + $0x54] sm:$0xf]
  %v1041 = vld [vmem:[%s3 + $0x58] sm:$0xf]
  %v1042 = vld [vmem:[%s3 + $0x5c] sm:$0xf]
  %v1043 = vld [vmem:[%s3 + $0x60] sm:$0xf]
  %v1044 = vld [vmem:[%s3 + $0x64] sm:$0xf]
  %v1045 = vld [vmem:[%s3 + $0x68] sm:$0xf]
  %v1046 = vld [vmem:[%s3 + $0x6c] sm:$0xf]
  %v1047 = vld [vmem:[%s3 + $0x70] sm:$0xf]
  %v1048 = vld [vmem:[%s3 + $0x74] sm:$0xf]
  %v1049 = vld [vmem:[%s3 + $0x78] sm:$0xf]
  %v1050 = vld [vmem:[%s3 + $0x7c] sm:$0xf]
  %v1051 = vld [vmem:[%s3 + $0x80] sm:$0xf]
  %v1052 = vld [vmem:[%s3 + $0x84] sm:$0xf]
  %v1053 = vld [vmem:[%s3 + $0x88] sm:$0xf]
  %v1054 = vld [vmem:[%s3 + $0x8c] sm:$0xf]
  %v1055 = vld [vmem:[%s3 + $0x90] sm:$0xf]
  %v1056 = vld [vmem:[%s3 + $0x94] sm:$0xf]
  %v1057 = vld [vmem:[%s3 + $0x98] sm:$0xf]
  %v1058 = vld [vmem:[%s3 + $0x9c] sm:$0xf]
  %v1059 = vld [vmem:[%s3 + $0xa0] sm:$0xf]
  %v1060 = vld [vmem:[%s3 + $0xa4] sm:$0xf]
  %v1061 = vld [vmem:[%s3 + $0xa8] sm:$0xf]
  %v1062 = vld [vmem:[%s3 + $0xac] sm:$0xf]
  %v1063 = vld [vmem:[%s3 + $0xb0] sm:$0xf]
  %v1064 = vld [vmem:[%s3 + $0xb4] sm:$0xf]
  %v1065 = vld [vmem:[%s3 + $0xb8] sm:$0xf]
  %v1066 = vld [vmem:[%s3 + $0xbc] sm:$0xf]
  %v1067 = vld [vmem:[%s3 + $0xc0] sm:$0xf]
  %v1068 = vld [vmem:[%s3 + $0xc4] sm:$0xf]
  %v1069 = vld [vmem:[%s3 + $0xc8] sm:$0xf]
  %v1070 = vld [vmem:[%s3 + $0xcc] sm:$0xf]
  %v1071 = vld [vmem:[%s3 + $0xd0] sm:$0xf]
  %v1072 = vld [vmem:[%s3 + $0xd4] sm:$0xf]
  %v1073 = vld [vmem:[%s3 + $0xd8] sm:$0xf]
  %v1074 = vld [vmem:[%s3 + $0xdc] sm:$0xf]
  %v1075 = vld [vmem:[%s3 + $0xe0] sm:$0xf]
  %v1076 = vld [vmem:[%s3 + $0xe4] sm:$0xf]
  %v1077 = vld [vmem:[%s3 + $0xe8] sm:$0xf]
  %v1078 = vld [vmem:[%s3 + $0xec] sm:$0xf]
  %v1079 = vld [vmem:[%s3 + $0xf0] sm:$0xf]
  %v1080 = vld [vmem:[%s3 + $0xf4] sm:$0xf]
  %v1081 = vld [vmem:[%s3 + $0xf8] sm:$0xf]
  %v1082 = vld [vmem:[%s3 + $0xfc] sm:$0xf]
  %v1083 = vld [vmem:[%s4] sm:$0x1]
  %v1085 = vlaneseq
  %v1086 = vshrl.u32 %v1085, 7
  %v1087 = vsub.s32 0, %v1086
  %v1088 = vrot.slane %v1083, %v1087
  %v1154 = vunpack.c.l.b16 %v1019
  %v1155 = vunpack.c.l.b16 %v1020
  %v1156 = vunpack.c.l.b16 %v1021
  %v1157 = vunpack.c.l.b16 %v1022
  %v1158 = vunpack.c.l.b16 %v1023
  %v1159 = vunpack.c.l.b16 %v1024
  %v1160 = vunpack.c.l.b16 %v1025
  %v1161 = vunpack.c.l.b16 %v1026
  %v1162 = vunpack.c.l.b16 %v1027
  %v1163 = vunpack.c.l.b16 %v1028
  %v1164 = vunpack.c.l.b16 %v1029
  %v1165 = vunpack.c.l.b16 %v1030
  %v1166 = vunpack.c.l.b16 %v1031
  %v1167 = vunpack.c.l.b16 %v1032
  %v1168 = vunpack.c.l.b16 %v1033
  %v1169 = vunpack.c.l.b16 %v1034
  %v1170 = vunpack.c.l.b16 %v1035
  %v1171 = vunpack.c.l.b16 %v1036
  %v1172 = vunpack.c.l.b16 %v1037
  %v1173 = vunpack.c.l.b16 %v1038
  %v1174 = vunpack.c.l.b16 %v1039
  %v1175 = vunpack.c.l.b16 %v1040
  %v1176 = vunpack.c.l.b16 %v1041
  %v1177 = vunpack.c.l.b16 %v1042
  %v1178 = vunpack.c.l.b16 %v1043
  %v1179 = vunpack.c.l.b16 %v1044
  %v1180 = vunpack.c.l.b16 %v1045
  %v1181 = vunpack.c.l.b16 %v1046
  %v1182 = vunpack.c.l.b16 %v1047
  %v1183 = vunpack.c.l.b16 %v1048
  %v1184 = vunpack.c.l.b16 %v1049
  %v1185 = vunpack.c.l.b16 %v1050
  %v1186 = vunpack.c.l.b16 %v1051
  %v1187 = vunpack.c.l.b16 %v1052
  %v1188 = vunpack.c.l.b16 %v1053
  %v1189 = vunpack.c.l.b16 %v1054
  %v1190 = vunpack.c.l.b16 %v1055
  %v1191 = vunpack.c.l.b16 %v1056
  %v1192 = vunpack.c.l.b16 %v1057
  %v1193 = vunpack.c.l.b16 %v1058
  %v1194 = vunpack.c.l.b16 %v1059
  %v1195 = vunpack.c.l.b16 %v1060
  %v1196 = vunpack.c.l.b16 %v1061
  %v1197 = vunpack.c.l.b16 %v1062
  %v1198 = vunpack.c.l.b16 %v1063
  %v1199 = vunpack.c.l.b16 %v1064
  %v1200 = vunpack.c.l.b16 %v1065
  %v1201 = vunpack.c.l.b16 %v1066
  %v1202 = vunpack.c.l.b16 %v1067
  %v1203 = vunpack.c.l.b16 %v1068
  %v1204 = vunpack.c.l.b16 %v1069
  %v1205 = vunpack.c.l.b16 %v1070
  %v1206 = vunpack.c.l.b16 %v1071
  %v1207 = vunpack.c.l.b16 %v1072
  %v1208 = vunpack.c.l.b16 %v1073
  %v1209 = vunpack.c.l.b16 %v1074
  %v1210 = vunpack.c.l.b16 %v1075
  %v1211 = vunpack.c.l.b16 %v1076
  %v1212 = vunpack.c.l.b16 %v1077
  %v1213 = vunpack.c.l.b16 %v1078
  %v1214 = vunpack.c.l.b16 %v1079
  %v1215 = vunpack.c.l.b16 %v1080
  %v1216 = vunpack.c.l.b16 %v1081
  %v1217 = vunpack.c.l.b16 %v1082
  %v1218 = vpack.c.b16 %v1155, %v1154
  %v1219 = vpack.c.b16 %v1157, %v1156
  %v1220 = vpack.c.b16 %v1159, %v1158
  %v1221 = vpack.c.b16 %v1161, %v1160
  %v1222 = vpack.c.b16 %v1163, %v1162
  %v1223 = vpack.c.b16 %v1165, %v1164
  %v1224 = vpack.c.b16 %v1167, %v1166
  %v1225 = vpack.c.b16 %v1169, %v1168
  %v1226 = vpack.c.b16 %v1171, %v1170
  %v1227 = vpack.c.b16 %v1173, %v1172
  %v1228 = vpack.c.b16 %v1175, %v1174
  %v1229 = vpack.c.b16 %v1177, %v1176
  %v1230 = vpack.c.b16 %v1179, %v1178
  %v1231 = vpack.c.b16 %v1181, %v1180
  %v1232 = vpack.c.b16 %v1183, %v1182
  %v1233 = vpack.c.b16 %v1185, %v1184
  %v1234 = vpack.c.b16 %v1187, %v1186
  %v1235 = vpack.c.b16 %v1189, %v1188
  %v1236 = vpack.c.b16 %v1191, %v1190
  %v1237 = vpack.c.b16 %v1193, %v1192
  %v1238 = vpack.c.b16 %v1195, %v1194
  %v1239 = vpack.c.b16 %v1197, %v1196
  %v1240 = vpack.c.b16 %v1199, %v1198
  %v1241 = vpack.c.b16 %v1201, %v1200
  %v1242 = vpack.c.b16 %v1203, %v1202
  %v1243 = vpack.c.b16 %v1205, %v1204
  %v1244 = vpack.c.b16 %v1207, %v1206
  %v1245 = vpack.c.b16 %v1209, %v1208
  %v1246 = vpack.c.b16 %v1211, %v1210
  %v1247 = vpack.c.b16 %v1213, %v1212
  %v1248 = vpack.c.b16 %v1215, %v1214
  %v1249 = vpack.c.b16 %v1217, %v1216
  %1282 = vmatprep.subr.bf16.mxu0 0
  %1283 = vmatpush1.bf16.msra.mxu0 %v1218
  %1284 = vmatprep.subr.bf16.mxu0 0
  %1285 = vmatpush1.bf16.msra.mxu0 %v1219
  %1286 = vmatprep.subr.bf16.mxu0 0
  %1287 = vmatpush1.bf16.msra.mxu0 %v1220
  %1288 = vmatprep.subr.bf16.mxu0 0
  %1289 = vmatpush1.bf16.msra.mxu0 %v1221
  %1290 = vmatprep.subr.bf16.mxu0 0
  %1291 = vmatpush1.bf16.msra.mxu0 %v1222
  %1292 = vmatprep.subr.bf16.mxu0 0
  %1293 = vmatpush1.bf16.msra.mxu0 %v1223
  %1294 = vmatprep.subr.bf16.mxu0 0
  %1295 = vmatpush1.bf16.msra.mxu0 %v1224
  %1296 = vmatprep.subr.bf16.mxu0 0
  %1297 = vmatpush1.bf16.msra.mxu0 %v1225
  %1298 = vmatprep.subr.bf16.mxu0 0
  %1299 = vmatpush1.bf16.msra.mxu0 %v1226
  %1300 = vmatprep.subr.bf16.mxu0 0
  %1301 = vmatpush1.bf16.msra.mxu0 %v1227
  %1302 = vmatprep.subr.bf16.mxu0 0
  %1303 = vmatpush1.bf16.msra.mxu0 %v1228
  %1304 = vmatprep.subr.bf16.mxu0 0
  %1305 = vmatpush1.bf16.msra.mxu0 %v1229
  %1306 = vmatprep.subr.bf16.mxu0 0
  %1307 = vmatpush1.bf16.msra.mxu0 %v1230
  %1308 = vmatprep.subr.bf16.mxu0 0
  %1309 = vmatpush1.bf16.msra.mxu0 %v1231
  %1310 = vmatprep.subr.bf16.mxu0 0
  %1311 = vmatpush1.bf16.msra.mxu0 %v1232
  %1312 = vmatprep.subr.bf16.mxu0 0
  %1313 = vmatpush1.bf16.msra.mxu0 %v1233
  %1314 = vmatprep.mubr.bf16.mxu0 %v1016
  %1315 = vmatmul.mubr.bf16.gmra.mrb[0].mxu0 %v1015
  %v1316 = vpop.f32.mrb[0].mxu0
  %v1317 = vadd.f32 %v1088, %v1316
  %v1318 = vpop.f32.mrb[0].mxu0
  %v1319 = vpop.f32.mrb[0].mxu0
  %v1320 = vadd.f32 %v1088, %v1319
  %v1321 = vpop.f32.mrb[0].mxu0
  %1322 = vdwg.mxu0
  %1323 = vmatprep.subr.bf16.mxu0 0
  %1324 = vmatpush1.bf16.msra.mxu0 %v1234
  %1325 = vmatprep.subr.bf16.mxu0 0
  %1326 = vmatpush1.bf16.msra.mxu0 %v1235
  %1327 = vmatprep.subr.bf16.mxu0 0
  %1328 = vmatpush1.bf16.msra.mxu0 %v1236
  %1329 = vmatprep.subr.bf16.mxu0 0
  %1330 = vmatpush1.bf16.msra.mxu0 %v1237
  %1331 = vmatprep.subr.bf16.mxu0 0
  %1332 = vmatpush1.bf16.msra.mxu0 %v1238
  %1333 = vmatprep.subr.bf16.mxu0 0
  %1334 = vmatpush1.bf16.msra.mxu0 %v1239
  %1335 = vmatprep.subr.bf16.mxu0 0
  %1336 = vmatpush1.bf16.msra.mxu0 %v1240
  %1337 = vmatprep.subr.bf16.mxu0 0
  %1338 = vmatpush1.bf16.msra.mxu0 %v1241
  %1339 = vmatprep.subr.bf16.mxu0 0
  %1340 = vmatpush1.bf16.msra.mxu0 %v1242
  %1341 = vmatprep.subr.bf16.mxu0 0
  %1342 = vmatpush1.bf16.msra.mxu0 %v1243
  %1343 = vmatprep.subr.bf16.mxu0 0
  %1344 = vmatpush1.bf16.msra.mxu0 %v1244
  %1345 = vmatprep.subr.bf16.mxu0 0
  %1346 = vmatpush1.bf16.msra.mxu0 %v1245
  %1347 = vmatprep.subr.bf16.mxu0 0
  %1348 = vmatpush1.bf16.msra.mxu0 %v1246
  %1349 = vmatprep.subr.bf16.mxu0 0
  %1350 = vmatpush1.bf16.msra.mxu0 %v1247
  %1351 = vmatprep.subr.bf16.mxu0 0
  %1352 = vmatpush1.bf16.msra.mxu0 %v1248
  %1353 = vmatprep.subr.bf16.mxu0 0
  %1354 = vmatpush1.bf16.msra.mxu0 %v1249
  %1355 = vmatprep.mubr.bf16.mxu0 %v1018
  %1356 = vmatmul.mubr.bf16.gmra.mrb[0].mxu0 %v1017
  %v1357 = vpop.f32.mrb[0].mxu0
  %v1358 = vadd.f32 %v1317, %v1357
  %v1359 = vpop.f32.mrb[0].mxu0
  %v1360 = vpop.f32.mrb[0].mxu0
  %v1361 = vadd.f32 %v1320, %v1360
  %v1362 = vpop.f32.mrb[0].mxu0
  %1363 = vdwg.mxu0
  %vm1364 = vcmask 15360
  %v1365 = vsel %vm1364, %v1358, -inf
  %1366 = vmax.xlane.f32.xlu0 %v1365
  %v1367 = vpop.xlane.xlu0 %1366
  %v1368 = vsel %vm1364, %v1361, -inf
  %1369 = vmax.xlane.f32.xlu0 %v1368
  %v1370 = vpop.xlane.xlu0 %1369
  %v1371 = vsub.f32 %v1358, %v1367
  %v1372 = vsub.f32 %v1361, %v1370
  %v1373 = vmul.f32 %v1371, 1.442695
  %v1374 = vpow.pop %v1373
  %v1375 = vmul.f32 %v1372, 1.442695
  %v1376 = vpow.pop %v1375
  %v1377 = vsel %vm1364, %v1374, 0.0
  %1378 = vadd.xlane.f32.xlu0 %v1377
  %v1379 = vpop.xlane.xlu0 %1378
  %v1380 = vsel %vm1364, %v1376, 0.0
  %1381 = vadd.xlane.f32.xlu0 %v1380
  %v1382 = vpop.xlane.xlu0 %1381
  %v1383 = vrcp.pop %v1379
  %v1384 = vmul.f32 %v1374, %v1383
  %v1385 = vrcp.pop %v1382
  %v1386 = vmul.f32 %v1376, %v1385
  %1387 = vst.msk [vmem:[%s5] sm:$0xff] %vm1364, %v1384
  %1388 = vst.msk [vmem:[%s5 + $0x8] sm:$0xff] %vm1364, %v1386
  // Predicated region
  $region22: #{net_forward.7} parent=0 // pred_check
    _
  $region23: #{net_forward.7} parent=0 // pred_check_branch
    %1390 = sbr.rel (0) target = $region25
  $region24: #{net_forward.7} parent=0 // pred_region
    _
  $region25: #{net_forward.7} parent=0 // pred_fallthru
    _
  // Predicated region
  $region26: #{net_forward.7} parent=0 // pred_check
    _
  $region27: #{net_forward.7} parent=0 // pred_check_branch
    %1392 = sbr.rel (0) target = $region29
  $region28: #{net_forward.7} parent=0 // pred_region
    _
  $region29: #{net_forward.7} parent=0 // pred_fallthru
    _

</llo_original>
